<compile_context>
chip_gen: v5e
topology: v5e:2x2
jax: 0.10.0
libtpu: 0.0.40
codegen_flags: <defaults>
</compile_context>

<pallas_src>
import jax
import jax.numpy as jnp
import numpy as np
from jax import lax
from jax.experimental import pallas as pl
from jax.experimental.pallas import tpu as pltpu

_C1 = 8      # conv1 out channels, padded 6 -> 8
_K1 = 32     # conv1 im2col K, padded 25 -> 32
_C2 = 16     # conv2 out channels (exact)
_K2 = 25 * _C1   # conv2 im2col K = 200
_NFC = 128   # padded FC width (120 / 84 / 10 -> 128), lane-dense output


# ----------------------------------------------------------------------------
# The fused kernel: one grid step == one image, everything stays in VMEM.
# ----------------------------------------------------------------------------
def _lenet_kernel(pat1_ref, w1_ref, p1m_ref, w2_ref, p2m_ref,
                  fc1w_ref, fc1b_ref, fc2w_ref, fc2b_ref, fc3w_ref, fc3b_ref,
                  out_ref, pat2_scr, feat_scr):
    f32 = jnp.float32

    # conv1 (im2col matmul) + ReLU: (784, 32) @ (32, 8) -> (784, 8)
    h1 = jnp.dot(pat1_ref[0], w1_ref[...], preferred_element_type=f32)
    h1 = jnp.maximum(h1, 0.0)

    # avg_pool 2x2 as a left matmul with a 0/1 pool matrix: (196,784)@(784,8)
    p1 = jnp.dot(p1m_ref[...], h1, preferred_element_type=f32) * 0.25

    # conv2 im2col: gather 5x5 taps of the 14x14 pooled map into VMEM scratch.
    # p1 rows are oh1*14+ow1, so each (tap, output-row) block is a contiguous
    # 10-row slice -> only static slices + stores, no reshapes.
    for oh in range(10):
        for kh in range(5):
            for kw in range(5):
                t = kh * 5 + kw
                src = (oh + kh) * 14 + kw
                pat2_scr[oh * 10:(oh + 1) * 10, t * _C1:(t + 1) * _C1] = (
                    p1[src:src + 10, :])

    # conv2 matmul + ReLU: (100, 200) @ (200, 16) -> (100, 16)
    h2 = jnp.dot(pat2_scr[...], w2_ref[...], preferred_element_type=f32)
    h2 = jnp.maximum(h2, 0.0)

    # avg_pool 2x2: (25, 100) @ (100, 16) -> (25, 16)
    p2 = jnp.dot(p2m_ref[...], h2, preferred_element_type=f32) * 0.25

    # flatten (spatial-major, channel-minor); fc1 weights are permuted to match
    for s in range(25):
        feat_scr[:, s * _C2:(s + 1) * _C2] = p2[s:s + 1, :]

    # fc1 -> fc2 -> fc3 (no activations, matching the module), padded to 128 lanes
    y = jnp.dot(feat_scr[...], fc1w_ref[...], preferred_element_type=f32) + fc1b_ref[...]
    y = jnp.dot(y, fc2w_ref[...], preferred_element_type=f32) + fc2b_ref[...]
    y = jnp.dot(y, fc3w_ref[...], preferred_element_type=f32) + fc3b_ref[...]

    out_ref[0] = y.astype(out_ref.dtype)


# ----------------------------------------------------------------------------
# Host-side (traced-once) operand preparation: padding, weight repacking,
# pooling matrices, conv1 patch extraction.
# ----------------------------------------------------------------------------
def _pool_matrix(h, w):
    """(h*w/4, h*w) 0/1 matrix selecting the 4 sources of each 2x2-avg pixel."""
    r = np.arange(h * w)
    p = np.arange((h // 2) * (w // 2))
    src_oh, src_ow = r // w, r % w
    dst_oh, dst_ow = p // (w // 2), p % (w // 2)
    m = ((src_oh[None, :] // 2 == dst_oh[:, None]) &
         (src_ow[None, :] // 2 == dst_ow[:, None])).astype(np.float32)
    return jnp.asarray(m)


def _conv1_patches(x_nchw):
    """NCHW (B,1,28,28) -> im2col patches (B, 784, 32) with K padded 25->32."""
    B = x_nchw.shape[0]
    x = x_nchw[:, 0].astype(jnp.float32)                      # (B, 28, 28)
    xp = jnp.pad(x, ((0, 0), (2, 2), (2, 2)))                 # (B, 32, 32)
    slabs = [xp[:, kh:kh + 28, kw:kw + 28]
             for kh in range(5) for kw in range(5)]
    pat = jnp.stack(slabs, axis=-1)                           # (B, 28, 28, 25)
    pat = jnp.pad(pat, ((0, 0), (0, 0), (0, 0), (0, _K1 - 25)))
    return pat.reshape(B, 784, _K1)


def _prepare_params(params):
    f32 = jnp.float32
    # conv1: (6,1,5,5) -> (kh,kw,ci,co) -> (25,6), pad K->32, Co->8
    w1m = jnp.transpose(params["conv1_w"].astype(f32), (2, 3, 1, 0)).reshape(25, 6)
    w1m = jnp.pad(w1m, ((0, _K1 - 25), (0, _C1 - 6)))

    # conv2: (16,6,5,5) -> (kh,kw,ci,co), pad ci->8 -> (200,16)
    w2m = jnp.transpose(params["conv2_w"].astype(f32), (2, 3, 1, 0))
    w2m = jnp.pad(w2m, ((0, 0), (0, 0), (0, _C1 - 6), (0, 0))).reshape(_K2, _C2)

    # fc1: permute columns from torch's (c*25+s) order to our (s*16+c) order
    fw1 = params["fc1_w"].astype(f32).reshape(120, 16, 25)        # (o, c, s)
    fw1 = jnp.transpose(fw1, (2, 1, 0)).reshape(400, 120)         # rows = s*16+c
    fc1w = jnp.pad(fw1, ((0, 0), (0, _NFC - 120)))                # (400, 128)
    fc1b = jnp.pad(params["fc1_b"].astype(f32), (0, _NFC - 120))[None, :]

    fc2w = jnp.pad(params["fc2_w"].astype(f32).T, ((0, _NFC - 120), (0, _NFC - 84)))
    fc2b = jnp.pad(params["fc2_b"].astype(f32), (0, _NFC - 84))[None, :]
    fc3w = jnp.pad(params["fc3_w"].astype(f32).T, ((0, _NFC - 84), (0, _NFC - 10)))
    fc3b = jnp.pad(params["fc3_b"].astype(f32), (0, _NFC - 10))[None, :]
    return w1m, w2m, fc1w, fc1b, fc2w, fc2b, fc3w, fc3b


# ----------------------------------------------------------------------------
# Full forward (input_shape=28, num_classes=10)
# ----------------------------------------------------------------------------
def lenet_forward(x_nchw, params):
    B = x_nchw.shape[0]
    assert x_nchw.shape[1:] == (1, 28, 28)

    pat1 = _conv1_patches(x_nchw)
    w1m, w2m, fc1w, fc1b, fc2w, fc2b, fc3w, fc3b = _prepare_params(params)
    p1m = _pool_matrix(28, 28)   # (196, 784)
    p2m = _pool_matrix(10, 10)   # (25, 100)

    def full(a):
        return pl.BlockSpec(a.shape, lambda b, _n=a.ndim: (0,) * _n)

    consts = (w1m, p1m, w2m, p2m, fc1w, fc1b, fc2w, fc2b, fc3w, fc3b)
    flops = 2 * B * (784 * _K1 * _C1 + 196 * 784 * _C1 + 100 * _K2 * _C2 +
                     25 * 100 * _C2 + 400 * _NFC + 2 * _NFC * _NFC)
    bytes_accessed = (B * (784 * _K1 + _NFC) * 4 +
                      sum(int(np.prod(a.shape)) * 4 for a in consts))

    out = pl.pallas_call(
        _lenet_kernel,
        out_shape=jax.ShapeDtypeStruct((B, 1, _NFC), jnp.float32),
        grid=(B,),
        in_specs=[
            pl.BlockSpec((1, 784, _K1), lambda b: (b, 0, 0)),
            full(w1m), full(p1m), full(w2m), full(p2m),
            full(fc1w), full(fc1b), full(fc2w), full(fc2b), full(fc3w), full(fc3b),
        ],
        out_specs=pl.BlockSpec((1, 1, _NFC), lambda b: (b, 0, 0)),
        scratch_shapes=[
            pltpu.VMEM((100, _K2), jnp.float32),     # conv2 im2col patches
            pltpu.VMEM((1, 25 * _C2), jnp.float32),  # flattened features
        ],
        compiler_params=pltpu.CompilerParams(dimension_semantics=("parallel",)),
        cost_estimate=pl.CostEstimate(flops=flops, transcendentals=0,
                                      bytes_accessed=bytes_accessed),
    )(pat1, w1m, p1m, w2m, p2m, fc1w, fc1b, fc2w, fc2b, fc3w, fc3b)

    return out[:, 0, :10]


# ----------------------------------------------------------------------------
# Pure-JAX reference (matches TorchLeNet.forward) and param init
# ----------------------------------------------------------------------------
def lenet_reference(x_nchw, params):
    hp = lax.Precision.HIGHEST
    dn = ("NCHW", "OIHW", "NCHW")
    out = lax.conv_general_dilated(x_nchw, params["conv1_w"], (1, 1),
                                   ((2, 2), (2, 2)), dimension_numbers=dn,
                                   precision=hp)
    out = jnp.maximum(out, 0.0)
    B, C, H, W = out.shape
    out = out.reshape(B, C, H // 2, 2, W // 2, 2).mean(axis=(3, 5))
    out = lax.conv_general_dilated(out, params["conv2_w"], (1, 1), "VALID",
                                   dimension_numbers=dn, precision=hp)
    out = jnp.maximum(out, 0.0)
    B, C, H, W = out.shape
    out = out.reshape(B, C, H // 2, 2, W // 2, 2).mean(axis=(3, 5))
    out = out.reshape(B, -1)
    out = out @ params["fc1_w"].T + params["fc1_b"]
    out = out @ params["fc2_w"].T + params["fc2_b"]
    out = out @ params["fc3_w"].T + params["fc3_b"]
    return out


def init_params(key, input_shape=28, num_classes=10):
    fc_in = ((input_shape // 2 - 4) // 2) ** 2 * 16        # 400
    ks = jax.random.split(key, 8)
    n = lambda k, s, scale: scale * jax.random.normal(k, s, jnp.float32)
    return {
        "conv1_w": n(ks[0], (6, 1, 5, 5), 0.2),
        "conv2_w": n(ks[1], (16, 6, 5, 5), 0.1),
        "fc1_w": n(ks[2], (120, fc_in), 0.05),
        "fc1_b": n(ks[3], (120,), 0.05),
        "fc2_w": n(ks[4], (84, 120), 0.05),
        "fc2_b": n(ks[5], (84,), 0.05),
        "fc3_w": n(ks[6], (num_classes, 84), 0.05),
        "fc3_b": n(ks[7], (num_classes,), 0.05),
    }


if __name__ == "__main__":
    key = jax.random.PRNGKey(0)
    kx, kp = jax.random.split(key)
    x = jax.random.normal(kx, (2, 1, 28, 28), jnp.float32)   # PyTorch NCHW input
    params = init_params(kp)

    out = jax.jit(lenet_forward)(x, params)
    out = jax.block_until_ready(out)
    assert out.shape == (2, 10) and out.dtype == jnp.float32

    ref = lenet_reference(x, params)
    assert jnp.allclose(out, ref, atol=1e-1, rtol=1e-1), (
        "max abs diff = %f" % float(jnp.max(jnp.abs(out - ref))))
    print("KERNEL_OK")
</pallas_src>

<mosaic_0001>
module attributes {stable_mosaic.version = 11 : i64} {
  func.func @_lenet_kernel(%arg0: i32, %arg1: memref<1x784x32xf32, #tpu.memory_space<vmem>>, %arg2: memref<32x8xf32, #tpu.memory_space<vmem>>, %arg3: memref<196x784xf32, #tpu.memory_space<vmem>>, %arg4: memref<200x16xf32, #tpu.memory_space<vmem>>, %arg5: memref<25x100xf32, #tpu.memory_space<vmem>>, %arg6: memref<400x128xf32, #tpu.memory_space<vmem>>, %arg7: memref<1x128xf32, #tpu.memory_space<vmem>>, %arg8: memref<128x128xf32, #tpu.memory_space<vmem>>, %arg9: memref<1x128xf32, #tpu.memory_space<vmem>>, %arg10: memref<128x128xf32, #tpu.memory_space<vmem>>, %arg11: memref<1x128xf32, #tpu.memory_space<vmem>>, %arg12: memref<1x1x128xf32, #tpu.memory_space<vmem>>, %arg13: memref<100x200xf32, #tpu.memory_space<vmem>>, %arg14: memref<1x400xf32, #tpu.memory_space<vmem>>) attributes {dimension_semantics = [#tpu.dimension_semantics<parallel>], iteration_bounds = array<i64: 2>, scalar_prefetch = 0 : i64, scratch_operands = 2 : i64, tpu.core_type = #tpu.core_type<tc>, window_params = [{transform_indices = @transform_0, window_bounds = array<i64: 1, 784, 32>}, {pipeline_mode = #tpu.pipeline_mode<synchronous>, transform_indices = @transform_1, window_bounds = array<i64: 32, 8>}, {pipeline_mode = #tpu.pipeline_mode<synchronous>, transform_indices = @transform_2, window_bounds = array<i64: 196, 784>}, {pipeline_mode = #tpu.pipeline_mode<synchronous>, transform_indices = @transform_3, window_bounds = array<i64: 200, 16>}, {pipeline_mode = #tpu.pipeline_mode<synchronous>, transform_indices = @transform_4, window_bounds = array<i64: 25, 100>}, {pipeline_mode = #tpu.pipeline_mode<synchronous>, transform_indices = @transform_5, window_bounds = array<i64: 400, 128>}, {pipeline_mode = #tpu.pipeline_mode<synchronous>, transform_indices = @transform_6, window_bounds = array<i64: 1, 128>}, {pipeline_mode = #tpu.pipeline_mode<synchronous>, transform_indices = @transform_7, window_bounds = array<i64: 128, 128>}, {pipeline_mode = #tpu.pipeline_mode<synchronous>, transform_indices = @transform_8, window_bounds = array<i64: 1, 128>}, {pipeline_mode = #tpu.pipeline_mode<synchronous>, transform_indices = @transform_9, window_bounds = array<i64: 128, 128>}, {pipeline_mode = #tpu.pipeline_mode<synchronous>, transform_indices = @transform_10, window_bounds = array<i64: 1, 128>}, {transform_indices = @transform_11, window_bounds = array<i64: 1, 1, 128>}]} {
    %c0 = arith.constant 0 : index
    %c0_0 = arith.constant 0 : index
    %c0_1 = arith.constant 0 : index
    %0 = vector.load %arg1[%c0, %c0_0, %c0_1] : memref<1x784x32xf32, #tpu.memory_space<vmem>>, vector<1x784x32xf32>
    %1 = vector.shape_cast %0 : vector<1x784x32xf32> to vector<784x32xf32>
    %c0_2 = arith.constant 0 : index
    %c0_3 = arith.constant 0 : index
    %2 = vector.load %arg2[%c0_2, %c0_3] : memref<32x8xf32, #tpu.memory_space<vmem>>, vector<32x8xf32>
    %cst = arith.constant dense<0.000000e+00> : vector<784x8xf32>
    %3 = tpu.matmul %1, %2, %cst {dimension_numbers = #tpu.dot_dimension_numbers<[1], [0], [0], [1], [0, 0, 1, 1], [], []>} : vector<784x32xf32>, vector<32x8xf32>, vector<784x8xf32> -> vector<784x8xf32>
    %cst_4 = arith.constant 0.000000e+00 : f32
    %4 = vector.broadcast %cst_4 : f32 to vector<784x8xf32>
    %5 = arith.maximumf %3, %4 : vector<784x8xf32>
    %c0_5 = arith.constant 0 : index
    %c0_6 = arith.constant 0 : index
    %6 = vector.load %arg3[%c0_5, %c0_6] : memref<196x784xf32, #tpu.memory_space<vmem>>, vector<196x784xf32>
    %cst_7 = arith.constant dense<0.000000e+00> : vector<196x8xf32>
    %7 = tpu.matmul %6, %5, %cst_7 {dimension_numbers = #tpu.dot_dimension_numbers<[1], [0], [0], [1], [0, 0, 1, 1], [], []>} : vector<196x784xf32>, vector<784x8xf32>, vector<196x8xf32> -> vector<196x8xf32>
    %cst_8 = arith.constant 2.500000e-01 : f32
    %8 = vector.broadcast %cst_8 : f32 to vector<196x8xf32>
    %9 = arith.mulf %7, %8 : vector<196x8xf32>
    %10 = vector.extract_strided_slice %9 {offsets = [0, 0], sizes = [10, 8], strides = [1, 1]} : vector<196x8xf32> to vector<10x8xf32>
    %c0_9 = arith.constant 0 : index
    %c0_10 = arith.constant 0 : index
    %11 = vector.load %arg13[%c0_9, %c0_10] : memref<100x200xf32, #tpu.memory_space<vmem>>, vector<10x8xf32>
    tpu.vector_store %arg13[%c0_9, %c0_10], %10 {strides = array<i32>} : memref<100x200xf32, #tpu.memory_space<vmem>>, vector<10x8xf32>,
    %12 = vector.extract_strided_slice %9 {offsets = [1, 0], sizes = [10, 8], strides = [1, 1]} : vector<196x8xf32> to vector<10x8xf32>
    %c0_11 = arith.constant 0 : index
    %c8 = arith.constant 8 : index
    %13 = vector.load %arg13[%c0_11, %c8] : memref<100x200xf32, #tpu.memory_space<vmem>>, vector<10x8xf32>
    tpu.vector_store %arg13[%c0_11, %c8], %12 {strides = array<i32>} : memref<100x200xf32, #tpu.memory_space<vmem>>, vector<10x8xf32>,
    %14 = vector.extract_strided_slice %9 {offsets = [2, 0], sizes = [10, 8], strides = [1, 1]} : vector<196x8xf32> to vector<10x8xf32>
    %c0_12 = arith.constant 0 : index
    %c16 = arith.constant 16 : index
    %15 = vector.load %arg13[%c0_12, %c16] : memref<100x200xf32, #tpu.memory_space<vmem>>, vector<10x8xf32>
    tpu.vector_store %arg13[%c0_12, %c16], %14 {strides = array<i32>} : memref<100x200xf32, #tpu.memory_space<vmem>>, vector<10x8xf32>,
    %16 = vector.extract_strided_slice %9 {offsets = [3, 0], sizes = [10, 8], strides = [1, 1]} : vector<196x8xf32> to vector<10x8xf32>
    %c0_13 = arith.constant 0 : index
    %c24 = arith.constant 24 : index
    %17 = vector.load %arg13[%c0_13, %c24] : memref<100x200xf32, #tpu.memory_space<vmem>>, vector<10x8xf32>
    tpu.vector_store %arg13[%c0_13, %c24], %16 {strides = array<i32>} : memref<100x200xf32, #tpu.memory_space<vmem>>, vector<10x8xf32>,
    %18 = vector.extract_strided_slice %9 {offsets = [4, 0], sizes = [10, 8], strides = [1, 1]} : vector<196x8xf32> to vector<10x8xf32>
    %c0_14 = arith.constant 0 : index
    %c32 = arith.constant 32 : index
    %19 = vector.load %arg13[%c0_14, %c32] : memref<100x200xf32, #tpu.memory_space<vmem>>, vector<10x8xf32>
    tpu.vector_store %arg13[%c0_14, %c32], %18 {strides = array<i32>} : memref<100x200xf32, #tpu.memory_space<vmem>>, vector<10x8xf32>,
    %20 = vector.extract_strided_slice %9 {offsets = [14, 0], sizes = [10, 8], strides = [1, 1]} : vector<196x8xf32> to vector<10x8xf32>
    %c0_15 = arith.constant 0 : index
    %c40 = arith.constant 40 : index
    %21 = vector.load %arg13[%c0_15, %c40] : memref<100x200xf32, #tpu.memory_space<vmem>>, vector<10x8xf32>
    tpu.vector_store %arg13[%c0_15, %c40], %20 {strides = array<i32>} : memref<100x200xf32, #tpu.memory_space<vmem>>, vector<10x8xf32>,
    %22 = vector.extract_strided_slice %9 {offsets = [15, 0], sizes = [10, 8], strides = [1, 1]} : vector<196x8xf32> to vector<10x8xf32>
    %c0_16 = arith.constant 0 : index
    %c48 = arith.constant 48 : index
    %23 = vector.load %arg13[%c0_16, %c48] : memref<100x200xf32, #tpu.memory_space<vmem>>, vector<10x8xf32>
    tpu.vector_store %arg13[%c0_16, %c48], %22 {strides = array<i32>} : memref<100x200xf32, #tpu.memory_space<vmem>>, vector<10x8xf32>,
    %24 = vector.extract_strided_slice %9 {offsets = [16, 0], sizes = [10, 8], strides = [1, 1]} : vector<196x8xf32> to vector<10x8xf32>
    %c0_17 = arith.constant 0 : index
    %c56 = arith.constant 56 : index
    %25 = vector.load %arg13[%c0_17, %c56] : memref<100x200xf32, #tpu.memory_space<vmem>>, vector<10x8xf32>
    tpu.vector_store %arg13[%c0_17, %c56], %24 {strides = array<i32>} : memref<100x200xf32, #tpu.memory_space<vmem>>, vector<10x8xf32>,
    %26 = vector.extract_strided_slice %9 {offsets = [17, 0], sizes = [10, 8], strides = [1, 1]} : vector<196x8xf32> to vector<10x8xf32>
    %c0_18 = arith.constant 0 : index
    %c64 = arith.constant 64 : index
    %27 = vector.load %arg13[%c0_18, %c64] : memref<100x200xf32, #tpu.memory_space<vmem>>, vector<10x8xf32>
    tpu.vector_store %arg13[%c0_18, %c64], %26 {strides = array<i32>} : memref<100x200xf32, #tpu.memory_space<vmem>>, vector<10x8xf32>,
    %28 = vector.extract_strided_slice %9 {offsets = [18, 0], sizes = [10, 8], strides = [1, 1]} : vector<196x8xf32> to vector<10x8xf32>
    %c0_19 = arith.constant 0 : index
    %c72 = arith.constant 72 : index
    %29 = vector.load %arg13[%c0_19, %c72] : memref<100x200xf32, #tpu.memory_space<vmem>>, vector<10x8xf32>
    tpu.vector_store %arg13[%c0_19, %c72], %28 {strides = array<i32>} : memref<100x200xf32, #tpu.memory_space<vmem>>, vector<10x8xf32>,
    %30 = vector.extract_strided_slice %9 {offsets = [28, 0], sizes = [10, 8], strides = [1, 1]} : vector<196x8xf32> to vector<10x8xf32>
    %c0_20 = arith.constant 0 : index
    %c80 = arith.constant 80 : index
    %31 = vector.load %arg13[%c0_20, %c80] : memref<100x200xf32, #tpu.memory_space<vmem>>, vector<10x8xf32>
    tpu.vector_store %arg13[%c0_20, %c80], %30 {strides = array<i32>} : memref<100x200xf32, #tpu.memory_space<vmem>>, vector<10x8xf32>,
    %32 = vector.extract_strided_slice %9 {offsets = [29, 0], sizes = [10, 8], strides = [1, 1]} : vector<196x8xf32> to vector<10x8xf32>
    %c0_21 = arith.constant 0 : index
    %c88 = arith.constant 88 : index
    %33 = vector.load %arg13[%c0_21, %c88] : memref<100x200xf32, #tpu.memory_space<vmem>>, vector<10x8xf32>
    tpu.vector_store %arg13[%c0_21, %c88], %32 {strides = array<i32>} : memref<100x200xf32, #tpu.memory_space<vmem>>, vector<10x8xf32>,
    %34 = vector.extract_strided_slice %9 {offsets = [30, 0], sizes = [10, 8], strides = [1, 1]} : vector<196x8xf32> to vector<10x8xf32>
    %c0_22 = arith.constant 0 : index
    %c96 = arith.constant 96 : index
    %35 = vector.load %arg13[%c0_22, %c96] : memref<100x200xf32, #tpu.memory_space<vmem>>, vector<10x8xf32>
    tpu.vector_store %arg13[%c0_22, %c96], %34 {strides = array<i32>} : memref<100x200xf32, #tpu.memory_space<vmem>>, vector<10x8xf32>,
    %36 = vector.extract_strided_slice %9 {offsets = [31, 0], sizes = [10, 8], strides = [1, 1]} : vector<196x8xf32> to vector<10x8xf32>
    %c0_23 = arith.constant 0 : index
    %c104 = arith.constant 104 : index
    %37 = vector.load %arg13[%c0_23, %c104] : memref<100x200xf32, #tpu.memory_space<vmem>>, vector<10x8xf32>
    tpu.vector_store %arg13[%c0_23, %c104], %36 {strides = array<i32>} : memref<100x200xf32, #tpu.memory_space<vmem>>, vector<10x8xf32>,
    %38 = vector.extract_strided_slice %9 {offsets = [32, 0], sizes = [10, 8], strides = [1, 1]} : vector<196x8xf32> to vector<10x8xf32>
    %c0_24 = arith.constant 0 : index
    %c112 = arith.constant 112 : index
    %39 = vector.load %arg13[%c0_24, %c112] : memref<100x200xf32, #tpu.memory_space<vmem>>, vector<10x8xf32>
    tpu.vector_store %arg13[%c0_24, %c112], %38 {strides = array<i32>} : memref<100x200xf32, #tpu.memory_space<vmem>>, vector<10x8xf32>,
    %40 = vector.extract_strided_slice %9 {offsets = [42, 0], sizes = [10, 8], strides = [1, 1]} : vector<196x8xf32> to vector<10x8xf32>
    %c0_25 = arith.constant 0 : index
    %c120 = arith.constant 120 : index
    %41 = vector.load %arg13[%c0_25, %c120] : memref<100x200xf32, #tpu.memory_space<vmem>>, vector<10x8xf32>
    tpu.vector_store %arg13[%c0_25, %c120], %40 {strides = array<i32>} : memref<100x200xf32, #tpu.memory_space<vmem>>, vector<10x8xf32>,
    %42 = vector.extract_strided_slice %9 {offsets = [43, 0], sizes = [10, 8], strides = [1, 1]} : vector<196x8xf32> to vector<10x8xf32>
    %c0_26 = arith.constant 0 : index
    %c128 = arith.constant 128 : index
    %43 = vector.load %arg13[%c0_26, %c128] : memref<100x200xf32, #tpu.memory_space<vmem>>, vector<10x8xf32>
    tpu.vector_store %arg13[%c0_26, %c128], %42 {strides = array<i32>} : memref<100x200xf32, #tpu.memory_space<vmem>>, vector<10x8xf32>,
    %44 = vector.extract_strided_slice %9 {offsets = [44, 0], sizes = [10, 8], strides = [1, 1]} : vector<196x8xf32> to vector<10x8xf32>
    %c0_27 = arith.constant 0 : index
    %c136 = arith.constant 136 : index
    %45 = vector.load %arg13[%c0_27, %c136] : memref<100x200xf32, #tpu.memory_space<vmem>>, vector<10x8xf32>
    tpu.vector_store %arg13[%c0_27, %c136], %44 {strides = array<i32>} : memref<100x200xf32, #tpu.memory_space<vmem>>, vector<10x8xf32>,
    %46 = vector.extract_strided_slice %9 {offsets = [45, 0], sizes = [10, 8], strides = [1, 1]} : vector<196x8xf32> to vector<10x8xf32>
    %c0_28 = arith.constant 0 : index
    %c144 = arith.constant 144 : index
    %47 = vector.load %arg13[%c0_28, %c144] : memref<100x200xf32, #tpu.memory_space<vmem>>, vector<10x8xf32>
    tpu.vector_store %arg13[%c0_28, %c144], %46 {strides = array<i32>} : memref<100x200xf32, #tpu.memory_space<vmem>>, vector<10x8xf32>,
    %48 = vector.extract_strided_slice %9 {offsets = [46, 0], sizes = [10, 8], strides = [1, 1]} : vector<196x8xf32> to vector<10x8xf32>
    %c0_29 = arith.constant 0 : index
    %c152 = arith.constant 152 : index
    %49 = vector.load %arg13[%c0_29, %c152] : memref<100x200xf32, #tpu.memory_space<vmem>>, vector<10x8xf32>
    tpu.vector_store %arg13[%c0_29, %c152], %48 {strides = array<i32>} : memref<100x200xf32, #tpu.memory_space<vmem>>, vector<10x8xf32>,
    %50 = vector.extract_strided_slice %9 {offsets = [56, 0], sizes = [10, 8], strides = [1, 1]} : vector<196x8xf32> to vector<10x8xf32>
    %c0_30 = arith.constant 0 : index
    %c160 = arith.constant 160 : index
    %51 = vector.load %arg13[%c0_30, %c160] : memref<100x200xf32, #tpu.memory_space<vmem>>, vector<10x8xf32>
    tpu.vector_store %arg13[%c0_30, %c160], %50 {strides = array<i32>} : memref<100x200xf32, #tpu.memory_space<vmem>>, vector<10x8xf32>,
    %52 = vector.extract_strided_slice %9 {offsets = [57, 0], sizes = [10, 8], strides = [1, 1]} : vector<196x8xf32> to vector<10x8xf32>
    %c0_31 = arith.constant 0 : index
    %c168 = arith.constant 168 : index
    %53 = vector.load %arg13[%c0_31, %c168] : memref<100x200xf32, #tpu.memory_space<vmem>>, vector<10x8xf32>
    tpu.vector_store %arg13[%c0_31, %c168], %52 {strides = array<i32>} : memref<100x200xf32, #tpu.memory_space<vmem>>, vector<10x8xf32>,
    %54 = vector.extract_strided_slice %9 {offsets = [58, 0], sizes = [10, 8], strides = [1, 1]} : vector<196x8xf32> to vector<10x8xf32>
    %c0_32 = arith.constant 0 : index
    %c176 = arith.constant 176 : index
    %55 = vector.load %arg13[%c0_32, %c176] : memref<100x200xf32, #tpu.memory_space<vmem>>, vector<10x8xf32>
    tpu.vector_store %arg13[%c0_32, %c176], %54 {strides = array<i32>} : memref<100x200xf32, #tpu.memory_space<vmem>>, vector<10x8xf32>,
    %56 = vector.extract_strided_slice %9 {offsets = [59, 0], sizes = [10, 8], strides = [1, 1]} : vector<196x8xf32> to vector<10x8xf32>
    %c0_33 = arith.constant 0 : index
    %c184 = arith.constant 184 : index
    %57 = vector.load %arg13[%c0_33, %c184] : memref<100x200xf32, #tpu.memory_space<vmem>>, vector<10x8xf32>
    tpu.vector_store %arg13[%c0_33, %c184], %56 {strides = array<i32>} : memref<100x200xf32, #tpu.memory_space<vmem>>, vector<10x8xf32>,
    %58 = vector.extract_strided_slice %9 {offsets = [60, 0], sizes = [10, 8], strides = [1, 1]} : vector<196x8xf32> to vector<10x8xf32>
    %c0_34 = arith.constant 0 : index
    %c192 = arith.constant 192 : index
    %59 = vector.load %arg13[%c0_34, %c192] : memref<100x200xf32, #tpu.memory_space<vmem>>, vector<10x8xf32>
    tpu.vector_store %arg13[%c0_34, %c192], %58 {strides = array<i32>} : memref<100x200xf32, #tpu.memory_space<vmem>>, vector<10x8xf32>,
    %60 = vector.extract_strided_slice %9 {offsets = [14, 0], sizes = [10, 8], strides = [1, 1]} : vector<196x8xf32> to vector<10x8xf32>
    %c10 = arith.constant 10 : index
    %c0_35 = arith.constant 0 : index
    %61 = vector.load %arg13[%c10, %c0_35] : memref<100x200xf32, #tpu.memory_space<vmem>>, vector<10x8xf32>
    tpu.vector_store %arg13[%c10, %c0_35], %60 {strides = array<i32>} : memref<100x200xf32, #tpu.memory_space<vmem>>, vector<10x8xf32>,
    %62 = vector.extract_strided_slice %9 {offsets = [15, 0], sizes = [10, 8], strides = [1, 1]} : vector<196x8xf32> to vector<10x8xf32>
    %c10_36 = arith.constant 10 : index
    %c8_37 = arith.constant 8 : index
    %63 = vector.load %arg13[%c10_36, %c8_37] : memref<100x200xf32, #tpu.memory_space<vmem>>, vector<10x8xf32>
    tpu.vector_store %arg13[%c10_36, %c8_37], %62 {strides = array<i32>} : memref<100x200xf32, #tpu.memory_space<vmem>>, vector<10x8xf32>,
    %64 = vector.extract_strided_slice %9 {offsets = [16, 0], sizes = [10, 8], strides = [1, 1]} : vector<196x8xf32> to vector<10x8xf32>
    %c10_38 = arith.constant 10 : index
    %c16_39 = arith.constant 16 : index
    %65 = vector.load %arg13[%c10_38, %c16_39] : memref<100x200xf32, #tpu.memory_space<vmem>>, vector<10x8xf32>
    tpu.vector_store %arg13[%c10_38, %c16_39], %64 {strides = array<i32>} : memref<100x200xf32, #tpu.memory_space<vmem>>, vector<10x8xf32>,
    %66 = vector.extract_strided_slice %9 {offsets = [17, 0], sizes = [10, 8], strides = [1, 1]} : vector<196x8xf32> to vector<10x8xf32>
    %c10_40 = arith.constant 10 : index
    %c24_41 = arith.constant 24 : index
    %67 = vector.load %arg13[%c10_40, %c24_41] : memref<100x200xf32, #tpu.memory_space<vmem>>, vector<10x8xf32>
    tpu.vector_store %arg13[%c10_40, %c24_41], %66 {strides = array<i32>} : memref<100x200xf32, #tpu.memory_space<vmem>>, vector<10x8xf32>,
    %68 = vector.extract_strided_slice %9 {offsets = [18, 0], sizes = [10, 8], strides = [1, 1]} : vector<196x8xf32> to vector<10x8xf32>
    %c10_42 = arith.constant 10 : index
    %c32_43 = arith.constant 32 : index
    %69 = vector.load %arg13[%c10_42, %c32_43] : memref<100x200xf32, #tpu.memory_space<vmem>>, vector<10x8xf32>
    tpu.vector_store %arg13[%c10_42, %c32_43], %68 {strides = array<i32>} : memref<100x200xf32, #tpu.memory_space<vmem>>, vector<10x8xf32>,
    %70 = vector.extract_strided_slice %9 {offsets = [28, 0], sizes = [10, 8], strides = [1, 1]} : vector<196x8xf32> to vector<10x8xf32>
    %c10_44 = arith.constant 10 : index
    %c40_45 = arith.constant 40 : index
    %71 = vector.load %arg13[%c10_44, %c40_45] : memref<100x200xf32, #tpu.memory_space<vmem>>, vector<10x8xf32>
    tpu.vector_store %arg13[%c10_44, %c40_45], %70 {strides = array<i32>} : memref<100x200xf32, #tpu.memory_space<vmem>>, vector<10x8xf32>,
    %72 = vector.extract_strided_slice %9 {offsets = [29, 0], sizes = [10, 8], strides = [1, 1]} : vector<196x8xf32> to vector<10x8xf32>
    %c10_46 = arith.constant 10 : index
    %c48_47 = arith.constant 48 : index
    %73 = vector.load %arg13[%c10_46, %c48_47] : memref<100x200xf32, #tpu.memory_space<vmem>>, vector<10x8xf32>
    tpu.vector_store %arg13[%c10_46, %c48_47], %72 {strides = array<i32>} : memref<100x200xf32, #tpu.memory_space<vmem>>, vector<10x8xf32>,
    %74 = vector.extract_strided_slice %9 {offsets = [30, 0], sizes = [10, 8], strides = [1, 1]} : vector<196x8xf32> to vector<10x8xf32>
    %c10_48 = arith.constant 10 : index
    %c56_49 = arith.constant 56 : index
    %75 = vector.load %arg13[%c10_48, %c56_49] : memref<100x200xf32, #tpu.memory_space<vmem>>, vector<10x8xf32>
    tpu.vector_store %arg13[%c10_48, %c56_49], %74 {strides = array<i32>} : memref<100x200xf32, #tpu.memory_space<vmem>>, vector<10x8xf32>,
    %76 = vector.extract_strided_slice %9 {offsets = [31, 0], sizes = [10, 8], strides = [1, 1]} : vector<196x8xf32> to vector<10x8xf32>
    %c10_50 = arith.constant 10 : index
    %c64_51 = arith.constant 64 : index
    %77 = vector.load %arg13[%c10_50, %c64_51] : memref<100x200xf32, #tpu.memory_space<vmem>>, vector<10x8xf32>
    tpu.vector_store %arg13[%c10_50, %c64_51], %76 {strides = array<i32>} : memref<100x200xf32, #tpu.memory_space<vmem>>, vector<10x8xf32>,
    %78 = vector.extract_strided_slice %9 {offsets = [32, 0], sizes = [10, 8], strides = [1, 1]} : vector<196x8xf32> to vector<10x8xf32>
    %c10_52 = arith.constant 10 : index
    %c72_53 = arith.constant 72 : index
    %79 = vector.load %arg13[%c10_52, %c72_53] : memref<100x200xf32, #tpu.memory_space<vmem>>, vector<10x8xf32>
    tpu.vector_store %arg13[%c10_52, %c72_53], %78 {strides = array<i32>} : memref<100x200xf32, #tpu.memory_space<vmem>>, vector<10x8xf32>,
    %80 = vector.extract_strided_slice %9 {offsets = [42, 0], sizes = [10, 8], strides = [1, 1]} : vector<196x8xf32> to vector<10x8xf32>
    %c10_54 = arith.constant 10 : index
    %c80_55 = arith.constant 80 : index
    %81 = vector.load %arg13[%c10_54, %c80_55] : memref<100x200xf32, #tpu.memory_space<vmem>>, vector<10x8xf32>
    tpu.vector_store %arg13[%c10_54, %c80_55], %80 {strides = array<i32>} : memref<100x200xf32, #tpu.memory_space<vmem>>, vector<10x8xf32>,
    %82 = vector.extract_strided_slice %9 {offsets = [43, 0], sizes = [10, 8], strides = [1, 1]} : vector<196x8xf32> to vector<10x8xf32>
    %c10_56 = arith.constant 10 : index
    %c88_57 = arith.constant 88 : index
    %83 = vector.load %arg13[%c10_56, %c88_57] : memref<100x200xf32, #tpu.memory_space<vmem>>, vector<10x8xf32>
    tpu.vector_store %arg13[%c10_56, %c88_57], %82 {strides = array<i32>} : memref<100x200xf32, #tpu.memory_space<vmem>>, vector<10x8xf32>,
    %84 = vector.extract_strided_slice %9 {offsets = [44, 0], sizes = [10, 8], strides = [1, 1]} : vector<196x8xf32> to vector<10x8xf32>
    %c10_58 = arith.constant 10 : index
    %c96_59 = arith.constant 96 : index
    %85 = vector.load %arg13[%c10_58, %c96_59] : memref<100x200xf32, #tpu.memory_space<vmem>>, vector<10x8xf32>
    tpu.vector_store %arg13[%c10_58, %c96_59], %84 {strides = array<i32>} : memref<100x200xf32, #tpu.memory_space<vmem>>, vector<10x8xf32>,
    %86 = vector.extract_strided_slice %9 {offsets = [45, 0], sizes = [10, 8], strides = [1, 1]} : vector<196x8xf32> to vector<10x8xf32>
    %c10_60 = arith.constant 10 : index
    %c104_61 = arith.constant 104 : index
    %87 = vector.load %arg13[%c10_60, %c104_61] : memref<100x200xf32, #tpu.memory_space<vmem>>, vector<10x8xf32>
    tpu.vector_store %arg13[%c10_60, %c104_61], %86 {strides = array<i32>} : memref<100x200xf32, #tpu.memory_space<vmem>>, vector<10x8xf32>,
    %88 = vector.extract_strided_slice %9 {offsets = [46, 0], sizes = [10, 8], strides = [1, 1]} : vector<196x8xf32> to vector<10x8xf32>
    %c10_62 = arith.constant 10 : index
    %c112_63 = arith.constant 112 : index
    %89 = vector.load %arg13[%c10_62, %c112_63] : memref<100x200xf32, #tpu.memory_space<vmem>>, vector<10x8xf32>
    tpu.vector_store %arg13[%c10_62, %c112_63], %88 {strides = array<i32>} : memref<100x200xf32, #tpu.memory_space<vmem>>, vector<10x8xf32>,
    %90 = vector.extract_strided_slice %9 {offsets = [56, 0], sizes = [10, 8], strides = [1, 1]} : vector<196x8xf32> to vector<10x8xf32>
    %c10_64 = arith.constant 10 : index
    %c120_65 = arith.constant 120 : index
    %91 = vector.load %arg13[%c10_64, %c120_65] : memref<100x200xf32, #tpu.memory_space<vmem>>, vector<10x8xf32>
    tpu.vector_store %arg13[%c10_64, %c120_65], %90 {strides = array<i32>} : memref<100x200xf32, #tpu.memory_space<vmem>>, vector<10x8xf32>,
    %92 = vector.extract_strided_slice %9 {offsets = [57, 0], sizes = [10, 8], strides = [1, 1]} : vector<196x8xf32> to vector<10x8xf32>
    %c10_66 = arith.constant 10 : index
    %c128_67 = arith.constant 128 : index
    %93 = vector.load %arg13[%c10_66, %c128_67] : memref<100x200xf32, #tpu.memory_space<vmem>>, vector<10x8xf32>
    tpu.vector_store %arg13[%c10_66, %c128_67], %92 {strides = array<i32>} : memref<100x200xf32, #tpu.memory_space<vmem>>, vector<10x8xf32>,
    %94 = vector.extract_strided_slice %9 {offsets = [58, 0], sizes = [10, 8], strides = [1, 1]} : vector<196x8xf32> to vector<10x8xf32>
    %c10_68 = arith.constant 10 : index
    %c136_69 = arith.constant 136 : index
    %95 = vector.load %arg13[%c10_68, %c136_69] : memref<100x200xf32, #tpu.memory_space<vmem>>, vector<10x8xf32>
    tpu.vector_store %arg13[%c10_68, %c136_69], %94 {strides = array<i32>} : memref<100x200xf32, #tpu.memory_space<vmem>>, vector<10x8xf32>,
    %96 = vector.extract_strided_slice %9 {offsets = [59, 0], sizes = [10, 8], strides = [1, 1]} : vector<196x8xf32> to vector<10x8xf32>
    %c10_70 = arith.constant 10 : index
    %c144_71 = arith.constant 144 : index
    %97 = vector.load %arg13[%c10_70, %c144_71] : memref<100x200xf32, #tpu.memory_space<vmem>>, vector<10x8xf32>
    tpu.vector_store %arg13[%c10_70, %c144_71], %96 {strides = array<i32>} : memref<100x200xf32, #tpu.memory_space<vmem>>, vector<10x8xf32>,
    %98 = vector.extract_strided_slice %9 {offsets = [60, 0], sizes = [10, 8], strides = [1, 1]} : vector<196x8xf32> to vector<10x8xf32>
    %c10_72 = arith.constant 10 : index
    %c152_73 = arith.constant 152 : index
    %99 = vector.load %arg13[%c10_72, %c152_73] : memref<100x200xf32, #tpu.memory_space<vmem>>, vector<10x8xf32>
    tpu.vector_store %arg13[%c10_72, %c152_73], %98 {strides = array<i32>} : memref<100x200xf32, #tpu.memory_space<vmem>>, vector<10x8xf32>,
    %100 = vector.extract_strided_slice %9 {offsets = [70, 0], sizes = [10, 8], strides = [1, 1]} : vector<196x8xf32> to vector<10x8xf32>
    %c10_74 = arith.constant 10 : index
    %c160_75 = arith.constant 160 : index
    %101 = vector.load %arg13[%c10_74, %c160_75] : memref<100x200xf32, #tpu.memory_space<vmem>>, vector<10x8xf32>
    tpu.vector_store %arg13[%c10_74, %c160_75], %100 {strides = array<i32>} : memref<100x200xf32, #tpu.memory_space<vmem>>, vector<10x8xf32>,
    %102 = vector.extract_strided_slice %9 {offsets = [71, 0], sizes = [10, 8], strides = [1, 1]} : vector<196x8xf32> to vector<10x8xf32>
    %c10_76 = arith.constant 10 : index
    %c168_77 = arith.constant 168 : index
    %103 = vector.load %arg13[%c10_76, %c168_77] : memref<100x200xf32, #tpu.memory_space<vmem>>, vector<10x8xf32>
    tpu.vector_store %arg13[%c10_76, %c168_77], %102 {strides = array<i32>} : memref<100x200xf32, #tpu.memory_space<vmem>>, vector<10x8xf32>,
    %104 = vector.extract_strided_slice %9 {offsets = [72, 0], sizes = [10, 8], strides = [1, 1]} : vector<196x8xf32> to vector<10x8xf32>
    %c10_78 = arith.constant 10 : index
    %c176_79 = arith.constant 176 : index
    %105 = vector.load %arg13[%c10_78, %c176_79] : memref<100x200xf32, #tpu.memory_space<vmem>>, vector<10x8xf32>
    tpu.vector_store %arg13[%c10_78, %c176_79], %104 {strides = array<i32>} : memref<100x200xf32, #tpu.memory_space<vmem>>, vector<10x8xf32>,
    %106 = vector.extract_strided_slice %9 {offsets = [73, 0], sizes = [10, 8], strides = [1, 1]} : vector<196x8xf32> to vector<10x8xf32>
    %c10_80 = arith.constant 10 : index
    %c184_81 = arith.constant 184 : index
    %107 = vector.load %arg13[%c10_80, %c184_81] : memref<100x200xf32, #tpu.memory_space<vmem>>, vector<10x8xf32>
    tpu.vector_store %arg13[%c10_80, %c184_81], %106 {strides = array<i32>} : memref<100x200xf32, #tpu.memory_space<vmem>>, vector<10x8xf32>,
    %108 = vector.extract_strided_slice %9 {offsets = [74, 0], sizes = [10, 8], strides = [1, 1]} : vector<196x8xf32> to vector<10x8xf32>
    %c10_82 = arith.constant 10 : index
    %c192_83 = arith.constant 192 : index
    %109 = vector.load %arg13[%c10_82, %c192_83] : memref<100x200xf32, #tpu.memory_space<vmem>>, vector<10x8xf32>
    tpu.vector_store %arg13[%c10_82, %c192_83], %108 {strides = array<i32>} : memref<100x200xf32, #tpu.memory_space<vmem>>, vector<10x8xf32>,
    %110 = vector.extract_strided_slice %9 {offsets = [28, 0], sizes = [10, 8], strides = [1, 1]} : vector<196x8xf32> to vector<10x8xf32>
    %c20 = arith.constant 20 : index
    %c0_84 = arith.constant 0 : index
    %111 = vector.load %arg13[%c20, %c0_84] : memref<100x200xf32, #tpu.memory_space<vmem>>, vector<10x8xf32>
    tpu.vector_store %arg13[%c20, %c0_84], %110 {strides = array<i32>} : memref<100x200xf32, #tpu.memory_space<vmem>>, vector<10x8xf32>,
    %112 = vector.extract_strided_slice %9 {offsets = [29, 0], sizes = [10, 8], strides = [1, 1]} : vector<196x8xf32> to vector<10x8xf32>
    %c20_85 = arith.constant 20 : index
    %c8_86 = arith.constant 8 : index
    %113 = vector.load %arg13[%c20_85, %c8_86] : memref<100x200xf32, #tpu.memory_space<vmem>>, vector<10x8xf32>
    tpu.vector_store %arg13[%c20_85, %c8_86], %112 {strides = array<i32>} : memref<100x200xf32, #tpu.memory_space<vmem>>, vector<10x8xf32>,
    %114 = vector.extract_strided_slice %9 {offsets = [30, 0], sizes = [10, 8], strides = [1, 1]} : vector<196x8xf32> to vector<10x8xf32>
    %c20_87 = arith.constant 20 : index
    %c16_88 = arith.constant 16 : index
    %115 = vector.load %arg13[%c20_87, %c16_88] : memref<100x200xf32, #tpu.memory_space<vmem>>, vector<10x8xf32>
    tpu.vector_store %arg13[%c20_87, %c16_88], %114 {strides = array<i32>} : memref<100x200xf32, #tpu.memory_space<vmem>>, vector<10x8xf32>,
    %116 = vector.extract_strided_slice %9 {offsets = [31, 0], sizes = [10, 8], strides = [1, 1]} : vector<196x8xf32> to vector<10x8xf32>
    %c20_89 = arith.constant 20 : index
    %c24_90 = arith.constant 24 : index
    %117 = vector.load %arg13[%c20_89, %c24_90] : memref<100x200xf32, #tpu.memory_space<vmem>>, vector<10x8xf32>
    tpu.vector_store %arg13[%c20_89, %c24_90], %116 {strides = array<i32>} : memref<100x200xf32, #tpu.memory_space<vmem>>, vector<10x8xf32>,
    %118 = vector.extract_strided_slice %9 {offsets = [32, 0], sizes = [10, 8], strides = [1, 1]} : vector<196x8xf32> to vector<10x8xf32>
    %c20_91 = arith.constant 20 : index
    %c32_92 = arith.constant 32 : index
    %119 = vector.load %arg13[%c20_91, %c32_92] : memref<100x200xf32, #tpu.memory_space<vmem>>, vector<10x8xf32>
    tpu.vector_store %arg13[%c20_91, %c32_92], %118 {strides = array<i32>} : memref<100x200xf32, #tpu.memory_space<vmem>>, vector<10x8xf32>,
    %120 = vector.extract_strided_slice %9 {offsets = [42, 0], sizes = [10, 8], strides = [1, 1]} : vector<196x8xf32> to vector<10x8xf32>
    %c20_93 = arith.constant 20 : index
    %c40_94 = arith.constant 40 : index
    %121 = vector.load %arg13[%c20_93, %c40_94] : memref<100x200xf32, #tpu.memory_space<vmem>>, vector<10x8xf32>
    tpu.vector_store %arg13[%c20_93, %c40_94], %120 {strides = array<i32>} : memref<100x200xf32, #tpu.memory_space<vmem>>, vector<10x8xf32>,
    %122 = vector.extract_strided_slice %9 {offsets = [43, 0], sizes = [10, 8], strides = [1, 1]} : vector<196x8xf32> to vector<10x8xf32>
    %c20_95 = arith.constant 20 : index
    %c48_96 = arith.constant 48 : index
    %123 = vector.load %arg13[%c20_95, %c48_96] : memref<100x200xf32, #tpu.memory_space<vmem>>, vector<10x8xf32>
    tpu.vector_store %arg13[%c20_95, %c48_96], %122 {strides = array<i32>} : memref<100x200xf32, #tpu.memory_space<vmem>>, vector<10x8xf32>,
    %124 = vector.extract_strided_slice %9 {offsets = [44, 0], sizes = [10, 8], strides = [1, 1]} : vector<196x8xf32> to vector<10x8xf32>
    %c20_97 = arith.constant 20 : index
    %c56_98 = arith.constant 56 : index
    %125 = vector.load %arg13[%c20_97, %c56_98] : memref<100x200xf32, #tpu.memory_space<vmem>>, vector<10x8xf32>
    tpu.vector_store %arg13[%c20_97, %c56_98], %124 {strides = array<i32>} : memref<100x200xf32, #tpu.memory_space<vmem>>, vector<10x8xf32>,
    %126 = vector.extract_strided_slice %9 {offsets = [45, 0], sizes = [10, 8], strides = [1, 1]} : vector<196x8xf32> to vector<10x8xf32>
    %c20_99 = arith.constant 20 : index
    %c64_100 = arith.constant 64 : index
    %127 = vector.load %arg13[%c20_99, %c64_100] : memref<100x200xf32, #tpu.memory_space<vmem>>, vector<10x8xf32>
    tpu.vector_store %arg13[%c20_99, %c64_100], %126 {strides = array<i32>} : memref<100x200xf32, #tpu.memory_space<vmem>>, vector<10x8xf32>,
    %128 = vector.extract_strided_slice %9 {offsets = [46, 0], sizes = [10, 8], strides = [1, 1]} : vector<196x8xf32> to vector<10x8xf32>
    %c20_101 = arith.constant 20 : index
    %c72_102 = arith.constant 72 : index
    %129 = vector.load %arg13[%c20_101, %c72_102] : memref<100x200xf32, #tpu.memory_space<vmem>>, vector<10x8xf32>
    tpu.vector_store %arg13[%c20_101, %c72_102], %128 {strides = array<i32>} : memref<100x200xf32, #tpu.memory_space<vmem>>, vector<10x8xf32>,
    %130 = vector.extract_strided_slice %9 {offsets = [56, 0], sizes = [10, 8], strides = [1, 1]} : vector<196x8xf32> to vector<10x8xf32>
    %c20_103 = arith.constant 20 : index
    %c80_104 = arith.constant 80 : index
    %131 = vector.load %arg13[%c20_103, %c80_104] : memref<100x200xf32, #tpu.memory_space<vmem>>, vector<10x8xf32>
    tpu.vector_store %arg13[%c20_103, %c80_104], %130 {strides = array<i32>} : memref<100x200xf32, #tpu.memory_space<vmem>>, vector<10x8xf32>,
    %132 = vector.extract_strided_slice %9 {offsets = [57, 0], sizes = [10, 8], strides = [1, 1]} : vector<196x8xf32> to vector<10x8xf32>
    %c20_105 = arith.constant 20 : index
    %c88_106 = arith.constant 88 : index
    %133 = vector.load %arg13[%c20_105, %c88_106] : memref<100x200xf32, #tpu.memory_space<vmem>>, vector<10x8xf32>
    tpu.vector_store %arg13[%c20_105, %c88_106], %132 {strides = array<i32>} : memref<100x200xf32, #tpu.memory_space<vmem>>, vector<10x8xf32>,
    %134 = vector.extract_strided_slice %9 {offsets = [58, 0], sizes = [10, 8], strides = [1, 1]} : vector<196x8xf32> to vector<10x8xf32>
    %c20_107 = arith.constant 20 : index
    %c96_108 = arith.constant 96 : index
    %135 = vector.load %arg13[%c20_107, %c96_108] : memref<100x200xf32, #tpu.memory_space<vmem>>, vector<10x8xf32>
    tpu.vector_store %arg13[%c20_107, %c96_108], %134 {strides = array<i32>} : memref<100x200xf32, #tpu.memory_space<vmem>>, vector<10x8xf32>,
    %136 = vector.extract_strided_slice %9 {offsets = [59, 0], sizes = [10, 8], strides = [1, 1]} : vector<196x8xf32> to vector<10x8xf32>
    %c20_109 = arith.constant 20 : index
    %c104_110 = arith.constant 104 : index
    %137 = vector.load %arg13[%c20_109, %c104_110] : memref<100x200xf32, #tpu.memory_space<vmem>>, vector<10x8xf32>
    tpu.vector_store %arg13[%c20_109, %c104_110], %136 {strides = array<i32>} : memref<100x200xf32, #tpu.memory_space<vmem>>, vector<10x8xf32>,
    %138 = vector.extract_strided_slice %9 {offsets = [60, 0], sizes = [10, 8], strides = [1, 1]} : vector<196x8xf32> to vector<10x8xf32>
    %c20_111 = arith.constant 20 : index
    %c112_112 = arith.constant 112 : index
    %139 = vector.load %arg13[%c20_111, %c112_112] : memref<100x200xf32, #tpu.memory_space<vmem>>, vector<10x8xf32>
    tpu.vector_store %arg13[%c20_111, %c112_112], %138 {strides = array<i32>} : memref<100x200xf32, #tpu.memory_space<vmem>>, vector<10x8xf32>,
    %140 = vector.extract_strided_slice %9 {offsets = [70, 0], sizes = [10, 8], strides = [1, 1]} : vector<196x8xf32> to vector<10x8xf32>
    %c20_113 = arith.constant 20 : index
    %c120_114 = arith.constant 120 : index
    %141 = vector.load %arg13[%c20_113, %c120_114] : memref<100x200xf32, #tpu.memory_space<vmem>>, vector<10x8xf32>
    tpu.vector_store %arg13[%c20_113, %c120_114], %140 {strides = array<i32>} : memref<100x200xf32, #tpu.memory_space<vmem>>, vector<10x8xf32>,
    %142 = vector.extract_strided_slice %9 {offsets = [71, 0], sizes = [10, 8], strides = [1, 1]} : vector<196x8xf32> to vector<10x8xf32>
    %c20_115 = arith.constant 20 : index
    %c128_116 = arith.constant 128 : index
    %143 = vector.load %arg13[%c20_115, %c128_116] : memref<100x200xf32, #tpu.memory_space<vmem>>, vector<10x8xf32>
    tpu.vector_store %arg13[%c20_115, %c128_116], %142 {strides = array<i32>} : memref<100x200xf32, #tpu.memory_space<vmem>>, vector<10x8xf32>,
    %144 = vector.extract_strided_slice %9 {offsets = [72, 0], sizes = [10, 8], strides = [1, 1]} : vector<196x8xf32> to vector<10x8xf32>
    %c20_117 = arith.constant 20 : index
    %c136_118 = arith.constant 136 : index
    %145 = vector.load %arg13[%c20_117, %c136_118] : memref<100x200xf32, #tpu.memory_space<vmem>>, vector<10x8xf32>
    tpu.vector_store %arg13[%c20_117, %c136_118], %144 {strides = array<i32>} : memref<100x200xf32, #tpu.memory_space<vmem>>, vector<10x8xf32>,
    %146 = vector.extract_strided_slice %9 {offsets = [73, 0], sizes = [10, 8], strides = [1, 1]} : vector<196x8xf32> to vector<10x8xf32>
    %c20_119 = arith.constant 20 : index
    %c144_120 = arith.constant 144 : index
    %147 = vector.load %arg13[%c20_119, %c144_120] : memref<100x200xf32, #tpu.memory_space<vmem>>, vector<10x8xf32>
    tpu.vector_store %arg13[%c20_119, %c144_120], %146 {strides = array<i32>} : memref<100x200xf32, #tpu.memory_space<vmem>>, vector<10x8xf32>,
    %148 = vector.extract_strided_slice %9 {offsets = [74, 0], sizes = [10, 8], strides = [1, 1]} : vector<196x8xf32> to vector<10x8xf32>
    %c20_121 = arith.constant 20 : index
    %c152_122 = arith.constant 152 : index
    %149 = vector.load %arg13[%c20_121, %c152_122] : memref<100x200xf32, #tpu.memory_space<vmem>>, vector<10x8xf32>
    tpu.vector_store %arg13[%c20_121, %c152_122], %148 {strides = array<i32>} : memref<100x200xf32, #tpu.memory_space<vmem>>, vector<10x8xf32>,
    %150 = vector.extract_strided_slice %9 {offsets = [84, 0], sizes = [10, 8], strides = [1, 1]} : vector<196x8xf32> to vector<10x8xf32>
    %c20_123 = arith.constant 20 : index
    %c160_124 = arith.constant 160 : index
    %151 = vector.load %arg13[%c20_123, %c160_124] : memref<100x200xf32, #tpu.memory_space<vmem>>, vector<10x8xf32>
    tpu.vector_store %arg13[%c20_123, %c160_124], %150 {strides = array<i32>} : memref<100x200xf32, #tpu.memory_space<vmem>>, vector<10x8xf32>,
    %152 = vector.extract_strided_slice %9 {offsets = [85, 0], sizes = [10, 8], strides = [1, 1]} : vector<196x8xf32> to vector<10x8xf32>
    %c20_125 = arith.constant 20 : index
    %c168_126 = arith.constant 168 : index
    %153 = vector.load %arg13[%c20_125, %c168_126] : memref<100x200xf32, #tpu.memory_space<vmem>>, vector<10x8xf32>
    tpu.vector_store %arg13[%c20_125, %c168_126], %152 {strides = array<i32>} : memref<100x200xf32, #tpu.memory_space<vmem>>, vector<10x8xf32>,
    %154 = vector.extract_strided_slice %9 {offsets = [86, 0], sizes = [10, 8], strides = [1, 1]} : vector<196x8xf32> to vector<10x8xf32>
    %c20_127 = arith.constant 20 : index
    %c176_128 = arith.constant 176 : index
    %155 = vector.load %arg13[%c20_127, %c176_128] : memref<100x200xf32, #tpu.memory_space<vmem>>, vector<10x8xf32>
    tpu.vector_store %arg13[%c20_127, %c176_128], %154 {strides = array<i32>} : memref<100x200xf32, #tpu.memory_space<vmem>>, vector<10x8xf32>,
    %156 = vector.extract_strided_slice %9 {offsets = [87, 0], sizes = [10, 8], strides = [1, 1]} : vector<196x8xf32> to vector<10x8xf32>
    %c20_129 = arith.constant 20 : index
    %c184_130 = arith.constant 184 : index
    %157 = vector.load %arg13[%c20_129, %c184_130] : memref<100x200xf32, #tpu.memory_space<vmem>>, vector<10x8xf32>
    tpu.vector_store %arg13[%c20_129, %c184_130], %156 {strides = array<i32>} : memref<100x200xf32, #tpu.memory_space<vmem>>, vector<10x8xf32>,
    %158 = vector.extract_strided_slice %9 {offsets = [88, 0], sizes = [10, 8], strides = [1, 1]} : vector<196x8xf32> to vector<10x8xf32>
    %c20_131 = arith.constant 20 : index
    %c192_132 = arith.constant 192 : index
    %159 = vector.load %arg13[%c20_131, %c192_132] : memref<100x200xf32, #tpu.memory_space<vmem>>, vector<10x8xf32>
    tpu.vector_store %arg13[%c20_131, %c192_132], %158 {strides = array<i32>} : memref<100x200xf32, #tpu.memory_space<vmem>>, vector<10x8xf32>,
    %160 = vector.extract_strided_slice %9 {offsets = [42, 0], sizes = [10, 8], strides = [1, 1]} : vector<196x8xf32> to vector<10x8xf32>
    %c30 = arith.constant 30 : index
    %c0_133 = arith.constant 0 : index
    %161 = vector.load %arg13[%c30, %c0_133] : memref<100x200xf32, #tpu.memory_space<vmem>>, vector<10x8xf32>
    tpu.vector_store %arg13[%c30, %c0_133], %160 {strides = array<i32>} : memref<100x200xf32, #tpu.memory_space<vmem>>, vector<10x8xf32>,
    %162 = vector.extract_strided_slice %9 {offsets = [43, 0], sizes = [10, 8], strides = [1, 1]} : vector<196x8xf32> to vector<10x8xf32>
    %c30_134 = arith.constant 30 : index
    %c8_135 = arith.constant 8 : index
    %163 = vector.load %arg13[%c30_134, %c8_135] : memref<100x200xf32, #tpu.memory_space<vmem>>, vector<10x8xf32>
    tpu.vector_store %arg13[%c30_134, %c8_135], %162 {strides = array<i32>} : memref<100x200xf32, #tpu.memory_space<vmem>>, vector<10x8xf32>,
    %164 = vector.extract_strided_slice %9 {offsets = [44, 0], sizes = [10, 8], strides = [1, 1]} : vector<196x8xf32> to vector<10x8xf32>
    %c30_136 = arith.constant 30 : index
    %c16_137 = arith.constant 16 : index
    %165 = vector.load %arg13[%c30_136, %c16_137] : memref<100x200xf32, #tpu.memory_space<vmem>>, vector<10x8xf32>
    tpu.vector_store %arg13[%c30_136, %c16_137], %164 {strides = array<i32>} : memref<100x200xf32, #tpu.memory_space<vmem>>, vector<10x8xf32>,
    %166 = vector.extract_strided_slice %9 {offsets = [45, 0], sizes = [10, 8], strides = [1, 1]} : vector<196x8xf32> to vector<10x8xf32>
    %c30_138 = arith.constant 30 : index
    %c24_139 = arith.constant 24 : index
    %167 = vector.load %arg13[%c30_138, %c24_139] : memref<100x200xf32, #tpu.memory_space<vmem>>, vector<10x8xf32>
    tpu.vector_store %arg13[%c30_138, %c24_139], %166 {strides = array<i32>} : memref<100x200xf32, #tpu.memory_space<vmem>>, vector<10x8xf32>,
    %168 = vector.extract_strided_slice %9 {offsets = [46, 0], sizes = [10, 8], strides = [1, 1]} : vector<196x8xf32> to vector<10x8xf32>
    %c30_140 = arith.constant 30 : index
    %c32_141 = arith.constant 32 : index
    %169 = vector.load %arg13[%c30_140, %c32_141] : memref<100x200xf32, #tpu.memory_space<vmem>>, vector<10x8xf32>
    tpu.vector_store %arg13[%c30_140, %c32_141], %168 {strides = array<i32>} : memref<100x200xf32, #tpu.memory_space<vmem>>, vector<10x8xf32>,
    %170 = vector.extract_strided_slice %9 {offsets = [56, 0], sizes = [10, 8], strides = [1, 1]} : vector<196x8xf32> to vector<10x8xf32>
    %c30_142 = arith.constant 30 : index
    %c40_143 = arith.constant 40 : index
    %171 = vector.load %arg13[%c30_142, %c40_143] : memref<100x200xf32, #tpu.memory_space<vmem>>, vector<10x8xf32>
    tpu.vector_store %arg13[%c30_142, %c40_143], %170 {strides = array<i32>} : memref<100x200xf32, #tpu.memory_space<vmem>>, vector<10x8xf32>,
    %172 = vector.extract_strided_slice %9 {offsets = [57, 0], sizes = [10, 8], strides = [1, 1]} : vector<196x8xf32> to vector<10x8xf32>
    %c30_144 = arith.constant 30 : index
    %c48_145 = arith.constant 48 : index
    %173 = vector.load %arg13[%c30_144, %c48_145] : memref<100x200xf32, #tpu.memory_space<vmem>>, vector<10x8xf32>
    tpu.vector_store %arg13[%c30_144, %c48_145], %172 {strides = array<i32>} : memref<100x200xf32, #tpu.memory_space<vmem>>, vector<10x8xf32>,
    %174 = vector.extract_strided_slice %9 {offsets = [58, 0], sizes = [10, 8], strides = [1, 1]} : vector<196x8xf32> to vector<10x8xf32>
    %c30_146 = arith.constant 30 : index
    %c56_147 = arith.constant 56 : index
    %175 = vector.load %arg13[%c30_146, %c56_147] : memref<100x200xf32, #tpu.memory_space<vmem>>, vector<10x8xf32>
    tpu.vector_store %arg13[%c30_146, %c56_147], %174 {strides = array<i32>} : memref<100x200xf32, #tpu.memory_space<vmem>>, vector<10x8xf32>,
    %176 = vector.extract_strided_slice %9 {offsets = [59, 0], sizes = [10, 8], strides = [1, 1]} : vector<196x8xf32> to vector<10x8xf32>
    %c30_148 = arith.constant 30 : index
    %c64_149 = arith.constant 64 : index
    %177 = vector.load %arg13[%c30_148, %c64_149] : memref<100x200xf32, #tpu.memory_space<vmem>>, vector<10x8xf32>
    tpu.vector_store %arg13[%c30_148, %c64_149], %176 {strides = array<i32>} : memref<100x200xf32, #tpu.memory_space<vmem>>, vector<10x8xf32>,
    %178 = vector.extract_strided_slice %9 {offsets = [60, 0], sizes = [10, 8], strides = [1, 1]} : vector<196x8xf32> to vector<10x8xf32>
    %c30_150 = arith.constant 30 : index
    %c72_151 = arith.constant 72 : index
    %179 = vector.load %arg13[%c30_150, %c72_151] : memref<100x200xf32, #tpu.memory_space<vmem>>, vector<10x8xf32>
    tpu.vector_store %arg13[%c30_150, %c72_151], %178 {strides = array<i32>} : memref<100x200xf32, #tpu.memory_space<vmem>>, vector<10x8xf32>,
    %180 = vector.extract_strided_slice %9 {offsets = [70, 0], sizes = [10, 8], strides = [1, 1]} : vector<196x8xf32> to vector<10x8xf32>
    %c30_152 = arith.constant 30 : index
    %c80_153 = arith.constant 80 : index
    %181 = vector.load %arg13[%c30_152, %c80_153] : memref<100x200xf32, #tpu.memory_space<vmem>>, vector<10x8xf32>
    tpu.vector_store %arg13[%c30_152, %c80_153], %180 {strides = array<i32>} : memref<100x200xf32, #tpu.memory_space<vmem>>, vector<10x8xf32>,
    %182 = vector.extract_strided_slice %9 {offsets = [71, 0], sizes = [10, 8], strides = [1, 1]} : vector<196x8xf32> to vector<10x8xf32>
    %c30_154 = arith.constant 30 : index
    %c88_155 = arith.constant 88 : index
    %183 = vector.load %arg13[%c30_154, %c88_155] : memref<100x200xf32, #tpu.memory_space<vmem>>, vector<10x8xf32>
    tpu.vector_store %arg13[%c30_154, %c88_155], %182 {strides = array<i32>} : memref<100x200xf32, #tpu.memory_space<vmem>>, vector<10x8xf32>,
    %184 = vector.extract_strided_slice %9 {offsets = [72, 0], sizes = [10, 8], strides = [1, 1]} : vector<196x8xf32> to vector<10x8xf32>
    %c30_156 = arith.constant 30 : index
    %c96_157 = arith.constant 96 : index
    %185 = vector.load %arg13[%c30_156, %c96_157] : memref<100x200xf32, #tpu.memory_space<vmem>>, vector<10x8xf32>
    tpu.vector_store %arg13[%c30_156, %c96_157], %184 {strides = array<i32>} : memref<100x200xf32, #tpu.memory_space<vmem>>, vector<10x8xf32>,
    %186 = vector.extract_strided_slice %9 {offsets = [73, 0], sizes = [10, 8], strides = [1, 1]} : vector<196x8xf32> to vector<10x8xf32>
    %c30_158 = arith.constant 30 : index
    %c104_159 = arith.constant 104 : index
    %187 = vector.load %arg13[%c30_158, %c104_159] : memref<100x200xf32, #tpu.memory_space<vmem>>, vector<10x8xf32>
    tpu.vector_store %arg13[%c30_158, %c104_159], %186 {strides = array<i32>} : memref<100x200xf32, #tpu.memory_space<vmem>>, vector<10x8xf32>,
    %188 = vector.extract_strided_slice %9 {offsets = [74, 0], sizes = [10, 8], strides = [1, 1]} : vector<196x8xf32> to vector<10x8xf32>
    %c30_160 = arith.constant 30 : index
    %c112_161 = arith.constant 112 : index
    %189 = vector.load %arg13[%c30_160, %c112_161] : memref<100x200xf32, #tpu.memory_space<vmem>>, vector<10x8xf32>
    tpu.vector_store %arg13[%c30_160, %c112_161], %188 {strides = array<i32>} : memref<100x200xf32, #tpu.memory_space<vmem>>, vector<10x8xf32>,
    %190 = vector.extract_strided_slice %9 {offsets = [84, 0], sizes = [10, 8], strides = [1, 1]} : vector<196x8xf32> to vector<10x8xf32>
    %c30_162 = arith.constant 30 : index
    %c120_163 = arith.constant 120 : index
    %191 = vector.load %arg13[%c30_162, %c120_163] : memref<100x200xf32, #tpu.memory_space<vmem>>, vector<10x8xf32>
    tpu.vector_store %arg13[%c30_162, %c120_163], %190 {strides = array<i32>} : memref<100x200xf32, #tpu.memory_space<vmem>>, vector<10x8xf32>,
    %192 = vector.extract_strided_slice %9 {offsets = [85, 0], sizes = [10, 8], strides = [1, 1]} : vector<196x8xf32> to vector<10x8xf32>
    %c30_164 = arith.constant 30 : index
    %c128_165 = arith.constant 128 : index
    %193 = vector.load %arg13[%c30_164, %c128_165] : memref<100x200xf32, #tpu.memory_space<vmem>>, vector<10x8xf32>
    tpu.vector_store %arg13[%c30_164, %c128_165], %192 {strides = array<i32>} : memref<100x200xf32, #tpu.memory_space<vmem>>, vector<10x8xf32>,
    %194 = vector.extract_strided_slice %9 {offsets = [86, 0], sizes = [10, 8], strides = [1, 1]} : vector<196x8xf32> to vector<10x8xf32>
    %c30_166 = arith.constant 30 : index
    %c136_167 = arith.constant 136 : index
    %195 = vector.load %arg13[%c30_166, %c136_167] : memref<100x200xf32, #tpu.memory_space<vmem>>, vector<10x8xf32>
    tpu.vector_store %arg13[%c30_166, %c136_167], %194 {strides = array<i32>} : memref<100x200xf32, #tpu.memory_space<vmem>>, vector<10x8xf32>,
    %196 = vector.extract_strided_slice %9 {offsets = [87, 0], sizes = [10, 8], strides = [1, 1]} : vector<196x8xf32> to vector<10x8xf32>
    %c30_168 = arith.constant 30 : index
    %c144_169 = arith.constant 144 : index
    %197 = vector.load %arg13[%c30_168, %c144_169] : memref<100x200xf32, #tpu.memory_space<vmem>>, vector<10x8xf32>
    tpu.vector_store %arg13[%c30_168, %c144_169], %196 {strides = array<i32>} : memref<100x200xf32, #tpu.memory_space<vmem>>, vector<10x8xf32>,
    %198 = vector.extract_strided_slice %9 {offsets = [88, 0], sizes = [10, 8], strides = [1, 1]} : vector<196x8xf32> to vector<10x8xf32>
    %c30_170 = arith.constant 30 : index
    %c152_171 = arith.constant 152 : index
    %199 = vector.load %arg13[%c30_170, %c152_171] : memref<100x200xf32, #tpu.memory_space<vmem>>, vector<10x8xf32>
    tpu.vector_store %arg13[%c30_170, %c152_171], %198 {strides = array<i32>} : memref<100x200xf32, #tpu.memory_space<vmem>>, vector<10x8xf32>,
    %200 = vector.extract_strided_slice %9 {offsets = [98, 0], sizes = [10, 8], strides = [1, 1]} : vector<196x8xf32> to vector<10x8xf32>
    %c30_172 = arith.constant 30 : index
    %c160_173 = arith.constant 160 : index
    %201 = vector.load %arg13[%c30_172, %c160_173] : memref<100x200xf32, #tpu.memory_space<vmem>>, vector<10x8xf32>
    tpu.vector_store %arg13[%c30_172, %c160_173], %200 {strides = array<i32>} : memref<100x200xf32, #tpu.memory_space<vmem>>, vector<10x8xf32>,
    %202 = vector.extract_strided_slice %9 {offsets = [99, 0], sizes = [10, 8], strides = [1, 1]} : vector<196x8xf32> to vector<10x8xf32>
    %c30_174 = arith.constant 30 : index
    %c168_175 = arith.constant 168 : index
    %203 = vector.load %arg13[%c30_174, %c168_175] : memref<100x200xf32, #tpu.memory_space<vmem>>, vector<10x8xf32>
    tpu.vector_store %arg13[%c30_174, %c168_175], %202 {strides = array<i32>} : memref<100x200xf32, #tpu.memory_space<vmem>>, vector<10x8xf32>,
    %204 = vector.extract_strided_slice %9 {offsets = [100, 0], sizes = [10, 8], strides = [1, 1]} : vector<196x8xf32> to vector<10x8xf32>
    %c30_176 = arith.constant 30 : index
    %c176_177 = arith.constant 176 : index
    %205 = vector.load %arg13[%c30_176, %c176_177] : memref<100x200xf32, #tpu.memory_space<vmem>>, vector<10x8xf32>
    tpu.vector_store %arg13[%c30_176, %c176_177], %204 {strides = array<i32>} : memref<100x200xf32, #tpu.memory_space<vmem>>, vector<10x8xf32>,
    %206 = vector.extract_strided_slice %9 {offsets = [101, 0], sizes = [10, 8], strides = [1, 1]} : vector<196x8xf32> to vector<10x8xf32>
    %c30_178 = arith.constant 30 : index
    %c184_179 = arith.constant 184 : index
    %207 = vector.load %arg13[%c30_178, %c184_179] : memref<100x200xf32, #tpu.memory_space<vmem>>, vector<10x8xf32>
    tpu.vector_store %arg13[%c30_178, %c184_179], %206 {strides = array<i32>} : memref<100x200xf32, #tpu.memory_space<vmem>>, vector<10x8xf32>,
    %208 = vector.extract_strided_slice %9 {offsets = [102, 0], sizes = [10, 8], strides = [1, 1]} : vector<196x8xf32> to vector<10x8xf32>
    %c30_180 = arith.constant 30 : index
    %c192_181 = arith.constant 192 : index
    %209 = vector.load %arg13[%c30_180, %c192_181] : memref<100x200xf32, #tpu.memory_space<vmem>>, vector<10x8xf32>
    tpu.vector_store %arg13[%c30_180, %c192_181], %208 {strides = array<i32>} : memref<100x200xf32, #tpu.memory_space<vmem>>, vector<10x8xf32>,
    %210 = vector.extract_strided_slice %9 {offsets = [56, 0], sizes = [10, 8], strides = [1, 1]} : vector<196x8xf32> to vector<10x8xf32>
    %c40_182 = arith.constant 40 : index
    %c0_183 = arith.constant 0 : index
    %211 = vector.load %arg13[%c40_182, %c0_183] : memref<100x200xf32, #tpu.memory_space<vmem>>, vector<10x8xf32>
    tpu.vector_store %arg13[%c40_182, %c0_183], %210 {strides = array<i32>} : memref<100x200xf32, #tpu.memory_space<vmem>>, vector<10x8xf32>,
    %212 = vector.extract_strided_slice %9 {offsets = [57, 0], sizes = [10, 8], strides = [1, 1]} : vector<196x8xf32> to vector<10x8xf32>
    %c40_184 = arith.constant 40 : index
    %c8_185 = arith.constant 8 : index
    %213 = vector.load %arg13[%c40_184, %c8_185] : memref<100x200xf32, #tpu.memory_space<vmem>>, vector<10x8xf32>
    tpu.vector_store %arg13[%c40_184, %c8_185], %212 {strides = array<i32>} : memref<100x200xf32, #tpu.memory_space<vmem>>, vector<10x8xf32>,
    %214 = vector.extract_strided_slice %9 {offsets = [58, 0], sizes = [10, 8], strides = [1, 1]} : vector<196x8xf32> to vector<10x8xf32>
    %c40_186 = arith.constant 40 : index
    %c16_187 = arith.constant 16 : index
    %215 = vector.load %arg13[%c40_186, %c16_187] : memref<100x200xf32, #tpu.memory_space<vmem>>, vector<10x8xf32>
    tpu.vector_store %arg13[%c40_186, %c16_187], %214 {strides = array<i32>} : memref<100x200xf32, #tpu.memory_space<vmem>>, vector<10x8xf32>,
    %216 = vector.extract_strided_slice %9 {offsets = [59, 0], sizes = [10, 8], strides = [1, 1]} : vector<196x8xf32> to vector<10x8xf32>
    %c40_188 = arith.constant 40 : index
    %c24_189 = arith.constant 24 : index
    %217 = vector.load %arg13[%c40_188, %c24_189] : memref<100x200xf32, #tpu.memory_space<vmem>>, vector<10x8xf32>
    tpu.vector_store %arg13[%c40_188, %c24_189], %216 {strides = array<i32>} : memref<100x200xf32, #tpu.memory_space<vmem>>, vector<10x8xf32>,
    %218 = vector.extract_strided_slice %9 {offsets = [60, 0], sizes = [10, 8], strides = [1, 1]} : vector<196x8xf32> to vector<10x8xf32>
    %c40_190 = arith.constant 40 : index
    %c32_191 = arith.constant 32 : index
    %219 = vector.load %arg13[%c40_190, %c32_191] : memref<100x200xf32, #tpu.memory_space<vmem>>, vector<10x8xf32>
    tpu.vector_store %arg13[%c40_190, %c32_191], %218 {strides = array<i32>} : memref<100x200xf32, #tpu.memory_space<vmem>>, vector<10x8xf32>,
    %220 = vector.extract_strided_slice %9 {offsets = [70, 0], sizes = [10, 8], strides = [1, 1]} : vector<196x8xf32> to vector<10x8xf32>
    %c40_192 = arith.constant 40 : index
    %c40_193 = arith.constant 40 : index
    %221 = vector.load %arg13[%c40_192, %c40_193] : memref<100x200xf32, #tpu.memory_space<vmem>>, vector<10x8xf32>
    tpu.vector_store %arg13[%c40_192, %c40_193], %220 {strides = array<i32>} : memref<100x200xf32, #tpu.memory_space<vmem>>, vector<10x8xf32>,
    %222 = vector.extract_strided_slice %9 {offsets = [71, 0], sizes = [10, 8], strides = [1, 1]} : vector<196x8xf32> to vector<10x8xf32>
    %c40_194 = arith.constant 40 : index
    %c48_195 = arith.constant 48 : index
    %223 = vector.load %arg13[%c40_194, %c48_195] : memref<100x200xf32, #tpu.memory_space<vmem>>, vector<10x8xf32>
    tpu.vector_store %arg13[%c40_194, %c48_195], %222 {strides = array<i32>} : memref<100x200xf32, #tpu.memory_space<vmem>>, vector<10x8xf32>,
    %224 = vector.extract_strided_slice %9 {offsets = [72, 0], sizes = [10, 8], strides = [1, 1]} : vector<196x8xf32> to vector<10x8xf32>
    %c40_196 = arith.constant 40 : index
    %c56_197 = arith.constant 56 : index
    %225 = vector.load %arg13[%c40_196, %c56_197] : memref<100x200xf32, #tpu.memory_space<vmem>>, vector<10x8xf32>
    tpu.vector_store %arg13[%c40_196, %c56_197], %224 {strides = array<i32>} : memref<100x200xf32, #tpu.memory_space<vmem>>, vector<10x8xf32>,
    %226 = vector.extract_strided_slice %9 {offsets = [73, 0], sizes = [10, 8], strides = [1, 1]} : vector<196x8xf32> to vector<10x8xf32>
    %c40_198 = arith.constant 40 : index
    %c64_199 = arith.constant 64 : index
    %227 = vector.load %arg13[%c40_198, %c64_199] : memref<100x200xf32, #tpu.memory_space<vmem>>, vector<10x8xf32>
    tpu.vector_store %arg13[%c40_198, %c64_199], %226 {strides = array<i32>} : memref<100x200xf32, #tpu.memory_space<vmem>>, vector<10x8xf32>,
    %228 = vector.extract_strided_slice %9 {offsets = [74, 0], sizes = [10, 8], strides = [1, 1]} : vector<196x8xf32> to vector<10x8xf32>
    %c40_200 = arith.constant 40 : index
    %c72_201 = arith.constant 72 : index
    %229 = vector.load %arg13[%c40_200, %c72_201] : memref<100x200xf32, #tpu.memory_space<vmem>>, vector<10x8xf32>
    tpu.vector_store %arg13[%c40_200, %c72_201], %228 {strides = array<i32>} : memref<100x200xf32, #tpu.memory_space<vmem>>, vector<10x8xf32>,
    %230 = vector.extract_strided_slice %9 {offsets = [84, 0], sizes = [10, 8], strides = [1, 1]} : vector<196x8xf32> to vector<10x8xf32>
    %c40_202 = arith.constant 40 : index
    %c80_203 = arith.constant 80 : index
    %231 = vector.load %arg13[%c40_202, %c80_203] : memref<100x200xf32, #tpu.memory_space<vmem>>, vector<10x8xf32>
    tpu.vector_store %arg13[%c40_202, %c80_203], %230 {strides = array<i32>} : memref<100x200xf32, #tpu.memory_space<vmem>>, vector<10x8xf32>,
    %232 = vector.extract_strided_slice %9 {offsets = [85, 0], sizes = [10, 8], strides = [1, 1]} : vector<196x8xf32> to vector<10x8xf32>
    %c40_204 = arith.constant 40 : index
    %c88_205 = arith.constant 88 : index
    %233 = vector.load %arg13[%c40_204, %c88_205] : memref<100x200xf32, #tpu.memory_space<vmem>>, vector<10x8xf32>
    tpu.vector_store %arg13[%c40_204, %c88_205], %232 {strides = array<i32>} : memref<100x200xf32, #tpu.memory_space<vmem>>, vector<10x8xf32>,
    %234 = vector.extract_strided_slice %9 {offsets = [86, 0], sizes = [10, 8], strides = [1, 1]} : vector<196x8xf32> to vector<10x8xf32>
    %c40_206 = arith.constant 40 : index
    %c96_207 = arith.constant 96 : index
    %235 = vector.load %arg13[%c40_206, %c96_207] : memref<100x200xf32, #tpu.memory_space<vmem>>, vector<10x8xf32>
    tpu.vector_store %arg13[%c40_206, %c96_207], %234 {strides = array<i32>} : memref<100x200xf32, #tpu.memory_space<vmem>>, vector<10x8xf32>,
    %236 = vector.extract_strided_slice %9 {offsets = [87, 0], sizes = [10, 8], strides = [1, 1]} : vector<196x8xf32> to vector<10x8xf32>
    %c40_208 = arith.constant 40 : index
    %c104_209 = arith.constant 104 : index
    %237 = vector.load %arg13[%c40_208, %c104_209] : memref<100x200xf32, #tpu.memory_space<vmem>>, vector<10x8xf32>
    tpu.vector_store %arg13[%c40_208, %c104_209], %236 {strides = array<i32>} : memref<100x200xf32, #tpu.memory_space<vmem>>, vector<10x8xf32>,
    %238 = vector.extract_strided_slice %9 {offsets = [88, 0], sizes = [10, 8], strides = [1, 1]} : vector<196x8xf32> to vector<10x8xf32>
    %c40_210 = arith.constant 40 : index
    %c112_211 = arith.constant 112 : index
    %239 = vector.load %arg13[%c40_210, %c112_211] : memref<100x200xf32, #tpu.memory_space<vmem>>, vector<10x8xf32>
    tpu.vector_store %arg13[%c40_210, %c112_211], %238 {strides = array<i32>} : memref<100x200xf32, #tpu.memory_space<vmem>>, vector<10x8xf32>,
    %240 = vector.extract_strided_slice %9 {offsets = [98, 0], sizes = [10, 8], strides = [1, 1]} : vector<196x8xf32> to vector<10x8xf32>
    %c40_212 = arith.constant 40 : index
    %c120_213 = arith.constant 120 : index
    %241 = vector.load %arg13[%c40_212, %c120_213] : memref<100x200xf32, #tpu.memory_space<vmem>>, vector<10x8xf32>
    tpu.vector_store %arg13[%c40_212, %c120_213], %240 {strides = array<i32>} : memref<100x200xf32, #tpu.memory_space<vmem>>, vector<10x8xf32>,
    %242 = vector.extract_strided_slice %9 {offsets = [99, 0], sizes = [10, 8], strides = [1, 1]} : vector<196x8xf32> to vector<10x8xf32>
    %c40_214 = arith.constant 40 : index
    %c128_215 = arith.constant 128 : index
    %243 = vector.load %arg13[%c40_214, %c128_215] : memref<100x200xf32, #tpu.memory_space<vmem>>, vector<10x8xf32>
    tpu.vector_store %arg13[%c40_214, %c128_215], %242 {strides = array<i32>} : memref<100x200xf32, #tpu.memory_space<vmem>>, vector<10x8xf32>,
    %244 = vector.extract_strided_slice %9 {offsets = [100, 0], sizes = [10, 8], strides = [1, 1]} : vector<196x8xf32> to vector<10x8xf32>
    %c40_216 = arith.constant 40 : index
    %c136_217 = arith.constant 136 : index
    %245 = vector.load %arg13[%c40_216, %c136_217] : memref<100x200xf32, #tpu.memory_space<vmem>>, vector<10x8xf32>
    tpu.vector_store %arg13[%c40_216, %c136_217], %244 {strides = array<i32>} : memref<100x200xf32, #tpu.memory_space<vmem>>, vector<10x8xf32>,
    %246 = vector.extract_strided_slice %9 {offsets = [101, 0], sizes = [10, 8], strides = [1, 1]} : vector<196x8xf32> to vector<10x8xf32>
    %c40_218 = arith.constant 40 : index
    %c144_219 = arith.constant 144 : index
    %247 = vector.load %arg13[%c40_218, %c144_219] : memref<100x200xf32, #tpu.memory_space<vmem>>, vector<10x8xf32>
    tpu.vector_store %arg13[%c40_218, %c144_219], %246 {strides = array<i32>} : memref<100x200xf32, #tpu.memory_space<vmem>>, vector<10x8xf32>,
    %248 = vector.extract_strided_slice %9 {offsets = [102, 0], sizes = [10, 8], strides = [1, 1]} : vector<196x8xf32> to vector<10x8xf32>
    %c40_220 = arith.constant 40 : index
    %c152_221 = arith.constant 152 : index
    %249 = vector.load %arg13[%c40_220, %c152_221] : memref<100x200xf32, #tpu.memory_space<vmem>>, vector<10x8xf32>
    tpu.vector_store %arg13[%c40_220, %c152_221], %248 {strides = array<i32>} : memref<100x200xf32, #tpu.memory_space<vmem>>, vector<10x8xf32>,
    %250 = vector.extract_strided_slice %9 {offsets = [112, 0], sizes = [10, 8], strides = [1, 1]} : vector<196x8xf32> to vector<10x8xf32>
    %c40_222 = arith.constant 40 : index
    %c160_223 = arith.constant 160 : index
    %251 = vector.load %arg13[%c40_222, %c160_223] : memref<100x200xf32, #tpu.memory_space<vmem>>, vector<10x8xf32>
    tpu.vector_store %arg13[%c40_222, %c160_223], %250 {strides = array<i32>} : memref<100x200xf32, #tpu.memory_space<vmem>>, vector<10x8xf32>,
    %252 = vector.extract_strided_slice %9 {offsets = [113, 0], sizes = [10, 8], strides = [1, 1]} : vector<196x8xf32> to vector<10x8xf32>
    %c40_224 = arith.constant 40 : index
    %c168_225 = arith.constant 168 : index
    %253 = vector.load %arg13[%c40_224, %c168_225] : memref<100x200xf32, #tpu.memory_space<vmem>>, vector<10x8xf32>
    tpu.vector_store %arg13[%c40_224, %c168_225], %252 {strides = array<i32>} : memref<100x200xf32, #tpu.memory_space<vmem>>, vector<10x8xf32>,
    %254 = vector.extract_strided_slice %9 {offsets = [114, 0], sizes = [10, 8], strides = [1, 1]} : vector<196x8xf32> to vector<10x8xf32>
    %c40_226 = arith.constant 40 : index
    %c176_227 = arith.constant 176 : index
    %255 = vector.load %arg13[%c40_226, %c176_227] : memref<100x200xf32, #tpu.memory_space<vmem>>, vector<10x8xf32>
    tpu.vector_store %arg13[%c40_226, %c176_227], %254 {strides = array<i32>} : memref<100x200xf32, #tpu.memory_space<vmem>>, vector<10x8xf32>,
    %256 = vector.extract_strided_slice %9 {offsets = [115, 0], sizes = [10, 8], strides = [1, 1]} : vector<196x8xf32> to vector<10x8xf32>
    %c40_228 = arith.constant 40 : index
    %c184_229 = arith.constant 184 : index
    %257 = vector.load %arg13[%c40_228, %c184_229] : memref<100x200xf32, #tpu.memory_space<vmem>>, vector<10x8xf32>
    tpu.vector_store %arg13[%c40_228, %c184_229], %256 {strides = array<i32>} : memref<100x200xf32, #tpu.memory_space<vmem>>, vector<10x8xf32>,
    %258 = vector.extract_strided_slice %9 {offsets = [116, 0], sizes = [10, 8], strides = [1, 1]} : vector<196x8xf32> to vector<10x8xf32>
    %c40_230 = arith.constant 40 : index
    %c192_231 = arith.constant 192 : index
    %259 = vector.load %arg13[%c40_230, %c192_231] : memref<100x200xf32, #tpu.memory_space<vmem>>, vector<10x8xf32>
    tpu.vector_store %arg13[%c40_230, %c192_231], %258 {strides = array<i32>} : memref<100x200xf32, #tpu.memory_space<vmem>>, vector<10x8xf32>,
    %260 = vector.extract_strided_slice %9 {offsets = [70, 0], sizes = [10, 8], strides = [1, 1]} : vector<196x8xf32> to vector<10x8xf32>
    %c50 = arith.constant 50 : index
    %c0_232 = arith.constant 0 : index
    %261 = vector.load %arg13[%c50, %c0_232] : memref<100x200xf32, #tpu.memory_space<vmem>>, vector<10x8xf32>
    tpu.vector_store %arg13[%c50, %c0_232], %260 {strides = array<i32>} : memref<100x200xf32, #tpu.memory_space<vmem>>, vector<10x8xf32>,
    %262 = vector.extract_strided_slice %9 {offsets = [71, 0], sizes = [10, 8], strides = [1, 1]} : vector<196x8xf32> to vector<10x8xf32>
    %c50_233 = arith.constant 50 : index
    %c8_234 = arith.constant 8 : index
    %263 = vector.load %arg13[%c50_233, %c8_234] : memref<100x200xf32, #tpu.memory_space<vmem>>, vector<10x8xf32>
    tpu.vector_store %arg13[%c50_233, %c8_234], %262 {strides = array<i32>} : memref<100x200xf32, #tpu.memory_space<vmem>>, vector<10x8xf32>,
    %264 = vector.extract_strided_slice %9 {offsets = [72, 0], sizes = [10, 8], strides = [1, 1]} : vector<196x8xf32> to vector<10x8xf32>
    %c50_235 = arith.constant 50 : index
    %c16_236 = arith.constant 16 : index
    %265 = vector.load %arg13[%c50_235, %c16_236] : memref<100x200xf32, #tpu.memory_space<vmem>>, vector<10x8xf32>
    tpu.vector_store %arg13[%c50_235, %c16_236], %264 {strides = array<i32>} : memref<100x200xf32, #tpu.memory_space<vmem>>, vector<10x8xf32>,
    %266 = vector.extract_strided_slice %9 {offsets = [73, 0], sizes = [10, 8], strides = [1, 1]} : vector<196x8xf32> to vector<10x8xf32>
    %c50_237 = arith.constant 50 : index
    %c24_238 = arith.constant 24 : index
    %267 = vector.load %arg13[%c50_237, %c24_238] : memref<100x200xf32, #tpu.memory_space<vmem>>, vector<10x8xf32>
    tpu.vector_store %arg13[%c50_237, %c24_238], %266 {strides = array<i32>} : memref<100x200xf32, #tpu.memory_space<vmem>>, vector<10x8xf32>,
    %268 = vector.extract_strided_slice %9 {offsets = [74, 0], sizes = [10, 8], strides = [1, 1]} : vector<196x8xf32> to vector<10x8xf32>
    %c50_239 = arith.constant 50 : index
    %c32_240 = arith.constant 32 : index
    %269 = vector.load %arg13[%c50_239, %c32_240] : memref<100x200xf32, #tpu.memory_space<vmem>>, vector<10x8xf32>
    tpu.vector_store %arg13[%c50_239, %c32_240], %268 {strides = array<i32>} : memref<100x200xf32, #tpu.memory_space<vmem>>, vector<10x8xf32>,
    %270 = vector.extract_strided_slice %9 {offsets = [84, 0], sizes = [10, 8], strides = [1, 1]} : vector<196x8xf32> to vector<10x8xf32>
    %c50_241 = arith.constant 50 : index
    %c40_242 = arith.constant 40 : index
    %271 = vector.load %arg13[%c50_241, %c40_242] : memref<100x200xf32, #tpu.memory_space<vmem>>, vector<10x8xf32>
    tpu.vector_store %arg13[%c50_241, %c40_242], %270 {strides = array<i32>} : memref<100x200xf32, #tpu.memory_space<vmem>>, vector<10x8xf32>,
    %272 = vector.extract_strided_slice %9 {offsets = [85, 0], sizes = [10, 8], strides = [1, 1]} : vector<196x8xf32> to vector<10x8xf32>
    %c50_243 = arith.constant 50 : index
    %c48_244 = arith.constant 48 : index
    %273 = vector.load %arg13[%c50_243, %c48_244] : memref<100x200xf32, #tpu.memory_space<vmem>>, vector<10x8xf32>
    tpu.vector_store %arg13[%c50_243, %c48_244], %272 {strides = array<i32>} : memref<100x200xf32, #tpu.memory_space<vmem>>, vector<10x8xf32>,
    %274 = vector.extract_strided_slice %9 {offsets = [86, 0], sizes = [10, 8], strides = [1, 1]} : vector<196x8xf32> to vector<10x8xf32>
    %c50_245 = arith.constant 50 : index
    %c56_246 = arith.constant 56 : index
    %275 = vector.load %arg13[%c50_245, %c56_246] : memref<100x200xf32, #tpu.memory_space<vmem>>, vector<10x8xf32>
    tpu.vector_store %arg13[%c50_245, %c56_246], %274 {strides = array<i32>} : memref<100x200xf32, #tpu.memory_space<vmem>>, vector<10x8xf32>,
    %276 = vector.extract_strided_slice %9 {offsets = [87, 0], sizes = [10, 8], strides = [1, 1]} : vector<196x8xf32> to vector<10x8xf32>
    %c50_247 = arith.constant 50 : index
    %c64_248 = arith.constant 64 : index
    %277 = vector.load %arg13[%c50_247, %c64_248] : memref<100x200xf32, #tpu.memory_space<vmem>>, vector<10x8xf32>
    tpu.vector_store %arg13[%c50_247, %c64_248], %276 {strides = array<i32>} : memref<100x200xf32, #tpu.memory_space<vmem>>, vector<10x8xf32>,
    %278 = vector.extract_strided_slice %9 {offsets = [88, 0], sizes = [10, 8], strides = [1, 1]} : vector<196x8xf32> to vector<10x8xf32>
    %c50_249 = arith.constant 50 : index
    %c72_250 = arith.constant 72 : index
    %279 = vector.load %arg13[%c50_249, %c72_250] : memref<100x200xf32, #tpu.memory_space<vmem>>, vector<10x8xf32>
    tpu.vector_store %arg13[%c50_249, %c72_250], %278 {strides = array<i32>} : memref<100x200xf32, #tpu.memory_space<vmem>>, vector<10x8xf32>,
    %280 = vector.extract_strided_slice %9 {offsets = [98, 0], sizes = [10, 8], strides = [1, 1]} : vector<196x8xf32> to vector<10x8xf32>
    %c50_251 = arith.constant 50 : index
    %c80_252 = arith.constant 80 : index
    %281 = vector.load %arg13[%c50_251, %c80_252] : memref<100x200xf32, #tpu.memory_space<vmem>>, vector<10x8xf32>
    tpu.vector_store %arg13[%c50_251, %c80_252], %280 {strides = array<i32>} : memref<100x200xf32, #tpu.memory_space<vmem>>, vector<10x8xf32>,
    %282 = vector.extract_strided_slice %9 {offsets = [99, 0], sizes = [10, 8], strides = [1, 1]} : vector<196x8xf32> to vector<10x8xf32>
    %c50_253 = arith.constant 50 : index
    %c88_254 = arith.constant 88 : index
    %283 = vector.load %arg13[%c50_253, %c88_254] : memref<100x200xf32, #tpu.memory_space<vmem>>, vector<10x8xf32>
    tpu.vector_store %arg13[%c50_253, %c88_254], %282 {strides = array<i32>} : memref<100x200xf32, #tpu.memory_space<vmem>>, vector<10x8xf32>,
    %284 = vector.extract_strided_slice %9 {offsets = [100, 0], sizes = [10, 8], strides = [1, 1]} : vector<196x8xf32> to vector<10x8xf32>
    %c50_255 = arith.constant 50 : index
    %c96_256 = arith.constant 96 : index
    %285 = vector.load %arg13[%c50_255, %c96_256] : memref<100x200xf32, #tpu.memory_space<vmem>>, vector<10x8xf32>
    tpu.vector_store %arg13[%c50_255, %c96_256], %284 {strides = array<i32>} : memref<100x200xf32, #tpu.memory_space<vmem>>, vector<10x8xf32>,
    %286 = vector.extract_strided_slice %9 {offsets = [101, 0], sizes = [10, 8], strides = [1, 1]} : vector<196x8xf32> to vector<10x8xf32>
    %c50_257 = arith.constant 50 : index
    %c104_258 = arith.constant 104 : index
    %287 = vector.load %arg13[%c50_257, %c104_258] : memref<100x200xf32, #tpu.memory_space<vmem>>, vector<10x8xf32>
    tpu.vector_store %arg13[%c50_257, %c104_258], %286 {strides = array<i32>} : memref<100x200xf32, #tpu.memory_space<vmem>>, vector<10x8xf32>,
    %288 = vector.extract_strided_slice %9 {offsets = [102, 0], sizes = [10, 8], strides = [1, 1]} : vector<196x8xf32> to vector<10x8xf32>
    %c50_259 = arith.constant 50 : index
    %c112_260 = arith.constant 112 : index
    %289 = vector.load %arg13[%c50_259, %c112_260] : memref<100x200xf32, #tpu.memory_space<vmem>>, vector<10x8xf32>
    tpu.vector_store %arg13[%c50_259, %c112_260], %288 {strides = array<i32>} : memref<100x200xf32, #tpu.memory_space<vmem>>, vector<10x8xf32>,
    %290 = vector.extract_strided_slice %9 {offsets = [112, 0], sizes = [10, 8], strides = [1, 1]} : vector<196x8xf32> to vector<10x8xf32>
    %c50_261 = arith.constant 50 : index
    %c120_262 = arith.constant 120 : index
    %291 = vector.load %arg13[%c50_261, %c120_262] : memref<100x200xf32, #tpu.memory_space<vmem>>, vector<10x8xf32>
    tpu.vector_store %arg13[%c50_261, %c120_262], %290 {strides = array<i32>} : memref<100x200xf32, #tpu.memory_space<vmem>>, vector<10x8xf32>,
    %292 = vector.extract_strided_slice %9 {offsets = [113, 0], sizes = [10, 8], strides = [1, 1]} : vector<196x8xf32> to vector<10x8xf32>
    %c50_263 = arith.constant 50 : index
    %c128_264 = arith.constant 128 : index
    %293 = vector.load %arg13[%c50_263, %c128_264] : memref<100x200xf32, #tpu.memory_space<vmem>>, vector<10x8xf32>
    tpu.vector_store %arg13[%c50_263, %c128_264], %292 {strides = array<i32>} : memref<100x200xf32, #tpu.memory_space<vmem>>, vector<10x8xf32>,
    %294 = vector.extract_strided_slice %9 {offsets = [114, 0], sizes = [10, 8], strides = [1, 1]} : vector<196x8xf32> to vector<10x8xf32>
    %c50_265 = arith.constant 50 : index
    %c136_266 = arith.constant 136 : index
    %295 = vector.load %arg13[%c50_265, %c136_266] : memref<100x200xf32, #tpu.memory_space<vmem>>, vector<10x8xf32>
    tpu.vector_store %arg13[%c50_265, %c136_266], %294 {strides = array<i32>} : memref<100x200xf32, #tpu.memory_space<vmem>>, vector<10x8xf32>,
    %296 = vector.extract_strided_slice %9 {offsets = [115, 0], sizes = [10, 8], strides = [1, 1]} : vector<196x8xf32> to vector<10x8xf32>
    %c50_267 = arith.constant 50 : index
    %c144_268 = arith.constant 144 : index
    %297 = vector.load %arg13[%c50_267, %c144_268] : memref<100x200xf32, #tpu.memory_space<vmem>>, vector<10x8xf32>
    tpu.vector_store %arg13[%c50_267, %c144_268], %296 {strides = array<i32>} : memref<100x200xf32, #tpu.memory_space<vmem>>, vector<10x8xf32>,
    %298 = vector.extract_strided_slice %9 {offsets = [116, 0], sizes = [10, 8], strides = [1, 1]} : vector<196x8xf32> to vector<10x8xf32>
    %c50_269 = arith.constant 50 : index
    %c152_270 = arith.constant 152 : index
    %299 = vector.load %arg13[%c50_269, %c152_270] : memref<100x200xf32, #tpu.memory_space<vmem>>, vector<10x8xf32>
    tpu.vector_store %arg13[%c50_269, %c152_270], %298 {strides = array<i32>} : memref<100x200xf32, #tpu.memory_space<vmem>>, vector<10x8xf32>,
    %300 = vector.extract_strided_slice %9 {offsets = [126, 0], sizes = [10, 8], strides = [1, 1]} : vector<196x8xf32> to vector<10x8xf32>
    %c50_271 = arith.constant 50 : index
    %c160_272 = arith.constant 160 : index
    %301 = vector.load %arg13[%c50_271, %c160_272] : memref<100x200xf32, #tpu.memory_space<vmem>>, vector<10x8xf32>
    tpu.vector_store %arg13[%c50_271, %c160_272], %300 {strides = array<i32>} : memref<100x200xf32, #tpu.memory_space<vmem>>, vector<10x8xf32>,
    %302 = vector.extract_strided_slice %9 {offsets = [127, 0], sizes = [10, 8], strides = [1, 1]} : vector<196x8xf32> to vector<10x8xf32>
    %c50_273 = arith.constant 50 : index
    %c168_274 = arith.constant 168 : index
    %303 = vector.load %arg13[%c50_273, %c168_274] : memref<100x200xf32, #tpu.memory_space<vmem>>, vector<10x8xf32>
    tpu.vector_store %arg13[%c50_273, %c168_274], %302 {strides = array<i32>} : memref<100x200xf32, #tpu.memory_space<vmem>>, vector<10x8xf32>,
    %304 = vector.extract_strided_slice %9 {offsets = [128, 0], sizes = [10, 8], strides = [1, 1]} : vector<196x8xf32> to vector<10x8xf32>
    %c50_275 = arith.constant 50 : index
    %c176_276 = arith.constant 176 : index
    %305 = vector.load %arg13[%c50_275, %c176_276] : memref<100x200xf32, #tpu.memory_space<vmem>>, vector<10x8xf32>
    tpu.vector_store %arg13[%c50_275, %c176_276], %304 {strides = array<i32>} : memref<100x200xf32, #tpu.memory_space<vmem>>, vector<10x8xf32>,
    %306 = vector.extract_strided_slice %9 {offsets = [129, 0], sizes = [10, 8], strides = [1, 1]} : vector<196x8xf32> to vector<10x8xf32>
    %c50_277 = arith.constant 50 : index
    %c184_278 = arith.constant 184 : index
    %307 = vector.load %arg13[%c50_277, %c184_278] : memref<100x200xf32, #tpu.memory_space<vmem>>, vector<10x8xf32>
    tpu.vector_store %arg13[%c50_277, %c184_278], %306 {strides = array<i32>} : memref<100x200xf32, #tpu.memory_space<vmem>>, vector<10x8xf32>,
    %308 = vector.extract_strided_slice %9 {offsets = [130, 0], sizes = [10, 8], strides = [1, 1]} : vector<196x8xf32> to vector<10x8xf32>
    %c50_279 = arith.constant 50 : index
    %c192_280 = arith.constant 192 : index
    %309 = vector.load %arg13[%c50_279, %c192_280] : memref<100x200xf32, #tpu.memory_space<vmem>>, vector<10x8xf32>
    tpu.vector_store %arg13[%c50_279, %c192_280], %308 {strides = array<i32>} : memref<100x200xf32, #tpu.memory_space<vmem>>, vector<10x8xf32>,
    %310 = vector.extract_strided_slice %9 {offsets = [84, 0], sizes = [10, 8], strides = [1, 1]} : vector<196x8xf32> to vector<10x8xf32>
    %c60 = arith.constant 60 : index
    %c0_281 = arith.constant 0 : index
    %311 = vector.load %arg13[%c60, %c0_281] : memref<100x200xf32, #tpu.memory_space<vmem>>, vector<10x8xf32>
    tpu.vector_store %arg13[%c60, %c0_281], %310 {strides = array<i32>} : memref<100x200xf32, #tpu.memory_space<vmem>>, vector<10x8xf32>,
    %312 = vector.extract_strided_slice %9 {offsets = [85, 0], sizes = [10, 8], strides = [1, 1]} : vector<196x8xf32> to vector<10x8xf32>
    %c60_282 = arith.constant 60 : index
    %c8_283 = arith.constant 8 : index
    %313 = vector.load %arg13[%c60_282, %c8_283] : memref<100x200xf32, #tpu.memory_space<vmem>>, vector<10x8xf32>
    tpu.vector_store %arg13[%c60_282, %c8_283], %312 {strides = array<i32>} : memref<100x200xf32, #tpu.memory_space<vmem>>, vector<10x8xf32>,
    %314 = vector.extract_strided_slice %9 {offsets = [86, 0], sizes = [10, 8], strides = [1, 1]} : vector<196x8xf32> to vector<10x8xf32>
    %c60_284 = arith.constant 60 : index
    %c16_285 = arith.constant 16 : index
    %315 = vector.load %arg13[%c60_284, %c16_285] : memref<100x200xf32, #tpu.memory_space<vmem>>, vector<10x8xf32>
    tpu.vector_store %arg13[%c60_284, %c16_285], %314 {strides = array<i32>} : memref<100x200xf32, #tpu.memory_space<vmem>>, vector<10x8xf32>,
    %316 = vector.extract_strided_slice %9 {offsets = [87, 0], sizes = [10, 8], strides = [1, 1]} : vector<196x8xf32> to vector<10x8xf32>
    %c60_286 = arith.constant 60 : index
    %c24_287 = arith.constant 24 : index
    %317 = vector.load %arg13[%c60_286, %c24_287] : memref<100x200xf32, #tpu.memory_space<vmem>>, vector<10x8xf32>
    tpu.vector_store %arg13[%c60_286, %c24_287], %316 {strides = array<i32>} : memref<100x200xf32, #tpu.memory_space<vmem>>, vector<10x8xf32>,
    %318 = vector.extract_strided_slice %9 {offsets = [88, 0], sizes = [10, 8], strides = [1, 1]} : vector<196x8xf32> to vector<10x8xf32>
    %c60_288 = arith.constant 60 : index
    %c32_289 = arith.constant 32 : index
    %319 = vector.load %arg13[%c60_288, %c32_289] : memref<100x200xf32, #tpu.memory_space<vmem>>, vector<10x8xf32>
    tpu.vector_store %arg13[%c60_288, %c32_289], %318 {strides = array<i32>} : memref<100x200xf32, #tpu.memory_space<vmem>>, vector<10x8xf32>,
    %320 = vector.extract_strided_slice %9 {offsets = [98, 0], sizes = [10, 8], strides = [1, 1]} : vector<196x8xf32> to vector<10x8xf32>
    %c60_290 = arith.constant 60 : index
    %c40_291 = arith.constant 40 : index
    %321 = vector.load %arg13[%c60_290, %c40_291] : memref<100x200xf32, #tpu.memory_space<vmem>>, vector<10x8xf32>
    tpu.vector_store %arg13[%c60_290, %c40_291], %320 {strides = array<i32>} : memref<100x200xf32, #tpu.memory_space<vmem>>, vector<10x8xf32>,
    %322 = vector.extract_strided_slice %9 {offsets = [99, 0], sizes = [10, 8], strides = [1, 1]} : vector<196x8xf32> to vector<10x8xf32>
    %c60_292 = arith.constant 60 : index
    %c48_293 = arith.constant 48 : index
    %323 = vector.load %arg13[%c60_292, %c48_293] : memref<100x200xf32, #tpu.memory_space<vmem>>, vector<10x8xf32>
    tpu.vector_store %arg13[%c60_292, %c48_293], %322 {strides = array<i32>} : memref<100x200xf32, #tpu.memory_space<vmem>>, vector<10x8xf32>,
    %324 = vector.extract_strided_slice %9 {offsets = [100, 0], sizes = [10, 8], strides = [1, 1]} : vector<196x8xf32> to vector<10x8xf32>
    %c60_294 = arith.constant 60 : index
    %c56_295 = arith.constant 56 : index
    %325 = vector.load %arg13[%c60_294, %c56_295] : memref<100x200xf32, #tpu.memory_space<vmem>>, vector<10x8xf32>
    tpu.vector_store %arg13[%c60_294, %c56_295], %324 {strides = array<i32>} : memref<100x200xf32, #tpu.memory_space<vmem>>, vector<10x8xf32>,
    %326 = vector.extract_strided_slice %9 {offsets = [101, 0], sizes = [10, 8], strides = [1, 1]} : vector<196x8xf32> to vector<10x8xf32>
    %c60_296 = arith.constant 60 : index
    %c64_297 = arith.constant 64 : index
    %327 = vector.load %arg13[%c60_296, %c64_297] : memref<100x200xf32, #tpu.memory_space<vmem>>, vector<10x8xf32>
    tpu.vector_store %arg13[%c60_296, %c64_297], %326 {strides = array<i32>} : memref<100x200xf32, #tpu.memory_space<vmem>>, vector<10x8xf32>,
    %328 = vector.extract_strided_slice %9 {offsets = [102, 0], sizes = [10, 8], strides = [1, 1]} : vector<196x8xf32> to vector<10x8xf32>
    %c60_298 = arith.constant 60 : index
    %c72_299 = arith.constant 72 : index
    %329 = vector.load %arg13[%c60_298, %c72_299] : memref<100x200xf32, #tpu.memory_space<vmem>>, vector<10x8xf32>
    tpu.vector_store %arg13[%c60_298, %c72_299], %328 {strides = array<i32>} : memref<100x200xf32, #tpu.memory_space<vmem>>, vector<10x8xf32>,
    %330 = vector.extract_strided_slice %9 {offsets = [112, 0], sizes = [10, 8], strides = [1, 1]} : vector<196x8xf32> to vector<10x8xf32>
    %c60_300 = arith.constant 60 : index
    %c80_301 = arith.constant 80 : index
    %331 = vector.load %arg13[%c60_300, %c80_301] : memref<100x200xf32, #tpu.memory_space<vmem>>, vector<10x8xf32>
    tpu.vector_store %arg13[%c60_300, %c80_301], %330 {strides = array<i32>} : memref<100x200xf32, #tpu.memory_space<vmem>>, vector<10x8xf32>,
    %332 = vector.extract_strided_slice %9 {offsets = [113, 0], sizes = [10, 8], strides = [1, 1]} : vector<196x8xf32> to vector<10x8xf32>
    %c60_302 = arith.constant 60 : index
    %c88_303 = arith.constant 88 : index
    %333 = vector.load %arg13[%c60_302, %c88_303] : memref<100x200xf32, #tpu.memory_space<vmem>>, vector<10x8xf32>
    tpu.vector_store %arg13[%c60_302, %c88_303], %332 {strides = array<i32>} : memref<100x200xf32, #tpu.memory_space<vmem>>, vector<10x8xf32>,
    %334 = vector.extract_strided_slice %9 {offsets = [114, 0], sizes = [10, 8], strides = [1, 1]} : vector<196x8xf32> to vector<10x8xf32>
    %c60_304 = arith.constant 60 : index
    %c96_305 = arith.constant 96 : index
    %335 = vector.load %arg13[%c60_304, %c96_305] : memref<100x200xf32, #tpu.memory_space<vmem>>, vector<10x8xf32>
    tpu.vector_store %arg13[%c60_304, %c96_305], %334 {strides = array<i32>} : memref<100x200xf32, #tpu.memory_space<vmem>>, vector<10x8xf32>,
    %336 = vector.extract_strided_slice %9 {offsets = [115, 0], sizes = [10, 8], strides = [1, 1]} : vector<196x8xf32> to vector<10x8xf32>
    %c60_306 = arith.constant 60 : index
    %c104_307 = arith.constant 104 : index
    %337 = vector.load %arg13[%c60_306, %c104_307] : memref<100x200xf32, #tpu.memory_space<vmem>>, vector<10x8xf32>
    tpu.vector_store %arg13[%c60_306, %c104_307], %336 {strides = array<i32>} : memref<100x200xf32, #tpu.memory_space<vmem>>, vector<10x8xf32>,
    %338 = vector.extract_strided_slice %9 {offsets = [116, 0], sizes = [10, 8], strides = [1, 1]} : vector<196x8xf32> to vector<10x8xf32>
    %c60_308 = arith.constant 60 : index
    %c112_309 = arith.constant 112 : index
    %339 = vector.load %arg13[%c60_308, %c112_309] : memref<100x200xf32, #tpu.memory_space<vmem>>, vector<10x8xf32>
    tpu.vector_store %arg13[%c60_308, %c112_309], %338 {strides = array<i32>} : memref<100x200xf32, #tpu.memory_space<vmem>>, vector<10x8xf32>,
    %340 = vector.extract_strided_slice %9 {offsets = [126, 0], sizes = [10, 8], strides = [1, 1]} : vector<196x8xf32> to vector<10x8xf32>
    %c60_310 = arith.constant 60 : index
    %c120_311 = arith.constant 120 : index
    %341 = vector.load %arg13[%c60_310, %c120_311] : memref<100x200xf32, #tpu.memory_space<vmem>>, vector<10x8xf32>
    tpu.vector_store %arg13[%c60_310, %c120_311], %340 {strides = array<i32>} : memref<100x200xf32, #tpu.memory_space<vmem>>, vector<10x8xf32>,
    %342 = vector.extract_strided_slice %9 {offsets = [127, 0], sizes = [10, 8], strides = [1, 1]} : vector<196x8xf32> to vector<10x8xf32>
    %c60_312 = arith.constant 60 : index
    %c128_313 = arith.constant 128 : index
    %343 = vector.load %arg13[%c60_312, %c128_313] : memref<100x200xf32, #tpu.memory_space<vmem>>, vector<10x8xf32>
    tpu.vector_store %arg13[%c60_312, %c128_313], %342 {strides = array<i32>} : memref<100x200xf32, #tpu.memory_space<vmem>>, vector<10x8xf32>,
    %344 = vector.extract_strided_slice %9 {offsets = [128, 0], sizes = [10, 8], strides = [1, 1]} : vector<196x8xf32> to vector<10x8xf32>
    %c60_314 = arith.constant 60 : index
    %c136_315 = arith.constant 136 : index
    %345 = vector.load %arg13[%c60_314, %c136_315] : memref<100x200xf32, #tpu.memory_space<vmem>>, vector<10x8xf32>
    tpu.vector_store %arg13[%c60_314, %c136_315], %344 {strides = array<i32>} : memref<100x200xf32, #tpu.memory_space<vmem>>, vector<10x8xf32>,
    %346 = vector.extract_strided_slice %9 {offsets = [129, 0], sizes = [10, 8], strides = [1, 1]} : vector<196x8xf32> to vector<10x8xf32>
    %c60_316 = arith.constant 60 : index
    %c144_317 = arith.constant 144 : index
    %347 = vector.load %arg13[%c60_316, %c144_317] : memref<100x200xf32, #tpu.memory_space<vmem>>, vector<10x8xf32>
    tpu.vector_store %arg13[%c60_316, %c144_317], %346 {strides = array<i32>} : memref<100x200xf32, #tpu.memory_space<vmem>>, vector<10x8xf32>,
    %348 = vector.extract_strided_slice %9 {offsets = [130, 0], sizes = [10, 8], strides = [1, 1]} : vector<196x8xf32> to vector<10x8xf32>
    %c60_318 = arith.constant 60 : index
    %c152_319 = arith.constant 152 : index
    %349 = vector.load %arg13[%c60_318, %c152_319] : memref<100x200xf32, #tpu.memory_space<vmem>>, vector<10x8xf32>
    tpu.vector_store %arg13[%c60_318, %c152_319], %348 {strides = array<i32>} : memref<100x200xf32, #tpu.memory_space<vmem>>, vector<10x8xf32>,
    %350 = vector.extract_strided_slice %9 {offsets = [140, 0], sizes = [10, 8], strides = [1, 1]} : vector<196x8xf32> to vector<10x8xf32>
    %c60_320 = arith.constant 60 : index
    %c160_321 = arith.constant 160 : index
    %351 = vector.load %arg13[%c60_320, %c160_321] : memref<100x200xf32, #tpu.memory_space<vmem>>, vector<10x8xf32>
    tpu.vector_store %arg13[%c60_320, %c160_321], %350 {strides = array<i32>} : memref<100x200xf32, #tpu.memory_space<vmem>>, vector<10x8xf32>,
    %352 = vector.extract_strided_slice %9 {offsets = [141, 0], sizes = [10, 8], strides = [1, 1]} : vector<196x8xf32> to vector<10x8xf32>
    %c60_322 = arith.constant 60 : index
    %c168_323 = arith.constant 168 : index
    %353 = vector.load %arg13[%c60_322, %c168_323] : memref<100x200xf32, #tpu.memory_space<vmem>>, vector<10x8xf32>
    tpu.vector_store %arg13[%c60_322, %c168_323], %352 {strides = array<i32>} : memref<100x200xf32, #tpu.memory_space<vmem>>, vector<10x8xf32>,
    %354 = vector.extract_strided_slice %9 {offsets = [142, 0], sizes = [10, 8], strides = [1, 1]} : vector<196x8xf32> to vector<10x8xf32>
    %c60_324 = arith.constant 60 : index
    %c176_325 = arith.constant 176 : index
    %355 = vector.load %arg13[%c60_324, %c176_325] : memref<100x200xf32, #tpu.memory_space<vmem>>, vector<10x8xf32>
    tpu.vector_store %arg13[%c60_324, %c176_325], %354 {strides = array<i32>} : memref<100x200xf32, #tpu.memory_space<vmem>>, vector<10x8xf32>,
    %356 = vector.extract_strided_slice %9 {offsets = [143, 0], sizes = [10, 8], strides = [1, 1]} : vector<196x8xf32> to vector<10x8xf32>
    %c60_326 = arith.constant 60 : index
    %c184_327 = arith.constant 184 : index
    %357 = vector.load %arg13[%c60_326, %c184_327] : memref<100x200xf32, #tpu.memory_space<vmem>>, vector<10x8xf32>
    tpu.vector_store %arg13[%c60_326, %c184_327], %356 {strides = array<i32>} : memref<100x200xf32, #tpu.memory_space<vmem>>, vector<10x8xf32>,
    %358 = vector.extract_strided_slice %9 {offsets = [144, 0], sizes = [10, 8], strides = [1, 1]} : vector<196x8xf32> to vector<10x8xf32>
    %c60_328 = arith.constant 60 : index
    %c192_329 = arith.constant 192 : index
    %359 = vector.load %arg13[%c60_328, %c192_329] : memref<100x200xf32, #tpu.memory_space<vmem>>, vector<10x8xf32>
    tpu.vector_store %arg13[%c60_328, %c192_329], %358 {strides = array<i32>} : memref<100x200xf32, #tpu.memory_space<vmem>>, vector<10x8xf32>,
    %360 = vector.extract_strided_slice %9 {offsets = [98, 0], sizes = [10, 8], strides = [1, 1]} : vector<196x8xf32> to vector<10x8xf32>
    %c70 = arith.constant 70 : index
    %c0_330 = arith.constant 0 : index
    %361 = vector.load %arg13[%c70, %c0_330] : memref<100x200xf32, #tpu.memory_space<vmem>>, vector<10x8xf32>
    tpu.vector_store %arg13[%c70, %c0_330], %360 {strides = array<i32>} : memref<100x200xf32, #tpu.memory_space<vmem>>, vector<10x8xf32>,
    %362 = vector.extract_strided_slice %9 {offsets = [99, 0], sizes = [10, 8], strides = [1, 1]} : vector<196x8xf32> to vector<10x8xf32>
    %c70_331 = arith.constant 70 : index
    %c8_332 = arith.constant 8 : index
    %363 = vector.load %arg13[%c70_331, %c8_332] : memref<100x200xf32, #tpu.memory_space<vmem>>, vector<10x8xf32>
    tpu.vector_store %arg13[%c70_331, %c8_332], %362 {strides = array<i32>} : memref<100x200xf32, #tpu.memory_space<vmem>>, vector<10x8xf32>,
    %364 = vector.extract_strided_slice %9 {offsets = [100, 0], sizes = [10, 8], strides = [1, 1]} : vector<196x8xf32> to vector<10x8xf32>
    %c70_333 = arith.constant 70 : index
    %c16_334 = arith.constant 16 : index
    %365 = vector.load %arg13[%c70_333, %c16_334] : memref<100x200xf32, #tpu.memory_space<vmem>>, vector<10x8xf32>
    tpu.vector_store %arg13[%c70_333, %c16_334], %364 {strides = array<i32>} : memref<100x200xf32, #tpu.memory_space<vmem>>, vector<10x8xf32>,
    %366 = vector.extract_strided_slice %9 {offsets = [101, 0], sizes = [10, 8], strides = [1, 1]} : vector<196x8xf32> to vector<10x8xf32>
    %c70_335 = arith.constant 70 : index
    %c24_336 = arith.constant 24 : index
    %367 = vector.load %arg13[%c70_335, %c24_336] : memref<100x200xf32, #tpu.memory_space<vmem>>, vector<10x8xf32>
    tpu.vector_store %arg13[%c70_335, %c24_336], %366 {strides = array<i32>} : memref<100x200xf32, #tpu.memory_space<vmem>>, vector<10x8xf32>,
    %368 = vector.extract_strided_slice %9 {offsets = [102, 0], sizes = [10, 8], strides = [1, 1]} : vector<196x8xf32> to vector<10x8xf32>
    %c70_337 = arith.constant 70 : index
    %c32_338 = arith.constant 32 : index
    %369 = vector.load %arg13[%c70_337, %c32_338] : memref<100x200xf32, #tpu.memory_space<vmem>>, vector<10x8xf32>
    tpu.vector_store %arg13[%c70_337, %c32_338], %368 {strides = array<i32>} : memref<100x200xf32, #tpu.memory_space<vmem>>, vector<10x8xf32>,
    %370 = vector.extract_strided_slice %9 {offsets = [112, 0], sizes = [10, 8], strides = [1, 1]} : vector<196x8xf32> to vector<10x8xf32>
    %c70_339 = arith.constant 70 : index
    %c40_340 = arith.constant 40 : index
    %371 = vector.load %arg13[%c70_339, %c40_340] : memref<100x200xf32, #tpu.memory_space<vmem>>, vector<10x8xf32>
    tpu.vector_store %arg13[%c70_339, %c40_340], %370 {strides = array<i32>} : memref<100x200xf32, #tpu.memory_space<vmem>>, vector<10x8xf32>,
    %372 = vector.extract_strided_slice %9 {offsets = [113, 0], sizes = [10, 8], strides = [1, 1]} : vector<196x8xf32> to vector<10x8xf32>
    %c70_341 = arith.constant 70 : index
    %c48_342 = arith.constant 48 : index
    %373 = vector.load %arg13[%c70_341, %c48_342] : memref<100x200xf32, #tpu.memory_space<vmem>>, vector<10x8xf32>
    tpu.vector_store %arg13[%c70_341, %c48_342], %372 {strides = array<i32>} : memref<100x200xf32, #tpu.memory_space<vmem>>, vector<10x8xf32>,
    %374 = vector.extract_strided_slice %9 {offsets = [114, 0], sizes = [10, 8], strides = [1, 1]} : vector<196x8xf32> to vector<10x8xf32>
    %c70_343 = arith.constant 70 : index
    %c56_344 = arith.constant 56 : index
    %375 = vector.load %arg13[%c70_343, %c56_344] : memref<100x200xf32, #tpu.memory_space<vmem>>, vector<10x8xf32>
    tpu.vector_store %arg13[%c70_343, %c56_344], %374 {strides = array<i32>} : memref<100x200xf32, #tpu.memory_space<vmem>>, vector<10x8xf32>,
    %376 = vector.extract_strided_slice %9 {offsets = [115, 0], sizes = [10, 8], strides = [1, 1]} : vector<196x8xf32> to vector<10x8xf32>
    %c70_345 = arith.constant 70 : index
    %c64_346 = arith.constant 64 : index
    %377 = vector.load %arg13[%c70_345, %c64_346] : memref<100x200xf32, #tpu.memory_space<vmem>>, vector<10x8xf32>
    tpu.vector_store %arg13[%c70_345, %c64_346], %376 {strides = array<i32>} : memref<100x200xf32, #tpu.memory_space<vmem>>, vector<10x8xf32>,
    %378 = vector.extract_strided_slice %9 {offsets = [116, 0], sizes = [10, 8], strides = [1, 1]} : vector<196x8xf32> to vector<10x8xf32>
    %c70_347 = arith.constant 70 : index
    %c72_348 = arith.constant 72 : index
    %379 = vector.load %arg13[%c70_347, %c72_348] : memref<100x200xf32, #tpu.memory_space<vmem>>, vector<10x8xf32>
    tpu.vector_store %arg13[%c70_347, %c72_348], %378 {strides = array<i32>} : memref<100x200xf32, #tpu.memory_space<vmem>>, vector<10x8xf32>,
    %380 = vector.extract_strided_slice %9 {offsets = [126, 0], sizes = [10, 8], strides = [1, 1]} : vector<196x8xf32> to vector<10x8xf32>
    %c70_349 = arith.constant 70 : index
    %c80_350 = arith.constant 80 : index
    %381 = vector.load %arg13[%c70_349, %c80_350] : memref<100x200xf32, #tpu.memory_space<vmem>>, vector<10x8xf32>
    tpu.vector_store %arg13[%c70_349, %c80_350], %380 {strides = array<i32>} : memref<100x200xf32, #tpu.memory_space<vmem>>, vector<10x8xf32>,
    %382 = vector.extract_strided_slice %9 {offsets = [127, 0], sizes = [10, 8], strides = [1, 1]} : vector<196x8xf32> to vector<10x8xf32>
    %c70_351 = arith.constant 70 : index
    %c88_352 = arith.constant 88 : index
    %383 = vector.load %arg13[%c70_351, %c88_352] : memref<100x200xf32, #tpu.memory_space<vmem>>, vector<10x8xf32>
    tpu.vector_store %arg13[%c70_351, %c88_352], %382 {strides = array<i32>} : memref<100x200xf32, #tpu.memory_space<vmem>>, vector<10x8xf32>,
    %384 = vector.extract_strided_slice %9 {offsets = [128, 0], sizes = [10, 8], strides = [1, 1]} : vector<196x8xf32> to vector<10x8xf32>
    %c70_353 = arith.constant 70 : index
    %c96_354 = arith.constant 96 : index
    %385 = vector.load %arg13[%c70_353, %c96_354] : memref<100x200xf32, #tpu.memory_space<vmem>>, vector<10x8xf32>
    tpu.vector_store %arg13[%c70_353, %c96_354], %384 {strides = array<i32>} : memref<100x200xf32, #tpu.memory_space<vmem>>, vector<10x8xf32>,
    %386 = vector.extract_strided_slice %9 {offsets = [129, 0], sizes = [10, 8], strides = [1, 1]} : vector<196x8xf32> to vector<10x8xf32>
    %c70_355 = arith.constant 70 : index
    %c104_356 = arith.constant 104 : index
    %387 = vector.load %arg13[%c70_355, %c104_356] : memref<100x200xf32, #tpu.memory_space<vmem>>, vector<10x8xf32>
    tpu.vector_store %arg13[%c70_355, %c104_356], %386 {strides = array<i32>} : memref<100x200xf32, #tpu.memory_space<vmem>>, vector<10x8xf32>,
    %388 = vector.extract_strided_slice %9 {offsets = [130, 0], sizes = [10, 8], strides = [1, 1]} : vector<196x8xf32> to vector<10x8xf32>
    %c70_357 = arith.constant 70 : index
    %c112_358 = arith.constant 112 : index
    %389 = vector.load %arg13[%c70_357, %c112_358] : memref<100x200xf32, #tpu.memory_space<vmem>>, vector<10x8xf32>
    tpu.vector_store %arg13[%c70_357, %c112_358], %388 {strides = array<i32>} : memref<100x200xf32, #tpu.memory_space<vmem>>, vector<10x8xf32>,
    %390 = vector.extract_strided_slice %9 {offsets = [140, 0], sizes = [10, 8], strides = [1, 1]} : vector<196x8xf32> to vector<10x8xf32>
    %c70_359 = arith.constant 70 : index
    %c120_360 = arith.constant 120 : index
    %391 = vector.load %arg13[%c70_359, %c120_360] : memref<100x200xf32, #tpu.memory_space<vmem>>, vector<10x8xf32>
    tpu.vector_store %arg13[%c70_359, %c120_360], %390 {strides = array<i32>} : memref<100x200xf32, #tpu.memory_space<vmem>>, vector<10x8xf32>,
    %392 = vector.extract_strided_slice %9 {offsets = [141, 0], sizes = [10, 8], strides = [1, 1]} : vector<196x8xf32> to vector<10x8xf32>
    %c70_361 = arith.constant 70 : index
    %c128_362 = arith.constant 128 : index
    %393 = vector.load %arg13[%c70_361, %c128_362] : memref<100x200xf32, #tpu.memory_space<vmem>>, vector<10x8xf32>
    tpu.vector_store %arg13[%c70_361, %c128_362], %392 {strides = array<i32>} : memref<100x200xf32, #tpu.memory_space<vmem>>, vector<10x8xf32>,
    %394 = vector.extract_strided_slice %9 {offsets = [142, 0], sizes = [10, 8], strides = [1, 1]} : vector<196x8xf32> to vector<10x8xf32>
    %c70_363 = arith.constant 70 : index
    %c136_364 = arith.constant 136 : index
    %395 = vector.load %arg13[%c70_363, %c136_364] : memref<100x200xf32, #tpu.memory_space<vmem>>, vector<10x8xf32>
    tpu.vector_store %arg13[%c70_363, %c136_364], %394 {strides = array<i32>} : memref<100x200xf32, #tpu.memory_space<vmem>>, vector<10x8xf32>,
    %396 = vector.extract_strided_slice %9 {offsets = [143, 0], sizes = [10, 8], strides = [1, 1]} : vector<196x8xf32> to vector<10x8xf32>
    %c70_365 = arith.constant 70 : index
    %c144_366 = arith.constant 144 : index
    %397 = vector.load %arg13[%c70_365, %c144_366] : memref<100x200xf32, #tpu.memory_space<vmem>>, vector<10x8xf32>
    tpu.vector_store %arg13[%c70_365, %c144_366], %396 {strides = array<i32>} : memref<100x200xf32, #tpu.memory_space<vmem>>, vector<10x8xf32>,
    %398 = vector.extract_strided_slice %9 {offsets = [144, 0], sizes = [10, 8], strides = [1, 1]} : vector<196x8xf32> to vector<10x8xf32>
    %c70_367 = arith.constant 70 : index
    %c152_368 = arith.constant 152 : index
    %399 = vector.load %arg13[%c70_367, %c152_368] : memref<100x200xf32, #tpu.memory_space<vmem>>, vector<10x8xf32>
    tpu.vector_store %arg13[%c70_367, %c152_368], %398 {strides = array<i32>} : memref<100x200xf32, #tpu.memory_space<vmem>>, vector<10x8xf32>,
    %400 = vector.extract_strided_slice %9 {offsets = [154, 0], sizes = [10, 8], strides = [1, 1]} : vector<196x8xf32> to vector<10x8xf32>
    %c70_369 = arith.constant 70 : index
    %c160_370 = arith.constant 160 : index
    %401 = vector.load %arg13[%c70_369, %c160_370] : memref<100x200xf32, #tpu.memory_space<vmem>>, vector<10x8xf32>
    tpu.vector_store %arg13[%c70_369, %c160_370], %400 {strides = array<i32>} : memref<100x200xf32, #tpu.memory_space<vmem>>, vector<10x8xf32>,
    %402 = vector.extract_strided_slice %9 {offsets = [155, 0], sizes = [10, 8], strides = [1, 1]} : vector<196x8xf32> to vector<10x8xf32>
    %c70_371 = arith.constant 70 : index
    %c168_372 = arith.constant 168 : index
    %403 = vector.load %arg13[%c70_371, %c168_372] : memref<100x200xf32, #tpu.memory_space<vmem>>, vector<10x8xf32>
    tpu.vector_store %arg13[%c70_371, %c168_372], %402 {strides = array<i32>} : memref<100x200xf32, #tpu.memory_space<vmem>>, vector<10x8xf32>,
    %404 = vector.extract_strided_slice %9 {offsets = [156, 0], sizes = [10, 8], strides = [1, 1]} : vector<196x8xf32> to vector<10x8xf32>
    %c70_373 = arith.constant 70 : index
    %c176_374 = arith.constant 176 : index
    %405 = vector.load %arg13[%c70_373, %c176_374] : memref<100x200xf32, #tpu.memory_space<vmem>>, vector<10x8xf32>
    tpu.vector_store %arg13[%c70_373, %c176_374], %404 {strides = array<i32>} : memref<100x200xf32, #tpu.memory_space<vmem>>, vector<10x8xf32>,
    %406 = vector.extract_strided_slice %9 {offsets = [157, 0], sizes = [10, 8], strides = [1, 1]} : vector<196x8xf32> to vector<10x8xf32>
    %c70_375 = arith.constant 70 : index
    %c184_376 = arith.constant 184 : index
    %407 = vector.load %arg13[%c70_375, %c184_376] : memref<100x200xf32, #tpu.memory_space<vmem>>, vector<10x8xf32>
    tpu.vector_store %arg13[%c70_375, %c184_376], %406 {strides = array<i32>} : memref<100x200xf32, #tpu.memory_space<vmem>>, vector<10x8xf32>,
    %408 = vector.extract_strided_slice %9 {offsets = [158, 0], sizes = [10, 8], strides = [1, 1]} : vector<196x8xf32> to vector<10x8xf32>
    %c70_377 = arith.constant 70 : index
    %c192_378 = arith.constant 192 : index
    %409 = vector.load %arg13[%c70_377, %c192_378] : memref<100x200xf32, #tpu.memory_space<vmem>>, vector<10x8xf32>
    tpu.vector_store %arg13[%c70_377, %c192_378], %408 {strides = array<i32>} : memref<100x200xf32, #tpu.memory_space<vmem>>, vector<10x8xf32>,
    %410 = vector.extract_strided_slice %9 {offsets = [112, 0], sizes = [10, 8], strides = [1, 1]} : vector<196x8xf32> to vector<10x8xf32>
    %c80_379 = arith.constant 80 : index
    %c0_380 = arith.constant 0 : index
    %411 = vector.load %arg13[%c80_379, %c0_380] : memref<100x200xf32, #tpu.memory_space<vmem>>, vector<10x8xf32>
    tpu.vector_store %arg13[%c80_379, %c0_380], %410 {strides = array<i32>} : memref<100x200xf32, #tpu.memory_space<vmem>>, vector<10x8xf32>,
    %412 = vector.extract_strided_slice %9 {offsets = [113, 0], sizes = [10, 8], strides = [1, 1]} : vector<196x8xf32> to vector<10x8xf32>
    %c80_381 = arith.constant 80 : index
    %c8_382 = arith.constant 8 : index
    %413 = vector.load %arg13[%c80_381, %c8_382] : memref<100x200xf32, #tpu.memory_space<vmem>>, vector<10x8xf32>
    tpu.vector_store %arg13[%c80_381, %c8_382], %412 {strides = array<i32>} : memref<100x200xf32, #tpu.memory_space<vmem>>, vector<10x8xf32>,
    %414 = vector.extract_strided_slice %9 {offsets = [114, 0], sizes = [10, 8], strides = [1, 1]} : vector<196x8xf32> to vector<10x8xf32>
    %c80_383 = arith.constant 80 : index
    %c16_384 = arith.constant 16 : index
    %415 = vector.load %arg13[%c80_383, %c16_384] : memref<100x200xf32, #tpu.memory_space<vmem>>, vector<10x8xf32>
    tpu.vector_store %arg13[%c80_383, %c16_384], %414 {strides = array<i32>} : memref<100x200xf32, #tpu.memory_space<vmem>>, vector<10x8xf32>,
    %416 = vector.extract_strided_slice %9 {offsets = [115, 0], sizes = [10, 8], strides = [1, 1]} : vector<196x8xf32> to vector<10x8xf32>
    %c80_385 = arith.constant 80 : index
    %c24_386 = arith.constant 24 : index
    %417 = vector.load %arg13[%c80_385, %c24_386] : memref<100x200xf32, #tpu.memory_space<vmem>>, vector<10x8xf32>
    tpu.vector_store %arg13[%c80_385, %c24_386], %416 {strides = array<i32>} : memref<100x200xf32, #tpu.memory_space<vmem>>, vector<10x8xf32>,
    %418 = vector.extract_strided_slice %9 {offsets = [116, 0], sizes = [10, 8], strides = [1, 1]} : vector<196x8xf32> to vector<10x8xf32>
    %c80_387 = arith.constant 80 : index
    %c32_388 = arith.constant 32 : index
    %419 = vector.load %arg13[%c80_387, %c32_388] : memref<100x200xf32, #tpu.memory_space<vmem>>, vector<10x8xf32>
    tpu.vector_store %arg13[%c80_387, %c32_388], %418 {strides = array<i32>} : memref<100x200xf32, #tpu.memory_space<vmem>>, vector<10x8xf32>,
    %420 = vector.extract_strided_slice %9 {offsets = [126, 0], sizes = [10, 8], strides = [1, 1]} : vector<196x8xf32> to vector<10x8xf32>
    %c80_389 = arith.constant 80 : index
    %c40_390 = arith.constant 40 : index
    %421 = vector.load %arg13[%c80_389, %c40_390] : memref<100x200xf32, #tpu.memory_space<vmem>>, vector<10x8xf32>
    tpu.vector_store %arg13[%c80_389, %c40_390], %420 {strides = array<i32>} : memref<100x200xf32, #tpu.memory_space<vmem>>, vector<10x8xf32>,
    %422 = vector.extract_strided_slice %9 {offsets = [127, 0], sizes = [10, 8], strides = [1, 1]} : vector<196x8xf32> to vector<10x8xf32>
    %c80_391 = arith.constant 80 : index
    %c48_392 = arith.constant 48 : index
    %423 = vector.load %arg13[%c80_391, %c48_392] : memref<100x200xf32, #tpu.memory_space<vmem>>, vector<10x8xf32>
    tpu.vector_store %arg13[%c80_391, %c48_392], %422 {strides = array<i32>} : memref<100x200xf32, #tpu.memory_space<vmem>>, vector<10x8xf32>,
    %424 = vector.extract_strided_slice %9 {offsets = [128, 0], sizes = [10, 8], strides = [1, 1]} : vector<196x8xf32> to vector<10x8xf32>
    %c80_393 = arith.constant 80 : index
    %c56_394 = arith.constant 56 : index
    %425 = vector.load %arg13[%c80_393, %c56_394] : memref<100x200xf32, #tpu.memory_space<vmem>>, vector<10x8xf32>
    tpu.vector_store %arg13[%c80_393, %c56_394], %424 {strides = array<i32>} : memref<100x200xf32, #tpu.memory_space<vmem>>, vector<10x8xf32>,
    %426 = vector.extract_strided_slice %9 {offsets = [129, 0], sizes = [10, 8], strides = [1, 1]} : vector<196x8xf32> to vector<10x8xf32>
    %c80_395 = arith.constant 80 : index
    %c64_396 = arith.constant 64 : index
    %427 = vector.load %arg13[%c80_395, %c64_396] : memref<100x200xf32, #tpu.memory_space<vmem>>, vector<10x8xf32>
    tpu.vector_store %arg13[%c80_395, %c64_396], %426 {strides = array<i32>} : memref<100x200xf32, #tpu.memory_space<vmem>>, vector<10x8xf32>,
    %428 = vector.extract_strided_slice %9 {offsets = [130, 0], sizes = [10, 8], strides = [1, 1]} : vector<196x8xf32> to vector<10x8xf32>
    %c80_397 = arith.constant 80 : index
    %c72_398 = arith.constant 72 : index
    %429 = vector.load %arg13[%c80_397, %c72_398] : memref<100x200xf32, #tpu.memory_space<vmem>>, vector<10x8xf32>
    tpu.vector_store %arg13[%c80_397, %c72_398], %428 {strides = array<i32>} : memref<100x200xf32, #tpu.memory_space<vmem>>, vector<10x8xf32>,
    %430 = vector.extract_strided_slice %9 {offsets = [140, 0], sizes = [10, 8], strides = [1, 1]} : vector<196x8xf32> to vector<10x8xf32>
    %c80_399 = arith.constant 80 : index
    %c80_400 = arith.constant 80 : index
    %431 = vector.load %arg13[%c80_399, %c80_400] : memref<100x200xf32, #tpu.memory_space<vmem>>, vector<10x8xf32>
    tpu.vector_store %arg13[%c80_399, %c80_400], %430 {strides = array<i32>} : memref<100x200xf32, #tpu.memory_space<vmem>>, vector<10x8xf32>,
    %432 = vector.extract_strided_slice %9 {offsets = [141, 0], sizes = [10, 8], strides = [1, 1]} : vector<196x8xf32> to vector<10x8xf32>
    %c80_401 = arith.constant 80 : index
    %c88_402 = arith.constant 88 : index
    %433 = vector.load %arg13[%c80_401, %c88_402] : memref<100x200xf32, #tpu.memory_space<vmem>>, vector<10x8xf32>
    tpu.vector_store %arg13[%c80_401, %c88_402], %432 {strides = array<i32>} : memref<100x200xf32, #tpu.memory_space<vmem>>, vector<10x8xf32>,
    %434 = vector.extract_strided_slice %9 {offsets = [142, 0], sizes = [10, 8], strides = [1, 1]} : vector<196x8xf32> to vector<10x8xf32>
    %c80_403 = arith.constant 80 : index
    %c96_404 = arith.constant 96 : index
    %435 = vector.load %arg13[%c80_403, %c96_404] : memref<100x200xf32, #tpu.memory_space<vmem>>, vector<10x8xf32>
    tpu.vector_store %arg13[%c80_403, %c96_404], %434 {strides = array<i32>} : memref<100x200xf32, #tpu.memory_space<vmem>>, vector<10x8xf32>,
    %436 = vector.extract_strided_slice %9 {offsets = [143, 0], sizes = [10, 8], strides = [1, 1]} : vector<196x8xf32> to vector<10x8xf32>
    %c80_405 = arith.constant 80 : index
    %c104_406 = arith.constant 104 : index
    %437 = vector.load %arg13[%c80_405, %c104_406] : memref<100x200xf32, #tpu.memory_space<vmem>>, vector<10x8xf32>
    tpu.vector_store %arg13[%c80_405, %c104_406], %436 {strides = array<i32>} : memref<100x200xf32, #tpu.memory_space<vmem>>, vector<10x8xf32>,
    %438 = vector.extract_strided_slice %9 {offsets = [144, 0], sizes = [10, 8], strides = [1, 1]} : vector<196x8xf32> to vector<10x8xf32>
    %c80_407 = arith.constant 80 : index
    %c112_408 = arith.constant 112 : index
    %439 = vector.load %arg13[%c80_407, %c112_408] : memref<100x200xf32, #tpu.memory_space<vmem>>, vector<10x8xf32>
    tpu.vector_store %arg13[%c80_407, %c112_408], %438 {strides = array<i32>} : memref<100x200xf32, #tpu.memory_space<vmem>>, vector<10x8xf32>,
    %440 = vector.extract_strided_slice %9 {offsets = [154, 0], sizes = [10, 8], strides = [1, 1]} : vector<196x8xf32> to vector<10x8xf32>
    %c80_409 = arith.constant 80 : index
    %c120_410 = arith.constant 120 : index
    %441 = vector.load %arg13[%c80_409, %c120_410] : memref<100x200xf32, #tpu.memory_space<vmem>>, vector<10x8xf32>
    tpu.vector_store %arg13[%c80_409, %c120_410], %440 {strides = array<i32>} : memref<100x200xf32, #tpu.memory_space<vmem>>, vector<10x8xf32>,
    %442 = vector.extract_strided_slice %9 {offsets = [155, 0], sizes = [10, 8], strides = [1, 1]} : vector<196x8xf32> to vector<10x8xf32>
    %c80_411 = arith.constant 80 : index
    %c128_412 = arith.constant 128 : index
    %443 = vector.load %arg13[%c80_411, %c128_412] : memref<100x200xf32, #tpu.memory_space<vmem>>, vector<10x8xf32>
    tpu.vector_store %arg13[%c80_411, %c128_412], %442 {strides = array<i32>} : memref<100x200xf32, #tpu.memory_space<vmem>>, vector<10x8xf32>,
    %444 = vector.extract_strided_slice %9 {offsets = [156, 0], sizes = [10, 8], strides = [1, 1]} : vector<196x8xf32> to vector<10x8xf32>
    %c80_413 = arith.constant 80 : index
    %c136_414 = arith.constant 136 : index
    %445 = vector.load %arg13[%c80_413, %c136_414] : memref<100x200xf32, #tpu.memory_space<vmem>>, vector<10x8xf32>
    tpu.vector_store %arg13[%c80_413, %c136_414], %444 {strides = array<i32>} : memref<100x200xf32, #tpu.memory_space<vmem>>, vector<10x8xf32>,
    %446 = vector.extract_strided_slice %9 {offsets = [157, 0], sizes = [10, 8], strides = [1, 1]} : vector<196x8xf32> to vector<10x8xf32>
    %c80_415 = arith.constant 80 : index
    %c144_416 = arith.constant 144 : index
    %447 = vector.load %arg13[%c80_415, %c144_416] : memref<100x200xf32, #tpu.memory_space<vmem>>, vector<10x8xf32>
    tpu.vector_store %arg13[%c80_415, %c144_416], %446 {strides = array<i32>} : memref<100x200xf32, #tpu.memory_space<vmem>>, vector<10x8xf32>,
    %448 = vector.extract_strided_slice %9 {offsets = [158, 0], sizes = [10, 8], strides = [1, 1]} : vector<196x8xf32> to vector<10x8xf32>
    %c80_417 = arith.constant 80 : index
    %c152_418 = arith.constant 152 : index
    %449 = vector.load %arg13[%c80_417, %c152_418] : memref<100x200xf32, #tpu.memory_space<vmem>>, vector<10x8xf32>
    tpu.vector_store %arg13[%c80_417, %c152_418], %448 {strides = array<i32>} : memref<100x200xf32, #tpu.memory_space<vmem>>, vector<10x8xf32>,
    %450 = vector.extract_strided_slice %9 {offsets = [168, 0], sizes = [10, 8], strides = [1, 1]} : vector<196x8xf32> to vector<10x8xf32>
    %c80_419 = arith.constant 80 : index
    %c160_420 = arith.constant 160 : index
    %451 = vector.load %arg13[%c80_419, %c160_420] : memref<100x200xf32, #tpu.memory_space<vmem>>, vector<10x8xf32>
    tpu.vector_store %arg13[%c80_419, %c160_420], %450 {strides = array<i32>} : memref<100x200xf32, #tpu.memory_space<vmem>>, vector<10x8xf32>,
    %452 = vector.extract_strided_slice %9 {offsets = [169, 0], sizes = [10, 8], strides = [1, 1]} : vector<196x8xf32> to vector<10x8xf32>
    %c80_421 = arith.constant 80 : index
    %c168_422 = arith.constant 168 : index
    %453 = vector.load %arg13[%c80_421, %c168_422] : memref<100x200xf32, #tpu.memory_space<vmem>>, vector<10x8xf32>
    tpu.vector_store %arg13[%c80_421, %c168_422], %452 {strides = array<i32>} : memref<100x200xf32, #tpu.memory_space<vmem>>, vector<10x8xf32>,
    %454 = vector.extract_strided_slice %9 {offsets = [170, 0], sizes = [10, 8], strides = [1, 1]} : vector<196x8xf32> to vector<10x8xf32>
    %c80_423 = arith.constant 80 : index
    %c176_424 = arith.constant 176 : index
    %455 = vector.load %arg13[%c80_423, %c176_424] : memref<100x200xf32, #tpu.memory_space<vmem>>, vector<10x8xf32>
    tpu.vector_store %arg13[%c80_423, %c176_424], %454 {strides = array<i32>} : memref<100x200xf32, #tpu.memory_space<vmem>>, vector<10x8xf32>,
    %456 = vector.extract_strided_slice %9 {offsets = [171, 0], sizes = [10, 8], strides = [1, 1]} : vector<196x8xf32> to vector<10x8xf32>
    %c80_425 = arith.constant 80 : index
    %c184_426 = arith.constant 184 : index
    %457 = vector.load %arg13[%c80_425, %c184_426] : memref<100x200xf32, #tpu.memory_space<vmem>>, vector<10x8xf32>
    tpu.vector_store %arg13[%c80_425, %c184_426], %456 {strides = array<i32>} : memref<100x200xf32, #tpu.memory_space<vmem>>, vector<10x8xf32>,
    %458 = vector.extract_strided_slice %9 {offsets = [172, 0], sizes = [10, 8], strides = [1, 1]} : vector<196x8xf32> to vector<10x8xf32>
    %c80_427 = arith.constant 80 : index
    %c192_428 = arith.constant 192 : index
    %459 = vector.load %arg13[%c80_427, %c192_428] : memref<100x200xf32, #tpu.memory_space<vmem>>, vector<10x8xf32>
    tpu.vector_store %arg13[%c80_427, %c192_428], %458 {strides = array<i32>} : memref<100x200xf32, #tpu.memory_space<vmem>>, vector<10x8xf32>,
    %460 = vector.extract_strided_slice %9 {offsets = [126, 0], sizes = [10, 8], strides = [1, 1]} : vector<196x8xf32> to vector<10x8xf32>
    %c90 = arith.constant 90 : index
    %c0_429 = arith.constant 0 : index
    %461 = vector.load %arg13[%c90, %c0_429] : memref<100x200xf32, #tpu.memory_space<vmem>>, vector<10x8xf32>
    tpu.vector_store %arg13[%c90, %c0_429], %460 {strides = array<i32>} : memref<100x200xf32, #tpu.memory_space<vmem>>, vector<10x8xf32>,
    %462 = vector.extract_strided_slice %9 {offsets = [127, 0], sizes = [10, 8], strides = [1, 1]} : vector<196x8xf32> to vector<10x8xf32>
    %c90_430 = arith.constant 90 : index
    %c8_431 = arith.constant 8 : index
    %463 = vector.load %arg13[%c90_430, %c8_431] : memref<100x200xf32, #tpu.memory_space<vmem>>, vector<10x8xf32>
    tpu.vector_store %arg13[%c90_430, %c8_431], %462 {strides = array<i32>} : memref<100x200xf32, #tpu.memory_space<vmem>>, vector<10x8xf32>,
    %464 = vector.extract_strided_slice %9 {offsets = [128, 0], sizes = [10, 8], strides = [1, 1]} : vector<196x8xf32> to vector<10x8xf32>
    %c90_432 = arith.constant 90 : index
    %c16_433 = arith.constant 16 : index
    %465 = vector.load %arg13[%c90_432, %c16_433] : memref<100x200xf32, #tpu.memory_space<vmem>>, vector<10x8xf32>
    tpu.vector_store %arg13[%c90_432, %c16_433], %464 {strides = array<i32>} : memref<100x200xf32, #tpu.memory_space<vmem>>, vector<10x8xf32>,
    %466 = vector.extract_strided_slice %9 {offsets = [129, 0], sizes = [10, 8], strides = [1, 1]} : vector<196x8xf32> to vector<10x8xf32>
    %c90_434 = arith.constant 90 : index
    %c24_435 = arith.constant 24 : index
    %467 = vector.load %arg13[%c90_434, %c24_435] : memref<100x200xf32, #tpu.memory_space<vmem>>, vector<10x8xf32>
    tpu.vector_store %arg13[%c90_434, %c24_435], %466 {strides = array<i32>} : memref<100x200xf32, #tpu.memory_space<vmem>>, vector<10x8xf32>,
    %468 = vector.extract_strided_slice %9 {offsets = [130, 0], sizes = [10, 8], strides = [1, 1]} : vector<196x8xf32> to vector<10x8xf32>
    %c90_436 = arith.constant 90 : index
    %c32_437 = arith.constant 32 : index
    %469 = vector.load %arg13[%c90_436, %c32_437] : memref<100x200xf32, #tpu.memory_space<vmem>>, vector<10x8xf32>
    tpu.vector_store %arg13[%c90_436, %c32_437], %468 {strides = array<i32>} : memref<100x200xf32, #tpu.memory_space<vmem>>, vector<10x8xf32>,
    %470 = vector.extract_strided_slice %9 {offsets = [140, 0], sizes = [10, 8], strides = [1, 1]} : vector<196x8xf32> to vector<10x8xf32>
    %c90_438 = arith.constant 90 : index
    %c40_439 = arith.constant 40 : index
    %471 = vector.load %arg13[%c90_438, %c40_439] : memref<100x200xf32, #tpu.memory_space<vmem>>, vector<10x8xf32>
    tpu.vector_store %arg13[%c90_438, %c40_439], %470 {strides = array<i32>} : memref<100x200xf32, #tpu.memory_space<vmem>>, vector<10x8xf32>,
    %472 = vector.extract_strided_slice %9 {offsets = [141, 0], sizes = [10, 8], strides = [1, 1]} : vector<196x8xf32> to vector<10x8xf32>
    %c90_440 = arith.constant 90 : index
    %c48_441 = arith.constant 48 : index
    %473 = vector.load %arg13[%c90_440, %c48_441] : memref<100x200xf32, #tpu.memory_space<vmem>>, vector<10x8xf32>
    tpu.vector_store %arg13[%c90_440, %c48_441], %472 {strides = array<i32>} : memref<100x200xf32, #tpu.memory_space<vmem>>, vector<10x8xf32>,
    %474 = vector.extract_strided_slice %9 {offsets = [142, 0], sizes = [10, 8], strides = [1, 1]} : vector<196x8xf32> to vector<10x8xf32>
    %c90_442 = arith.constant 90 : index
    %c56_443 = arith.constant 56 : index
    %475 = vector.load %arg13[%c90_442, %c56_443] : memref<100x200xf32, #tpu.memory_space<vmem>>, vector<10x8xf32>
    tpu.vector_store %arg13[%c90_442, %c56_443], %474 {strides = array<i32>} : memref<100x200xf32, #tpu.memory_space<vmem>>, vector<10x8xf32>,
    %476 = vector.extract_strided_slice %9 {offsets = [143, 0], sizes = [10, 8], strides = [1, 1]} : vector<196x8xf32> to vector<10x8xf32>
    %c90_444 = arith.constant 90 : index
    %c64_445 = arith.constant 64 : index
    %477 = vector.load %arg13[%c90_444, %c64_445] : memref<100x200xf32, #tpu.memory_space<vmem>>, vector<10x8xf32>
    tpu.vector_store %arg13[%c90_444, %c64_445], %476 {strides = array<i32>} : memref<100x200xf32, #tpu.memory_space<vmem>>, vector<10x8xf32>,
    %478 = vector.extract_strided_slice %9 {offsets = [144, 0], sizes = [10, 8], strides = [1, 1]} : vector<196x8xf32> to vector<10x8xf32>
    %c90_446 = arith.constant 90 : index
    %c72_447 = arith.constant 72 : index
    %479 = vector.load %arg13[%c90_446, %c72_447] : memref<100x200xf32, #tpu.memory_space<vmem>>, vector<10x8xf32>
    tpu.vector_store %arg13[%c90_446, %c72_447], %478 {strides = array<i32>} : memref<100x200xf32, #tpu.memory_space<vmem>>, vector<10x8xf32>,
    %480 = vector.extract_strided_slice %9 {offsets = [154, 0], sizes = [10, 8], strides = [1, 1]} : vector<196x8xf32> to vector<10x8xf32>
    %c90_448 = arith.constant 90 : index
    %c80_449 = arith.constant 80 : index
    %481 = vector.load %arg13[%c90_448, %c80_449] : memref<100x200xf32, #tpu.memory_space<vmem>>, vector<10x8xf32>
    tpu.vector_store %arg13[%c90_448, %c80_449], %480 {strides = array<i32>} : memref<100x200xf32, #tpu.memory_space<vmem>>, vector<10x8xf32>,
    %482 = vector.extract_strided_slice %9 {offsets = [155, 0], sizes = [10, 8], strides = [1, 1]} : vector<196x8xf32> to vector<10x8xf32>
    %c90_450 = arith.constant 90 : index
    %c88_451 = arith.constant 88 : index
    %483 = vector.load %arg13[%c90_450, %c88_451] : memref<100x200xf32, #tpu.memory_space<vmem>>, vector<10x8xf32>
    tpu.vector_store %arg13[%c90_450, %c88_451], %482 {strides = array<i32>} : memref<100x200xf32, #tpu.memory_space<vmem>>, vector<10x8xf32>,
    %484 = vector.extract_strided_slice %9 {offsets = [156, 0], sizes = [10, 8], strides = [1, 1]} : vector<196x8xf32> to vector<10x8xf32>
    %c90_452 = arith.constant 90 : index
    %c96_453 = arith.constant 96 : index
    %485 = vector.load %arg13[%c90_452, %c96_453] : memref<100x200xf32, #tpu.memory_space<vmem>>, vector<10x8xf32>
    tpu.vector_store %arg13[%c90_452, %c96_453], %484 {strides = array<i32>} : memref<100x200xf32, #tpu.memory_space<vmem>>, vector<10x8xf32>,
    %486 = vector.extract_strided_slice %9 {offsets = [157, 0], sizes = [10, 8], strides = [1, 1]} : vector<196x8xf32> to vector<10x8xf32>
    %c90_454 = arith.constant 90 : index
    %c104_455 = arith.constant 104 : index
    %487 = vector.load %arg13[%c90_454, %c104_455] : memref<100x200xf32, #tpu.memory_space<vmem>>, vector<10x8xf32>
    tpu.vector_store %arg13[%c90_454, %c104_455], %486 {strides = array<i32>} : memref<100x200xf32, #tpu.memory_space<vmem>>, vector<10x8xf32>,
    %488 = vector.extract_strided_slice %9 {offsets = [158, 0], sizes = [10, 8], strides = [1, 1]} : vector<196x8xf32> to vector<10x8xf32>
    %c90_456 = arith.constant 90 : index
    %c112_457 = arith.constant 112 : index
    %489 = vector.load %arg13[%c90_456, %c112_457] : memref<100x200xf32, #tpu.memory_space<vmem>>, vector<10x8xf32>
    tpu.vector_store %arg13[%c90_456, %c112_457], %488 {strides = array<i32>} : memref<100x200xf32, #tpu.memory_space<vmem>>, vector<10x8xf32>,
    %490 = vector.extract_strided_slice %9 {offsets = [168, 0], sizes = [10, 8], strides = [1, 1]} : vector<196x8xf32> to vector<10x8xf32>
    %c90_458 = arith.constant 90 : index
    %c120_459 = arith.constant 120 : index
    %491 = vector.load %arg13[%c90_458, %c120_459] : memref<100x200xf32, #tpu.memory_space<vmem>>, vector<10x8xf32>
    tpu.vector_store %arg13[%c90_458, %c120_459], %490 {strides = array<i32>} : memref<100x200xf32, #tpu.memory_space<vmem>>, vector<10x8xf32>,
    %492 = vector.extract_strided_slice %9 {offsets = [169, 0], sizes = [10, 8], strides = [1, 1]} : vector<196x8xf32> to vector<10x8xf32>
    %c90_460 = arith.constant 90 : index
    %c128_461 = arith.constant 128 : index
    %493 = vector.load %arg13[%c90_460, %c128_461] : memref<100x200xf32, #tpu.memory_space<vmem>>, vector<10x8xf32>
    tpu.vector_store %arg13[%c90_460, %c128_461], %492 {strides = array<i32>} : memref<100x200xf32, #tpu.memory_space<vmem>>, vector<10x8xf32>,
    %494 = vector.extract_strided_slice %9 {offsets = [170, 0], sizes = [10, 8], strides = [1, 1]} : vector<196x8xf32> to vector<10x8xf32>
    %c90_462 = arith.constant 90 : index
    %c136_463 = arith.constant 136 : index
    %495 = vector.load %arg13[%c90_462, %c136_463] : memref<100x200xf32, #tpu.memory_space<vmem>>, vector<10x8xf32>
    tpu.vector_store %arg13[%c90_462, %c136_463], %494 {strides = array<i32>} : memref<100x200xf32, #tpu.memory_space<vmem>>, vector<10x8xf32>,
    %496 = vector.extract_strided_slice %9 {offsets = [171, 0], sizes = [10, 8], strides = [1, 1]} : vector<196x8xf32> to vector<10x8xf32>
    %c90_464 = arith.constant 90 : index
    %c144_465 = arith.constant 144 : index
    %497 = vector.load %arg13[%c90_464, %c144_465] : memref<100x200xf32, #tpu.memory_space<vmem>>, vector<10x8xf32>
    tpu.vector_store %arg13[%c90_464, %c144_465], %496 {strides = array<i32>} : memref<100x200xf32, #tpu.memory_space<vmem>>, vector<10x8xf32>,
    %498 = vector.extract_strided_slice %9 {offsets = [172, 0], sizes = [10, 8], strides = [1, 1]} : vector<196x8xf32> to vector<10x8xf32>
    %c90_466 = arith.constant 90 : index
    %c152_467 = arith.constant 152 : index
    %499 = vector.load %arg13[%c90_466, %c152_467] : memref<100x200xf32, #tpu.memory_space<vmem>>, vector<10x8xf32>
    tpu.vector_store %arg13[%c90_466, %c152_467], %498 {strides = array<i32>} : memref<100x200xf32, #tpu.memory_space<vmem>>, vector<10x8xf32>,
    %500 = vector.extract_strided_slice %9 {offsets = [182, 0], sizes = [10, 8], strides = [1, 1]} : vector<196x8xf32> to vector<10x8xf32>
    %c90_468 = arith.constant 90 : index
    %c160_469 = arith.constant 160 : index
    %501 = vector.load %arg13[%c90_468, %c160_469] : memref<100x200xf32, #tpu.memory_space<vmem>>, vector<10x8xf32>
    tpu.vector_store %arg13[%c90_468, %c160_469], %500 {strides = array<i32>} : memref<100x200xf32, #tpu.memory_space<vmem>>, vector<10x8xf32>,
    %502 = vector.extract_strided_slice %9 {offsets = [183, 0], sizes = [10, 8], strides = [1, 1]} : vector<196x8xf32> to vector<10x8xf32>
    %c90_470 = arith.constant 90 : index
    %c168_471 = arith.constant 168 : index
    %503 = vector.load %arg13[%c90_470, %c168_471] : memref<100x200xf32, #tpu.memory_space<vmem>>, vector<10x8xf32>
    tpu.vector_store %arg13[%c90_470, %c168_471], %502 {strides = array<i32>} : memref<100x200xf32, #tpu.memory_space<vmem>>, vector<10x8xf32>,
    %504 = vector.extract_strided_slice %9 {offsets = [184, 0], sizes = [10, 8], strides = [1, 1]} : vector<196x8xf32> to vector<10x8xf32>
    %c90_472 = arith.constant 90 : index
    %c176_473 = arith.constant 176 : index
    %505 = vector.load %arg13[%c90_472, %c176_473] : memref<100x200xf32, #tpu.memory_space<vmem>>, vector<10x8xf32>
    tpu.vector_store %arg13[%c90_472, %c176_473], %504 {strides = array<i32>} : memref<100x200xf32, #tpu.memory_space<vmem>>, vector<10x8xf32>,
    %506 = vector.extract_strided_slice %9 {offsets = [185, 0], sizes = [10, 8], strides = [1, 1]} : vector<196x8xf32> to vector<10x8xf32>
    %c90_474 = arith.constant 90 : index
    %c184_475 = arith.constant 184 : index
    %507 = vector.load %arg13[%c90_474, %c184_475] : memref<100x200xf32, #tpu.memory_space<vmem>>, vector<10x8xf32>
    tpu.vector_store %arg13[%c90_474, %c184_475], %506 {strides = array<i32>} : memref<100x200xf32, #tpu.memory_space<vmem>>, vector<10x8xf32>,
    %508 = vector.extract_strided_slice %9 {offsets = [186, 0], sizes = [10, 8], strides = [1, 1]} : vector<196x8xf32> to vector<10x8xf32>
    %c90_476 = arith.constant 90 : index
    %c192_477 = arith.constant 192 : index
    %509 = vector.load %arg13[%c90_476, %c192_477] : memref<100x200xf32, #tpu.memory_space<vmem>>, vector<10x8xf32>
    tpu.vector_store %arg13[%c90_476, %c192_477], %508 {strides = array<i32>} : memref<100x200xf32, #tpu.memory_space<vmem>>, vector<10x8xf32>,
    %c0_478 = arith.constant 0 : index
    %c0_479 = arith.constant 0 : index
    %510 = vector.load %arg13[%c0_478, %c0_479] : memref<100x200xf32, #tpu.memory_space<vmem>>, vector<100x200xf32>
    %c0_480 = arith.constant 0 : index
    %c0_481 = arith.constant 0 : index
    %511 = vector.load %arg4[%c0_480, %c0_481] : memref<200x16xf32, #tpu.memory_space<vmem>>, vector<200x16xf32>
    %cst_482 = arith.constant dense<0.000000e+00> : vector<100x16xf32>
    %512 = tpu.matmul %510, %511, %cst_482 {dimension_numbers = #tpu.dot_dimension_numbers<[1], [0], [0], [1], [0, 0, 1, 1], [], []>} : vector<100x200xf32>, vector<200x16xf32>, vector<100x16xf32> -> vector<100x16xf32>
    %cst_483 = arith.constant 0.000000e+00 : f32
    %513 = vector.broadcast %cst_483 : f32 to vector<100x16xf32>
    %514 = arith.maximumf %512, %513 : vector<100x16xf32>
    %c0_484 = arith.constant 0 : index
    %c0_485 = arith.constant 0 : index
    %515 = vector.load %arg5[%c0_484, %c0_485] : memref<25x100xf32, #tpu.memory_space<vmem>>, vector<25x100xf32>
    %cst_486 = arith.constant dense<0.000000e+00> : vector<25x16xf32>
    %516 = tpu.matmul %515, %514, %cst_486 {dimension_numbers = #tpu.dot_dimension_numbers<[1], [0], [0], [1], [0, 0, 1, 1], [], []>} : vector<25x100xf32>, vector<100x16xf32>, vector<25x16xf32> -> vector<25x16xf32>
    %cst_487 = arith.constant 2.500000e-01 : f32
    %517 = vector.broadcast %cst_487 : f32 to vector<25x16xf32>
    %518 = arith.mulf %516, %517 : vector<25x16xf32>
    %519 = vector.extract_strided_slice %518 {offsets = [0, 0], sizes = [1, 16], strides = [1, 1]} : vector<25x16xf32> to vector<1x16xf32>
    %c0_488 = arith.constant 0 : index
    %c0_489 = arith.constant 0 : index
    %520 = vector.load %arg14[%c0_488, %c0_489] : memref<1x400xf32, #tpu.memory_space<vmem>>, vector<1x16xf32>
    tpu.vector_store %arg14[%c0_488, %c0_489], %519 {strides = array<i32>} : memref<1x400xf32, #tpu.memory_space<vmem>>, vector<1x16xf32>,
    %521 = vector.extract_strided_slice %518 {offsets = [1, 0], sizes = [1, 16], strides = [1, 1]} : vector<25x16xf32> to vector<1x16xf32>
    %c0_490 = arith.constant 0 : index
    %c16_491 = arith.constant 16 : index
    %522 = vector.load %arg14[%c0_490, %c16_491] : memref<1x400xf32, #tpu.memory_space<vmem>>, vector<1x16xf32>
    tpu.vector_store %arg14[%c0_490, %c16_491], %521 {strides = array<i32>} : memref<1x400xf32, #tpu.memory_space<vmem>>, vector<1x16xf32>,
    %523 = vector.extract_strided_slice %518 {offsets = [2, 0], sizes = [1, 16], strides = [1, 1]} : vector<25x16xf32> to vector<1x16xf32>
    %c0_492 = arith.constant 0 : index
    %c32_493 = arith.constant 32 : index
    %524 = vector.load %arg14[%c0_492, %c32_493] : memref<1x400xf32, #tpu.memory_space<vmem>>, vector<1x16xf32>
    tpu.vector_store %arg14[%c0_492, %c32_493], %523 {strides = array<i32>} : memref<1x400xf32, #tpu.memory_space<vmem>>, vector<1x16xf32>,
    %525 = vector.extract_strided_slice %518 {offsets = [3, 0], sizes = [1, 16], strides = [1, 1]} : vector<25x16xf32> to vector<1x16xf32>
    %c0_494 = arith.constant 0 : index
    %c48_495 = arith.constant 48 : index
    %526 = vector.load %arg14[%c0_494, %c48_495] : memref<1x400xf32, #tpu.memory_space<vmem>>, vector<1x16xf32>
    tpu.vector_store %arg14[%c0_494, %c48_495], %525 {strides = array<i32>} : memref<1x400xf32, #tpu.memory_space<vmem>>, vector<1x16xf32>,
    %527 = vector.extract_strided_slice %518 {offsets = [4, 0], sizes = [1, 16], strides = [1, 1]} : vector<25x16xf32> to vector<1x16xf32>
    %c0_496 = arith.constant 0 : index
    %c64_497 = arith.constant 64 : index
    %528 = vector.load %arg14[%c0_496, %c64_497] : memref<1x400xf32, #tpu.memory_space<vmem>>, vector<1x16xf32>
    tpu.vector_store %arg14[%c0_496, %c64_497], %527 {strides = array<i32>} : memref<1x400xf32, #tpu.memory_space<vmem>>, vector<1x16xf32>,
    %529 = vector.extract_strided_slice %518 {offsets = [5, 0], sizes = [1, 16], strides = [1, 1]} : vector<25x16xf32> to vector<1x16xf32>
    %c0_498 = arith.constant 0 : index
    %c80_499 = arith.constant 80 : index
    %530 = vector.load %arg14[%c0_498, %c80_499] : memref<1x400xf32, #tpu.memory_space<vmem>>, vector<1x16xf32>
    tpu.vector_store %arg14[%c0_498, %c80_499], %529 {strides = array<i32>} : memref<1x400xf32, #tpu.memory_space<vmem>>, vector<1x16xf32>,
    %531 = vector.extract_strided_slice %518 {offsets = [6, 0], sizes = [1, 16], strides = [1, 1]} : vector<25x16xf32> to vector<1x16xf32>
    %c0_500 = arith.constant 0 : index
    %c96_501 = arith.constant 96 : index
    %532 = vector.load %arg14[%c0_500, %c96_501] : memref<1x400xf32, #tpu.memory_space<vmem>>, vector<1x16xf32>
    tpu.vector_store %arg14[%c0_500, %c96_501], %531 {strides = array<i32>} : memref<1x400xf32, #tpu.memory_space<vmem>>, vector<1x16xf32>,
    %533 = vector.extract_strided_slice %518 {offsets = [7, 0], sizes = [1, 16], strides = [1, 1]} : vector<25x16xf32> to vector<1x16xf32>
    %c0_502 = arith.constant 0 : index
    %c112_503 = arith.constant 112 : index
    %534 = vector.load %arg14[%c0_502, %c112_503] : memref<1x400xf32, #tpu.memory_space<vmem>>, vector<1x16xf32>
    tpu.vector_store %arg14[%c0_502, %c112_503], %533 {strides = array<i32>} : memref<1x400xf32, #tpu.memory_space<vmem>>, vector<1x16xf32>,
    %535 = vector.extract_strided_slice %518 {offsets = [8, 0], sizes = [1, 16], strides = [1, 1]} : vector<25x16xf32> to vector<1x16xf32>
    %c0_504 = arith.constant 0 : index
    %c128_505 = arith.constant 128 : index
    %536 = vector.load %arg14[%c0_504, %c128_505] : memref<1x400xf32, #tpu.memory_space<vmem>>, vector<1x16xf32>
    tpu.vector_store %arg14[%c0_504, %c128_505], %535 {strides = array<i32>} : memref<1x400xf32, #tpu.memory_space<vmem>>, vector<1x16xf32>,
    %537 = vector.extract_strided_slice %518 {offsets = [9, 0], sizes = [1, 16], strides = [1, 1]} : vector<25x16xf32> to vector<1x16xf32>
    %c0_506 = arith.constant 0 : index
    %c144_507 = arith.constant 144 : index
    %538 = vector.load %arg14[%c0_506, %c144_507] : memref<1x400xf32, #tpu.memory_space<vmem>>, vector<1x16xf32>
    tpu.vector_store %arg14[%c0_506, %c144_507], %537 {strides = array<i32>} : memref<1x400xf32, #tpu.memory_space<vmem>>, vector<1x16xf32>,
    %539 = vector.extract_strided_slice %518 {offsets = [10, 0], sizes = [1, 16], strides = [1, 1]} : vector<25x16xf32> to vector<1x16xf32>
    %c0_508 = arith.constant 0 : index
    %c160_509 = arith.constant 160 : index
    %540 = vector.load %arg14[%c0_508, %c160_509] : memref<1x400xf32, #tpu.memory_space<vmem>>, vector<1x16xf32>
    tpu.vector_store %arg14[%c0_508, %c160_509], %539 {strides = array<i32>} : memref<1x400xf32, #tpu.memory_space<vmem>>, vector<1x16xf32>,
    %541 = vector.extract_strided_slice %518 {offsets = [11, 0], sizes = [1, 16], strides = [1, 1]} : vector<25x16xf32> to vector<1x16xf32>
    %c0_510 = arith.constant 0 : index
    %c176_511 = arith.constant 176 : index
    %542 = vector.load %arg14[%c0_510, %c176_511] : memref<1x400xf32, #tpu.memory_space<vmem>>, vector<1x16xf32>
    tpu.vector_store %arg14[%c0_510, %c176_511], %541 {strides = array<i32>} : memref<1x400xf32, #tpu.memory_space<vmem>>, vector<1x16xf32>,
    %543 = vector.extract_strided_slice %518 {offsets = [12, 0], sizes = [1, 16], strides = [1, 1]} : vector<25x16xf32> to vector<1x16xf32>
    %c0_512 = arith.constant 0 : index
    %c192_513 = arith.constant 192 : index
    %544 = vector.load %arg14[%c0_512, %c192_513] : memref<1x400xf32, #tpu.memory_space<vmem>>, vector<1x16xf32>
    tpu.vector_store %arg14[%c0_512, %c192_513], %543 {strides = array<i32>} : memref<1x400xf32, #tpu.memory_space<vmem>>, vector<1x16xf32>,
    %545 = vector.extract_strided_slice %518 {offsets = [13, 0], sizes = [1, 16], strides = [1, 1]} : vector<25x16xf32> to vector<1x16xf32>
    %c0_514 = arith.constant 0 : index
    %c208 = arith.constant 208 : index
    %546 = vector.load %arg14[%c0_514, %c208] : memref<1x400xf32, #tpu.memory_space<vmem>>, vector<1x16xf32>
    tpu.vector_store %arg14[%c0_514, %c208], %545 {strides = array<i32>} : memref<1x400xf32, #tpu.memory_space<vmem>>, vector<1x16xf32>,
    %547 = vector.extract_strided_slice %518 {offsets = [14, 0], sizes = [1, 16], strides = [1, 1]} : vector<25x16xf32> to vector<1x16xf32>
    %c0_515 = arith.constant 0 : index
    %c224 = arith.constant 224 : index
    %548 = vector.load %arg14[%c0_515, %c224] : memref<1x400xf32, #tpu.memory_space<vmem>>, vector<1x16xf32>
    tpu.vector_store %arg14[%c0_515, %c224], %547 {strides = array<i32>} : memref<1x400xf32, #tpu.memory_space<vmem>>, vector<1x16xf32>,
    %549 = vector.extract_strided_slice %518 {offsets = [15, 0], sizes = [1, 16], strides = [1, 1]} : vector<25x16xf32> to vector<1x16xf32>
    %c0_516 = arith.constant 0 : index
    %c240 = arith.constant 240 : index
    %550 = vector.load %arg14[%c0_516, %c240] : memref<1x400xf32, #tpu.memory_space<vmem>>, vector<1x16xf32>
    tpu.vector_store %arg14[%c0_516, %c240], %549 {strides = array<i32>} : memref<1x400xf32, #tpu.memory_space<vmem>>, vector<1x16xf32>,
    %551 = vector.extract_strided_slice %518 {offsets = [16, 0], sizes = [1, 16], strides = [1, 1]} : vector<25x16xf32> to vector<1x16xf32>
    %c0_517 = arith.constant 0 : index
    %c256 = arith.constant 256 : index
    %552 = vector.load %arg14[%c0_517, %c256] : memref<1x400xf32, #tpu.memory_space<vmem>>, vector<1x16xf32>
    tpu.vector_store %arg14[%c0_517, %c256], %551 {strides = array<i32>} : memref<1x400xf32, #tpu.memory_space<vmem>>, vector<1x16xf32>,
    %553 = vector.extract_strided_slice %518 {offsets = [17, 0], sizes = [1, 16], strides = [1, 1]} : vector<25x16xf32> to vector<1x16xf32>
    %c0_518 = arith.constant 0 : index
    %c272 = arith.constant 272 : index
    %554 = vector.load %arg14[%c0_518, %c272] : memref<1x400xf32, #tpu.memory_space<vmem>>, vector<1x16xf32>
    tpu.vector_store %arg14[%c0_518, %c272], %553 {strides = array<i32>} : memref<1x400xf32, #tpu.memory_space<vmem>>, vector<1x16xf32>,
    %555 = vector.extract_strided_slice %518 {offsets = [18, 0], sizes = [1, 16], strides = [1, 1]} : vector<25x16xf32> to vector<1x16xf32>
    %c0_519 = arith.constant 0 : index
    %c288 = arith.constant 288 : index
    %556 = vector.load %arg14[%c0_519, %c288] : memref<1x400xf32, #tpu.memory_space<vmem>>, vector<1x16xf32>
    tpu.vector_store %arg14[%c0_519, %c288], %555 {strides = array<i32>} : memref<1x400xf32, #tpu.memory_space<vmem>>, vector<1x16xf32>,
    %557 = vector.extract_strided_slice %518 {offsets = [19, 0], sizes = [1, 16], strides = [1, 1]} : vector<25x16xf32> to vector<1x16xf32>
    %c0_520 = arith.constant 0 : index
    %c304 = arith.constant 304 : index
    %558 = vector.load %arg14[%c0_520, %c304] : memref<1x400xf32, #tpu.memory_space<vmem>>, vector<1x16xf32>
    tpu.vector_store %arg14[%c0_520, %c304], %557 {strides = array<i32>} : memref<1x400xf32, #tpu.memory_space<vmem>>, vector<1x16xf32>,
    %559 = vector.extract_strided_slice %518 {offsets = [20, 0], sizes = [1, 16], strides = [1, 1]} : vector<25x16xf32> to vector<1x16xf32>
    %c0_521 = arith.constant 0 : index
    %c320 = arith.constant 320 : index
    %560 = vector.load %arg14[%c0_521, %c320] : memref<1x400xf32, #tpu.memory_space<vmem>>, vector<1x16xf32>
    tpu.vector_store %arg14[%c0_521, %c320], %559 {strides = array<i32>} : memref<1x400xf32, #tpu.memory_space<vmem>>, vector<1x16xf32>,
    %561 = vector.extract_strided_slice %518 {offsets = [21, 0], sizes = [1, 16], strides = [1, 1]} : vector<25x16xf32> to vector<1x16xf32>
    %c0_522 = arith.constant 0 : index
    %c336 = arith.constant 336 : index
    %562 = vector.load %arg14[%c0_522, %c336] : memref<1x400xf32, #tpu.memory_space<vmem>>, vector<1x16xf32>
    tpu.vector_store %arg14[%c0_522, %c336], %561 {strides = array<i32>} : memref<1x400xf32, #tpu.memory_space<vmem>>, vector<1x16xf32>,
    %563 = vector.extract_strided_slice %518 {offsets = [22, 0], sizes = [1, 16], strides = [1, 1]} : vector<25x16xf32> to vector<1x16xf32>
    %c0_523 = arith.constant 0 : index
    %c352 = arith.constant 352 : index
    %564 = vector.load %arg14[%c0_523, %c352] : memref<1x400xf32, #tpu.memory_space<vmem>>, vector<1x16xf32>
    tpu.vector_store %arg14[%c0_523, %c352], %563 {strides = array<i32>} : memref<1x400xf32, #tpu.memory_space<vmem>>, vector<1x16xf32>,
    %565 = vector.extract_strided_slice %518 {offsets = [23, 0], sizes = [1, 16], strides = [1, 1]} : vector<25x16xf32> to vector<1x16xf32>
    %c0_524 = arith.constant 0 : index
    %c368 = arith.constant 368 : index
    %566 = vector.load %arg14[%c0_524, %c368] : memref<1x400xf32, #tpu.memory_space<vmem>>, vector<1x16xf32>
    tpu.vector_store %arg14[%c0_524, %c368], %565 {strides = array<i32>} : memref<1x400xf32, #tpu.memory_space<vmem>>, vector<1x16xf32>,
    %567 = vector.extract_strided_slice %518 {offsets = [24, 0], sizes = [1, 16], strides = [1, 1]} : vector<25x16xf32> to vector<1x16xf32>
    %c0_525 = arith.constant 0 : index
    %c384 = arith.constant 384 : index
    %568 = vector.load %arg14[%c0_525, %c384] : memref<1x400xf32, #tpu.memory_space<vmem>>, vector<1x16xf32>
    tpu.vector_store %arg14[%c0_525, %c384], %567 {strides = array<i32>} : memref<1x400xf32, #tpu.memory_space<vmem>>, vector<1x16xf32>,
    %c0_526 = arith.constant 0 : index
    %c0_527 = arith.constant 0 : index
    %569 = vector.load %arg14[%c0_526, %c0_527] : memref<1x400xf32, #tpu.memory_space<vmem>>, vector<1x400xf32>
    %c0_528 = arith.constant 0 : index
    %c0_529 = arith.constant 0 : index
    %570 = vector.load %arg6[%c0_528, %c0_529] : memref<400x128xf32, #tpu.memory_space<vmem>>, vector<400x128xf32>
    %cst_530 = arith.constant dense<0.000000e+00> : vector<1x128xf32>
    %571 = tpu.matmul %569, %570, %cst_530 {dimension_numbers = #tpu.dot_dimension_numbers<[1], [0], [0], [1], [0, 0, 1, 1], [], []>} : vector<1x400xf32>, vector<400x128xf32>, vector<1x128xf32> -> vector<1x128xf32>
    %c0_531 = arith.constant 0 : index
    %c0_532 = arith.constant 0 : index
    %572 = vector.load %arg7[%c0_531, %c0_532] : memref<1x128xf32, #tpu.memory_space<vmem>>, vector<1x128xf32>
    %573 = arith.addf %571, %572 : vector<1x128xf32>
    %c0_533 = arith.constant 0 : index
    %c0_534 = arith.constant 0 : index
    %574 = vector.load %arg8[%c0_533, %c0_534] : memref<128x128xf32, #tpu.memory_space<vmem>>, vector<128x128xf32>
    %cst_535 = arith.constant dense<0.000000e+00> : vector<1x128xf32>
    %575 = tpu.matmul %573, %574, %cst_535 {dimension_numbers = #tpu.dot_dimension_numbers<[1], [0], [0], [1], [0, 0, 1, 1], [], []>} : vector<1x128xf32>, vector<128x128xf32>, vector<1x128xf32> -> vector<1x128xf32>
    %c0_536 = arith.constant 0 : index
    %c0_537 = arith.constant 0 : index
    %576 = vector.load %arg9[%c0_536, %c0_537] : memref<1x128xf32, #tpu.memory_space<vmem>>, vector<1x128xf32>
    %577 = arith.addf %575, %576 : vector<1x128xf32>
    %c0_538 = arith.constant 0 : index
    %c0_539 = arith.constant 0 : index
    %578 = vector.load %arg10[%c0_538, %c0_539] : memref<128x128xf32, #tpu.memory_space<vmem>>, vector<128x128xf32>
    %cst_540 = arith.constant dense<0.000000e+00> : vector<1x128xf32>
    %579 = tpu.matmul %577, %578, %cst_540 {dimension_numbers = #tpu.dot_dimension_numbers<[1], [0], [0], [1], [0, 0, 1, 1], [], []>} : vector<1x128xf32>, vector<128x128xf32>, vector<1x128xf32> -> vector<1x128xf32>
    %c0_541 = arith.constant 0 : index
    %c0_542 = arith.constant 0 : index
    %580 = vector.load %arg11[%c0_541, %c0_542] : memref<1x128xf32, #tpu.memory_space<vmem>>, vector<1x128xf32>
    %581 = arith.addf %579, %580 : vector<1x128xf32>
    %c0_543 = arith.constant 0 : index
    %c0_544 = arith.constant 0 : index
    %c0_545 = arith.constant 0 : index
    %582 = vector.load %arg12[%c0_543, %c0_544, %c0_545] : memref<1x1x128xf32, #tpu.memory_space<vmem>>, vector<1x1x128xf32>
    %583 = vector.shape_cast %582 : vector<1x1x128xf32> to vector<1x128xf32>
    %584 = vector.shape_cast %581 : vector<1x128xf32> to vector<1x1x128xf32>
    tpu.vector_store %arg12[%c0_543, %c0_544, %c0_545], %584 {strides = array<i32>} : memref<1x1x128xf32, #tpu.memory_space<vmem>>, vector<1x1x128xf32>,
    return
  }
  func.func @transform_0(%arg0: i32) -> (i32, i32, i32) {
    %c0_i32 = arith.constant 0 : i32
    %c0_i32_0 = arith.constant 0 : i32
    %c0_i32_1 = arith.constant 0 : i32
    return %arg0, %c0_i32, %c0_i32_0 : i32, i32, i32
  }
  func.func @transform_1(%arg0: i32) -> (i32, i32) {
    %c0_i32 = arith.constant 0 : i32
    %c0_i32_0 = arith.constant 0 : i32
    %c0_i32_1 = arith.constant 0 : i32
    return %c0_i32, %c0_i32_0 : i32, i32
  }
  func.func @transform_2(%arg0: i32) -> (i32, i32) {
    %c0_i32 = arith.constant 0 : i32
    %c0_i32_0 = arith.constant 0 : i32
    %c0_i32_1 = arith.constant 0 : i32
    return %c0_i32, %c0_i32_0 : i32, i32
  }
  func.func @transform_3(%arg0: i32) -> (i32, i32) {
    %c0_i32 = arith.constant 0 : i32
    %c0_i32_0 = arith.constant 0 : i32
    %c0_i32_1 = arith.constant 0 : i32
    return %c0_i32, %c0_i32_0 : i32, i32
  }
  func.func @transform_4(%arg0: i32) -> (i32, i32) {
    %c0_i32 = arith.constant 0 : i32
    %c0_i32_0 = arith.constant 0 : i32
    %c0_i32_1 = arith.constant 0 : i32
    return %c0_i32, %c0_i32_0 : i32, i32
  }
  func.func @transform_5(%arg0: i32) -> (i32, i32) {
    %c0_i32 = arith.constant 0 : i32
    %c0_i32_0 = arith.constant 0 : i32
    %c0_i32_1 = arith.constant 0 : i32
    return %c0_i32, %c0_i32_0 : i32, i32
  }
  func.func @transform_6(%arg0: i32) -> (i32, i32) {
    %c0_i32 = arith.constant 0 : i32
    %c0_i32_0 = arith.constant 0 : i32
    %c0_i32_1 = arith.constant 0 : i32
    return %c0_i32, %c0_i32_0 : i32, i32
  }
  func.func @transform_7(%arg0: i32) -> (i32, i32) {
    %c0_i32 = arith.constant 0 : i32
    %c0_i32_0 = arith.constant 0 : i32
    %c0_i32_1 = arith.constant 0 : i32
    return %c0_i32, %c0_i32_0 : i32, i32
  }
  func.func @transform_8(%arg0: i32) -> (i32, i32) {
    %c0_i32 = arith.constant 0 : i32
    %c0_i32_0 = arith.constant 0 : i32
    %c0_i32_1 = arith.constant 0 : i32
    return %c0_i32, %c0_i32_0 : i32, i32
  }
  func.func @transform_9(%arg0: i32) -> (i32, i32) {
    %c0_i32 = arith.constant 0 : i32
    %c0_i32_0 = arith.constant 0 : i32
    %c0_i32_1 = arith.constant 0 : i32
    return %c0_i32, %c0_i32_0 : i32, i32
  }
  func.func @transform_10(%arg0: i32) -> (i32, i32) {
    %c0_i32 = arith.constant 0 : i32
    %c0_i32_0 = arith.constant 0 : i32
    %c0_i32_1 = arith.constant 0 : i32
    return %c0_i32, %c0_i32_0 : i32, i32
  }
  func.func @transform_11(%arg0: i32) -> (i32, i32, i32) {
    %c0_i32 = arith.constant 0 : i32
    %c0_i32_0 = arith.constant 0 : i32
    %c0_i32_1 = arith.constant 0 : i32
    return %arg0, %c0_i32, %c0_i32_0 : i32, i32, i32
  }
}

</mosaic_0001>

<llo_original>
// kernel: lenet_forward.1
$region0: #{lenet_forward.1}
  #allocation0 [shape = 'u32[]', space=smem, size = 0x4, offset = 0x4, fixed_abs, tag = 'smem constant byte address 0x4 - core index']
  #allocation1 [shape = 'u32[72,128]{1,0:T(1,128)}', space=vmem, size = 0x9000, scoped, tag = 'internal scratch']
  #allocation2 [shape = 'f32[100,200]{1,0:T(8,128)}', space=vmem, size = 0x1a000, scoped, tag = 'scratch operand']
  #allocation3 [shape = 'f32[1,400]{1,0:T(1,128)}', space=vmem, size = 0x800, scoped, tag = 'scratch operand']
  %s0 = inlined_call_operand.vmem [shape: f32[2,784,32], index: 0, kind: input, shape index: {}]
  %s1 = inlined_call_operand.vmem [shape: f32[32,8], index: 1, kind: input, shape index: {}]
  %s2 = inlined_call_operand.vmem [shape: f32[196,784], index: 2, kind: input, shape index: {}]
  %s3 = inlined_call_operand.vmem [shape: f32[200,16], index: 3, kind: input, shape index: {}]
  %s4 = inlined_call_operand.vmem [shape: f32[25,100], index: 4, kind: input, shape index: {}]
  %s5 = inlined_call_operand.vmem [shape: f32[400,128], index: 5, kind: input, shape index: {}]
  %s6 = inlined_call_operand.vmem [shape: f32[1,128], index: 6, kind: input, shape index: {}]
  %s7 = inlined_call_operand.vmem [shape: f32[128,128], index: 7, kind: input, shape index: {}]
  %s8 = inlined_call_operand.vmem [shape: f32[1,128], index: 8, kind: input, shape index: {}]
  %s9 = inlined_call_operand.vmem [shape: f32[128,128], index: 9, kind: input, shape index: {}]
  %s10 = inlined_call_operand.vmem [shape: f32[1,128], index: 10, kind: input, shape index: {}]
  %s11 = inlined_call_operand.hbm [shape: f32[2,1,128], index: 11, kind: output, shape index: {}]
  %s12 = sld [smem:[#allocation0]]
  $region77: #{lenet_forward.1} parent=0
    _
  %s14 = ssub.s32 1, %s12
  %s15 = scalar_select 0, %s14, %s12
  $region1: #{lenet_forward.1} parent=0
    #allocation4 [shape = 'u8[1024]{0}', space=vmem, size = 0x400, scoped, tag = 'output window, operand 0']
    #allocation5 [shape = 's32[2]{0}', space=sflag, size = 0x8, scoped, tag = 'scoped memory for lenet_forward.1']
    %16 = vsyncpa [#allocation5], 0
    %s17 = scalar_lea.sflag [#allocation5], 1
    %18 = vsyncpa %s17, 0
    loop: start=0, step=1, limit=4
    $region2: #{lenet_forward.1} parent=1 // loop_pre_header
      _
    $region3: #{lenet_forward.1} parent=1 // loop_header
      %s20 = sphi 0, %s24
      %p21 = scmp.ge.s32.totalorder %s20, 4
      %s30 = sphi 0, %s32
      %s33 = sphi 0, %s30
      %s34 = sphi 0, %s33
      %s50 = sphi 0, %s34
      %s54 = sphi 0, %s54
      %s56 = sphi 0, %s54
      %s57 = sphi 0, %s56
      %s71 = sphi 0, %s57
      %s75 = sphi 0, %s75
      %s77 = sphi 0, %s75
      %s78 = sphi 0, %s77
      %s92 = sphi 0, %s78
      %s96 = sphi 0, %s96
      %s98 = sphi 0, %s96
      %s99 = sphi 0, %s98
      %s113 = sphi 0, %s99
      %s117 = sphi 0, %s117
      %s119 = sphi 0, %s117
      %s120 = sphi 0, %s119
      %s134 = sphi 0, %s120
      %s138 = sphi 0, %s138
      %s140 = sphi 0, %s138
      %s141 = sphi 0, %s140
      %s155 = sphi 0, %s141
      %s159 = sphi 0, %s159
      %s161 = sphi 0, %s159
      %s162 = sphi 0, %s161
      %s176 = sphi 0, %s162
      %s180 = sphi 0, %s180
      %s182 = sphi 0, %s180
      %s183 = sphi 0, %s182
      %s197 = sphi 0, %s183
      %s201 = sphi 0, %s201
      %s203 = sphi 0, %s201
      %s204 = sphi 0, %s203
      %s218 = sphi 0, %s204
      %s222 = sphi 0, %s222
      %s224 = sphi 0, %s222
      %s225 = sphi 0, %s224
      %s239 = sphi 0, %s225
      %s243 = sphi 0, %s243
      %s245 = sphi 0, %s243
      %s246 = sphi 0, %s245
      %s260 = sphi 0, %s246
      %s266 = sphi 0, %s268
      %s269 = sphi 0, %s266
      %s270 = sphi 0, %s269
      %s286 = sphi 0, %s270
    $region4: #{lenet_forward.1} parent=1 // loop_header_branch
      %23 = sbr.rel (%p21) target = $region8
    $region5: #{lenet_forward.1} parent=1 // loop_body
      %s25 = ssub.s32 %s20, 1
      %s26 = ssub.s32 %s20, 2
      %s27 = sadd.s32 %s20, 1
      %s28 = ssub.s32 %s20, %s27
      %p29 = scmp.eq.s32.totalorder %s28, 0
      %s31 = sadd.s32 %s30, 1
      %s32 = scalar_select %p29, %s30, %s31
      %p35 = pneg %p29
      %p36 = scmp.eq.s32.totalorder %s20, 1
      %p37 = por %p35, %p36
      %p38 = scmp.ne.s32.totalorder %s30, %s33
      %p39 = scmp.eq.s32.totalorder %s20, 0
      %p40 = por %p38, %p39
      %p41 = scmp.ne.s32.totalorder %s30, %s33
      %p42 = scmp.eq.s32.totalorder %s25, 1
      %p43 = por %p41, %p42
      %p44 = scmp.ne.s32.totalorder %s33, %s34
      %p45 = scmp.eq.s32.totalorder %s25, 0
      %p46 = por %p44, %p45
      %p47 = scmp.ne.s32.totalorder %s33, %s34
      %p48 = scmp.eq.s32.totalorder %s26, 1
      %p49 = por %p47, %p48
      %p51 = scmp.ne.s32.totalorder %s34, %s50
      %p52 = scmp.eq.s32.totalorder %s26, 0
      %p53 = por %p51, %p52
      %s55 = sadd.s32 %s54, 1
      %p58 = scmp.eq.s32.totalorder %s20, 1
      %p59 = scmp.ne.s32.totalorder %s54, %s56
      %p60 = scmp.eq.s32.totalorder %s20, 0
      %p61 = por %p59, %p60
      %p62 = scmp.ne.s32.totalorder %s54, %s56
      %p63 = scmp.eq.s32.totalorder %s25, 1
      %p64 = por %p62, %p63
      %p65 = scmp.ne.s32.totalorder %s56, %s57
      %p66 = scmp.eq.s32.totalorder %s25, 0
      %p67 = por %p65, %p66
      %p68 = scmp.ne.s32.totalorder %s56, %s57
      %p69 = scmp.eq.s32.totalorder %s26, 1
      %p70 = por %p68, %p69
      %p72 = scmp.ne.s32.totalorder %s57, %s71
      %p73 = scmp.eq.s32.totalorder %s26, 0
      %p74 = por %p72, %p73
      %s76 = sadd.s32 %s75, 1
      %p79 = scmp.eq.s32.totalorder %s20, 1
      %p80 = scmp.ne.s32.totalorder %s75, %s77
      %p81 = scmp.eq.s32.totalorder %s20, 0
      %p82 = por %p80, %p81
      %p83 = scmp.ne.s32.totalorder %s75, %s77
      %p84 = scmp.eq.s32.totalorder %s25, 1
      %p85 = por %p83, %p84
      %p86 = scmp.ne.s32.totalorder %s77, %s78
      %p87 = scmp.eq.s32.totalorder %s25, 0
      %p88 = por %p86, %p87
      %p89 = scmp.ne.s32.totalorder %s77, %s78
      %p90 = scmp.eq.s32.totalorder %s26, 1
      %p91 = por %p89, %p90
      %p93 = scmp.ne.s32.totalorder %s78, %s92
      %p94 = scmp.eq.s32.totalorder %s26, 0
      %p95 = por %p93, %p94
      %s97 = sadd.s32 %s96, 1
      %p100 = scmp.eq.s32.totalorder %s20, 1
      %p101 = scmp.ne.s32.totalorder %s96, %s98
      %p102 = scmp.eq.s32.totalorder %s20, 0
      %p103 = por %p101, %p102
      %p104 = scmp.ne.s32.totalorder %s96, %s98
      %p105 = scmp.eq.s32.totalorder %s25, 1
      %p106 = por %p104, %p105
      %p107 = scmp.ne.s32.totalorder %s98, %s99
      %p108 = scmp.eq.s32.totalorder %s25, 0
      %p109 = por %p107, %p108
      %p110 = scmp.ne.s32.totalorder %s98, %s99
      %p111 = scmp.eq.s32.totalorder %s26, 1
      %p112 = por %p110, %p111
      %p114 = scmp.ne.s32.totalorder %s99, %s113
      %p115 = scmp.eq.s32.totalorder %s26, 0
      %p116 = por %p114, %p115
      %s118 = sadd.s32 %s117, 1
      %p121 = scmp.eq.s32.totalorder %s20, 1
      %p122 = scmp.ne.s32.totalorder %s117, %s119
      %p123 = scmp.eq.s32.totalorder %s20, 0
      %p124 = por %p122, %p123
      %p125 = scmp.ne.s32.totalorder %s117, %s119
      %p126 = scmp.eq.s32.totalorder %s25, 1
      %p127 = por %p125, %p126
      %p128 = scmp.ne.s32.totalorder %s119, %s120
      %p129 = scmp.eq.s32.totalorder %s25, 0
      %p130 = por %p128, %p129
      %p131 = scmp.ne.s32.totalorder %s119, %s120
      %p132 = scmp.eq.s32.totalorder %s26, 1
      %p133 = por %p131, %p132
      %p135 = scmp.ne.s32.totalorder %s120, %s134
      %p136 = scmp.eq.s32.totalorder %s26, 0
      %p137 = por %p135, %p136
      %s139 = sadd.s32 %s138, 1
      %p142 = scmp.eq.s32.totalorder %s20, 1
      %p143 = scmp.ne.s32.totalorder %s138, %s140
      %p144 = scmp.eq.s32.totalorder %s20, 0
      %p145 = por %p143, %p144
      %p146 = scmp.ne.s32.totalorder %s138, %s140
      %p147 = scmp.eq.s32.totalorder %s25, 1
      %p148 = por %p146, %p147
      %p149 = scmp.ne.s32.totalorder %s140, %s141
      %p150 = scmp.eq.s32.totalorder %s25, 0
      %p151 = por %p149, %p150
      %p152 = scmp.ne.s32.totalorder %s140, %s141
      %p153 = scmp.eq.s32.totalorder %s26, 1
      %p154 = por %p152, %p153
      %p156 = scmp.ne.s32.totalorder %s141, %s155
      %p157 = scmp.eq.s32.totalorder %s26, 0
      %p158 = por %p156, %p157
      %s160 = sadd.s32 %s159, 1
      %p163 = scmp.eq.s32.totalorder %s20, 1
      %p164 = scmp.ne.s32.totalorder %s159, %s161
      %p165 = scmp.eq.s32.totalorder %s20, 0
      %p166 = por %p164, %p165
      %p167 = scmp.ne.s32.totalorder %s159, %s161
      %p168 = scmp.eq.s32.totalorder %s25, 1
      %p169 = por %p167, %p168
      %p170 = scmp.ne.s32.totalorder %s161, %s162
      %p171 = scmp.eq.s32.totalorder %s25, 0
      %p172 = por %p170, %p171
      %p173 = scmp.ne.s32.totalorder %s161, %s162
      %p174 = scmp.eq.s32.totalorder %s26, 1
      %p175 = por %p173, %p174
      %p177 = scmp.ne.s32.totalorder %s162, %s176
      %p178 = scmp.eq.s32.totalorder %s26, 0
      %p179 = por %p177, %p178
      %s181 = sadd.s32 %s180, 1
      %p184 = scmp.eq.s32.totalorder %s20, 1
      %p185 = scmp.ne.s32.totalorder %s180, %s182
      %p186 = scmp.eq.s32.totalorder %s20, 0
      %p187 = por %p185, %p186
      %p188 = scmp.ne.s32.totalorder %s180, %s182
      %p189 = scmp.eq.s32.totalorder %s25, 1
      %p190 = por %p188, %p189
      %p191 = scmp.ne.s32.totalorder %s182, %s183
      %p192 = scmp.eq.s32.totalorder %s25, 0
      %p193 = por %p191, %p192
      %p194 = scmp.ne.s32.totalorder %s182, %s183
      %p195 = scmp.eq.s32.totalorder %s26, 1
      %p196 = por %p194, %p195
      %p198 = scmp.ne.s32.totalorder %s183, %s197
      %p199 = scmp.eq.s32.totalorder %s26, 0
      %p200 = por %p198, %p199
      %s202 = sadd.s32 %s201, 1
      %p205 = scmp.eq.s32.totalorder %s20, 1
      %p206 = scmp.ne.s32.totalorder %s201, %s203
      %p207 = scmp.eq.s32.totalorder %s20, 0
      %p208 = por %p206, %p207
      %p209 = scmp.ne.s32.totalorder %s201, %s203
      %p210 = scmp.eq.s32.totalorder %s25, 1
      %p211 = por %p209, %p210
      %p212 = scmp.ne.s32.totalorder %s203, %s204
      %p213 = scmp.eq.s32.totalorder %s25, 0
      %p214 = por %p212, %p213
      %p215 = scmp.ne.s32.totalorder %s203, %s204
      %p216 = scmp.eq.s32.totalorder %s26, 1
      %p217 = por %p215, %p216
      %p219 = scmp.ne.s32.totalorder %s204, %s218
      %p220 = scmp.eq.s32.totalorder %s26, 0
      %p221 = por %p219, %p220
      %s223 = sadd.s32 %s222, 1
      %p226 = scmp.eq.s32.totalorder %s20, 1
      %p227 = scmp.ne.s32.totalorder %s222, %s224
      %p228 = scmp.eq.s32.totalorder %s20, 0
      %p229 = por %p227, %p228
      %p230 = scmp.ne.s32.totalorder %s222, %s224
      %p231 = scmp.eq.s32.totalorder %s25, 1
      %p232 = por %p230, %p231
      %p233 = scmp.ne.s32.totalorder %s224, %s225
      %p234 = scmp.eq.s32.totalorder %s25, 0
      %p235 = por %p233, %p234
      %p236 = scmp.ne.s32.totalorder %s224, %s225
      %p237 = scmp.eq.s32.totalorder %s26, 1
      %p238 = por %p236, %p237
      %p240 = scmp.ne.s32.totalorder %s225, %s239
      %p241 = scmp.eq.s32.totalorder %s26, 0
      %p242 = por %p240, %p241
      %s244 = sadd.s32 %s243, 1
      %p247 = scmp.eq.s32.totalorder %s20, 1
      %p248 = scmp.ne.s32.totalorder %s243, %s245
      %p249 = scmp.eq.s32.totalorder %s20, 0
      %p250 = por %p248, %p249
      %p251 = scmp.ne.s32.totalorder %s243, %s245
      %p252 = scmp.eq.s32.totalorder %s25, 1
      %p253 = por %p251, %p252
      %p254 = scmp.ne.s32.totalorder %s245, %s246
      %p255 = scmp.eq.s32.totalorder %s25, 0
      %p256 = por %p254, %p255
      %p257 = scmp.ne.s32.totalorder %s245, %s246
      %p258 = scmp.eq.s32.totalorder %s26, 1
      %p259 = por %p257, %p258
      %p261 = scmp.ne.s32.totalorder %s246, %s260
      %p262 = scmp.eq.s32.totalorder %s26, 0
      %p263 = por %p261, %p262
      %s264 = ssub.s32 %s20, %s27
      %p265 = scmp.eq.s32.totalorder %s264, 0
      %s267 = sadd.s32 %s266, 1
      %s268 = scalar_select %p265, %s266, %s267
      %p271 = pneg %p265
      %p272 = scmp.eq.s32.totalorder %s20, 1
      %p273 = por %p271, %p272
      %p274 = scmp.ne.s32.totalorder %s266, %s269
      %p275 = scmp.eq.s32.totalorder %s20, 0
      %p276 = por %p274, %p275
      %p277 = scmp.ne.s32.totalorder %s266, %s269
      %p278 = scmp.eq.s32.totalorder %s25, 1
      %p279 = por %p277, %p278
      %p280 = scmp.ne.s32.totalorder %s269, %s270
      %p281 = scmp.eq.s32.totalorder %s25, 0
      %p282 = por %p280, %p281
      %p283 = scmp.ne.s32.totalorder %s269, %s270
      %p284 = scmp.eq.s32.totalorder %s26, 1
      %p285 = por %p283, %p284
      %p287 = scmp.ne.s32.totalorder %s270, %s286
      %p288 = scmp.eq.s32.totalorder %s26, 0
      %p289 = por %p287, %p288
      %p290 = scmp.le.s32.totalorder 1, %s20
      %p291 = scmp.lt.s32.totalorder %s20, 3
      %p292 = pnand %p290, %p291
      %p293 = pneg %p292
      // Predicated region
      $region9: #{lenet_forward.1} parent=5 // pred_check
        _
      $region10: #{lenet_forward.1} parent=5 // pred_check_branch
        %295 = sbr.rel (%p292) target = $region12
      $region11: #{lenet_forward.1} parent=5 // pred_region
        %s296 = ssub.s32 %s20, 1
        // Predicated region
        $region13: #{lenet_forward.1} parent=11 // pred_check
          %p297 = pneg %p67
        $region14: #{lenet_forward.1} parent=11 // pred_check_branch
          %299 = sbr.rel (%p297) target = $region16
        $region15: #{lenet_forward.1} parent=11 // pred_region
          _
        $region16: #{lenet_forward.1} parent=11 // pred_fallthru
          _
        // Predicated region
        $region17: #{lenet_forward.1} parent=11 // pred_check
          %p300 = pneg %p88
        $region18: #{lenet_forward.1} parent=11 // pred_check_branch
          %302 = sbr.rel (%p300) target = $region20
        $region19: #{lenet_forward.1} parent=11 // pred_region
          _
        $region20: #{lenet_forward.1} parent=11 // pred_fallthru
          _
        // Predicated region
        $region21: #{lenet_forward.1} parent=11 // pred_check
          %p303 = pneg %p109
        $region22: #{lenet_forward.1} parent=11 // pred_check_branch
          %305 = sbr.rel (%p303) target = $region24
        $region23: #{lenet_forward.1} parent=11 // pred_region
          _
        $region24: #{lenet_forward.1} parent=11 // pred_fallthru
          _
        // Predicated region
        $region25: #{lenet_forward.1} parent=11 // pred_check
          %p306 = pneg %p130
        $region26: #{lenet_forward.1} parent=11 // pred_check_branch
          %308 = sbr.rel (%p306) target = $region28
        $region27: #{lenet_forward.1} parent=11 // pred_region
          _
        $region28: #{lenet_forward.1} parent=11 // pred_fallthru
          _
        // Predicated region
        $region29: #{lenet_forward.1} parent=11 // pred_check
          %p309 = pneg %p151
        $region30: #{lenet_forward.1} parent=11 // pred_check_branch
          %311 = sbr.rel (%p309) target = $region32
        $region31: #{lenet_forward.1} parent=11 // pred_region
          _
        $region32: #{lenet_forward.1} parent=11 // pred_fallthru
          _
        // Predicated region
        $region33: #{lenet_forward.1} parent=11 // pred_check
          %p312 = pneg %p172
        $region34: #{lenet_forward.1} parent=11 // pred_check_branch
          %314 = sbr.rel (%p312) target = $region36
        $region35: #{lenet_forward.1} parent=11 // pred_region
          _
        $region36: #{lenet_forward.1} parent=11 // pred_fallthru
          _
        // Predicated region
        $region37: #{lenet_forward.1} parent=11 // pred_check
          %p315 = pneg %p193
        $region38: #{lenet_forward.1} parent=11 // pred_check_branch
          %317 = sbr.rel (%p315) target = $region40
        $region39: #{lenet_forward.1} parent=11 // pred_region
          _
        $region40: #{lenet_forward.1} parent=11 // pred_fallthru
          _
        // Predicated region
        $region41: #{lenet_forward.1} parent=11 // pred_check
          %p318 = pneg %p214
        $region42: #{lenet_forward.1} parent=11 // pred_check_branch
          %320 = sbr.rel (%p318) target = $region44
        $region43: #{lenet_forward.1} parent=11 // pred_region
          _
        $region44: #{lenet_forward.1} parent=11 // pred_fallthru
          _
        // Predicated region
        $region45: #{lenet_forward.1} parent=11 // pred_check
          %p321 = pneg %p235
        $region46: #{lenet_forward.1} parent=11 // pred_check_branch
          %323 = sbr.rel (%p321) target = $region48
        $region47: #{lenet_forward.1} parent=11 // pred_region
          _
        $region48: #{lenet_forward.1} parent=11 // pred_fallthru
          _
        // Predicated region
        $region49: #{lenet_forward.1} parent=11 // pred_check
          %p324 = pneg %p256
        $region50: #{lenet_forward.1} parent=11 // pred_check_branch
          %326 = sbr.rel (%p324) target = $region52
        $region51: #{lenet_forward.1} parent=11 // pred_region
          _
        $region52: #{lenet_forward.1} parent=11 // pred_fallthru
          _
      $region12: #{lenet_forward.1} parent=5 // pred_fallthru
        _
      %p327 = scmp.lt.s32.totalorder %s20, 2
      // Predicated region
      $region53: #{lenet_forward.1} parent=5 // pred_check
        %p328 = pneg %p327
      $region54: #{lenet_forward.1} parent=5 // pred_check_branch
        %330 = sbr.rel (%p328) target = $region56
      $region55: #{lenet_forward.1} parent=5 // pred_region
        // Predicated region
        $region57: #{lenet_forward.1} parent=55 // pred_check
          %p331 = pneg %p40
        $region58: #{lenet_forward.1} parent=55 // pred_check_branch
          %333 = sbr.rel (%p331) target = $region60
        $region59: #{lenet_forward.1} parent=55 // pred_region
          %p334 = scmp.lt.s32.totalorder %s20, 1
          %s335 = scalar_select %p334, %s20, 1
          %s336 = smul.addr %s335, 98
          %s337 = smul.addr %s336, 8
          %s338 = scalar_lea.vmem %s0, %s337
        $region60: #{lenet_forward.1} parent=55 // pred_fallthru
          _
      $region56: #{lenet_forward.1} parent=5 // pred_fallthru
        _
      %p339 = scmp.le.s32.totalorder 1, %s20
      %p340 = scmp.lt.s32.totalorder %s20, 3
      %p341 = pnand %p339, %p340
      %p342 = pneg %p341
      // Predicated region
      $region61: #{lenet_forward.1} parent=5 // pred_check
        _
      $region62: #{lenet_forward.1} parent=5 // pred_check_branch
        %344 = sbr.rel (%p341) target = $region64
      $region63: #{lenet_forward.1} parent=5 // pred_region
        %s345 = ssub.s32 %s20, 1
        %p346 = scmp.lt.s32.totalorder %s25, 1
        %s347 = scalar_select %p346, %s25, 1
        %s348 = smul.addr %s347, 98
        %s349 = smul.addr %s348, 8
        %s350 = scalar_lea.vmem %s0, %s349
        %p351 = pneg %p46
        %p352 = pneg %p43
        %p353 = pneg %p67
        %p354 = pneg %p64
        %p355 = pneg %p88
        %p356 = pneg %p85
        %p357 = pneg %p109
        %p358 = pneg %p106
        %p359 = pneg %p130
        %p360 = pneg %p127
        %p361 = pneg %p151
        %p362 = pneg %p148
        %p363 = pneg %p172
        %p364 = pneg %p169
        %p365 = pneg %p193
        %p366 = pneg %p190
        %p367 = pneg %p214
        %p368 = pneg %p211
        %p369 = pneg %p235
        %p370 = pneg %p232
        %p371 = pneg %p256
        %p372 = pneg %p253
        %p373 = pneg %p282
        %p374 = pneg %p279
        %s375 = sand.u32 %s269, 1
        %s376 = scalar_lea.sflag [#allocation5], %s375
        %s377 = sand.u32 %s269, 1
        %s378 = scalar_lea.vmem [#allocation4], %s377
        %p379 = scmp.lt.s32.totalorder %s25, 1
        %s380 = scalar_select %p379, %s25, 1
        %s381 = smul.addr %s380, 98
        %s382 = smul.addr %s381, 8
        %s383 = scalar_lea.vmem %s0, %s382
        %v384 = vld [vmem:[%s383] sm:$0xff]
        %v385 = vld [vmem:[%s383 + $0x8] sm:$0xff]
        %v386 = vld [vmem:[%s383 + $0x10] sm:$0xff]
        %v387 = vld [vmem:[%s383 + $0x18] sm:$0xff]
        %v388 = vld [vmem:[%s383 + $0x20] sm:$0xff]
        %v389 = vld [vmem:[%s383 + $0x28] sm:$0xff]
        %v390 = vld [vmem:[%s383 + $0x30] sm:$0xff]
        %v391 = vld [vmem:[%s383 + $0x38] sm:$0xff]
        %v392 = vld [vmem:[%s383 + $0x40] sm:$0xff]
        %v393 = vld [vmem:[%s383 + $0x48] sm:$0xff]
        %v394 = vld [vmem:[%s383 + $0x50] sm:$0xff]
        %v395 = vld [vmem:[%s383 + $0x58] sm:$0xff]
        %v396 = vld [vmem:[%s383 + $0x60] sm:$0xff]
        %v397 = vld [vmem:[%s383 + $0x68] sm:$0xff]
        %v398 = vld [vmem:[%s383 + $0x70] sm:$0xff]
        %v399 = vld [vmem:[%s383 + $0x78] sm:$0xff]
        %v400 = vld [vmem:[%s383 + $0x80] sm:$0xff]
        %v401 = vld [vmem:[%s383 + $0x88] sm:$0xff]
        %v402 = vld [vmem:[%s383 + $0x90] sm:$0xff]
        %v403 = vld [vmem:[%s383 + $0x98] sm:$0xff]
        %v404 = vld [vmem:[%s383 + $0xa0] sm:$0xff]
        %v405 = vld [vmem:[%s383 + $0xa8] sm:$0xff]
        %v406 = vld [vmem:[%s383 + $0xb0] sm:$0xff]
        %v407 = vld [vmem:[%s383 + $0xb8] sm:$0xff]
        %v408 = vld [vmem:[%s383 + $0xc0] sm:$0xff]
        %v409 = vld [vmem:[%s383 + $0xc8] sm:$0xff]
        %v410 = vld [vmem:[%s383 + $0xd0] sm:$0xff]
        %v411 = vld [vmem:[%s383 + $0xd8] sm:$0xff]
        %v412 = vld [vmem:[%s383 + $0xe0] sm:$0xff]
        %v413 = vld [vmem:[%s383 + $0xe8] sm:$0xff]
        %v414 = vld [vmem:[%s383 + $0xf0] sm:$0xff]
        %v415 = vld [vmem:[%s383 + $0xf8] sm:$0xff]
        %v416 = vld [vmem:[%s383 + $0x100] sm:$0xff]
        %v417 = vld [vmem:[%s383 + $0x108] sm:$0xff]
        %v418 = vld [vmem:[%s383 + $0x110] sm:$0xff]
        %v419 = vld [vmem:[%s383 + $0x118] sm:$0xff]
        %v420 = vld [vmem:[%s383 + $0x120] sm:$0xff]
        %v421 = vld [vmem:[%s383 + $0x128] sm:$0xff]
        %v422 = vld [vmem:[%s383 + $0x130] sm:$0xff]
        %v423 = vld [vmem:[%s383 + $0x138] sm:$0xff]
        %v424 = vld [vmem:[%s383 + $0x140] sm:$0xff]
        %v425 = vld [vmem:[%s383 + $0x148] sm:$0xff]
        %v426 = vld [vmem:[%s383 + $0x150] sm:$0xff]
        %v427 = vld [vmem:[%s383 + $0x158] sm:$0xff]
        %v428 = vld [vmem:[%s383 + $0x160] sm:$0xff]
        %v429 = vld [vmem:[%s383 + $0x168] sm:$0xff]
        %v430 = vld [vmem:[%s383 + $0x170] sm:$0xff]
        %v431 = vld [vmem:[%s383 + $0x178] sm:$0xff]
        %v432 = vld [vmem:[%s383 + $0x180] sm:$0xff]
        %v433 = vld [vmem:[%s383 + $0x188] sm:$0xff]
        %v434 = vld [vmem:[%s383 + $0x190] sm:$0xff]
        %v435 = vld [vmem:[%s383 + $0x198] sm:$0xff]
        %v436 = vld [vmem:[%s383 + $0x1a0] sm:$0xff]
        %v437 = vld [vmem:[%s383 + $0x1a8] sm:$0xff]
        %v438 = vld [vmem:[%s383 + $0x1b0] sm:$0xff]
        %v439 = vld [vmem:[%s383 + $0x1b8] sm:$0xff]
        %v440 = vld [vmem:[%s383 + $0x1c0] sm:$0xff]
        %v441 = vld [vmem:[%s383 + $0x1c8] sm:$0xff]
        %v442 = vld [vmem:[%s383 + $0x1d0] sm:$0xff]
        %v443 = vld [vmem:[%s383 + $0x1d8] sm:$0xff]
        %v444 = vld [vmem:[%s383 + $0x1e0] sm:$0xff]
        %v445 = vld [vmem:[%s383 + $0x1e8] sm:$0xff]
        %v446 = vld [vmem:[%s383 + $0x1f0] sm:$0xff]
        %v447 = vld [vmem:[%s383 + $0x1f8] sm:$0xff]
        %v448 = vld [vmem:[%s383 + $0x200] sm:$0xff]
        %v449 = vld [vmem:[%s383 + $0x208] sm:$0xff]
        %v450 = vld [vmem:[%s383 + $0x210] sm:$0xff]
        %v451 = vld [vmem:[%s383 + $0x218] sm:$0xff]
        %v452 = vld [vmem:[%s383 + $0x220] sm:$0xff]
        %v453 = vld [vmem:[%s383 + $0x228] sm:$0xff]
        %v454 = vld [vmem:[%s383 + $0x230] sm:$0xff]
        %v455 = vld [vmem:[%s383 + $0x238] sm:$0xff]
        %v456 = vld [vmem:[%s383 + $0x240] sm:$0xff]
        %v457 = vld [vmem:[%s383 + $0x248] sm:$0xff]
        %v458 = vld [vmem:[%s383 + $0x250] sm:$0xff]
        %v459 = vld [vmem:[%s383 + $0x258] sm:$0xff]
        %v460 = vld [vmem:[%s383 + $0x260] sm:$0xff]
        %v461 = vld [vmem:[%s383 + $0x268] sm:$0xff]
        %v462 = vld [vmem:[%s383 + $0x270] sm:$0xff]
        %v463 = vld [vmem:[%s383 + $0x278] sm:$0xff]
        %v464 = vld [vmem:[%s383 + $0x280] sm:$0xff]
        %v465 = vld [vmem:[%s383 + $0x288] sm:$0xff]
        %v466 = vld [vmem:[%s383 + $0x290] sm:$0xff]
        %v467 = vld [vmem:[%s383 + $0x298] sm:$0xff]
        %v468 = vld [vmem:[%s383 + $0x2a0] sm:$0xff]
        %v469 = vld [vmem:[%s383 + $0x2a8] sm:$0xff]
        %v470 = vld [vmem:[%s383 + $0x2b0] sm:$0xff]
        %v471 = vld [vmem:[%s383 + $0x2b8] sm:$0xff]
        %v472 = vld [vmem:[%s383 + $0x2c0] sm:$0xff]
        %v473 = vld [vmem:[%s383 + $0x2c8] sm:$0xff]
        %v474 = vld [vmem:[%s383 + $0x2d0] sm:$0xff]
        %v475 = vld [vmem:[%s383 + $0x2d8] sm:$0xff]
        %v476 = vld [vmem:[%s383 + $0x2e0] sm:$0xff]
        %v477 = vld [vmem:[%s383 + $0x2e8] sm:$0xff]
        %v478 = vld [vmem:[%s383 + $0x2f0] sm:$0xff]
        %v479 = vld [vmem:[%s383 + $0x2f8] sm:$0xff]
        %v480 = vld [vmem:[%s383 + $0x300] sm:$0xff]
        %v481 = vld [vmem:[%s383 + $0x308] sm:$0xff]
        %v482 = vld [vmem:[%s1] sm:$0xff]
        %v483 = vld [vmem:[%s1 + $0x8] sm:$0xff]
        %v484 = vld [vmem:[%s1 + $0x10] sm:$0xff]
        %v485 = vld [vmem:[%s1 + $0x18] sm:$0xff]
        %vm486 = vcmask 261120
        %v488 = vsel %vm486, %v384, 0
        %v491 = vsel %vm486, %v385, 0
        %v494 = vsel %vm486, %v386, 0
        %v497 = vsel %vm486, %v387, 0
        %v500 = vsel %vm486, %v388, 0
        %v503 = vsel %vm486, %v389, 0
        %v506 = vsel %vm486, %v390, 0
        %v509 = vsel %vm486, %v391, 0
        %v512 = vsel %vm486, %v392, 0
        %v515 = vsel %vm486, %v393, 0
        %v518 = vsel %vm486, %v394, 0
        %v521 = vsel %vm486, %v395, 0
        %v524 = vsel %vm486, %v396, 0
        %v527 = vsel %vm486, %v397, 0
        %v530 = vsel %vm486, %v398, 0
        %v533 = vsel %vm486, %v399, 0
        %v536 = vsel %vm486, %v400, 0
        %v539 = vsel %vm486, %v401, 0
        %v542 = vsel %vm486, %v402, 0
        %v545 = vsel %vm486, %v403, 0
        %v548 = vsel %vm486, %v404, 0
        %v551 = vsel %vm486, %v405, 0
        %v554 = vsel %vm486, %v406, 0
        %v557 = vsel %vm486, %v407, 0
        %v560 = vsel %vm486, %v408, 0
        %v563 = vsel %vm486, %v409, 0
        %v566 = vsel %vm486, %v410, 0
        %v569 = vsel %vm486, %v411, 0
        %v572 = vsel %vm486, %v412, 0
        %v575 = vsel %vm486, %v413, 0
        %v578 = vsel %vm486, %v414, 0
        %v581 = vsel %vm486, %v415, 0
        %v584 = vsel %vm486, %v416, 0
        %v587 = vsel %vm486, %v417, 0
        %v590 = vsel %vm486, %v418, 0
        %v593 = vsel %vm486, %v419, 0
        %v596 = vsel %vm486, %v420, 0
        %v599 = vsel %vm486, %v421, 0
        %v602 = vsel %vm486, %v422, 0
        %v605 = vsel %vm486, %v423, 0
        %v608 = vsel %vm486, %v424, 0
        %v611 = vsel %vm486, %v425, 0
        %v614 = vsel %vm486, %v426, 0
        %v617 = vsel %vm486, %v427, 0
        %v620 = vsel %vm486, %v428, 0
        %v623 = vsel %vm486, %v429, 0
        %v626 = vsel %vm486, %v430, 0
        %v629 = vsel %vm486, %v431, 0
        %v632 = vsel %vm486, %v432, 0
        %v635 = vsel %vm486, %v433, 0
        %v638 = vsel %vm486, %v434, 0
        %v641 = vsel %vm486, %v435, 0
        %v644 = vsel %vm486, %v436, 0
        %v647 = vsel %vm486, %v437, 0
        %v650 = vsel %vm486, %v438, 0
        %v653 = vsel %vm486, %v439, 0
        %v656 = vsel %vm486, %v440, 0
        %v659 = vsel %vm486, %v441, 0
        %v662 = vsel %vm486, %v442, 0
        %v665 = vsel %vm486, %v443, 0
        %v668 = vsel %vm486, %v444, 0
        %v671 = vsel %vm486, %v445, 0
        %v674 = vsel %vm486, %v446, 0
        %v677 = vsel %vm486, %v447, 0
        %v680 = vsel %vm486, %v448, 0
        %v683 = vsel %vm486, %v449, 0
        %v686 = vsel %vm486, %v450, 0
        %v689 = vsel %vm486, %v451, 0
        %v692 = vsel %vm486, %v452, 0
        %v695 = vsel %vm486, %v453, 0
        %v698 = vsel %vm486, %v454, 0
        %v701 = vsel %vm486, %v455, 0
        %v704 = vsel %vm486, %v456, 0
        %v707 = vsel %vm486, %v457, 0
        %v710 = vsel %vm486, %v458, 0
        %v713 = vsel %vm486, %v459, 0
        %v716 = vsel %vm486, %v460, 0
        %v719 = vsel %vm486, %v461, 0
        %v722 = vsel %vm486, %v462, 0
        %v725 = vsel %vm486, %v463, 0
        %v728 = vsel %vm486, %v464, 0
        %v731 = vsel %vm486, %v465, 0
        %v734 = vsel %vm486, %v466, 0
        %v737 = vsel %vm486, %v467, 0
        %v740 = vsel %vm486, %v468, 0
        %v743 = vsel %vm486, %v469, 0
        %v746 = vsel %vm486, %v470, 0
        %v749 = vsel %vm486, %v471, 0
        %v752 = vsel %vm486, %v472, 0
        %v755 = vsel %vm486, %v473, 0
        %v758 = vsel %vm486, %v474, 0
        %v761 = vsel %vm486, %v475, 0
        %v764 = vsel %vm486, %v476, 0
        %v767 = vsel %vm486, %v477, 0
        %v770 = vsel %vm486, %v478, 0
        %v773 = vsel %vm486, %v479, 0
        %v776 = vsel %vm486, %v480, 0
        %v779 = vsel %vm486, %v481, 0
        %781 = vmatpush.msra.mxu0 0.0
        %782 = vmatpush.msra.mxu0 0.0
        %783 = vmatpush.msra.mxu0 0.0
        %784 = vmatpush.msra.mxu0 0.0
        %785 = vmatpush.msra.mxu0 0.0
        %786 = vmatpush.msra.mxu0 0.0
        %787 = vmatpush.msra.mxu0 0.0
        %788 = vmatpush.msra.mxu0 0.0
        %789 = vmatpush.msra.mxu0 0.0
        %790 = vmatpush.msra.mxu0 0.0
        %791 = vmatpush.msra.mxu0 0.0
        %792 = vmatpush.msra.mxu0 0.0
        %793 = vmatpush.msra.mxu0 %v485
        %794 = vmatpush.msra.mxu0 %v484
        %795 = vmatpush.msra.mxu0 %v483
        %796 = vmatpush.msra.mxu0 %v482
        %797 = vmatmul.f32.gmra.mxu0 %v488
        %v798 = vpop.f32.mrf.mxu0
        %v799 = vadd.f32 0.0, %v798
        %800 = vmatmul.f32.gmra.mxu0 %v491
        %v801 = vpop.f32.mrf.mxu0
        %v802 = vadd.f32 0.0, %v801
        %803 = vmatmul.f32.gmra.mxu0 %v494
        %v804 = vpop.f32.mrf.mxu0
        %v805 = vadd.f32 0.0, %v804
        %806 = vmatmul.f32.gmra.mxu0 %v497
        %v807 = vpop.f32.mrf.mxu0
        %v808 = vadd.f32 0.0, %v807
        %809 = vmatmul.f32.gmra.mxu0 %v500
        %v810 = vpop.f32.mrf.mxu0
        %v811 = vadd.f32 0.0, %v810
        %812 = vmatmul.f32.gmra.mxu0 %v503
        %v813 = vpop.f32.mrf.mxu0
        %v814 = vadd.f32 0.0, %v813
        %815 = vmatmul.f32.gmra.mxu0 %v506
        %v816 = vpop.f32.mrf.mxu0
        %v817 = vadd.f32 0.0, %v816
        %818 = vmatmul.f32.gmra.mxu0 %v509
        %v819 = vpop.f32.mrf.mxu0
        %v820 = vadd.f32 0.0, %v819
        %821 = vmatmul.f32.gmra.mxu0 %v512
        %v822 = vpop.f32.mrf.mxu0
        %v823 = vadd.f32 0.0, %v822
        %824 = vmatmul.f32.gmra.mxu0 %v515
        %v825 = vpop.f32.mrf.mxu0
        %v826 = vadd.f32 0.0, %v825
        %827 = vmatmul.f32.gmra.mxu0 %v518
        %v828 = vpop.f32.mrf.mxu0
        %v829 = vadd.f32 0.0, %v828
        %830 = vmatmul.f32.gmra.mxu0 %v521
        %v831 = vpop.f32.mrf.mxu0
        %v832 = vadd.f32 0.0, %v831
        %833 = vmatmul.f32.gmra.mxu0 %v524
        %v834 = vpop.f32.mrf.mxu0
        %v835 = vadd.f32 0.0, %v834
        %836 = vmatmul.f32.gmra.mxu0 %v527
        %v837 = vpop.f32.mrf.mxu0
        %v838 = vadd.f32 0.0, %v837
        %839 = vmatmul.f32.gmra.mxu0 %v530
        %v840 = vpop.f32.mrf.mxu0
        %v841 = vadd.f32 0.0, %v840
        %842 = vmatmul.f32.gmra.mxu0 %v533
        %v843 = vpop.f32.mrf.mxu0
        %v844 = vadd.f32 0.0, %v843
        %845 = vmatmul.f32.gmra.mxu0 %v536
        %v846 = vpop.f32.mrf.mxu0
        %v847 = vadd.f32 0.0, %v846
        %848 = vmatmul.f32.gmra.mxu0 %v539
        %v849 = vpop.f32.mrf.mxu0
        %v850 = vadd.f32 0.0, %v849
        %851 = vmatmul.f32.gmra.mxu0 %v542
        %v852 = vpop.f32.mrf.mxu0
        %v853 = vadd.f32 0.0, %v852
        %854 = vmatmul.f32.gmra.mxu0 %v545
        %v855 = vpop.f32.mrf.mxu0
        %v856 = vadd.f32 0.0, %v855
        %857 = vmatmul.f32.gmra.mxu0 %v548
        %v858 = vpop.f32.mrf.mxu0
        %v859 = vadd.f32 0.0, %v858
        %860 = vmatmul.f32.gmra.mxu0 %v551
        %v861 = vpop.f32.mrf.mxu0
        %v862 = vadd.f32 0.0, %v861
        %863 = vmatmul.f32.gmra.mxu0 %v554
        %v864 = vpop.f32.mrf.mxu0
        %v865 = vadd.f32 0.0, %v864
        %866 = vmatmul.f32.gmra.mxu0 %v557
        %v867 = vpop.f32.mrf.mxu0
        %v868 = vadd.f32 0.0, %v867
        %869 = vmatmul.f32.gmra.mxu0 %v560
        %v870 = vpop.f32.mrf.mxu0
        %v871 = vadd.f32 0.0, %v870
        %872 = vmatmul.f32.gmra.mxu0 %v563
        %v873 = vpop.f32.mrf.mxu0
        %v874 = vadd.f32 0.0, %v873
        %875 = vmatmul.f32.gmra.mxu0 %v566
        %v876 = vpop.f32.mrf.mxu0
        %v877 = vadd.f32 0.0, %v876
        %878 = vmatmul.f32.gmra.mxu0 %v569
        %v879 = vpop.f32.mrf.mxu0
        %v880 = vadd.f32 0.0, %v879
        %881 = vmatmul.f32.gmra.mxu0 %v572
        %v882 = vpop.f32.mrf.mxu0
        %v883 = vadd.f32 0.0, %v882
        %884 = vmatmul.f32.gmra.mxu0 %v575
        %v885 = vpop.f32.mrf.mxu0
        %v886 = vadd.f32 0.0, %v885
        %887 = vmatmul.f32.gmra.mxu0 %v578
        %v888 = vpop.f32.mrf.mxu0
        %v889 = vadd.f32 0.0, %v888
        %890 = vmatmul.f32.gmra.mxu0 %v581
        %v891 = vpop.f32.mrf.mxu0
        %v892 = vadd.f32 0.0, %v891
        %893 = vmatmul.f32.gmra.mxu0 %v584
        %v894 = vpop.f32.mrf.mxu0
        %v895 = vadd.f32 0.0, %v894
        %896 = vmatmul.f32.gmra.mxu0 %v587
        %v897 = vpop.f32.mrf.mxu0
        %v898 = vadd.f32 0.0, %v897
        %899 = vmatmul.f32.gmra.mxu0 %v590
        %v900 = vpop.f32.mrf.mxu0
        %v901 = vadd.f32 0.0, %v900
        %902 = vmatmul.f32.gmra.mxu0 %v593
        %v903 = vpop.f32.mrf.mxu0
        %v904 = vadd.f32 0.0, %v903
        %905 = vmatmul.f32.gmra.mxu0 %v596
        %v906 = vpop.f32.mrf.mxu0
        %v907 = vadd.f32 0.0, %v906
        %908 = vmatmul.f32.gmra.mxu0 %v599
        %v909 = vpop.f32.mrf.mxu0
        %v910 = vadd.f32 0.0, %v909
        %911 = vmatmul.f32.gmra.mxu0 %v602
        %v912 = vpop.f32.mrf.mxu0
        %v913 = vadd.f32 0.0, %v912
        %914 = vmatmul.f32.gmra.mxu0 %v605
        %v915 = vpop.f32.mrf.mxu0
        %v916 = vadd.f32 0.0, %v915
        %917 = vmatmul.f32.gmra.mxu0 %v608
        %v918 = vpop.f32.mrf.mxu0
        %v919 = vadd.f32 0.0, %v918
        %920 = vmatmul.f32.gmra.mxu0 %v611
        %v921 = vpop.f32.mrf.mxu0
        %v922 = vadd.f32 0.0, %v921
        %923 = vmatmul.f32.gmra.mxu0 %v614
        %v924 = vpop.f32.mrf.mxu0
        %v925 = vadd.f32 0.0, %v924
        %926 = vmatmul.f32.gmra.mxu0 %v617
        %v927 = vpop.f32.mrf.mxu0
        %v928 = vadd.f32 0.0, %v927
        %929 = vmatmul.f32.gmra.mxu0 %v620
        %v930 = vpop.f32.mrf.mxu0
        %v931 = vadd.f32 0.0, %v930
        %932 = vmatmul.f32.gmra.mxu0 %v623
        %v933 = vpop.f32.mrf.mxu0
        %v934 = vadd.f32 0.0, %v933
        %935 = vmatmul.f32.gmra.mxu0 %v626
        %v936 = vpop.f32.mrf.mxu0
        %v937 = vadd.f32 0.0, %v936
        %938 = vmatmul.f32.gmra.mxu0 %v629
        %v939 = vpop.f32.mrf.mxu0
        %v940 = vadd.f32 0.0, %v939
        %941 = vmatmul.f32.gmra.mxu0 %v632
        %v942 = vpop.f32.mrf.mxu0
        %v943 = vadd.f32 0.0, %v942
        %944 = vmatmul.f32.gmra.mxu0 %v635
        %v945 = vpop.f32.mrf.mxu0
        %v946 = vadd.f32 0.0, %v945
        %947 = vmatmul.f32.gmra.mxu0 %v638
        %v948 = vpop.f32.mrf.mxu0
        %v949 = vadd.f32 0.0, %v948
        %950 = vmatmul.f32.gmra.mxu0 %v641
        %v951 = vpop.f32.mrf.mxu0
        %v952 = vadd.f32 0.0, %v951
        %953 = vmatmul.f32.gmra.mxu0 %v644
        %v954 = vpop.f32.mrf.mxu0
        %v955 = vadd.f32 0.0, %v954
        %956 = vmatmul.f32.gmra.mxu0 %v647
        %v957 = vpop.f32.mrf.mxu0
        %v958 = vadd.f32 0.0, %v957
        %959 = vmatmul.f32.gmra.mxu0 %v650
        %v960 = vpop.f32.mrf.mxu0
        %v961 = vadd.f32 0.0, %v960
        %962 = vmatmul.f32.gmra.mxu0 %v653
        %v963 = vpop.f32.mrf.mxu0
        %v964 = vadd.f32 0.0, %v963
        %965 = vmatmul.f32.gmra.mxu0 %v656
        %v966 = vpop.f32.mrf.mxu0
        %v967 = vadd.f32 0.0, %v966
        %968 = vmatmul.f32.gmra.mxu0 %v659
        %v969 = vpop.f32.mrf.mxu0
        %v970 = vadd.f32 0.0, %v969
        %971 = vmatmul.f32.gmra.mxu0 %v662
        %v972 = vpop.f32.mrf.mxu0
        %v973 = vadd.f32 0.0, %v972
        %974 = vmatmul.f32.gmra.mxu0 %v665
        %v975 = vpop.f32.mrf.mxu0
        %v976 = vadd.f32 0.0, %v975
        %977 = vmatmul.f32.gmra.mxu0 %v668
        %v978 = vpop.f32.mrf.mxu0
        %v979 = vadd.f32 0.0, %v978
        %980 = vmatmul.f32.gmra.mxu0 %v671
        %v981 = vpop.f32.mrf.mxu0
        %v982 = vadd.f32 0.0, %v981
        %983 = vmatmul.f32.gmra.mxu0 %v674
        %v984 = vpop.f32.mrf.mxu0
        %v985 = vadd.f32 0.0, %v984
        %986 = vmatmul.f32.gmra.mxu0 %v677
        %v987 = vpop.f32.mrf.mxu0
        %v988 = vadd.f32 0.0, %v987
        %989 = vmatmul.f32.gmra.mxu0 %v680
        %v990 = vpop.f32.mrf.mxu0
        %v991 = vadd.f32 0.0, %v990
        %992 = vmatmul.f32.gmra.mxu0 %v683
        %v993 = vpop.f32.mrf.mxu0
        %v994 = vadd.f32 0.0, %v993
        %995 = vmatmul.f32.gmra.mxu0 %v686
        %v996 = vpop.f32.mrf.mxu0
        %v997 = vadd.f32 0.0, %v996
        %998 = vmatmul.f32.gmra.mxu0 %v689
        %v999 = vpop.f32.mrf.mxu0
        %v1000 = vadd.f32 0.0, %v999
        %1001 = vmatmul.f32.gmra.mxu0 %v692
        %v1002 = vpop.f32.mrf.mxu0
        %v1003 = vadd.f32 0.0, %v1002
        %1004 = vmatmul.f32.gmra.mxu0 %v695
        %v1005 = vpop.f32.mrf.mxu0
        %v1006 = vadd.f32 0.0, %v1005
        %1007 = vmatmul.f32.gmra.mxu0 %v698
        %v1008 = vpop.f32.mrf.mxu0
        %v1009 = vadd.f32 0.0, %v1008
        %1010 = vmatmul.f32.gmra.mxu0 %v701
        %v1011 = vpop.f32.mrf.mxu0
        %v1012 = vadd.f32 0.0, %v1011
        %1013 = vmatmul.f32.gmra.mxu0 %v704
        %v1014 = vpop.f32.mrf.mxu0
        %v1015 = vadd.f32 0.0, %v1014
        %1016 = vmatmul.f32.gmra.mxu0 %v707
        %v1017 = vpop.f32.mrf.mxu0
        %v1018 = vadd.f32 0.0, %v1017
        %1019 = vmatmul.f32.gmra.mxu0 %v710
        %v1020 = vpop.f32.mrf.mxu0
        %v1021 = vadd.f32 0.0, %v1020
        %1022 = vmatmul.f32.gmra.mxu0 %v713
        %v1023 = vpop.f32.mrf.mxu0
        %v1024 = vadd.f32 0.0, %v1023
        %1025 = vmatmul.f32.gmra.mxu0 %v716
        %v1026 = vpop.f32.mrf.mxu0
        %v1027 = vadd.f32 0.0, %v1026
        %1028 = vmatmul.f32.gmra.mxu0 %v719
        %v1029 = vpop.f32.mrf.mxu0
        %v1030 = vadd.f32 0.0, %v1029
        %1031 = vmatmul.f32.gmra.mxu0 %v722
        %v1032 = vpop.f32.mrf.mxu0
        %v1033 = vadd.f32 0.0, %v1032
        %1034 = vmatmul.f32.gmra.mxu0 %v725
        %v1035 = vpop.f32.mrf.mxu0
        %v1036 = vadd.f32 0.0, %v1035
        %1037 = vmatmul.f32.gmra.mxu0 %v728
        %v1038 = vpop.f32.mrf.mxu0
        %v1039 = vadd.f32 0.0, %v1038
        %1040 = vmatmul.f32.gmra.mxu0 %v731
        %v1041 = vpop.f32.mrf.mxu0
        %v1042 = vadd.f32 0.0, %v1041
        %1043 = vmatmul.f32.gmra.mxu0 %v734
        %v1044 = vpop.f32.mrf.mxu0
        %v1045 = vadd.f32 0.0, %v1044
        %1046 = vmatmul.f32.gmra.mxu0 %v737
        %v1047 = vpop.f32.mrf.mxu0
        %v1048 = vadd.f32 0.0, %v1047
        %1049 = vmatmul.f32.gmra.mxu0 %v740
        %v1050 = vpop.f32.mrf.mxu0
        %v1051 = vadd.f32 0.0, %v1050
        %1052 = vmatmul.f32.gmra.mxu0 %v743
        %v1053 = vpop.f32.mrf.mxu0
        %v1054 = vadd.f32 0.0, %v1053
        %1055 = vmatmul.f32.gmra.mxu0 %v746
        %v1056 = vpop.f32.mrf.mxu0
        %v1057 = vadd.f32 0.0, %v1056
        %1058 = vmatmul.f32.gmra.mxu0 %v749
        %v1059 = vpop.f32.mrf.mxu0
        %v1060 = vadd.f32 0.0, %v1059
        %1061 = vmatmul.f32.gmra.mxu0 %v752
        %v1062 = vpop.f32.mrf.mxu0
        %v1063 = vadd.f32 0.0, %v1062
        %1064 = vmatmul.f32.gmra.mxu0 %v755
        %v1065 = vpop.f32.mrf.mxu0
        %v1066 = vadd.f32 0.0, %v1065
        %1067 = vmatmul.f32.gmra.mxu0 %v758
        %v1068 = vpop.f32.mrf.mxu0
        %v1069 = vadd.f32 0.0, %v1068
        %1070 = vmatmul.f32.gmra.mxu0 %v761
        %v1071 = vpop.f32.mrf.mxu0
        %v1072 = vadd.f32 0.0, %v1071
        %1073 = vmatmul.f32.gmra.mxu0 %v764
        %v1074 = vpop.f32.mrf.mxu0
        %v1075 = vadd.f32 0.0, %v1074
        %1076 = vmatmul.f32.gmra.mxu0 %v767
        %v1077 = vpop.f32.mrf.mxu0
        %v1078 = vadd.f32 0.0, %v1077
        %1079 = vmatmul.f32.gmra.mxu0 %v770
        %v1080 = vpop.f32.mrf.mxu0
        %v1081 = vadd.f32 0.0, %v1080
        %1082 = vmatmul.f32.gmra.mxu0 %v773
        %v1083 = vpop.f32.mrf.mxu0
        %v1084 = vadd.f32 0.0, %v1083
        %1085 = vmatmul.f32.gmra.mxu0 %v776
        %v1086 = vpop.f32.mrf.mxu0
        %v1087 = vadd.f32 0.0, %v1086
        %1088 = vmatmul.f32.gmra.mxu0 %v779
        %v1089 = vpop.f32.mrf.mxu0
        %v1090 = vadd.f32 0.0, %v1089
        %1091 = vdwg.mxu0
        %v1092 = vmax.f32 %v799, 0.0
        %v1093 = vmax.f32 %v802, 0.0
        %v1094 = vmax.f32 %v805, 0.0
        %v1095 = vmax.f32 %v808, 0.0
        %v1096 = vmax.f32 %v811, 0.0
        %v1097 = vmax.f32 %v814, 0.0
        %v1098 = vmax.f32 %v817, 0.0
        %v1099 = vmax.f32 %v820, 0.0
        %v1100 = vmax.f32 %v823, 0.0
        %v1101 = vmax.f32 %v826, 0.0
        %v1102 = vmax.f32 %v829, 0.0
        %v1103 = vmax.f32 %v832, 0.0
        %v1104 = vmax.f32 %v835, 0.0
        %v1105 = vmax.f32 %v838, 0.0
        %v1106 = vmax.f32 %v841, 0.0
        %v1107 = vmax.f32 %v844, 0.0
        %v1108 = vmax.f32 %v847, 0.0
        %v1109 = vmax.f32 %v850, 0.0
        %v1110 = vmax.f32 %v853, 0.0
        %v1111 = vmax.f32 %v856, 0.0
        %v1112 = vmax.f32 %v859, 0.0
        %v1113 = vmax.f32 %v862, 0.0
        %v1114 = vmax.f32 %v865, 0.0
        %v1115 = vmax.f32 %v868, 0.0
        %v1116 = vmax.f32 %v871, 0.0
        %v1117 = vmax.f32 %v874, 0.0
        %v1118 = vmax.f32 %v877, 0.0
        %v1119 = vmax.f32 %v880, 0.0
        %v1120 = vmax.f32 %v883, 0.0
        %v1121 = vmax.f32 %v886, 0.0
        %v1122 = vmax.f32 %v889, 0.0
        %v1123 = vmax.f32 %v892, 0.0
        %v1124 = vmax.f32 %v895, 0.0
        %v1125 = vmax.f32 %v898, 0.0
        %v1126 = vmax.f32 %v901, 0.0
        %v1127 = vmax.f32 %v904, 0.0
        %v1128 = vmax.f32 %v907, 0.0
        %v1129 = vmax.f32 %v910, 0.0
        %v1130 = vmax.f32 %v913, 0.0
        %v1131 = vmax.f32 %v916, 0.0
        %v1132 = vmax.f32 %v919, 0.0
        %v1133 = vmax.f32 %v922, 0.0
        %v1134 = vmax.f32 %v925, 0.0
        %v1135 = vmax.f32 %v928, 0.0
        %v1136 = vmax.f32 %v931, 0.0
        %v1137 = vmax.f32 %v934, 0.0
        %v1138 = vmax.f32 %v937, 0.0
        %v1139 = vmax.f32 %v940, 0.0
        %v1140 = vmax.f32 %v943, 0.0
        %v1141 = vmax.f32 %v946, 0.0
        %v1142 = vmax.f32 %v949, 0.0
        %v1143 = vmax.f32 %v952, 0.0
        %v1144 = vmax.f32 %v955, 0.0
        %v1145 = vmax.f32 %v958, 0.0
        %v1146 = vmax.f32 %v961, 0.0
        %v1147 = vmax.f32 %v964, 0.0
        %v1148 = vmax.f32 %v967, 0.0
        %v1149 = vmax.f32 %v970, 0.0
        %v1150 = vmax.f32 %v973, 0.0
        %v1151 = vmax.f32 %v976, 0.0
        %v1152 = vmax.f32 %v979, 0.0
        %v1153 = vmax.f32 %v982, 0.0
        %v1154 = vmax.f32 %v985, 0.0
        %v1155 = vmax.f32 %v988, 0.0
        %v1156 = vmax.f32 %v991, 0.0
        %v1157 = vmax.f32 %v994, 0.0
        %v1158 = vmax.f32 %v997, 0.0
        %v1159 = vmax.f32 %v1000, 0.0
        %v1160 = vmax.f32 %v1003, 0.0
        %v1161 = vmax.f32 %v1006, 0.0
        %v1162 = vmax.f32 %v1009, 0.0
        %v1163 = vmax.f32 %v1012, 0.0
        %v1164 = vmax.f32 %v1015, 0.0
        %v1165 = vmax.f32 %v1018, 0.0
        %v1166 = vmax.f32 %v1021, 0.0
        %v1167 = vmax.f32 %v1024, 0.0
        %v1168 = vmax.f32 %v1027, 0.0
        %v1169 = vmax.f32 %v1030, 0.0
        %v1170 = vmax.f32 %v1033, 0.0
        %v1171 = vmax.f32 %v1036, 0.0
        %v1172 = vmax.f32 %v1039, 0.0
        %v1173 = vmax.f32 %v1042, 0.0
        %v1174 = vmax.f32 %v1045, 0.0
        %v1175 = vmax.f32 %v1048, 0.0
        %v1176 = vmax.f32 %v1051, 0.0
        %v1177 = vmax.f32 %v1054, 0.0
        %v1178 = vmax.f32 %v1057, 0.0
        %v1179 = vmax.f32 %v1060, 0.0
        %v1180 = vmax.f32 %v1063, 0.0
        %v1181 = vmax.f32 %v1066, 0.0
        %v1182 = vmax.f32 %v1069, 0.0
        %v1183 = vmax.f32 %v1072, 0.0
        %v1184 = vmax.f32 %v1075, 0.0
        %v1185 = vmax.f32 %v1078, 0.0
        %v1186 = vmax.f32 %v1081, 0.0
        %v1187 = vmax.f32 %v1084, 0.0
        %v1188 = vmax.f32 %v1087, 0.0
        %v1189 = vmax.f32 %v1090, 0.0
        %v1190 = vld [vmem:[%s2] sm:$0xff]
        %v1191 = vld [vmem:[%s2 + $0x8] sm:$0xff]
        %v1192 = vld [vmem:[%s2 + $0x10] sm:$0xff]
        %v1193 = vld [vmem:[%s2 + $0x18] sm:$0xff]
        %v1194 = vld [vmem:[%s2 + $0x20] sm:$0xff]
        %v1195 = vld [vmem:[%s2 + $0x28] sm:$0xff]
        %v1196 = vld [vmem:[%s2 + $0x30] sm:$0xff]
        %v1197 = vld [vmem:[%s2 + $0x38] sm:$0xff]
        %v1198 = vld [vmem:[%s2 + $0x40] sm:$0xff]
        %v1199 = vld [vmem:[%s2 + $0x48] sm:$0xff]
        %v1200 = vld [vmem:[%s2 + $0x50] sm:$0xff]
        %v1201 = vld [vmem:[%s2 + $0x58] sm:$0xff]
        %v1202 = vld [vmem:[%s2 + $0x60] sm:$0xff]
        %v1203 = vld [vmem:[%s2 + $0x68] sm:$0xff]
        %v1204 = vld [vmem:[%s2 + $0x70] sm:$0xff]
        %v1205 = vld [vmem:[%s2 + $0x78] sm:$0xff]
        %v1206 = vld [vmem:[%s2 + $0x80] sm:$0xff]
        %v1207 = vld [vmem:[%s2 + $0x88] sm:$0xff]
        %v1208 = vld [vmem:[%s2 + $0x90] sm:$0xff]
        %v1209 = vld [vmem:[%s2 + $0x98] sm:$0xff]
        %v1210 = vld [vmem:[%s2 + $0xa0] sm:$0xff]
        %v1211 = vld [vmem:[%s2 + $0xa8] sm:$0xff]
        %v1212 = vld [vmem:[%s2 + $0xb0] sm:$0xff]
        %v1213 = vld [vmem:[%s2 + $0xb8] sm:$0xff]
        %v1214 = vld [vmem:[%s2 + $0xc0] sm:$0xff]
        %v1215 = vld [vmem:[%s2 + $0xc8] sm:$0xff]
        %v1216 = vld [vmem:[%s2 + $0xd0] sm:$0xff]
        %v1217 = vld [vmem:[%s2 + $0xd8] sm:$0xff]
        %v1218 = vld [vmem:[%s2 + $0xe0] sm:$0xff]
        %v1219 = vld [vmem:[%s2 + $0xe8] sm:$0xff]
        %v1220 = vld [vmem:[%s2 + $0xf0] sm:$0xff]
        %v1221 = vld [vmem:[%s2 + $0xf8] sm:$0xff]
        %v1222 = vld [vmem:[%s2 + $0x100] sm:$0xff]
        %v1223 = vld [vmem:[%s2 + $0x108] sm:$0xff]
        %v1224 = vld [vmem:[%s2 + $0x110] sm:$0xff]
        %v1225 = vld [vmem:[%s2 + $0x118] sm:$0xff]
        %v1226 = vld [vmem:[%s2 + $0x120] sm:$0xff]
        %v1227 = vld [vmem:[%s2 + $0x128] sm:$0xff]
        %v1228 = vld [vmem:[%s2 + $0x130] sm:$0xff]
        %v1229 = vld [vmem:[%s2 + $0x138] sm:$0xff]
        %v1230 = vld [vmem:[%s2 + $0x140] sm:$0xff]
        %v1231 = vld [vmem:[%s2 + $0x148] sm:$0xff]
        %v1232 = vld [vmem:[%s2 + $0x150] sm:$0xff]
        %v1233 = vld [vmem:[%s2 + $0x158] sm:$0xff]
        %v1234 = vld [vmem:[%s2 + $0x160] sm:$0xff]
        %v1235 = vld [vmem:[%s2 + $0x168] sm:$0xff]
        %v1236 = vld [vmem:[%s2 + $0x170] sm:$0xff]
        %v1237 = vld [vmem:[%s2 + $0x178] sm:$0xff]
        %v1238 = vld [vmem:[%s2 + $0x180] sm:$0xff]
        %v1239 = vld [vmem:[%s2 + $0x188] sm:$0xff]
        %v1240 = vld [vmem:[%s2 + $0x190] sm:$0xff]
        %v1241 = vld [vmem:[%s2 + $0x198] sm:$0xff]
        %v1242 = vld [vmem:[%s2 + $0x1a0] sm:$0xff]
        %v1243 = vld [vmem:[%s2 + $0x1a8] sm:$0xff]
        %v1244 = vld [vmem:[%s2 + $0x1b0] sm:$0xff]
        %v1245 = vld [vmem:[%s2 + $0x1b8] sm:$0xff]
        %v1246 = vld [vmem:[%s2 + $0x1c0] sm:$0xff]
        %v1247 = vld [vmem:[%s2 + $0x1c8] sm:$0xff]
        %v1248 = vld [vmem:[%s2 + $0x1d0] sm:$0xff]
        %v1249 = vld [vmem:[%s2 + $0x1d8] sm:$0xff]
        %v1250 = vld [vmem:[%s2 + $0x1e0] sm:$0xff]
        %v1251 = vld [vmem:[%s2 + $0x1e8] sm:$0xff]
        %v1252 = vld [vmem:[%s2 + $0x1f0] sm:$0xff]
        %v1253 = vld [vmem:[%s2 + $0x1f8] sm:$0xff]
        %v1254 = vld [vmem:[%s2 + $0x200] sm:$0xff]
        %v1255 = vld [vmem:[%s2 + $0x208] sm:$0xff]
        %v1256 = vld [vmem:[%s2 + $0x210] sm:$0xff]
        %v1257 = vld [vmem:[%s2 + $0x218] sm:$0xff]
        %v1258 = vld [vmem:[%s2 + $0x220] sm:$0xff]
        %v1259 = vld [vmem:[%s2 + $0x228] sm:$0xff]
        %v1260 = vld [vmem:[%s2 + $0x230] sm:$0xff]
        %v1261 = vld [vmem:[%s2 + $0x238] sm:$0xff]
        %v1262 = vld [vmem:[%s2 + $0x240] sm:$0xff]
        %v1263 = vld [vmem:[%s2 + $0x248] sm:$0xff]
        %v1264 = vld [vmem:[%s2 + $0x250] sm:$0xff]
        %v1265 = vld [vmem:[%s2 + $0x258] sm:$0xff]
        %v1266 = vld [vmem:[%s2 + $0x260] sm:$0xff]
        %v1267 = vld [vmem:[%s2 + $0x268] sm:$0xff]
        %v1268 = vld [vmem:[%s2 + $0x270] sm:$0xff]
        %v1269 = vld [vmem:[%s2 + $0x278] sm:$0xff]
        %v1270 = vld [vmem:[%s2 + $0x280] sm:$0xff]
        %v1271 = vld [vmem:[%s2 + $0x288] sm:$0xff]
        %v1272 = vld [vmem:[%s2 + $0x290] sm:$0xff]
        %v1273 = vld [vmem:[%s2 + $0x298] sm:$0xff]
        %v1274 = vld [vmem:[%s2 + $0x2a0] sm:$0xff]
        %v1275 = vld [vmem:[%s2 + $0x2a8] sm:$0xff]
        %v1276 = vld [vmem:[%s2 + $0x2b0] sm:$0xff]
        %v1277 = vld [vmem:[%s2 + $0x2b8] sm:$0xff]
        %v1278 = vld [vmem:[%s2 + $0x2c0] sm:$0xff]
        %v1279 = vld [vmem:[%s2 + $0x2c8] sm:$0xff]
        %v1280 = vld [vmem:[%s2 + $0x2d0] sm:$0xff]
        %v1281 = vld [vmem:[%s2 + $0x2d8] sm:$0xff]
        %v1282 = vld [vmem:[%s2 + $0x2e0] sm:$0xff]
        %v1283 = vld [vmem:[%s2 + $0x2e8] sm:$0xff]
        %v1284 = vld [vmem:[%s2 + $0x2f0] sm:$0xff]
        %v1285 = vld [vmem:[%s2 + $0x2f8] sm:$0xff]
        %v1286 = vld [vmem:[%s2 + $0x300] sm:$0xff]
        %v1287 = vld [vmem:[%s2 + $0x308] sm:$0xff]
        %v1288 = vld [vmem:[%s2 + $0x310] sm:$0xff]
        %v1289 = vld [vmem:[%s2 + $0x318] sm:$0xff]
        %v1290 = vld [vmem:[%s2 + $0x320] sm:$0xff]
        %v1291 = vld [vmem:[%s2 + $0x328] sm:$0xff]
        %v1292 = vld [vmem:[%s2 + $0x330] sm:$0xff]
        %v1293 = vld [vmem:[%s2 + $0x338] sm:$0xff]
        %v1294 = vld [vmem:[%s2 + $0x340] sm:$0xff]
        %v1295 = vld [vmem:[%s2 + $0x348] sm:$0xff]
        %v1296 = vld [vmem:[%s2 + $0x350] sm:$0xff]
        %v1297 = vld [vmem:[%s2 + $0x358] sm:$0xff]
        %v1298 = vld [vmem:[%s2 + $0x360] sm:$0xff]
        %v1299 = vld [vmem:[%s2 + $0x368] sm:$0xff]
        %v1300 = vld [vmem:[%s2 + $0x370] sm:$0xff]
        %v1301 = vld [vmem:[%s2 + $0x378] sm:$0xff]
        %v1302 = vld [vmem:[%s2 + $0x380] sm:$0xff]
        %v1303 = vld [vmem:[%s2 + $0x388] sm:$0xff]
        %v1304 = vld [vmem:[%s2 + $0x390] sm:$0xff]
        %v1305 = vld [vmem:[%s2 + $0x398] sm:$0xff]
        %v1306 = vld [vmem:[%s2 + $0x3a0] sm:$0xff]
        %v1307 = vld [vmem:[%s2 + $0x3a8] sm:$0xff]
        %v1308 = vld [vmem:[%s2 + $0x3b0] sm:$0xff]
        %v1309 = vld [vmem:[%s2 + $0x3b8] sm:$0xff]
        %v1310 = vld [vmem:[%s2 + $0x3c0] sm:$0xff]
        %v1311 = vld [vmem:[%s2 + $0x3c8] sm:$0xff]
        %v1312 = vld [vmem:[%s2 + $0x3d0] sm:$0xff]
        %v1313 = vld [vmem:[%s2 + $0x3d8] sm:$0xff]
        %v1314 = vld [vmem:[%s2 + $0x3e0] sm:$0xff]
        %v1315 = vld [vmem:[%s2 + $0x3e8] sm:$0xff]
        %v1316 = vld [vmem:[%s2 + $0x3f0] sm:$0xff]
        %v1317 = vld [vmem:[%s2 + $0x3f8] sm:$0xff]
        %v1318 = vld [vmem:[%s2 + $0x400] sm:$0xff]
        %v1319 = vld [vmem:[%s2 + $0x408] sm:$0xff]
        %v1320 = vld [vmem:[%s2 + $0x410] sm:$0xff]
        %v1321 = vld [vmem:[%s2 + $0x418] sm:$0xff]
        %v1322 = vld [vmem:[%s2 + $0x420] sm:$0xff]
        %v1323 = vld [vmem:[%s2 + $0x428] sm:$0xff]
        %v1324 = vld [vmem:[%s2 + $0x430] sm:$0xff]
        %v1325 = vld [vmem:[%s2 + $0x438] sm:$0xff]
        %v1326 = vld [vmem:[%s2 + $0x440] sm:$0xff]
        %v1327 = vld [vmem:[%s2 + $0x448] sm:$0xff]
        %v1328 = vld [vmem:[%s2 + $0x450] sm:$0xff]
        %v1329 = vld [vmem:[%s2 + $0x458] sm:$0xff]
        %v1330 = vld [vmem:[%s2 + $0x460] sm:$0xff]
        %v1331 = vld [vmem:[%s2 + $0x468] sm:$0xff]
        %v1332 = vld [vmem:[%s2 + $0x470] sm:$0xff]
        %v1333 = vld [vmem:[%s2 + $0x478] sm:$0xff]
        %v1334 = vld [vmem:[%s2 + $0x480] sm:$0xff]
        %v1335 = vld [vmem:[%s2 + $0x488] sm:$0xff]
        %v1336 = vld [vmem:[%s2 + $0x490] sm:$0xff]
        %v1337 = vld [vmem:[%s2 + $0x498] sm:$0xff]
        %v1338 = vld [vmem:[%s2 + $0x4a0] sm:$0xff]
        %v1339 = vld [vmem:[%s2 + $0x4a8] sm:$0xff]
        %v1340 = vld [vmem:[%s2 + $0x4b0] sm:$0xff]
        %v1341 = vld [vmem:[%s2 + $0x4b8] sm:$0xff]
        %v1342 = vld [vmem:[%s2 + $0x4c0] sm:$0xff]
        %v1343 = vld [vmem:[%s2 + $0x4c8] sm:$0xff]
        %v1344 = vld [vmem:[%s2 + $0x4d0] sm:$0xff]
        %v1345 = vld [vmem:[%s2 + $0x4d8] sm:$0xff]
        %v1346 = vld [vmem:[%s2 + $0x4e0] sm:$0xff]
        %v1347 = vld [vmem:[%s2 + $0x4e8] sm:$0xff]
        %v1348 = vld [vmem:[%s2 + $0x4f0] sm:$0xff]
        %v1349 = vld [vmem:[%s2 + $0x4f8] sm:$0xff]
        %v1350 = vld [vmem:[%s2 + $0x500] sm:$0xff]
        %v1351 = vld [vmem:[%s2 + $0x508] sm:$0xff]
        %v1352 = vld [vmem:[%s2 + $0x510] sm:$0xff]
        %v1353 = vld [vmem:[%s2 + $0x518] sm:$0xff]
        %v1354 = vld [vmem:[%s2 + $0x520] sm:$0xff]
        %v1355 = vld [vmem:[%s2 + $0x528] sm:$0xff]
        %v1356 = vld [vmem:[%s2 + $0x530] sm:$0xff]
        %v1357 = vld [vmem:[%s2 + $0x538] sm:$0xff]
        %v1358 = vld [vmem:[%s2 + $0x540] sm:$0xf]
        %v1359 = vld [vmem:[%s2 + $0x548] sm:$0xf]
        %v1360 = vld [vmem:[%s2 + $0x550] sm:$0xf]
        %v1361 = vld [vmem:[%s2 + $0x558] sm:$0xf]
        %v1362 = vld [vmem:[%s2 + $0x560] sm:$0xf]
        %v1363 = vld [vmem:[%s2 + $0x568] sm:$0xf]
        %v1364 = vld [vmem:[%s2 + $0x570] sm:$0xf]
        %vm1365 = vcmask 130048
        %v1367 = vsel %vm1365, %v1196, 0
        %v1370 = vsel %vm1365, %v1203, 0
        %v1373 = vsel %vm1365, %v1210, 0
        %v1376 = vsel %vm1365, %v1217, 0
        %v1379 = vsel %vm1365, %v1224, 0
        %v1382 = vsel %vm1365, %v1231, 0
        %v1385 = vsel %vm1365, %v1238, 0
        %v1388 = vsel %vm1365, %v1245, 0
        %v1391 = vsel %vm1365, %v1252, 0
        %v1394 = vsel %vm1365, %v1259, 0
        %v1397 = vsel %vm1365, %v1266, 0
        %v1400 = vsel %vm1365, %v1273, 0
        %v1403 = vsel %vm1365, %v1280, 0
        %v1406 = vsel %vm1365, %v1287, 0
        %v1409 = vsel %vm1365, %v1294, 0
        %v1412 = vsel %vm1365, %v1301, 0
        %v1415 = vsel %vm1365, %v1308, 0
        %v1418 = vsel %vm1365, %v1315, 0
        %v1421 = vsel %vm1365, %v1322, 0
        %v1424 = vsel %vm1365, %v1329, 0
        %v1427 = vsel %vm1365, %v1336, 0
        %v1430 = vsel %vm1365, %v1343, 0
        %v1433 = vsel %vm1365, %v1350, 0
        %v1436 = vsel %vm1365, %v1357, 0
        %v1439 = vsel %vm1365, %v1364, 0
        %1441 = vmatpush.msra.mxu0 %v1107
        %1442 = vmatpush.msra.mxu0 %v1106
        %1443 = vmatpush.msra.mxu0 %v1105
        %1444 = vmatpush.msra.mxu0 %v1104
        %1445 = vmatpush.msra.mxu0 %v1103
        %1446 = vmatpush.msra.mxu0 %v1102
        %1447 = vmatpush.msra.mxu0 %v1101
        %1448 = vmatpush.msra.mxu0 %v1100
        %1449 = vmatpush.msra.mxu0 %v1099
        %1450 = vmatpush.msra.mxu0 %v1098
        %1451 = vmatpush.msra.mxu0 %v1097
        %1452 = vmatpush.msra.mxu0 %v1096
        %1453 = vmatpush.msra.mxu0 %v1095
        %1454 = vmatpush.msra.mxu0 %v1094
        %1455 = vmatpush.msra.mxu0 %v1093
        %1456 = vmatpush.msra.mxu0 %v1092
        %1457 = vmatmul.f32.gmra.mxu0 %v1190
        %v1458 = vpop.f32.mrf.mxu0
        %v1459 = vadd.f32 0.0, %v1458
        %1460 = vmatmul.f32.gmra.mxu0 %v1197
        %v1461 = vpop.f32.mrf.mxu0
        %v1462 = vadd.f32 0.0, %v1461
        %1463 = vmatmul.f32.gmra.mxu0 %v1204
        %v1464 = vpop.f32.mrf.mxu0
        %v1465 = vadd.f32 0.0, %v1464
        %1466 = vmatmul.f32.gmra.mxu0 %v1211
        %v1467 = vpop.f32.mrf.mxu0
        %v1468 = vadd.f32 0.0, %v1467
        %1469 = vmatmul.f32.gmra.mxu0 %v1218
        %v1470 = vpop.f32.mrf.mxu0
        %v1471 = vadd.f32 0.0, %v1470
        %1472 = vmatmul.f32.gmra.mxu0 %v1225
        %v1473 = vpop.f32.mrf.mxu0
        %v1474 = vadd.f32 0.0, %v1473
        %1475 = vmatmul.f32.gmra.mxu0 %v1232
        %v1476 = vpop.f32.mrf.mxu0
        %v1477 = vadd.f32 0.0, %v1476
        %1478 = vmatmul.f32.gmra.mxu0 %v1239
        %v1479 = vpop.f32.mrf.mxu0
        %v1480 = vadd.f32 0.0, %v1479
        %1481 = vmatmul.f32.gmra.mxu0 %v1246
        %v1482 = vpop.f32.mrf.mxu0
        %v1483 = vadd.f32 0.0, %v1482
        %1484 = vmatmul.f32.gmra.mxu0 %v1253
        %v1485 = vpop.f32.mrf.mxu0
        %v1486 = vadd.f32 0.0, %v1485
        %1487 = vmatmul.f32.gmra.mxu0 %v1260
        %v1488 = vpop.f32.mrf.mxu0
        %v1489 = vadd.f32 0.0, %v1488
        %1490 = vmatmul.f32.gmra.mxu0 %v1267
        %v1491 = vpop.f32.mrf.mxu0
        %v1492 = vadd.f32 0.0, %v1491
        %1493 = vmatmul.f32.gmra.mxu0 %v1274
        %v1494 = vpop.f32.mrf.mxu0
        %v1495 = vadd.f32 0.0, %v1494
        %1496 = vmatmul.f32.gmra.mxu0 %v1281
        %v1497 = vpop.f32.mrf.mxu0
        %v1498 = vadd.f32 0.0, %v1497
        %1499 = vmatmul.f32.gmra.mxu0 %v1288
        %v1500 = vpop.f32.mrf.mxu0
        %v1501 = vadd.f32 0.0, %v1500
        %1502 = vmatmul.f32.gmra.mxu0 %v1295
        %v1503 = vpop.f32.mrf.mxu0
        %v1504 = vadd.f32 0.0, %v1503
        %1505 = vmatmul.f32.gmra.mxu0 %v1302
        %v1506 = vpop.f32.mrf.mxu0
        %v1507 = vadd.f32 0.0, %v1506
        %1508 = vmatmul.f32.gmra.mxu0 %v1309
        %v1509 = vpop.f32.mrf.mxu0
        %v1510 = vadd.f32 0.0, %v1509
        %1511 = vmatmul.f32.gmra.mxu0 %v1316
        %v1512 = vpop.f32.mrf.mxu0
        %v1513 = vadd.f32 0.0, %v1512
        %1514 = vmatmul.f32.gmra.mxu0 %v1323
        %v1515 = vpop.f32.mrf.mxu0
        %v1516 = vadd.f32 0.0, %v1515
        %1517 = vmatmul.f32.gmra.mxu0 %v1330
        %v1518 = vpop.f32.mrf.mxu0
        %v1519 = vadd.f32 0.0, %v1518
        %1520 = vmatmul.f32.gmra.mxu0 %v1337
        %v1521 = vpop.f32.mrf.mxu0
        %v1522 = vadd.f32 0.0, %v1521
        %1523 = vmatmul.f32.gmra.mxu0 %v1344
        %v1524 = vpop.f32.mrf.mxu0
        %v1525 = vadd.f32 0.0, %v1524
        %1526 = vmatmul.f32.gmra.mxu0 %v1351
        %v1527 = vpop.f32.mrf.mxu0
        %v1528 = vadd.f32 0.0, %v1527
        %1529 = vmatmul.f32.gmra.mxu0 %v1358
        %v1530 = vpop.f32.mrf.mxu0
        %v1531 = vadd.f32 0.0, %v1530
        %1532 = vdwg.mxu0
        %1533 = vmatpush.msra.mxu0 %v1123
        %1534 = vmatpush.msra.mxu0 %v1122
        %1535 = vmatpush.msra.mxu0 %v1121
        %1536 = vmatpush.msra.mxu0 %v1120
        %1537 = vmatpush.msra.mxu0 %v1119
        %1538 = vmatpush.msra.mxu0 %v1118
        %1539 = vmatpush.msra.mxu0 %v1117
        %1540 = vmatpush.msra.mxu0 %v1116
        %1541 = vmatpush.msra.mxu0 %v1115
        %1542 = vmatpush.msra.mxu0 %v1114
        %1543 = vmatpush.msra.mxu0 %v1113
        %1544 = vmatpush.msra.mxu0 %v1112
        %1545 = vmatpush.msra.mxu0 %v1111
        %1546 = vmatpush.msra.mxu0 %v1110
        %1547 = vmatpush.msra.mxu0 %v1109
        %1548 = vmatpush.msra.mxu0 %v1108
        %1549 = vmatmul.f32.gmra.mxu0 %v1191
        %v1550 = vpop.f32.mrf.mxu0
        %v1551 = vadd.f32 %v1459, %v1550
        %1552 = vmatmul.f32.gmra.mxu0 %v1198
        %v1553 = vpop.f32.mrf.mxu0
        %v1554 = vadd.f32 %v1462, %v1553
        %1555 = vmatmul.f32.gmra.mxu0 %v1205
        %v1556 = vpop.f32.mrf.mxu0
        %v1557 = vadd.f32 %v1465, %v1556
        %1558 = vmatmul.f32.gmra.mxu0 %v1212
        %v1559 = vpop.f32.mrf.mxu0
        %v1560 = vadd.f32 %v1468, %v1559
        %1561 = vmatmul.f32.gmra.mxu0 %v1219
        %v1562 = vpop.f32.mrf.mxu0
        %v1563 = vadd.f32 %v1471, %v1562
        %1564 = vmatmul.f32.gmra.mxu0 %v1226
        %v1565 = vpop.f32.mrf.mxu0
        %v1566 = vadd.f32 %v1474, %v1565
        %1567 = vmatmul.f32.gmra.mxu0 %v1233
        %v1568 = vpop.f32.mrf.mxu0
        %v1569 = vadd.f32 %v1477, %v1568
        %1570 = vmatmul.f32.gmra.mxu0 %v1240
        %v1571 = vpop.f32.mrf.mxu0
        %v1572 = vadd.f32 %v1480, %v1571
        %1573 = vmatmul.f32.gmra.mxu0 %v1247
        %v1574 = vpop.f32.mrf.mxu0
        %v1575 = vadd.f32 %v1483, %v1574
        %1576 = vmatmul.f32.gmra.mxu0 %v1254
        %v1577 = vpop.f32.mrf.mxu0
        %v1578 = vadd.f32 %v1486, %v1577
        %1579 = vmatmul.f32.gmra.mxu0 %v1261
        %v1580 = vpop.f32.mrf.mxu0
        %v1581 = vadd.f32 %v1489, %v1580
        %1582 = vmatmul.f32.gmra.mxu0 %v1268
        %v1583 = vpop.f32.mrf.mxu0
        %v1584 = vadd.f32 %v1492, %v1583
        %1585 = vmatmul.f32.gmra.mxu0 %v1275
        %v1586 = vpop.f32.mrf.mxu0
        %v1587 = vadd.f32 %v1495, %v1586
        %1588 = vmatmul.f32.gmra.mxu0 %v1282
        %v1589 = vpop.f32.mrf.mxu0
        %v1590 = vadd.f32 %v1498, %v1589
        %1591 = vmatmul.f32.gmra.mxu0 %v1289
        %v1592 = vpop.f32.mrf.mxu0
        %v1593 = vadd.f32 %v1501, %v1592
        %1594 = vmatmul.f32.gmra.mxu0 %v1296
        %v1595 = vpop.f32.mrf.mxu0
        %v1596 = vadd.f32 %v1504, %v1595
        %1597 = vmatmul.f32.gmra.mxu0 %v1303
        %v1598 = vpop.f32.mrf.mxu0
        %v1599 = vadd.f32 %v1507, %v1598
        %1600 = vmatmul.f32.gmra.mxu0 %v1310
        %v1601 = vpop.f32.mrf.mxu0
        %v1602 = vadd.f32 %v1510, %v1601
        %1603 = vmatmul.f32.gmra.mxu0 %v1317
        %v1604 = vpop.f32.mrf.mxu0
        %v1605 = vadd.f32 %v1513, %v1604
        %1606 = vmatmul.f32.gmra.mxu0 %v1324
        %v1607 = vpop.f32.mrf.mxu0
        %v1608 = vadd.f32 %v1516, %v1607
        %1609 = vmatmul.f32.gmra.mxu0 %v1331
        %v1610 = vpop.f32.mrf.mxu0
        %v1611 = vadd.f32 %v1519, %v1610
        %1612 = vmatmul.f32.gmra.mxu0 %v1338
        %v1613 = vpop.f32.mrf.mxu0
        %v1614 = vadd.f32 %v1522, %v1613
        %1615 = vmatmul.f32.gmra.mxu0 %v1345
        %v1616 = vpop.f32.mrf.mxu0
        %v1617 = vadd.f32 %v1525, %v1616
        %1618 = vmatmul.f32.gmra.mxu0 %v1352
        %v1619 = vpop.f32.mrf.mxu0
        %v1620 = vadd.f32 %v1528, %v1619
        %1621 = vmatmul.f32.gmra.mxu0 %v1359
        %v1622 = vpop.f32.mrf.mxu0
        %v1623 = vadd.f32 %v1531, %v1622
        %1624 = vdwg.mxu0
        %1625 = vmatpush.msra.mxu0 %v1139
        %1626 = vmatpush.msra.mxu0 %v1138
        %1627 = vmatpush.msra.mxu0 %v1137
        %1628 = vmatpush.msra.mxu0 %v1136
        %1629 = vmatpush.msra.mxu0 %v1135
        %1630 = vmatpush.msra.mxu0 %v1134
        %1631 = vmatpush.msra.mxu0 %v1133
        %1632 = vmatpush.msra.mxu0 %v1132
        %1633 = vmatpush.msra.mxu0 %v1131
        %1634 = vmatpush.msra.mxu0 %v1130
        %1635 = vmatpush.msra.mxu0 %v1129
        %1636 = vmatpush.msra.mxu0 %v1128
        %1637 = vmatpush.msra.mxu0 %v1127
        %1638 = vmatpush.msra.mxu0 %v1126
        %1639 = vmatpush.msra.mxu0 %v1125
        %1640 = vmatpush.msra.mxu0 %v1124
        %1641 = vmatmul.f32.gmra.mxu0 %v1192
        %v1642 = vpop.f32.mrf.mxu0
        %v1643 = vadd.f32 %v1551, %v1642
        %1644 = vmatmul.f32.gmra.mxu0 %v1199
        %v1645 = vpop.f32.mrf.mxu0
        %v1646 = vadd.f32 %v1554, %v1645
        %1647 = vmatmul.f32.gmra.mxu0 %v1206
        %v1648 = vpop.f32.mrf.mxu0
        %v1649 = vadd.f32 %v1557, %v1648
        %1650 = vmatmul.f32.gmra.mxu0 %v1213
        %v1651 = vpop.f32.mrf.mxu0
        %v1652 = vadd.f32 %v1560, %v1651
        %1653 = vmatmul.f32.gmra.mxu0 %v1220
        %v1654 = vpop.f32.mrf.mxu0
        %v1655 = vadd.f32 %v1563, %v1654
        %1656 = vmatmul.f32.gmra.mxu0 %v1227
        %v1657 = vpop.f32.mrf.mxu0
        %v1658 = vadd.f32 %v1566, %v1657
        %1659 = vmatmul.f32.gmra.mxu0 %v1234
        %v1660 = vpop.f32.mrf.mxu0
        %v1661 = vadd.f32 %v1569, %v1660
        %1662 = vmatmul.f32.gmra.mxu0 %v1241
        %v1663 = vpop.f32.mrf.mxu0
        %v1664 = vadd.f32 %v1572, %v1663
        %1665 = vmatmul.f32.gmra.mxu0 %v1248
        %v1666 = vpop.f32.mrf.mxu0
        %v1667 = vadd.f32 %v1575, %v1666
        %1668 = vmatmul.f32.gmra.mxu0 %v1255
        %v1669 = vpop.f32.mrf.mxu0
        %v1670 = vadd.f32 %v1578, %v1669
        %1671 = vmatmul.f32.gmra.mxu0 %v1262
        %v1672 = vpop.f32.mrf.mxu0
        %v1673 = vadd.f32 %v1581, %v1672
        %1674 = vmatmul.f32.gmra.mxu0 %v1269
        %v1675 = vpop.f32.mrf.mxu0
        %v1676 = vadd.f32 %v1584, %v1675
        %1677 = vmatmul.f32.gmra.mxu0 %v1276
        %v1678 = vpop.f32.mrf.mxu0
        %v1679 = vadd.f32 %v1587, %v1678
        %1680 = vmatmul.f32.gmra.mxu0 %v1283
        %v1681 = vpop.f32.mrf.mxu0
        %v1682 = vadd.f32 %v1590, %v1681
        %1683 = vmatmul.f32.gmra.mxu0 %v1290
        %v1684 = vpop.f32.mrf.mxu0
        %v1685 = vadd.f32 %v1593, %v1684
        %1686 = vmatmul.f32.gmra.mxu0 %v1297
        %v1687 = vpop.f32.mrf.mxu0
        %v1688 = vadd.f32 %v1596, %v1687
        %1689 = vmatmul.f32.gmra.mxu0 %v1304
        %v1690 = vpop.f32.mrf.mxu0
        %v1691 = vadd.f32 %v1599, %v1690
        %1692 = vmatmul.f32.gmra.mxu0 %v1311
        %v1693 = vpop.f32.mrf.mxu0
        %v1694 = vadd.f32 %v1602, %v1693
        %1695 = vmatmul.f32.gmra.mxu0 %v1318
        %v1696 = vpop.f32.mrf.mxu0
        %v1697 = vadd.f32 %v1605, %v1696
        %1698 = vmatmul.f32.gmra.mxu0 %v1325
        %v1699 = vpop.f32.mrf.mxu0
        %v1700 = vadd.f32 %v1608, %v1699
        %1701 = vmatmul.f32.gmra.mxu0 %v1332
        %v1702 = vpop.f32.mrf.mxu0
        %v1703 = vadd.f32 %v1611, %v1702
        %1704 = vmatmul.f32.gmra.mxu0 %v1339
        %v1705 = vpop.f32.mrf.mxu0
        %v1706 = vadd.f32 %v1614, %v1705
        %1707 = vmatmul.f32.gmra.mxu0 %v1346
        %v1708 = vpop.f32.mrf.mxu0
        %v1709 = vadd.f32 %v1617, %v1708
        %1710 = vmatmul.f32.gmra.mxu0 %v1353
        %v1711 = vpop.f32.mrf.mxu0
        %v1712 = vadd.f32 %v1620, %v1711
        %1713 = vmatmul.f32.gmra.mxu0 %v1360
        %v1714 = vpop.f32.mrf.mxu0
        %v1715 = vadd.f32 %v1623, %v1714
        %1716 = vdwg.mxu0
        %1717 = vmatpush.msra.mxu0 %v1155
        %1718 = vmatpush.msra.mxu0 %v1154
        %1719 = vmatpush.msra.mxu0 %v1153
        %1720 = vmatpush.msra.mxu0 %v1152
        %1721 = vmatpush.msra.mxu0 %v1151
        %1722 = vmatpush.msra.mxu0 %v1150
        %1723 = vmatpush.msra.mxu0 %v1149
        %1724 = vmatpush.msra.mxu0 %v1148
        %1725 = vmatpush.msra.mxu0 %v1147
        %1726 = vmatpush.msra.mxu0 %v1146
        %1727 = vmatpush.msra.mxu0 %v1145
        %1728 = vmatpush.msra.mxu0 %v1144
        %1729 = vmatpush.msra.mxu0 %v1143
        %1730 = vmatpush.msra.mxu0 %v1142
        %1731 = vmatpush.msra.mxu0 %v1141
        %1732 = vmatpush.msra.mxu0 %v1140
        %1733 = vmatmul.f32.gmra.mxu0 %v1193
        %v1734 = vpop.f32.mrf.mxu0
        %v1735 = vadd.f32 %v1643, %v1734
        %1736 = vmatmul.f32.gmra.mxu0 %v1200
        %v1737 = vpop.f32.mrf.mxu0
        %v1738 = vadd.f32 %v1646, %v1737
        %1739 = vmatmul.f32.gmra.mxu0 %v1207
        %v1740 = vpop.f32.mrf.mxu0
        %v1741 = vadd.f32 %v1649, %v1740
        %1742 = vmatmul.f32.gmra.mxu0 %v1214
        %v1743 = vpop.f32.mrf.mxu0
        %v1744 = vadd.f32 %v1652, %v1743
        %1745 = vmatmul.f32.gmra.mxu0 %v1221
        %v1746 = vpop.f32.mrf.mxu0
        %v1747 = vadd.f32 %v1655, %v1746
        %1748 = vmatmul.f32.gmra.mxu0 %v1228
        %v1749 = vpop.f32.mrf.mxu0
        %v1750 = vadd.f32 %v1658, %v1749
        %1751 = vmatmul.f32.gmra.mxu0 %v1235
        %v1752 = vpop.f32.mrf.mxu0
        %v1753 = vadd.f32 %v1661, %v1752
        %1754 = vmatmul.f32.gmra.mxu0 %v1242
        %v1755 = vpop.f32.mrf.mxu0
        %v1756 = vadd.f32 %v1664, %v1755
        %1757 = vmatmul.f32.gmra.mxu0 %v1249
        %v1758 = vpop.f32.mrf.mxu0
        %v1759 = vadd.f32 %v1667, %v1758
        %1760 = vmatmul.f32.gmra.mxu0 %v1256
        %v1761 = vpop.f32.mrf.mxu0
        %v1762 = vadd.f32 %v1670, %v1761
        %1763 = vmatmul.f32.gmra.mxu0 %v1263
        %v1764 = vpop.f32.mrf.mxu0
        %v1765 = vadd.f32 %v1673, %v1764
        %1766 = vmatmul.f32.gmra.mxu0 %v1270
        %v1767 = vpop.f32.mrf.mxu0
        %v1768 = vadd.f32 %v1676, %v1767
        %1769 = vmatmul.f32.gmra.mxu0 %v1277
        %v1770 = vpop.f32.mrf.mxu0
        %v1771 = vadd.f32 %v1679, %v1770
        %1772 = vmatmul.f32.gmra.mxu0 %v1284
        %v1773 = vpop.f32.mrf.mxu0
        %v1774 = vadd.f32 %v1682, %v1773
        %1775 = vmatmul.f32.gmra.mxu0 %v1291
        %v1776 = vpop.f32.mrf.mxu0
        %v1777 = vadd.f32 %v1685, %v1776
        %1778 = vmatmul.f32.gmra.mxu0 %v1298
        %v1779 = vpop.f32.mrf.mxu0
        %v1780 = vadd.f32 %v1688, %v1779
        %1781 = vmatmul.f32.gmra.mxu0 %v1305
        %v1782 = vpop.f32.mrf.mxu0
        %v1783 = vadd.f32 %v1691, %v1782
        %1784 = vmatmul.f32.gmra.mxu0 %v1312
        %v1785 = vpop.f32.mrf.mxu0
        %v1786 = vadd.f32 %v1694, %v1785
        %1787 = vmatmul.f32.gmra.mxu0 %v1319
        %v1788 = vpop.f32.mrf.mxu0
        %v1789 = vadd.f32 %v1697, %v1788
        %1790 = vmatmul.f32.gmra.mxu0 %v1326
        %v1791 = vpop.f32.mrf.mxu0
        %v1792 = vadd.f32 %v1700, %v1791
        %1793 = vmatmul.f32.gmra.mxu0 %v1333
        %v1794 = vpop.f32.mrf.mxu0
        %v1795 = vadd.f32 %v1703, %v1794
        %1796 = vmatmul.f32.gmra.mxu0 %v1340
        %v1797 = vpop.f32.mrf.mxu0
        %v1798 = vadd.f32 %v1706, %v1797
        %1799 = vmatmul.f32.gmra.mxu0 %v1347
        %v1800 = vpop.f32.mrf.mxu0
        %v1801 = vadd.f32 %v1709, %v1800
        %1802 = vmatmul.f32.gmra.mxu0 %v1354
        %v1803 = vpop.f32.mrf.mxu0
        %v1804 = vadd.f32 %v1712, %v1803
        %1805 = vmatmul.f32.gmra.mxu0 %v1361
        %v1806 = vpop.f32.mrf.mxu0
        %v1807 = vadd.f32 %v1715, %v1806
        %1808 = vdwg.mxu0
        %1809 = vmatpush.msra.mxu0 %v1171
        %1810 = vmatpush.msra.mxu0 %v1170
        %1811 = vmatpush.msra.mxu0 %v1169
        %1812 = vmatpush.msra.mxu0 %v1168
        %1813 = vmatpush.msra.mxu0 %v1167
        %1814 = vmatpush.msra.mxu0 %v1166
        %1815 = vmatpush.msra.mxu0 %v1165
        %1816 = vmatpush.msra.mxu0 %v1164
        %1817 = vmatpush.msra.mxu0 %v1163
        %1818 = vmatpush.msra.mxu0 %v1162
        %1819 = vmatpush.msra.mxu0 %v1161
        %1820 = vmatpush.msra.mxu0 %v1160
        %1821 = vmatpush.msra.mxu0 %v1159
        %1822 = vmatpush.msra.mxu0 %v1158
        %1823 = vmatpush.msra.mxu0 %v1157
        %1824 = vmatpush.msra.mxu0 %v1156
        %1825 = vmatmul.f32.gmra.mxu0 %v1194
        %v1826 = vpop.f32.mrf.mxu0
        %v1827 = vadd.f32 %v1735, %v1826
        %1828 = vmatmul.f32.gmra.mxu0 %v1201
        %v1829 = vpop.f32.mrf.mxu0
        %v1830 = vadd.f32 %v1738, %v1829
        %1831 = vmatmul.f32.gmra.mxu0 %v1208
        %v1832 = vpop.f32.mrf.mxu0
        %v1833 = vadd.f32 %v1741, %v1832
        %1834 = vmatmul.f32.gmra.mxu0 %v1215
        %v1835 = vpop.f32.mrf.mxu0
        %v1836 = vadd.f32 %v1744, %v1835
        %1837 = vmatmul.f32.gmra.mxu0 %v1222
        %v1838 = vpop.f32.mrf.mxu0
        %v1839 = vadd.f32 %v1747, %v1838
        %1840 = vmatmul.f32.gmra.mxu0 %v1229
        %v1841 = vpop.f32.mrf.mxu0
        %v1842 = vadd.f32 %v1750, %v1841
        %1843 = vmatmul.f32.gmra.mxu0 %v1236
        %v1844 = vpop.f32.mrf.mxu0
        %v1845 = vadd.f32 %v1753, %v1844
        %1846 = vmatmul.f32.gmra.mxu0 %v1243
        %v1847 = vpop.f32.mrf.mxu0
        %v1848 = vadd.f32 %v1756, %v1847
        %1849 = vmatmul.f32.gmra.mxu0 %v1250
        %v1850 = vpop.f32.mrf.mxu0
        %v1851 = vadd.f32 %v1759, %v1850
        %1852 = vmatmul.f32.gmra.mxu0 %v1257
        %v1853 = vpop.f32.mrf.mxu0
        %v1854 = vadd.f32 %v1762, %v1853
        %1855 = vmatmul.f32.gmra.mxu0 %v1264
        %v1856 = vpop.f32.mrf.mxu0
        %v1857 = vadd.f32 %v1765, %v1856
        %1858 = vmatmul.f32.gmra.mxu0 %v1271
        %v1859 = vpop.f32.mrf.mxu0
        %v1860 = vadd.f32 %v1768, %v1859
        %1861 = vmatmul.f32.gmra.mxu0 %v1278
        %v1862 = vpop.f32.mrf.mxu0
        %v1863 = vadd.f32 %v1771, %v1862
        %1864 = vmatmul.f32.gmra.mxu0 %v1285
        %v1865 = vpop.f32.mrf.mxu0
        %v1866 = vadd.f32 %v1774, %v1865
        %1867 = vmatmul.f32.gmra.mxu0 %v1292
        %v1868 = vpop.f32.mrf.mxu0
        %v1869 = vadd.f32 %v1777, %v1868
        %1870 = vmatmul.f32.gmra.mxu0 %v1299
        %v1871 = vpop.f32.mrf.mxu0
        %v1872 = vadd.f32 %v1780, %v1871
        %1873 = vmatmul.f32.gmra.mxu0 %v1306
        %v1874 = vpop.f32.mrf.mxu0
        %v1875 = vadd.f32 %v1783, %v1874
        %1876 = vmatmul.f32.gmra.mxu0 %v1313
        %v1877 = vpop.f32.mrf.mxu0
        %v1878 = vadd.f32 %v1786, %v1877
        %1879 = vmatmul.f32.gmra.mxu0 %v1320
        %v1880 = vpop.f32.mrf.mxu0
        %v1881 = vadd.f32 %v1789, %v1880
        %1882 = vmatmul.f32.gmra.mxu0 %v1327
        %v1883 = vpop.f32.mrf.mxu0
        %v1884 = vadd.f32 %v1792, %v1883
        %1885 = vmatmul.f32.gmra.mxu0 %v1334
        %v1886 = vpop.f32.mrf.mxu0
        %v1887 = vadd.f32 %v1795, %v1886
        %1888 = vmatmul.f32.gmra.mxu0 %v1341
        %v1889 = vpop.f32.mrf.mxu0
        %v1890 = vadd.f32 %v1798, %v1889
        %1891 = vmatmul.f32.gmra.mxu0 %v1348
        %v1892 = vpop.f32.mrf.mxu0
        %v1893 = vadd.f32 %v1801, %v1892
        %1894 = vmatmul.f32.gmra.mxu0 %v1355
        %v1895 = vpop.f32.mrf.mxu0
        %v1896 = vadd.f32 %v1804, %v1895
        %1897 = vmatmul.f32.gmra.mxu0 %v1362
        %v1898 = vpop.f32.mrf.mxu0
        %v1899 = vadd.f32 %v1807, %v1898
        %1900 = vdwg.mxu0
        %1901 = vmatpush.msra.mxu0 %v1187
        %1902 = vmatpush.msra.mxu0 %v1186
        %1903 = vmatpush.msra.mxu0 %v1185
        %1904 = vmatpush.msra.mxu0 %v1184
        %1905 = vmatpush.msra.mxu0 %v1183
        %1906 = vmatpush.msra.mxu0 %v1182
        %1907 = vmatpush.msra.mxu0 %v1181
        %1908 = vmatpush.msra.mxu0 %v1180
        %1909 = vmatpush.msra.mxu0 %v1179
        %1910 = vmatpush.msra.mxu0 %v1178
        %1911 = vmatpush.msra.mxu0 %v1177
        %1912 = vmatpush.msra.mxu0 %v1176
        %1913 = vmatpush.msra.mxu0 %v1175
        %1914 = vmatpush.msra.mxu0 %v1174
        %1915 = vmatpush.msra.mxu0 %v1173
        %1916 = vmatpush.msra.mxu0 %v1172
        %1917 = vmatmul.f32.gmra.mxu0 %v1195
        %v1918 = vpop.f32.mrf.mxu0
        %v1919 = vadd.f32 %v1827, %v1918
        %1920 = vmatmul.f32.gmra.mxu0 %v1202
        %v1921 = vpop.f32.mrf.mxu0
        %v1922 = vadd.f32 %v1830, %v1921
        %1923 = vmatmul.f32.gmra.mxu0 %v1209
        %v1924 = vpop.f32.mrf.mxu0
        %v1925 = vadd.f32 %v1833, %v1924
        %1926 = vmatmul.f32.gmra.mxu0 %v1216
        %v1927 = vpop.f32.mrf.mxu0
        %v1928 = vadd.f32 %v1836, %v1927
        %1929 = vmatmul.f32.gmra.mxu0 %v1223
        %v1930 = vpop.f32.mrf.mxu0
        %v1931 = vadd.f32 %v1839, %v1930
        %1932 = vmatmul.f32.gmra.mxu0 %v1230
        %v1933 = vpop.f32.mrf.mxu0
        %v1934 = vadd.f32 %v1842, %v1933
        %1935 = vmatmul.f32.gmra.mxu0 %v1237
        %v1936 = vpop.f32.mrf.mxu0
        %v1937 = vadd.f32 %v1845, %v1936
        %1938 = vmatmul.f32.gmra.mxu0 %v1244
        %v1939 = vpop.f32.mrf.mxu0
        %v1940 = vadd.f32 %v1848, %v1939
        %1941 = vmatmul.f32.gmra.mxu0 %v1251
        %v1942 = vpop.f32.mrf.mxu0
        %v1943 = vadd.f32 %v1851, %v1942
        %1944 = vmatmul.f32.gmra.mxu0 %v1258
        %v1945 = vpop.f32.mrf.mxu0
        %v1946 = vadd.f32 %v1854, %v1945
        %1947 = vmatmul.f32.gmra.mxu0 %v1265
        %v1948 = vpop.f32.mrf.mxu0
        %v1949 = vadd.f32 %v1857, %v1948
        %1950 = vmatmul.f32.gmra.mxu0 %v1272
        %v1951 = vpop.f32.mrf.mxu0
        %v1952 = vadd.f32 %v1860, %v1951
        %1953 = vmatmul.f32.gmra.mxu0 %v1279
        %v1954 = vpop.f32.mrf.mxu0
        %v1955 = vadd.f32 %v1863, %v1954
        %1956 = vmatmul.f32.gmra.mxu0 %v1286
        %v1957 = vpop.f32.mrf.mxu0
        %v1958 = vadd.f32 %v1866, %v1957
        %1959 = vmatmul.f32.gmra.mxu0 %v1293
        %v1960 = vpop.f32.mrf.mxu0
        %v1961 = vadd.f32 %v1869, %v1960
        %1962 = vmatmul.f32.gmra.mxu0 %v1300
        %v1963 = vpop.f32.mrf.mxu0
        %v1964 = vadd.f32 %v1872, %v1963
        %1965 = vmatmul.f32.gmra.mxu0 %v1307
        %v1966 = vpop.f32.mrf.mxu0
        %v1967 = vadd.f32 %v1875, %v1966
        %1968 = vmatmul.f32.gmra.mxu0 %v1314
        %v1969 = vpop.f32.mrf.mxu0
        %v1970 = vadd.f32 %v1878, %v1969
        %1971 = vmatmul.f32.gmra.mxu0 %v1321
        %v1972 = vpop.f32.mrf.mxu0
        %v1973 = vadd.f32 %v1881, %v1972
        %1974 = vmatmul.f32.gmra.mxu0 %v1328
        %v1975 = vpop.f32.mrf.mxu0
        %v1976 = vadd.f32 %v1884, %v1975
        %1977 = vmatmul.f32.gmra.mxu0 %v1335
        %v1978 = vpop.f32.mrf.mxu0
        %v1979 = vadd.f32 %v1887, %v1978
        %1980 = vmatmul.f32.gmra.mxu0 %v1342
        %v1981 = vpop.f32.mrf.mxu0
        %v1982 = vadd.f32 %v1890, %v1981
        %1983 = vmatmul.f32.gmra.mxu0 %v1349
        %v1984 = vpop.f32.mrf.mxu0
        %v1985 = vadd.f32 %v1893, %v1984
        %1986 = vmatmul.f32.gmra.mxu0 %v1356
        %v1987 = vpop.f32.mrf.mxu0
        %v1988 = vadd.f32 %v1896, %v1987
        %1989 = vmatmul.f32.gmra.mxu0 %v1363
        %v1990 = vpop.f32.mrf.mxu0
        %v1991 = vadd.f32 %v1899, %v1990
        %1992 = vdwg.mxu0
        %1993 = vmatpush.msra.mxu0 0.0
        %1994 = vmatpush.msra.mxu0 0.0
        %1995 = vmatpush.msra.mxu0 0.0
        %1996 = vmatpush.msra.mxu0 0.0
        %1997 = vmatpush.msra.mxu0 0.0
        %1998 = vmatpush.msra.mxu0 0.0
        %1999 = vmatpush.msra.mxu0 0.0
        %2000 = vmatpush.msra.mxu0 0.0
        %2001 = vmatpush.msra.mxu0 0.0
        %2002 = vmatpush.msra.mxu0 0.0
        %2003 = vmatpush.msra.mxu0 0.0
        %2004 = vmatpush.msra.mxu0 0.0
        %2005 = vmatpush.msra.mxu0 0.0
        %2006 = vmatpush.msra.mxu0 0.0
        %2007 = vmatpush.msra.mxu0 %v1189
        %2008 = vmatpush.msra.mxu0 %v1188
        %2009 = vmatmul.f32.gmra.mxu0 %v1367
        %v2010 = vpop.f32.mrf.mxu0
        %v2011 = vadd.f32 %v1919, %v2010
        %2012 = vmatmul.f32.gmra.mxu0 %v1370
        %v2013 = vpop.f32.mrf.mxu0
        %v2014 = vadd.f32 %v1922, %v2013
        %2015 = vmatmul.f32.gmra.mxu0 %v1373
        %v2016 = vpop.f32.mrf.mxu0
        %v2017 = vadd.f32 %v1925, %v2016
        %2018 = vmatmul.f32.gmra.mxu0 %v1376
        %v2019 = vpop.f32.mrf.mxu0
        %v2020 = vadd.f32 %v1928, %v2019
        %2021 = vmatmul.f32.gmra.mxu0 %v1379
        %v2022 = vpop.f32.mrf.mxu0
        %v2023 = vadd.f32 %v1931, %v2022
        %2024 = vmatmul.f32.gmra.mxu0 %v1382
        %v2025 = vpop.f32.mrf.mxu0
        %v2026 = vadd.f32 %v1934, %v2025
        %2027 = vmatmul.f32.gmra.mxu0 %v1385
        %v2028 = vpop.f32.mrf.mxu0
        %v2029 = vadd.f32 %v1937, %v2028
        %2030 = vmatmul.f32.gmra.mxu0 %v1388
        %v2031 = vpop.f32.mrf.mxu0
        %v2032 = vadd.f32 %v1940, %v2031
        %2033 = vmatmul.f32.gmra.mxu0 %v1391
        %v2034 = vpop.f32.mrf.mxu0
        %v2035 = vadd.f32 %v1943, %v2034
        %2036 = vmatmul.f32.gmra.mxu0 %v1394
        %v2037 = vpop.f32.mrf.mxu0
        %v2038 = vadd.f32 %v1946, %v2037
        %2039 = vmatmul.f32.gmra.mxu0 %v1397
        %v2040 = vpop.f32.mrf.mxu0
        %v2041 = vadd.f32 %v1949, %v2040
        %2042 = vmatmul.f32.gmra.mxu0 %v1400
        %v2043 = vpop.f32.mrf.mxu0
        %v2044 = vadd.f32 %v1952, %v2043
        %2045 = vmatmul.f32.gmra.mxu0 %v1403
        %v2046 = vpop.f32.mrf.mxu0
        %v2047 = vadd.f32 %v1955, %v2046
        %2048 = vmatmul.f32.gmra.mxu0 %v1406
        %v2049 = vpop.f32.mrf.mxu0
        %v2050 = vadd.f32 %v1958, %v2049
        %2051 = vmatmul.f32.gmra.mxu0 %v1409
        %v2052 = vpop.f32.mrf.mxu0
        %v2053 = vadd.f32 %v1961, %v2052
        %2054 = vmatmul.f32.gmra.mxu0 %v1412
        %v2055 = vpop.f32.mrf.mxu0
        %v2056 = vadd.f32 %v1964, %v2055
        %2057 = vmatmul.f32.gmra.mxu0 %v1415
        %v2058 = vpop.f32.mrf.mxu0
        %v2059 = vadd.f32 %v1967, %v2058
        %2060 = vmatmul.f32.gmra.mxu0 %v1418
        %v2061 = vpop.f32.mrf.mxu0
        %v2062 = vadd.f32 %v1970, %v2061
        %2063 = vmatmul.f32.gmra.mxu0 %v1421
        %v2064 = vpop.f32.mrf.mxu0
        %v2065 = vadd.f32 %v1973, %v2064
        %2066 = vmatmul.f32.gmra.mxu0 %v1424
        %v2067 = vpop.f32.mrf.mxu0
        %v2068 = vadd.f32 %v1976, %v2067
        %2069 = vmatmul.f32.gmra.mxu0 %v1427
        %v2070 = vpop.f32.mrf.mxu0
        %v2071 = vadd.f32 %v1979, %v2070
        %2072 = vmatmul.f32.gmra.mxu0 %v1430
        %v2073 = vpop.f32.mrf.mxu0
        %v2074 = vadd.f32 %v1982, %v2073
        %2075 = vmatmul.f32.gmra.mxu0 %v1433
        %v2076 = vpop.f32.mrf.mxu0
        %v2077 = vadd.f32 %v1985, %v2076
        %2078 = vmatmul.f32.gmra.mxu0 %v1436
        %v2079 = vpop.f32.mrf.mxu0
        %v2080 = vadd.f32 %v1988, %v2079
        %2081 = vmatmul.f32.gmra.mxu0 %v1439
        %v2082 = vpop.f32.mrf.mxu0
        %v2083 = vadd.f32 %v1991, %v2082
        %2084 = vdwg.mxu0
        %v2085 = vmul.f32 %v2011, 0.25
        %v2086 = vmul.f32 %v2014, 0.25
        %v2087 = vmul.f32 %v2017, 0.25
        %v2088 = vmul.f32 %v2020, 0.25
        %v2089 = vmul.f32 %v2023, 0.25
        %v2090 = vmul.f32 %v2026, 0.25
        %v2091 = vmul.f32 %v2029, 0.25
        %v2092 = vmul.f32 %v2032, 0.25
        %v2093 = vmul.f32 %v2035, 0.25
        %v2094 = vmul.f32 %v2038, 0.25
        %v2095 = vmul.f32 %v2041, 0.25
        %v2096 = vmul.f32 %v2044, 0.25
        %v2097 = vmul.f32 %v2047, 0.25
        %v2098 = vmul.f32 %v2050, 0.25
        %v2099 = vmul.f32 %v2053, 0.25
        %v2100 = vmul.f32 %v2056, 0.25
        %v2101 = vmul.f32 %v2059, 0.25
        %v2102 = vmul.f32 %v2062, 0.25
        %v2103 = vmul.f32 %v2065, 0.25
        %v2104 = vmul.f32 %v2068, 0.25
        %v2105 = vmul.f32 %v2071, 0.25
        %v2106 = vmul.f32 %v2074, 0.25
        %v2107 = vmul.f32 %v2077, 0.25
        %v2108 = vmul.f32 %v2080, 0.25
        %v2109 = vmul.f32 %v2083, 0.25
        %vm2110 = vcmask 64512
        %2111 = vst.msk [vmem:[#allocation2] sm:$0xff] %vm2110, %v2085
        %vm2112 = vcmask 58368
        %2113 = vst.msk [vmem:[#allocation2 + $0x10] sm:$0x3] %vm2112, %v2086
        %vm2116 = vcmask 1046528
        %v2117 = vrot.slane %v2085, 1
        %v2118 = vrot.slane %v2086, 1
        %v2119 = vsel %vm2116, %v2117, %v2118
        %2120 = vrot.lane.b32.xlu0 %v2119, 8
        %v2121 = vpop.permute.xlu0 %2120
        %2122 = vrot.lane.b32.xlu0 %v2118, 8
        %v2123 = vpop.permute.xlu0 %2122
        %vm2126 = vcmask 130112
        %2127 = vst.msk [vmem:[#allocation2] sm:$0xff] %vm2126, %v2121
        %vm2128 = vcmask 123968
        %2129 = vst.msk [vmem:[#allocation2 + $0x10] sm:$0x3] %vm2128, %v2123
        %vm2130 = vcmask 1045504
        %v2131 = vrot.slane %v2085, 2
        %v2132 = vrot.slane %v2086, 2
        %v2133 = vsel %vm2130, %v2131, %v2132
        %2134 = vrot.lane.b32.xlu0 %v2133, 16
        %v2135 = vpop.permute.xlu0 %2134
        %2136 = vrot.lane.b32.xlu0 %v2132, 16
        %v2137 = vpop.permute.xlu0 %2136
        %vm2140 = vcmask 195712
        %2141 = vst.msk [vmem:[#allocation2] sm:$0xff] %vm2140, %v2135
        %vm2142 = vcmask 189568
        %2143 = vst.msk [vmem:[#allocation2 + $0x10] sm:$0x3] %vm2142, %v2137
        %vm2144 = vcmask 1044480
        %v2145 = vrot.slane %v2085, 3
        %v2146 = vrot.slane %v2086, 3
        %v2147 = vsel %vm2144, %v2145, %v2146
        %2148 = vrot.lane.b32.xlu0 %v2147, 24
        %v2149 = vpop.permute.xlu0 %2148
        %2150 = vrot.lane.b32.xlu0 %v2146, 24
        %v2151 = vpop.permute.xlu0 %2150
        %vm2154 = vcmask 261312
        %2155 = vst.msk [vmem:[#allocation2] sm:$0xff] %vm2154, %v2149
        %vm2156 = vcmask 255168
        %2157 = vst.msk [vmem:[#allocation2 + $0x10] sm:$0x3] %vm2156, %v2151
        %vm2158 = vcmask 1043456
        %v2159 = vrot.slane %v2085, 4
        %v2160 = vrot.slane %v2086, 4
        %v2161 = vsel %vm2158, %v2159, %v2160
        %2162 = vrot.lane.b32.xlu0 %v2161, 32
        %v2163 = vpop.permute.xlu0 %2162
        %2164 = vrot.lane.b32.xlu0 %v2160, 32
        %v2165 = vpop.permute.xlu0 %2164
        %vm2168 = vcmask 326912
        %2169 = vst.msk [vmem:[#allocation2] sm:$0xff] %vm2168, %v2163
        %vm2170 = vcmask 320768
        %2171 = vst.msk [vmem:[#allocation2 + $0x10] sm:$0x3] %vm2170, %v2165
        %vm2173 = vcmask 1041408
        %v2174 = vrot.slane %v2086, 6
        %v2175 = vrot.slane %v2087, 6
        %v2176 = vsel %vm2173, %v2174, %v2175
        %2177 = vrot.lane.b32.xlu0 %v2176, 40
        %v2178 = vpop.permute.xlu0 %2177
        %2179 = vrot.lane.b32.xlu0 %v2175, 40
        %v2180 = vpop.permute.xlu0 %2179
        %vm2183 = vcmask 392512
        %2184 = vst.msk [vmem:[#allocation2] sm:$0xff] %vm2183, %v2178
        %vm2185 = vcmask 386368
        %2186 = vst.msk [vmem:[#allocation2 + $0x10] sm:$0x3] %vm2185, %v2180
        %vm2188 = vcmask 1040384
        %v2189 = vrot.slane %v2086, 7
        %v2190 = vrot.slane %v2087, 7
        %v2191 = vsel %vm2188, %v2189, %v2190
        %v2192 = vrot.slane %v2088, 7
        %v2193 = vsel %vm2188, %v2190, %v2192
        %2194 = vrot.lane.b32.xlu0 %v2191, 48
        %v2195 = vpop.permute.xlu0 %2194
        %2196 = vrot.lane.b32.xlu0 %v2193, 48
        %v2197 = vpop.permute.xlu0 %2196
        %vm2200 = vcmask 458112
        %2201 = vst.msk [vmem:[#allocation2] sm:$0xff] %vm2200, %v2195
        %vm2202 = vcmask 451968
        %2203 = vst.msk [vmem:[#allocation2 + $0x10] sm:$0x3] %vm2202, %v2197
        %2204 = vrot.lane.b32.xlu0 %v2087, 56
        %v2205 = vpop.permute.xlu0 %2204
        %2206 = vrot.lane.b32.xlu0 %v2088, 56
        %v2207 = vpop.permute.xlu0 %2206
        %vm2210 = vcmask 523712
        %2211 = vst.msk [vmem:[#allocation2] sm:$0xff] %vm2210, %v2205
        %vm2212 = vcmask 517568
        %2213 = vst.msk [vmem:[#allocation2 + $0x10] sm:$0x3] %vm2212, %v2207
        %v2214 = vrot.slane %v2087, 1
        %v2215 = vrot.slane %v2088, 1
        %v2216 = vsel %vm2116, %v2214, %v2215
        %2217 = vrot.lane.b32.xlu0 %v2216, 64
        %v2218 = vpop.permute.xlu0 %2217
        %2219 = vrot.lane.b32.xlu0 %v2215, 64
        %v2220 = vpop.permute.xlu0 %2219
        %vm2223 = vcmask 589312
        %2224 = vst.msk [vmem:[#allocation2] sm:$0xff] %vm2223, %v2218
        %vm2225 = vcmask 583168
        %2226 = vst.msk [vmem:[#allocation2 + $0x10] sm:$0x3] %vm2225, %v2220
        %v2227 = vrot.slane %v2087, 2
        %v2228 = vrot.slane %v2088, 2
        %v2229 = vsel %vm2130, %v2227, %v2228
        %2230 = vrot.lane.b32.xlu0 %v2229, 72
        %v2231 = vpop.permute.xlu0 %2230
        %2232 = vrot.lane.b32.xlu0 %v2228, 72
        %v2233 = vpop.permute.xlu0 %2232
        %vm2236 = vcmask 654912
        %2237 = vst.msk [vmem:[#allocation2] sm:$0xff] %vm2236, %v2231
        %vm2238 = vcmask 648768
        %2239 = vst.msk [vmem:[#allocation2 + $0x10] sm:$0x3] %vm2238, %v2233
        %v2241 = vrot.slane %v2088, 4
        %v2242 = vrot.slane %v2089, 4
        %v2243 = vsel %vm2158, %v2241, %v2242
        %2244 = vrot.lane.b32.xlu0 %v2243, 80
        %v2245 = vpop.permute.xlu0 %2244
        %2246 = vrot.lane.b32.xlu0 %v2242, 80
        %v2247 = vpop.permute.xlu0 %2246
        %vm2250 = vcmask 720512
        %2251 = vst.msk [vmem:[#allocation2] sm:$0xff] %vm2250, %v2245
        %vm2252 = vcmask 714368
        %2253 = vst.msk [vmem:[#allocation2 + $0x10] sm:$0x3] %vm2252, %v2247
        %vm2254 = vcmask 1042432
        %v2255 = vrot.slane %v2088, 5
        %v2256 = vrot.slane %v2089, 5
        %v2257 = vsel %vm2254, %v2255, %v2256
        %2258 = vrot.lane.b32.xlu0 %v2257, 88
        %v2259 = vpop.permute.xlu0 %2258
        %2260 = vrot.lane.b32.xlu0 %v2256, 88
        %v2261 = vpop.permute.xlu0 %2260
        %vm2264 = vcmask 786112
        %2265 = vst.msk [vmem:[#allocation2] sm:$0xff] %vm2264, %v2259
        %vm2266 = vcmask 779968
        %2267 = vst.msk [vmem:[#allocation2 + $0x10] sm:$0x3] %vm2266, %v2261
        %v2268 = vrot.slane %v2088, 6
        %v2269 = vrot.slane %v2089, 6
        %v2270 = vsel %vm2173, %v2268, %v2269
        %2271 = vrot.lane.b32.xlu0 %v2270, 96
        %v2272 = vpop.permute.xlu0 %2271
        %2273 = vrot.lane.b32.xlu0 %v2269, 96
        %v2274 = vpop.permute.xlu0 %2273
        %vm2277 = vcmask 851712
        %2278 = vst.msk [vmem:[#allocation2] sm:$0xff] %vm2277, %v2272
        %vm2279 = vcmask 845568
        %2280 = vst.msk [vmem:[#allocation2 + $0x10] sm:$0x3] %vm2279, %v2274
        %v2282 = vrot.slane %v2089, 7
        %v2283 = vsel %vm2188, %v2192, %v2282
        %v2284 = vrot.slane %v2090, 7
        %v2285 = vsel %vm2188, %v2282, %v2284
        %2286 = vrot.lane.b32.xlu0 %v2283, 104
        %v2287 = vpop.permute.xlu0 %2286
        %2288 = vrot.lane.b32.xlu0 %v2285, 104
        %v2289 = vpop.permute.xlu0 %2288
        %vm2292 = vcmask 917312
        %2293 = vst.msk [vmem:[#allocation2] sm:$0xff] %vm2292, %v2287
        %vm2294 = vcmask 911168
        %2295 = vst.msk [vmem:[#allocation2 + $0x10] sm:$0x3] %vm2294, %v2289
        %2296 = vrot.lane.b32.xlu0 %v2089, 112
        %v2297 = vpop.permute.xlu0 %2296
        %2298 = vrot.lane.b32.xlu0 %v2090, 112
        %v2299 = vpop.permute.xlu0 %2298
        %vm2302 = vcmask 982912
        %2303 = vst.msk [vmem:[#allocation2] sm:$0xff] %vm2302, %v2297
        %vm2304 = vcmask 976768
        %2305 = vst.msk [vmem:[#allocation2 + $0x10] sm:$0x3] %vm2304, %v2299
        %v2307 = vrot.slane %v2090, 2
        %v2308 = vrot.slane %v2091, 2
        %v2309 = vsel %vm2130, %v2307, %v2308
        %2310 = vrot.lane.b32.xlu0 %v2309, 120
        %v2311 = vpop.permute.xlu0 %2310
        %2312 = vrot.lane.b32.xlu0 %v2308, 120
        %v2313 = vpop.permute.xlu0 %2312
        %vm2316 = vcmask 1048512
        %2317 = vst.msk [vmem:[#allocation2] sm:$0xff] %vm2316, %v2311
        %vm2318 = vcmask 1042368
        %2319 = vst.msk [vmem:[#allocation2 + $0x10] sm:$0x3] %vm2318, %v2313
        %v2320 = vrot.slane %v2090, 3
        %v2321 = vrot.slane %v2091, 3
        %v2322 = vsel %vm2144, %v2320, %v2321
        %2325 = vst.msk [vmem:[#allocation2 + $0x8] sm:$0xff] %vm2110, %v2322
        %2326 = vst.msk [vmem:[#allocation2 + $0x18] sm:$0x3] %vm2112, %v2321
        %v2327 = vrot.slane %v2090, 4
        %v2328 = vrot.slane %v2091, 4
        %v2329 = vsel %vm2158, %v2327, %v2328
        %2330 = vrot.lane.b32.xlu0 %v2329, 8
        %v2331 = vpop.permute.xlu0 %2330
        %2332 = vrot.lane.b32.xlu0 %v2328, 8
        %v2333 = vpop.permute.xlu0 %2332
        %2336 = vst.msk [vmem:[#allocation2 + $0x8] sm:$0xff] %vm2126, %v2331
        %2337 = vst.msk [vmem:[#allocation2 + $0x18] sm:$0x3] %vm2128, %v2333
        %v2338 = vrot.slane %v2090, 5
        %v2339 = vrot.slane %v2091, 5
        %v2340 = vsel %vm2254, %v2338, %v2339
        %2341 = vrot.lane.b32.xlu0 %v2340, 16
        %v2342 = vpop.permute.xlu0 %2341
        %2343 = vrot.lane.b32.xlu0 %v2339, 16
        %v2344 = vpop.permute.xlu0 %2343
        %2347 = vst.msk [vmem:[#allocation2 + $0x8] sm:$0xff] %vm2140, %v2342
        %2348 = vst.msk [vmem:[#allocation2 + $0x18] sm:$0x3] %vm2142, %v2344
        %v2349 = vrot.slane %v2090, 6
        %v2350 = vrot.slane %v2091, 6
        %v2351 = vsel %vm2173, %v2349, %v2350
        %2352 = vrot.lane.b32.xlu0 %v2351, 24
        %v2353 = vpop.permute.xlu0 %2352
        %2354 = vrot.lane.b32.xlu0 %v2350, 24
        %v2355 = vpop.permute.xlu0 %2354
        %2358 = vst.msk [vmem:[#allocation2 + $0x8] sm:$0xff] %vm2154, %v2353
        %2359 = vst.msk [vmem:[#allocation2 + $0x18] sm:$0x3] %vm2156, %v2355
        %2362 = vrot.lane.b32.xlu0 %v2092, 32
        %v2363 = vpop.permute.xlu0 %2362
        %2364 = vrot.lane.b32.xlu0 %v2093, 32
        %v2365 = vpop.permute.xlu0 %2364
        %2368 = vst.msk [vmem:[#allocation2 + $0x8] sm:$0xff] %vm2168, %v2363
        %2369 = vst.msk [vmem:[#allocation2 + $0x18] sm:$0x3] %vm2170, %v2365
        %v2370 = vrot.slane %v2092, 1
        %v2371 = vrot.slane %v2093, 1
        %v2372 = vsel %vm2116, %v2370, %v2371
        %2373 = vrot.lane.b32.xlu0 %v2372, 40
        %v2374 = vpop.permute.xlu0 %2373
        %2375 = vrot.lane.b32.xlu0 %v2371, 40
        %v2376 = vpop.permute.xlu0 %2375
        %2379 = vst.msk [vmem:[#allocation2 + $0x8] sm:$0xff] %vm2183, %v2374
        %2380 = vst.msk [vmem:[#allocation2 + $0x18] sm:$0x3] %vm2185, %v2376
        %v2381 = vrot.slane %v2092, 2
        %v2382 = vrot.slane %v2093, 2
        %v2383 = vsel %vm2130, %v2381, %v2382
        %2384 = vrot.lane.b32.xlu0 %v2383, 48
        %v2385 = vpop.permute.xlu0 %2384
        %2386 = vrot.lane.b32.xlu0 %v2382, 48
        %v2387 = vpop.permute.xlu0 %2386
        %2390 = vst.msk [vmem:[#allocation2 + $0x8] sm:$0xff] %vm2200, %v2385
        %2391 = vst.msk [vmem:[#allocation2 + $0x18] sm:$0x3] %vm2202, %v2387
        %v2392 = vrot.slane %v2092, 3
        %v2393 = vrot.slane %v2093, 3
        %v2394 = vsel %vm2144, %v2392, %v2393
        %2395 = vrot.lane.b32.xlu0 %v2394, 56
        %v2396 = vpop.permute.xlu0 %2395
        %2397 = vrot.lane.b32.xlu0 %v2393, 56
        %v2398 = vpop.permute.xlu0 %2397
        %2401 = vst.msk [vmem:[#allocation2 + $0x8] sm:$0xff] %vm2210, %v2396
        %2402 = vst.msk [vmem:[#allocation2 + $0x18] sm:$0x3] %vm2212, %v2398
        %v2403 = vrot.slane %v2092, 4
        %v2404 = vrot.slane %v2093, 4
        %v2405 = vsel %vm2158, %v2403, %v2404
        %2406 = vrot.lane.b32.xlu0 %v2405, 64
        %v2407 = vpop.permute.xlu0 %2406
        %2408 = vrot.lane.b32.xlu0 %v2404, 64
        %v2409 = vpop.permute.xlu0 %2408
        %2412 = vst.msk [vmem:[#allocation2 + $0x8] sm:$0xff] %vm2223, %v2407
        %2413 = vst.msk [vmem:[#allocation2 + $0x18] sm:$0x3] %vm2225, %v2409
        %v2414 = vrot.slane %v2087, 4
        %v2415 = vsel %vm2158, %v2160, %v2414
        %vm2418 = vcmask 64514
        %2419 = vst.msk [vmem:[#allocation2 + $0x10] sm:$0xfc] %vm2418, %v2415
        %vm2420 = vcmask 60416
        %2421 = vst.msk [vmem:[#allocation2 + $0x20] sm:$0xf] %vm2420, %v2414
        %v2422 = vrot.slane %v2086, 5
        %v2423 = vrot.slane %v2087, 5
        %v2424 = vsel %vm2254, %v2422, %v2423
        %v2425 = vsel %vm2254, %v2423, %v2255
        %2426 = vrot.lane.b32.xlu0 %v2424, 8
        %v2427 = vpop.permute.xlu0 %2426
        %2428 = vrot.lane.b32.xlu0 %v2425, 8
        %v2429 = vpop.permute.xlu0 %2428
        %vm2432 = vcmask 130114
        %2433 = vst.msk [vmem:[#allocation2 + $0x10] sm:$0xfc] %vm2432, %v2427
        %vm2434 = vcmask 126016
        %2435 = vst.msk [vmem:[#allocation2 + $0x20] sm:$0xf] %vm2434, %v2429
        %v2436 = vsel %vm2173, %v2175, %v2268
        %2437 = vrot.lane.b32.xlu0 %v2175, 16
        %v2438 = vpop.permute.xlu0 %2437
        %2439 = vrot.lane.b32.xlu0 %v2436, 16
        %v2440 = vpop.permute.xlu0 %2439
        %vm2443 = vcmask 195714
        %2444 = vst.msk [vmem:[#allocation2 + $0x10] sm:$0xfc] %vm2443, %v2438
        %vm2445 = vcmask 191616
        %2446 = vst.msk [vmem:[#allocation2 + $0x20] sm:$0xf] %vm2445, %v2440
        %2447 = vrot.lane.b32.xlu0 %v2190, 24
        %v2448 = vpop.permute.xlu0 %2447
        %2449 = vrot.lane.b32.xlu0 %v2193, 24
        %v2450 = vpop.permute.xlu0 %2449
        %vm2453 = vcmask 261314
        %2454 = vst.msk [vmem:[#allocation2 + $0x10] sm:$0xfc] %vm2453, %v2448
        %vm2455 = vcmask 257216
        %2456 = vst.msk [vmem:[#allocation2 + $0x20] sm:$0xf] %vm2455, %v2450
        %2457 = vrot.lane.b32.xlu0 %v2087, 32
        %v2458 = vpop.permute.xlu0 %2457
        %2459 = vrot.lane.b32.xlu0 %v2088, 32
        %v2460 = vpop.permute.xlu0 %2459
        %vm2463 = vcmask 326914
        %2464 = vst.msk [vmem:[#allocation2 + $0x10] sm:$0xfc] %vm2463, %v2458
        %vm2465 = vcmask 322816
        %2466 = vst.msk [vmem:[#allocation2 + $0x20] sm:$0xf] %vm2465, %v2460
        %v2467 = vrot.slane %v2089, 2
        %v2468 = vsel %vm2130, %v2228, %v2467
        %2469 = vrot.lane.b32.xlu0 %v2468, 40
        %v2470 = vpop.permute.xlu0 %2469
        %2471 = vrot.lane.b32.xlu0 %v2467, 40
        %v2472 = vpop.permute.xlu0 %2471
        %vm2475 = vcmask 392514
        %2476 = vst.msk [vmem:[#allocation2 + $0x10] sm:$0xfc] %vm2475, %v2470
        %vm2477 = vcmask 388416
        %2478 = vst.msk [vmem:[#allocation2 + $0x20] sm:$0xf] %vm2477, %v2472
        %v2479 = vrot.slane %v2088, 3
        %v2480 = vrot.slane %v2089, 3
        %v2481 = vsel %vm2144, %v2479, %v2480
        %2482 = vrot.lane.b32.xlu0 %v2481, 48
        %v2483 = vpop.permute.xlu0 %2482
        %2484 = vrot.lane.b32.xlu0 %v2480, 48
        %v2485 = vpop.permute.xlu0 %2484
        %vm2488 = vcmask 458114
        %2489 = vst.msk [vmem:[#allocation2 + $0x10] sm:$0xfc] %vm2488, %v2483
        %vm2490 = vcmask 454016
        %2491 = vst.msk [vmem:[#allocation2 + $0x20] sm:$0xf] %vm2490, %v2485
        %2492 = vrot.lane.b32.xlu0 %v2243, 56
        %v2493 = vpop.permute.xlu0 %2492
        %2494 = vrot.lane.b32.xlu0 %v2242, 56
        %v2495 = vpop.permute.xlu0 %2494
        %vm2498 = vcmask 523714
        %2499 = vst.msk [vmem:[#allocation2 + $0x10] sm:$0xfc] %vm2498, %v2493
        %vm2500 = vcmask 519616
        %2501 = vst.msk [vmem:[#allocation2 + $0x20] sm:$0xf] %vm2500, %v2495
        %v2502 = vsel %vm2254, %v2256, %v2338
        %2503 = vrot.lane.b32.xlu0 %v2257, 64
        %v2504 = vpop.permute.xlu0 %2503
        %2505 = vrot.lane.b32.xlu0 %v2502, 64
        %v2506 = vpop.permute.xlu0 %2505
        %vm2509 = vcmask 589314
        %2510 = vst.msk [vmem:[#allocation2 + $0x10] sm:$0xfc] %vm2509, %v2504
        %vm2511 = vcmask 585216
        %2512 = vst.msk [vmem:[#allocation2 + $0x20] sm:$0xf] %vm2511, %v2506
        %v2513 = vsel %vm2173, %v2269, %v2349
        %2514 = vrot.lane.b32.xlu0 %v2269, 72
        %v2515 = vpop.permute.xlu0 %2514
        %2516 = vrot.lane.b32.xlu0 %v2513, 72
        %v2517 = vpop.permute.xlu0 %2516
        %vm2520 = vcmask 654914
        %2521 = vst.msk [vmem:[#allocation2 + $0x10] sm:$0xfc] %vm2520, %v2515
        %vm2522 = vcmask 650816
        %2523 = vst.msk [vmem:[#allocation2 + $0x20] sm:$0xf] %vm2522, %v2517
        %2524 = vrot.lane.b32.xlu0 %v2090, 80
        %v2525 = vpop.permute.xlu0 %2524
        %2526 = vrot.lane.b32.xlu0 %v2091, 80
        %v2527 = vpop.permute.xlu0 %2526
        %vm2530 = vcmask 720514
        %2531 = vst.msk [vmem:[#allocation2 + $0x10] sm:$0xfc] %vm2530, %v2525
        %vm2532 = vcmask 716416
        %2533 = vst.msk [vmem:[#allocation2 + $0x20] sm:$0xf] %vm2532, %v2527
        %v2534 = vrot.slane %v2090, 1
        %v2535 = vrot.slane %v2091, 1
        %v2536 = vsel %vm2116, %v2534, %v2535
        %2537 = vrot.lane.b32.xlu0 %v2536, 88
        %v2538 = vpop.permute.xlu0 %2537
        %2539 = vrot.lane.b32.xlu0 %v2535, 88
        %v2540 = vpop.permute.xlu0 %2539
        %vm2543 = vcmask 786114
        %2544 = vst.msk [vmem:[#allocation2 + $0x10] sm:$0xfc] %vm2543, %v2538
        %vm2545 = vcmask 782016
        %2546 = vst.msk [vmem:[#allocation2 + $0x20] sm:$0xf] %vm2545, %v2540
        %2547 = vrot.lane.b32.xlu0 %v2309, 96
        %v2548 = vpop.permute.xlu0 %2547
        %2549 = vrot.lane.b32.xlu0 %v2308, 96
        %v2550 = vpop.permute.xlu0 %2549
        %vm2553 = vcmask 851714
        %2554 = vst.msk [vmem:[#allocation2 + $0x10] sm:$0xfc] %vm2553, %v2548
        %vm2555 = vcmask 847616
        %2556 = vst.msk [vmem:[#allocation2 + $0x20] sm:$0xf] %vm2555, %v2550
        %2557 = vrot.lane.b32.xlu0 %v2322, 104
        %v2558 = vpop.permute.xlu0 %2557
        %2559 = vrot.lane.b32.xlu0 %v2321, 104
        %v2560 = vpop.permute.xlu0 %2559
        %vm2563 = vcmask 917314
        %2564 = vst.msk [vmem:[#allocation2 + $0x10] sm:$0xfc] %vm2563, %v2558
        %vm2565 = vcmask 913216
        %2566 = vst.msk [vmem:[#allocation2 + $0x20] sm:$0xf] %vm2565, %v2560
        %2567 = vrot.lane.b32.xlu0 %v2329, 112
        %v2568 = vpop.permute.xlu0 %2567
        %2569 = vrot.lane.b32.xlu0 %v2328, 112
        %v2570 = vpop.permute.xlu0 %2569
        %vm2573 = vcmask 982914
        %2574 = vst.msk [vmem:[#allocation2 + $0x10] sm:$0xfc] %vm2573, %v2568
        %vm2575 = vcmask 978816
        %2576 = vst.msk [vmem:[#allocation2 + $0x20] sm:$0xf] %vm2575, %v2570
        %v2577 = vrot.slane %v2092, 6
        %v2578 = vrot.slane %v2093, 6
        %v2579 = vsel %vm2173, %v2577, %v2578
        %2580 = vrot.lane.b32.xlu0 %v2577, 120
        %v2581 = vpop.permute.xlu0 %2580
        %2582 = vrot.lane.b32.xlu0 %v2579, 120
        %v2583 = vpop.permute.xlu0 %2582
        %vm2586 = vcmask 1048514
        %2587 = vst.msk [vmem:[#allocation2 + $0x10] sm:$0xfc] %vm2586, %v2581
        %vm2588 = vcmask 1044416
        %2589 = vst.msk [vmem:[#allocation2 + $0x20] sm:$0xf] %vm2588, %v2583
        %v2590 = vrot.slane %v2092, 7
        %v2591 = vrot.slane %v2093, 7
        %v2592 = vsel %vm2188, %v2590, %v2591
        %2595 = vst.msk [vmem:[#allocation2 + $0x18] sm:$0xfc] %vm2418, %v2590
        %2596 = vst.msk [vmem:[#allocation2 + $0x28] sm:$0xf] %vm2420, %v2592
        %2597 = vrot.lane.b32.xlu0 %v2092, 8
        %v2598 = vpop.permute.xlu0 %2597
        %2599 = vrot.lane.b32.xlu0 %v2093, 8
        %v2600 = vpop.permute.xlu0 %2599
        %2603 = vst.msk [vmem:[#allocation2 + $0x18] sm:$0xfc] %vm2432, %v2598
        %2604 = vst.msk [vmem:[#allocation2 + $0x28] sm:$0xf] %vm2434, %v2600
        %2605 = vrot.lane.b32.xlu0 %v2372, 16
        %v2606 = vpop.permute.xlu0 %2605
        %2607 = vrot.lane.b32.xlu0 %v2371, 16
        %v2608 = vpop.permute.xlu0 %2607
        %2611 = vst.msk [vmem:[#allocation2 + $0x18] sm:$0xfc] %vm2443, %v2606
        %2612 = vst.msk [vmem:[#allocation2 + $0x28] sm:$0xf] %vm2445, %v2608
        %2613 = vrot.lane.b32.xlu0 %v2383, 24
        %v2614 = vpop.permute.xlu0 %2613
        %2615 = vrot.lane.b32.xlu0 %v2382, 24
        %v2616 = vpop.permute.xlu0 %2615
        %2619 = vst.msk [vmem:[#allocation2 + $0x18] sm:$0xfc] %vm2453, %v2614
        %2620 = vst.msk [vmem:[#allocation2 + $0x28] sm:$0xf] %vm2455, %v2616
        %v2622 = vrot.slane %v2094, 4
        %v2623 = vsel %vm2158, %v2404, %v2622
        %2624 = vrot.lane.b32.xlu0 %v2623, 32
        %v2625 = vpop.permute.xlu0 %2624
        %2626 = vrot.lane.b32.xlu0 %v2622, 32
        %v2627 = vpop.permute.xlu0 %2626
        %2630 = vst.msk [vmem:[#allocation2 + $0x18] sm:$0xfc] %vm2463, %v2625
        %2631 = vst.msk [vmem:[#allocation2 + $0x28] sm:$0xf] %vm2465, %v2627
        %v2633 = vrot.slane %v2093, 5
        %v2634 = vrot.slane %v2094, 5
        %v2635 = vsel %vm2254, %v2633, %v2634
        %v2636 = vrot.slane %v2095, 5
        %v2637 = vsel %vm2254, %v2634, %v2636
        %2638 = vrot.lane.b32.xlu0 %v2635, 40
        %v2639 = vpop.permute.xlu0 %2638
        %2640 = vrot.lane.b32.xlu0 %v2637, 40
        %v2641 = vpop.permute.xlu0 %2640
        %2644 = vst.msk [vmem:[#allocation2 + $0x18] sm:$0xfc] %vm2475, %v2639
        %2645 = vst.msk [vmem:[#allocation2 + $0x28] sm:$0xf] %vm2477, %v2641
        %v2646 = vrot.slane %v2094, 6
        %v2647 = vrot.slane %v2095, 6
        %v2648 = vsel %vm2173, %v2646, %v2647
        %2649 = vrot.lane.b32.xlu0 %v2646, 48
        %v2650 = vpop.permute.xlu0 %2649
        %2651 = vrot.lane.b32.xlu0 %v2648, 48
        %v2652 = vpop.permute.xlu0 %2651
        %2655 = vst.msk [vmem:[#allocation2 + $0x18] sm:$0xfc] %vm2488, %v2650
        %2656 = vst.msk [vmem:[#allocation2 + $0x28] sm:$0xf] %vm2490, %v2652
        %v2657 = vrot.slane %v2094, 7
        %v2658 = vrot.slane %v2095, 7
        %v2659 = vsel %vm2188, %v2657, %v2658
        %2660 = vrot.lane.b32.xlu0 %v2657, 56
        %v2661 = vpop.permute.xlu0 %2660
        %2662 = vrot.lane.b32.xlu0 %v2659, 56
        %v2663 = vpop.permute.xlu0 %2662
        %2666 = vst.msk [vmem:[#allocation2 + $0x18] sm:$0xfc] %vm2498, %v2661
        %2667 = vst.msk [vmem:[#allocation2 + $0x28] sm:$0xf] %vm2500, %v2663
        %2668 = vrot.lane.b32.xlu0 %v2094, 64
        %v2669 = vpop.permute.xlu0 %2668
        %2670 = vrot.lane.b32.xlu0 %v2095, 64
        %v2671 = vpop.permute.xlu0 %2670
        %2674 = vst.msk [vmem:[#allocation2 + $0x18] sm:$0xfc] %vm2509, %v2669
        %2675 = vst.msk [vmem:[#allocation2 + $0x28] sm:$0xf] %vm2511, %v2671
        %vm2676 = vcmask 64516
        %2677 = vst.msk [vmem:[#allocation2 + $0x20] sm:$0xf0] %vm2676, %v2088
        %vm2678 = vcmask 62464
        %2679 = vst.msk [vmem:[#allocation2 + $0x30] sm:$0x3f] %vm2678, %v2089
        %v2680 = vrot.slane %v2089, 1
        %v2681 = vsel %vm2116, %v2215, %v2680
        %2682 = vrot.lane.b32.xlu0 %v2681, 8
        %v2683 = vpop.permute.xlu0 %2682
        %2684 = vrot.lane.b32.xlu0 %v2680, 8
        %v2685 = vpop.permute.xlu0 %2684
        %vm2688 = vcmask 130116
        %2689 = vst.msk [vmem:[#allocation2 + $0x20] sm:$0xf0] %vm2688, %v2683
        %vm2690 = vcmask 128064
        %2691 = vst.msk [vmem:[#allocation2 + $0x30] sm:$0x3f] %vm2690, %v2685
        %2692 = vrot.lane.b32.xlu0 %v2468, 16
        %v2693 = vpop.permute.xlu0 %2692
        %2694 = vrot.lane.b32.xlu0 %v2467, 16
        %v2695 = vpop.permute.xlu0 %2694
        %vm2698 = vcmask 195716
        %2699 = vst.msk [vmem:[#allocation2 + $0x20] sm:$0xf0] %vm2698, %v2693
        %vm2700 = vcmask 193664
        %2701 = vst.msk [vmem:[#allocation2 + $0x30] sm:$0x3f] %vm2700, %v2695
        %v2702 = vsel %vm2144, %v2480, %v2320
        %2703 = vrot.lane.b32.xlu0 %v2481, 24
        %v2704 = vpop.permute.xlu0 %2703
        %2705 = vrot.lane.b32.xlu0 %v2702, 24
        %v2706 = vpop.permute.xlu0 %2705
        %vm2709 = vcmask 261316
        %2710 = vst.msk [vmem:[#allocation2 + $0x20] sm:$0xf0] %vm2709, %v2704
        %vm2711 = vcmask 259264
        %2712 = vst.msk [vmem:[#allocation2 + $0x30] sm:$0x3f] %vm2711, %v2706
        %v2713 = vsel %vm2158, %v2242, %v2327
        %2714 = vrot.lane.b32.xlu0 %v2242, 32
        %v2715 = vpop.permute.xlu0 %2714
        %2716 = vrot.lane.b32.xlu0 %v2713, 32
        %v2717 = vpop.permute.xlu0 %2716
        %vm2720 = vcmask 326916
        %2721 = vst.msk [vmem:[#allocation2 + $0x20] sm:$0xf0] %vm2720, %v2715
        %vm2722 = vcmask 324864
        %2723 = vst.msk [vmem:[#allocation2 + $0x30] sm:$0x3f] %vm2722, %v2717
        %2724 = vrot.lane.b32.xlu0 %v2349, 40
        %v2725 = vpop.permute.xlu0 %2724
        %2726 = vrot.lane.b32.xlu0 %v2351, 40
        %v2727 = vpop.permute.xlu0 %2726
        %vm2730 = vcmask 392516
        %2731 = vst.msk [vmem:[#allocation2 + $0x20] sm:$0xf0] %vm2730, %v2725
        %vm2732 = vcmask 390464
        %2733 = vst.msk [vmem:[#allocation2 + $0x30] sm:$0x3f] %vm2732, %v2727
        %v2734 = vrot.slane %v2091, 7
        %v2735 = vsel %vm2188, %v2284, %v2734
        %2736 = vrot.lane.b32.xlu0 %v2284, 48
        %v2737 = vpop.permute.xlu0 %2736
        %2738 = vrot.lane.b32.xlu0 %v2735, 48
        %v2739 = vpop.permute.xlu0 %2738
        %vm2742 = vcmask 458116
        %2743 = vst.msk [vmem:[#allocation2 + $0x20] sm:$0xf0] %vm2742, %v2737
        %vm2744 = vcmask 456064
        %2745 = vst.msk [vmem:[#allocation2 + $0x30] sm:$0x3f] %vm2744, %v2739
        %2746 = vrot.lane.b32.xlu0 %v2090, 56
        %v2747 = vpop.permute.xlu0 %2746
        %2748 = vrot.lane.b32.xlu0 %v2091, 56
        %v2749 = vpop.permute.xlu0 %2748
        %vm2752 = vcmask 523716
        %2753 = vst.msk [vmem:[#allocation2 + $0x20] sm:$0xf0] %vm2752, %v2747
        %vm2754 = vcmask 521664
        %2755 = vst.msk [vmem:[#allocation2 + $0x30] sm:$0x3f] %vm2754, %v2749
        %2756 = vrot.lane.b32.xlu0 %v2536, 64
        %v2757 = vpop.permute.xlu0 %2756
        %2758 = vrot.lane.b32.xlu0 %v2535, 64
        %v2759 = vpop.permute.xlu0 %2758
        %vm2762 = vcmask 589316
        %2763 = vst.msk [vmem:[#allocation2 + $0x20] sm:$0xf0] %vm2762, %v2757
        %vm2764 = vcmask 587264
        %2765 = vst.msk [vmem:[#allocation2 + $0x30] sm:$0x3f] %vm2764, %v2759
        %2766 = vrot.lane.b32.xlu0 %v2309, 72
        %v2767 = vpop.permute.xlu0 %2766
        %2768 = vrot.lane.b32.xlu0 %v2308, 72
        %v2769 = vpop.permute.xlu0 %2768
        %vm2772 = vcmask 654916
        %2773 = vst.msk [vmem:[#allocation2 + $0x20] sm:$0xf0] %vm2772, %v2767
        %vm2774 = vcmask 652864
        %2775 = vst.msk [vmem:[#allocation2 + $0x30] sm:$0x3f] %vm2774, %v2769
        %2776 = vrot.lane.b32.xlu0 %v2403, 80
        %v2777 = vpop.permute.xlu0 %2776
        %2778 = vrot.lane.b32.xlu0 %v2405, 80
        %v2779 = vpop.permute.xlu0 %2778
        %vm2782 = vcmask 720516
        %2783 = vst.msk [vmem:[#allocation2 + $0x20] sm:$0xf0] %vm2782, %v2777
        %vm2784 = vcmask 718464
        %2785 = vst.msk [vmem:[#allocation2 + $0x30] sm:$0x3f] %vm2784, %v2779
        %v2786 = vrot.slane %v2092, 5
        %v2787 = vsel %vm2254, %v2786, %v2633
        %2788 = vrot.lane.b32.xlu0 %v2786, 88
        %v2789 = vpop.permute.xlu0 %2788
        %2790 = vrot.lane.b32.xlu0 %v2787, 88
        %v2791 = vpop.permute.xlu0 %2790
        %vm2794 = vcmask 786116
        %2795 = vst.msk [vmem:[#allocation2 + $0x20] sm:$0xf0] %vm2794, %v2789
        %vm2796 = vcmask 784064
        %2797 = vst.msk [vmem:[#allocation2 + $0x30] sm:$0x3f] %vm2796, %v2791
        %2798 = vrot.lane.b32.xlu0 %v2577, 96
        %v2799 = vpop.permute.xlu0 %2798
        %2800 = vrot.lane.b32.xlu0 %v2579, 96
        %v2801 = vpop.permute.xlu0 %2800
        %vm2804 = vcmask 851716
        %2805 = vst.msk [vmem:[#allocation2 + $0x20] sm:$0xf0] %vm2804, %v2799
        %vm2806 = vcmask 849664
        %2807 = vst.msk [vmem:[#allocation2 + $0x30] sm:$0x3f] %vm2806, %v2801
        %2808 = vrot.lane.b32.xlu0 %v2590, 104
        %v2809 = vpop.permute.xlu0 %2808
        %2810 = vrot.lane.b32.xlu0 %v2592, 104
        %v2811 = vpop.permute.xlu0 %2810
        %vm2814 = vcmask 917316
        %2815 = vst.msk [vmem:[#allocation2 + $0x20] sm:$0xf0] %vm2814, %v2809
        %vm2816 = vcmask 915264
        %2817 = vst.msk [vmem:[#allocation2 + $0x30] sm:$0x3f] %vm2816, %v2811
        %2818 = vrot.lane.b32.xlu0 %v2092, 112
        %v2819 = vpop.permute.xlu0 %2818
        %2820 = vrot.lane.b32.xlu0 %v2093, 112
        %v2821 = vpop.permute.xlu0 %2820
        %vm2824 = vcmask 982916
        %2825 = vst.msk [vmem:[#allocation2 + $0x20] sm:$0xf0] %vm2824, %v2819
        %vm2826 = vcmask 980864
        %2827 = vst.msk [vmem:[#allocation2 + $0x30] sm:$0x3f] %vm2826, %v2821
        %v2828 = vrot.slane %v2094, 2
        %v2829 = vsel %vm2130, %v2382, %v2828
        %2830 = vrot.lane.b32.xlu0 %v2829, 120
        %v2831 = vpop.permute.xlu0 %2830
        %2832 = vrot.lane.b32.xlu0 %v2828, 120
        %v2833 = vpop.permute.xlu0 %2832
        %vm2836 = vcmask 1048516
        %2837 = vst.msk [vmem:[#allocation2 + $0x20] sm:$0xf0] %vm2836, %v2831
        %vm2838 = vcmask 1046464
        %2839 = vst.msk [vmem:[#allocation2 + $0x30] sm:$0x3f] %vm2838, %v2833
        %v2840 = vrot.slane %v2094, 3
        %v2841 = vsel %vm2144, %v2393, %v2840
        %v2842 = vrot.slane %v2095, 3
        %v2843 = vsel %vm2144, %v2840, %v2842
        %2846 = vst.msk [vmem:[#allocation2 + $0x28] sm:$0xf0] %vm2676, %v2841
        %2847 = vst.msk [vmem:[#allocation2 + $0x38] sm:$0x3f] %vm2678, %v2843
        %v2848 = vrot.slane %v2095, 4
        %v2849 = vsel %vm2158, %v2622, %v2848
        %2850 = vrot.lane.b32.xlu0 %v2622, 8
        %v2851 = vpop.permute.xlu0 %2850
        %2852 = vrot.lane.b32.xlu0 %v2849, 8
        %v2853 = vpop.permute.xlu0 %2852
        %2856 = vst.msk [vmem:[#allocation2 + $0x28] sm:$0xf0] %vm2688, %v2851
        %2857 = vst.msk [vmem:[#allocation2 + $0x38] sm:$0x3f] %vm2690, %v2853
        %2858 = vrot.lane.b32.xlu0 %v2634, 16
        %v2859 = vpop.permute.xlu0 %2858
        %2860 = vrot.lane.b32.xlu0 %v2637, 16
        %v2861 = vpop.permute.xlu0 %2860
        %2864 = vst.msk [vmem:[#allocation2 + $0x28] sm:$0xf0] %vm2698, %v2859
        %2865 = vst.msk [vmem:[#allocation2 + $0x38] sm:$0x3f] %vm2700, %v2861
        %2866 = vrot.lane.b32.xlu0 %v2646, 24
        %v2867 = vpop.permute.xlu0 %2866
        %2868 = vrot.lane.b32.xlu0 %v2648, 24
        %v2869 = vpop.permute.xlu0 %2868
        %2872 = vst.msk [vmem:[#allocation2 + $0x28] sm:$0xf0] %vm2709, %v2867
        %2873 = vst.msk [vmem:[#allocation2 + $0x38] sm:$0x3f] %vm2711, %v2869
        %2875 = vrot.lane.b32.xlu0 %v2095, 32
        %v2876 = vpop.permute.xlu0 %2875
        %2877 = vrot.lane.b32.xlu0 %v2096, 32
        %v2878 = vpop.permute.xlu0 %2877
        %2881 = vst.msk [vmem:[#allocation2 + $0x28] sm:$0xf0] %vm2720, %v2876
        %2882 = vst.msk [vmem:[#allocation2 + $0x38] sm:$0x3f] %vm2722, %v2878
        %v2883 = vrot.slane %v2095, 1
        %v2884 = vrot.slane %v2096, 1
        %v2885 = vsel %vm2116, %v2883, %v2884
        %2886 = vrot.lane.b32.xlu0 %v2885, 40
        %v2887 = vpop.permute.xlu0 %2886
        %2888 = vrot.lane.b32.xlu0 %v2884, 40
        %v2889 = vpop.permute.xlu0 %2888
        %2892 = vst.msk [vmem:[#allocation2 + $0x28] sm:$0xf0] %vm2730, %v2887
        %2893 = vst.msk [vmem:[#allocation2 + $0x38] sm:$0x3f] %vm2732, %v2889
        %v2894 = vrot.slane %v2095, 2
        %v2895 = vrot.slane %v2096, 2
        %v2896 = vsel %vm2130, %v2894, %v2895
        %2897 = vrot.lane.b32.xlu0 %v2896, 48
        %v2898 = vpop.permute.xlu0 %2897
        %2899 = vrot.lane.b32.xlu0 %v2895, 48
        %v2900 = vpop.permute.xlu0 %2899
        %2903 = vst.msk [vmem:[#allocation2 + $0x28] sm:$0xf0] %vm2742, %v2898
        %2904 = vst.msk [vmem:[#allocation2 + $0x38] sm:$0x3f] %vm2744, %v2900
        %v2906 = vrot.slane %v2096, 3
        %v2907 = vsel %vm2144, %v2842, %v2906
        %v2908 = vrot.slane %v2097, 3
        %v2909 = vsel %vm2144, %v2906, %v2908
        %2910 = vrot.lane.b32.xlu0 %v2907, 56
        %v2911 = vpop.permute.xlu0 %2910
        %2912 = vrot.lane.b32.xlu0 %v2909, 56
        %v2913 = vpop.permute.xlu0 %2912
        %2916 = vst.msk [vmem:[#allocation2 + $0x28] sm:$0xf0] %vm2752, %v2911
        %2917 = vst.msk [vmem:[#allocation2 + $0x38] sm:$0x3f] %vm2754, %v2913
        %v2918 = vrot.slane %v2096, 4
        %v2919 = vrot.slane %v2097, 4
        %v2920 = vsel %vm2158, %v2918, %v2919
        %2921 = vrot.lane.b32.xlu0 %v2918, 64
        %v2922 = vpop.permute.xlu0 %2921
        %2923 = vrot.lane.b32.xlu0 %v2920, 64
        %v2924 = vpop.permute.xlu0 %2923
        %2927 = vst.msk [vmem:[#allocation2 + $0x28] sm:$0xf0] %vm2762, %v2922
        %2928 = vst.msk [vmem:[#allocation2 + $0x38] sm:$0x3f] %vm2764, %v2924
        %vm2931 = vcmask 64518
        %2932 = vst.msk [vmem:[#allocation2 + $0x30] sm:$0xc0] %vm2931, %v2327
        %2933 = vst.msk [vmem:[#allocation2 + $0x40] sm:$0xff] %vm2110, %v2329
        %2934 = vrot.lane.b32.xlu0 %v2338, 8
        %v2935 = vpop.permute.xlu0 %2934
        %2936 = vrot.lane.b32.xlu0 %v2340, 8
        %v2937 = vpop.permute.xlu0 %2936
        %vm2940 = vcmask 130118
        %2941 = vst.msk [vmem:[#allocation2 + $0x30] sm:$0xc0] %vm2940, %v2935
        %2942 = vst.msk [vmem:[#allocation2 + $0x40] sm:$0xff] %vm2126, %v2937
        %2943 = vrot.lane.b32.xlu0 %v2349, 16
        %v2944 = vpop.permute.xlu0 %2943
        %2945 = vrot.lane.b32.xlu0 %v2351, 16
        %v2946 = vpop.permute.xlu0 %2945
        %vm2949 = vcmask 195718
        %2950 = vst.msk [vmem:[#allocation2 + $0x30] sm:$0xc0] %vm2949, %v2944
        %2951 = vst.msk [vmem:[#allocation2 + $0x40] sm:$0xff] %vm2140, %v2946
        %2952 = vrot.lane.b32.xlu0 %v2284, 24
        %v2953 = vpop.permute.xlu0 %2952
        %2954 = vrot.lane.b32.xlu0 %v2735, 24
        %v2955 = vpop.permute.xlu0 %2954
        %vm2958 = vcmask 261318
        %2959 = vst.msk [vmem:[#allocation2 + $0x30] sm:$0xc0] %vm2958, %v2953
        %2960 = vst.msk [vmem:[#allocation2 + $0x40] sm:$0xff] %vm2154, %v2955
        %2961 = vrot.lane.b32.xlu0 %v2090, 32
        %v2962 = vpop.permute.xlu0 %2961
        %2963 = vrot.lane.b32.xlu0 %v2091, 32
        %v2964 = vpop.permute.xlu0 %2963
        %vm2967 = vcmask 326918
        %2968 = vst.msk [vmem:[#allocation2 + $0x30] sm:$0xc0] %vm2967, %v2962
        %2969 = vst.msk [vmem:[#allocation2 + $0x40] sm:$0xff] %vm2168, %v2964
        %2970 = vrot.lane.b32.xlu0 %v2381, 40
        %v2971 = vpop.permute.xlu0 %2970
        %2972 = vrot.lane.b32.xlu0 %v2383, 40
        %v2973 = vpop.permute.xlu0 %2972
        %vm2976 = vcmask 392518
        %2977 = vst.msk [vmem:[#allocation2 + $0x30] sm:$0xc0] %vm2976, %v2971
        %2978 = vst.msk [vmem:[#allocation2 + $0x40] sm:$0xff] %vm2183, %v2973
        %2979 = vrot.lane.b32.xlu0 %v2392, 48
        %v2980 = vpop.permute.xlu0 %2979
        %2981 = vrot.lane.b32.xlu0 %v2394, 48
        %v2982 = vpop.permute.xlu0 %2981
        %vm2985 = vcmask 458118
        %2986 = vst.msk [vmem:[#allocation2 + $0x30] sm:$0xc0] %vm2985, %v2980
        %2987 = vst.msk [vmem:[#allocation2 + $0x40] sm:$0xff] %vm2200, %v2982
        %2988 = vrot.lane.b32.xlu0 %v2403, 56
        %v2989 = vpop.permute.xlu0 %2988
        %2990 = vrot.lane.b32.xlu0 %v2405, 56
        %v2991 = vpop.permute.xlu0 %2990
        %vm2994 = vcmask 523718
        %2995 = vst.msk [vmem:[#allocation2 + $0x30] sm:$0xc0] %vm2994, %v2989
        %2996 = vst.msk [vmem:[#allocation2 + $0x40] sm:$0xff] %vm2210, %v2991
        %2997 = vrot.lane.b32.xlu0 %v2786, 64
        %v2998 = vpop.permute.xlu0 %2997
        %2999 = vrot.lane.b32.xlu0 %v2787, 64
        %v3000 = vpop.permute.xlu0 %2999
        %vm3003 = vcmask 589318
        %3004 = vst.msk [vmem:[#allocation2 + $0x30] sm:$0xc0] %vm3003, %v2998
        %3005 = vst.msk [vmem:[#allocation2 + $0x40] sm:$0xff] %vm2223, %v3000
        %3006 = vrot.lane.b32.xlu0 %v2577, 72
        %v3007 = vpop.permute.xlu0 %3006
        %3008 = vrot.lane.b32.xlu0 %v2579, 72
        %v3009 = vpop.permute.xlu0 %3008
        %vm3012 = vcmask 654918
        %3013 = vst.msk [vmem:[#allocation2 + $0x30] sm:$0xc0] %vm3012, %v3007
        %3014 = vst.msk [vmem:[#allocation2 + $0x40] sm:$0xff] %vm2236, %v3009
        %3015 = vrot.lane.b32.xlu0 %v2093, 80
        %v3016 = vpop.permute.xlu0 %3015
        %3017 = vrot.lane.b32.xlu0 %v2094, 80
        %v3018 = vpop.permute.xlu0 %3017
        %vm3021 = vcmask 720518
        %3022 = vst.msk [vmem:[#allocation2 + $0x30] sm:$0xc0] %vm3021, %v3016
        %3023 = vst.msk [vmem:[#allocation2 + $0x40] sm:$0xff] %vm2250, %v3018
        %v3024 = vrot.slane %v2094, 1
        %v3025 = vsel %vm2116, %v2371, %v3024
        %v3026 = vsel %vm2116, %v3024, %v2883
        %3027 = vrot.lane.b32.xlu0 %v3025, 88
        %v3028 = vpop.permute.xlu0 %3027
        %3029 = vrot.lane.b32.xlu0 %v3026, 88
        %v3030 = vpop.permute.xlu0 %3029
        %vm3033 = vcmask 786118
        %3034 = vst.msk [vmem:[#allocation2 + $0x30] sm:$0xc0] %vm3033, %v3028
        %3035 = vst.msk [vmem:[#allocation2 + $0x40] sm:$0xff] %vm2264, %v3030
        %v3036 = vsel %vm2130, %v2828, %v2894
        %3037 = vrot.lane.b32.xlu0 %v2828, 96
        %v3038 = vpop.permute.xlu0 %3037
        %3039 = vrot.lane.b32.xlu0 %v3036, 96
        %v3040 = vpop.permute.xlu0 %3039
        %vm3043 = vcmask 851718
        %3044 = vst.msk [vmem:[#allocation2 + $0x30] sm:$0xc0] %vm3043, %v3038
        %3045 = vst.msk [vmem:[#allocation2 + $0x40] sm:$0xff] %vm2277, %v3040
        %3046 = vrot.lane.b32.xlu0 %v2840, 104
        %v3047 = vpop.permute.xlu0 %3046
        %3048 = vrot.lane.b32.xlu0 %v2843, 104
        %v3049 = vpop.permute.xlu0 %3048
        %vm3052 = vcmask 917318
        %3053 = vst.msk [vmem:[#allocation2 + $0x30] sm:$0xc0] %vm3052, %v3047
        %3054 = vst.msk [vmem:[#allocation2 + $0x40] sm:$0xff] %vm2292, %v3049
        %3055 = vrot.lane.b32.xlu0 %v2622, 112
        %v3056 = vpop.permute.xlu0 %3055
        %3057 = vrot.lane.b32.xlu0 %v2849, 112
        %v3058 = vpop.permute.xlu0 %3057
        %vm3061 = vcmask 982918
        %3062 = vst.msk [vmem:[#allocation2 + $0x30] sm:$0xc0] %vm3061, %v3056
        %3063 = vst.msk [vmem:[#allocation2 + $0x40] sm:$0xff] %vm2302, %v3058
        %v3064 = vrot.slane %v2096, 6
        %v3065 = vsel %vm2173, %v2647, %v3064
        %3066 = vrot.lane.b32.xlu0 %v2647, 120
        %v3067 = vpop.permute.xlu0 %3066
        %3068 = vrot.lane.b32.xlu0 %v3065, 120
        %v3069 = vpop.permute.xlu0 %3068
        %vm3072 = vcmask 1048518
        %3073 = vst.msk [vmem:[#allocation2 + $0x30] sm:$0xc0] %vm3072, %v3067
        %3074 = vst.msk [vmem:[#allocation2 + $0x40] sm:$0xff] %vm2316, %v3069
        %v3075 = vrot.slane %v2096, 7
        %v3076 = vsel %vm2188, %v2658, %v3075
        %3079 = vst.msk [vmem:[#allocation2 + $0x38] sm:$0xc0] %vm2931, %v2658
        %3080 = vst.msk [vmem:[#allocation2 + $0x48] sm:$0xff] %vm2110, %v3076
        %3081 = vrot.lane.b32.xlu0 %v2095, 8
        %v3082 = vpop.permute.xlu0 %3081
        %3083 = vrot.lane.b32.xlu0 %v2096, 8
        %v3084 = vpop.permute.xlu0 %3083
        %3087 = vst.msk [vmem:[#allocation2 + $0x38] sm:$0xc0] %vm2940, %v3082
        %3088 = vst.msk [vmem:[#allocation2 + $0x48] sm:$0xff] %vm2126, %v3084
        %v3089 = vrot.slane %v2097, 1
        %v3090 = vsel %vm2116, %v2884, %v3089
        %3091 = vrot.lane.b32.xlu0 %v2885, 16
        %v3092 = vpop.permute.xlu0 %3091
        %3093 = vrot.lane.b32.xlu0 %v3090, 16
        %v3094 = vpop.permute.xlu0 %3093
        %3097 = vst.msk [vmem:[#allocation2 + $0x38] sm:$0xc0] %vm2949, %v3092
        %3098 = vst.msk [vmem:[#allocation2 + $0x48] sm:$0xff] %vm2140, %v3094
        %v3099 = vrot.slane %v2097, 2
        %v3100 = vsel %vm2130, %v2895, %v3099
        %3101 = vrot.lane.b32.xlu0 %v2895, 24
        %v3102 = vpop.permute.xlu0 %3101
        %3103 = vrot.lane.b32.xlu0 %v3100, 24
        %v3104 = vpop.permute.xlu0 %3103
        %3107 = vst.msk [vmem:[#allocation2 + $0x38] sm:$0xc0] %vm2958, %v3102
        %3108 = vst.msk [vmem:[#allocation2 + $0x48] sm:$0xff] %vm2154, %v3104
        %v3110 = vrot.slane %v2098, 4
        %v3111 = vsel %vm2158, %v2919, %v3110
        %3112 = vrot.lane.b32.xlu0 %v2919, 32
        %v3113 = vpop.permute.xlu0 %3112
        %3114 = vrot.lane.b32.xlu0 %v3111, 32
        %v3115 = vpop.permute.xlu0 %3114
        %3118 = vst.msk [vmem:[#allocation2 + $0x38] sm:$0xc0] %vm2967, %v3113
        %3119 = vst.msk [vmem:[#allocation2 + $0x48] sm:$0xff] %vm2168, %v3115
        %v3120 = vrot.slane %v2097, 5
        %v3121 = vrot.slane %v2098, 5
        %v3122 = vsel %vm2254, %v3120, %v3121
        %3123 = vrot.lane.b32.xlu0 %v3120, 40
        %v3124 = vpop.permute.xlu0 %3123
        %3125 = vrot.lane.b32.xlu0 %v3122, 40
        %v3126 = vpop.permute.xlu0 %3125
        %3129 = vst.msk [vmem:[#allocation2 + $0x38] sm:$0xc0] %vm2976, %v3124
        %3130 = vst.msk [vmem:[#allocation2 + $0x48] sm:$0xff] %vm2183, %v3126
        %v3131 = vrot.slane %v2097, 6
        %v3132 = vrot.slane %v2098, 6
        %v3133 = vsel %vm2173, %v3131, %v3132
        %3134 = vrot.lane.b32.xlu0 %v3131, 48
        %v3135 = vpop.permute.xlu0 %3134
        %3136 = vrot.lane.b32.xlu0 %v3133, 48
        %v3137 = vpop.permute.xlu0 %3136
        %3140 = vst.msk [vmem:[#allocation2 + $0x38] sm:$0xc0] %vm2985, %v3135
        %3141 = vst.msk [vmem:[#allocation2 + $0x48] sm:$0xff] %vm2200, %v3137
        %v3142 = vrot.slane %v2097, 7
        %v3143 = vrot.slane %v2098, 7
        %v3144 = vsel %vm2188, %v3142, %v3143
        %3145 = vrot.lane.b32.xlu0 %v3142, 56
        %v3146 = vpop.permute.xlu0 %3145
        %3147 = vrot.lane.b32.xlu0 %v3144, 56
        %v3148 = vpop.permute.xlu0 %3147
        %3151 = vst.msk [vmem:[#allocation2 + $0x38] sm:$0xc0] %vm2994, %v3146
        %3152 = vst.msk [vmem:[#allocation2 + $0x48] sm:$0xff] %vm2210, %v3148
        %3153 = vrot.lane.b32.xlu0 %v2097, 64
        %v3154 = vpop.permute.xlu0 %3153
        %3155 = vrot.lane.b32.xlu0 %v2098, 64
        %v3156 = vpop.permute.xlu0 %3155
        %3159 = vst.msk [vmem:[#allocation2 + $0x38] sm:$0xc0] %vm3003, %v3154
        %3160 = vst.msk [vmem:[#allocation2 + $0x48] sm:$0xff] %vm2223, %v3156
        %3161 = vst.msk [vmem:[#allocation2 + $0x50] sm:$0xff] %vm2110, %v2092
        %3162 = vst.msk [vmem:[#allocation2 + $0x60] sm:$0x3] %vm2112, %v2093
        %3163 = vrot.lane.b32.xlu0 %v2372, 8
        %v3164 = vpop.permute.xlu0 %3163
        %3165 = vrot.lane.b32.xlu0 %v2371, 8
        %v3166 = vpop.permute.xlu0 %3165
        %3169 = vst.msk [vmem:[#allocation2 + $0x50] sm:$0xff] %vm2126, %v3164
        %3170 = vst.msk [vmem:[#allocation2 + $0x60] sm:$0x3] %vm2128, %v3166
        %3171 = vrot.lane.b32.xlu0 %v2383, 16
        %v3172 = vpop.permute.xlu0 %3171
        %3173 = vrot.lane.b32.xlu0 %v2382, 16
        %v3174 = vpop.permute.xlu0 %3173
        %3177 = vst.msk [vmem:[#allocation2 + $0x50] sm:$0xff] %vm2140, %v3172
        %3178 = vst.msk [vmem:[#allocation2 + $0x60] sm:$0x3] %vm2142, %v3174
        %3179 = vrot.lane.b32.xlu0 %v2394, 24
        %v3180 = vpop.permute.xlu0 %3179
        %3181 = vrot.lane.b32.xlu0 %v2393, 24
        %v3182 = vpop.permute.xlu0 %3181
        %3185 = vst.msk [vmem:[#allocation2 + $0x50] sm:$0xff] %vm2154, %v3180
        %3186 = vst.msk [vmem:[#allocation2 + $0x60] sm:$0x3] %vm2156, %v3182
        %3187 = vrot.lane.b32.xlu0 %v2405, 32
        %v3188 = vpop.permute.xlu0 %3187
        %3189 = vrot.lane.b32.xlu0 %v2404, 32
        %v3190 = vpop.permute.xlu0 %3189
        %3193 = vst.msk [vmem:[#allocation2 + $0x50] sm:$0xff] %vm2168, %v3188
        %3194 = vst.msk [vmem:[#allocation2 + $0x60] sm:$0x3] %vm2170, %v3190
        %v3195 = vsel %vm2173, %v2578, %v2646
        %3196 = vrot.lane.b32.xlu0 %v3195, 40
        %v3197 = vpop.permute.xlu0 %3196
        %3198 = vrot.lane.b32.xlu0 %v2646, 40
        %v3199 = vpop.permute.xlu0 %3198
        %3202 = vst.msk [vmem:[#allocation2 + $0x50] sm:$0xff] %vm2183, %v3197
        %3203 = vst.msk [vmem:[#allocation2 + $0x60] sm:$0x3] %vm2185, %v3199
        %v3204 = vsel %vm2188, %v2591, %v2657
        %3205 = vrot.lane.b32.xlu0 %v3204, 48
        %v3206 = vpop.permute.xlu0 %3205
        %3207 = vrot.lane.b32.xlu0 %v2659, 48
        %v3208 = vpop.permute.xlu0 %3207
        %3211 = vst.msk [vmem:[#allocation2 + $0x50] sm:$0xff] %vm2200, %v3206
        %3212 = vst.msk [vmem:[#allocation2 + $0x60] sm:$0x3] %vm2202, %v3208
        %3213 = vrot.lane.b32.xlu0 %v2094, 56
        %v3214 = vpop.permute.xlu0 %3213
        %3215 = vrot.lane.b32.xlu0 %v2095, 56
        %v3216 = vpop.permute.xlu0 %3215
        %3219 = vst.msk [vmem:[#allocation2 + $0x50] sm:$0xff] %vm2210, %v3214
        %3220 = vst.msk [vmem:[#allocation2 + $0x60] sm:$0x3] %vm2212, %v3216
        %3221 = vrot.lane.b32.xlu0 %v3026, 64
        %v3222 = vpop.permute.xlu0 %3221
        %3223 = vrot.lane.b32.xlu0 %v2883, 64
        %v3224 = vpop.permute.xlu0 %3223
        %3227 = vst.msk [vmem:[#allocation2 + $0x50] sm:$0xff] %vm2223, %v3222
        %3228 = vst.msk [vmem:[#allocation2 + $0x60] sm:$0x3] %vm2225, %v3224
        %3229 = vrot.lane.b32.xlu0 %v3036, 72
        %v3230 = vpop.permute.xlu0 %3229
        %3231 = vrot.lane.b32.xlu0 %v2894, 72
        %v3232 = vpop.permute.xlu0 %3231
        %3235 = vst.msk [vmem:[#allocation2 + $0x50] sm:$0xff] %vm2236, %v3230
        %3236 = vst.msk [vmem:[#allocation2 + $0x60] sm:$0x3] %vm2238, %v3232
        %v3237 = vsel %vm2158, %v2848, %v2918
        %3238 = vrot.lane.b32.xlu0 %v3237, 80
        %v3239 = vpop.permute.xlu0 %3238
        %3240 = vrot.lane.b32.xlu0 %v2918, 80
        %v3241 = vpop.permute.xlu0 %3240
        %3244 = vst.msk [vmem:[#allocation2 + $0x50] sm:$0xff] %vm2250, %v3239
        %3245 = vst.msk [vmem:[#allocation2 + $0x60] sm:$0x3] %vm2252, %v3241
        %v3246 = vrot.slane %v2096, 5
        %v3247 = vsel %vm2254, %v2636, %v3246
        %3248 = vrot.lane.b32.xlu0 %v3247, 88
        %v3249 = vpop.permute.xlu0 %3248
        %3250 = vrot.lane.b32.xlu0 %v3246, 88
        %v3251 = vpop.permute.xlu0 %3250
        %3254 = vst.msk [vmem:[#allocation2 + $0x50] sm:$0xff] %vm2264, %v3249
        %3255 = vst.msk [vmem:[#allocation2 + $0x60] sm:$0x3] %vm2266, %v3251
        %3256 = vrot.lane.b32.xlu0 %v3065, 96
        %v3257 = vpop.permute.xlu0 %3256
        %3258 = vrot.lane.b32.xlu0 %v3064, 96
        %v3259 = vpop.permute.xlu0 %3258
        %3262 = vst.msk [vmem:[#allocation2 + $0x50] sm:$0xff] %vm2277, %v3257
        %3263 = vst.msk [vmem:[#allocation2 + $0x60] sm:$0x3] %vm2279, %v3259
        %v3264 = vsel %vm2188, %v3075, %v3142
        %3265 = vrot.lane.b32.xlu0 %v3076, 104
        %v3266 = vpop.permute.xlu0 %3265
        %3267 = vrot.lane.b32.xlu0 %v3264, 104
        %v3268 = vpop.permute.xlu0 %3267
        %3271 = vst.msk [vmem:[#allocation2 + $0x50] sm:$0xff] %vm2292, %v3266
        %3272 = vst.msk [vmem:[#allocation2 + $0x60] sm:$0x3] %vm2294, %v3268
        %3273 = vrot.lane.b32.xlu0 %v2096, 112
        %v3274 = vpop.permute.xlu0 %3273
        %3275 = vrot.lane.b32.xlu0 %v2097, 112
        %v3276 = vpop.permute.xlu0 %3275
        %3279 = vst.msk [vmem:[#allocation2 + $0x50] sm:$0xff] %vm2302, %v3274
        %3280 = vst.msk [vmem:[#allocation2 + $0x60] sm:$0x3] %vm2304, %v3276
        %v3281 = vrot.slane %v2098, 2
        %v3282 = vsel %vm2130, %v3099, %v3281
        %3283 = vrot.lane.b32.xlu0 %v3282, 120
        %v3284 = vpop.permute.xlu0 %3283
        %3285 = vrot.lane.b32.xlu0 %v3281, 120
        %v3286 = vpop.permute.xlu0 %3285
        %3289 = vst.msk [vmem:[#allocation2 + $0x50] sm:$0xff] %vm2316, %v3284
        %3290 = vst.msk [vmem:[#allocation2 + $0x60] sm:$0x3] %vm2318, %v3286
        %v3291 = vrot.slane %v2098, 3
        %v3292 = vsel %vm2144, %v2908, %v3291
        %3295 = vst.msk [vmem:[#allocation2 + $0x58] sm:$0xff] %vm2110, %v3292
        %3296 = vst.msk [vmem:[#allocation2 + $0x68] sm:$0x3] %vm2112, %v3291
        %3297 = vrot.lane.b32.xlu0 %v3111, 8
        %v3298 = vpop.permute.xlu0 %3297
        %3299 = vrot.lane.b32.xlu0 %v3110, 8
        %v3300 = vpop.permute.xlu0 %3299
        %3303 = vst.msk [vmem:[#allocation2 + $0x58] sm:$0xff] %vm2126, %v3298
        %3304 = vst.msk [vmem:[#allocation2 + $0x68] sm:$0x3] %vm2128, %v3300
        %3305 = vrot.lane.b32.xlu0 %v3122, 16
        %v3306 = vpop.permute.xlu0 %3305
        %3307 = vrot.lane.b32.xlu0 %v3121, 16
        %v3308 = vpop.permute.xlu0 %3307
        %3311 = vst.msk [vmem:[#allocation2 + $0x58] sm:$0xff] %vm2140, %v3306
        %3312 = vst.msk [vmem:[#allocation2 + $0x68] sm:$0x3] %vm2142, %v3308
        %3313 = vrot.lane.b32.xlu0 %v3133, 24
        %v3314 = vpop.permute.xlu0 %3313
        %3315 = vrot.lane.b32.xlu0 %v3132, 24
        %v3316 = vpop.permute.xlu0 %3315
        %3319 = vst.msk [vmem:[#allocation2 + $0x58] sm:$0xff] %vm2154, %v3314
        %3320 = vst.msk [vmem:[#allocation2 + $0x68] sm:$0x3] %vm2156, %v3316
        %3323 = vrot.lane.b32.xlu0 %v2099, 32
        %v3324 = vpop.permute.xlu0 %3323
        %3325 = vrot.lane.b32.xlu0 %v2100, 32
        %v3326 = vpop.permute.xlu0 %3325
        %3329 = vst.msk [vmem:[#allocation2 + $0x58] sm:$0xff] %vm2168, %v3324
        %3330 = vst.msk [vmem:[#allocation2 + $0x68] sm:$0x3] %vm2170, %v3326
        %v3331 = vrot.slane %v2099, 1
        %v3332 = vrot.slane %v2100, 1
        %v3333 = vsel %vm2116, %v3331, %v3332
        %3334 = vrot.lane.b32.xlu0 %v3333, 40
        %v3335 = vpop.permute.xlu0 %3334
        %3336 = vrot.lane.b32.xlu0 %v3332, 40
        %v3337 = vpop.permute.xlu0 %3336
        %3340 = vst.msk [vmem:[#allocation2 + $0x58] sm:$0xff] %vm2183, %v3335
        %3341 = vst.msk [vmem:[#allocation2 + $0x68] sm:$0x3] %vm2185, %v3337
        %v3342 = vrot.slane %v2099, 2
        %v3343 = vrot.slane %v2100, 2
        %v3344 = vsel %vm2130, %v3342, %v3343
        %3345 = vrot.lane.b32.xlu0 %v3344, 48
        %v3346 = vpop.permute.xlu0 %3345
        %3347 = vrot.lane.b32.xlu0 %v3343, 48
        %v3348 = vpop.permute.xlu0 %3347
        %3351 = vst.msk [vmem:[#allocation2 + $0x58] sm:$0xff] %vm2200, %v3346
        %3352 = vst.msk [vmem:[#allocation2 + $0x68] sm:$0x3] %vm2202, %v3348
        %v3353 = vrot.slane %v2099, 3
        %v3354 = vrot.slane %v2100, 3
        %v3355 = vsel %vm2144, %v3353, %v3354
        %3356 = vrot.lane.b32.xlu0 %v3355, 56
        %v3357 = vpop.permute.xlu0 %3356
        %3358 = vrot.lane.b32.xlu0 %v3354, 56
        %v3359 = vpop.permute.xlu0 %3358
        %3362 = vst.msk [vmem:[#allocation2 + $0x58] sm:$0xff] %vm2210, %v3357
        %3363 = vst.msk [vmem:[#allocation2 + $0x68] sm:$0x3] %vm2212, %v3359
        %v3364 = vrot.slane %v2099, 4
        %v3365 = vrot.slane %v2100, 4
        %v3366 = vsel %vm2158, %v3364, %v3365
        %3367 = vrot.lane.b32.xlu0 %v3366, 64
        %v3368 = vpop.permute.xlu0 %3367
        %3369 = vrot.lane.b32.xlu0 %v3365, 64
        %v3370 = vpop.permute.xlu0 %3369
        %3373 = vst.msk [vmem:[#allocation2 + $0x58] sm:$0xff] %vm2223, %v3368
        %3374 = vst.msk [vmem:[#allocation2 + $0x68] sm:$0x3] %vm2225, %v3370
        %3377 = vst.msk [vmem:[#allocation2 + $0x60] sm:$0xfc] %vm2418, %v2623
        %3378 = vst.msk [vmem:[#allocation2 + $0x70] sm:$0xf] %vm2420, %v2622
        %3379 = vrot.lane.b32.xlu0 %v2635, 8
        %v3380 = vpop.permute.xlu0 %3379
        %3381 = vrot.lane.b32.xlu0 %v2637, 8
        %v3382 = vpop.permute.xlu0 %3381
        %3385 = vst.msk [vmem:[#allocation2 + $0x60] sm:$0xfc] %vm2432, %v3380
        %3386 = vst.msk [vmem:[#allocation2 + $0x70] sm:$0xf] %vm2434, %v3382
        %3387 = vrot.lane.b32.xlu0 %v2646, 16
        %v3388 = vpop.permute.xlu0 %3387
        %3389 = vrot.lane.b32.xlu0 %v2648, 16
        %v3390 = vpop.permute.xlu0 %3389
        %3393 = vst.msk [vmem:[#allocation2 + $0x60] sm:$0xfc] %vm2443, %v3388
        %3394 = vst.msk [vmem:[#allocation2 + $0x70] sm:$0xf] %vm2445, %v3390
        %3395 = vrot.lane.b32.xlu0 %v2657, 24
        %v3396 = vpop.permute.xlu0 %3395
        %3397 = vrot.lane.b32.xlu0 %v2659, 24
        %v3398 = vpop.permute.xlu0 %3397
        %3401 = vst.msk [vmem:[#allocation2 + $0x60] sm:$0xfc] %vm2453, %v3396
        %3402 = vst.msk [vmem:[#allocation2 + $0x70] sm:$0xf] %vm2455, %v3398
        %3403 = vrot.lane.b32.xlu0 %v2094, 32
        %v3404 = vpop.permute.xlu0 %3403
        %3406 = vst.msk [vmem:[#allocation2 + $0x60] sm:$0xfc] %vm2463, %v3404
        %3407 = vst.msk [vmem:[#allocation2 + $0x70] sm:$0xf] %vm2465, %v2876
        %3408 = vrot.lane.b32.xlu0 %v2896, 40
        %v3409 = vpop.permute.xlu0 %3408
        %3410 = vrot.lane.b32.xlu0 %v2895, 40
        %v3411 = vpop.permute.xlu0 %3410
        %3414 = vst.msk [vmem:[#allocation2 + $0x60] sm:$0xfc] %vm2475, %v3409
        %3415 = vst.msk [vmem:[#allocation2 + $0x70] sm:$0xf] %vm2477, %v3411
        %3416 = vrot.lane.b32.xlu0 %v2907, 48
        %v3417 = vpop.permute.xlu0 %3416
        %3418 = vrot.lane.b32.xlu0 %v2906, 48
        %v3419 = vpop.permute.xlu0 %3418
        %3422 = vst.msk [vmem:[#allocation2 + $0x60] sm:$0xfc] %vm2488, %v3417
        %3423 = vst.msk [vmem:[#allocation2 + $0x70] sm:$0xf] %vm2490, %v3419
        %3424 = vrot.lane.b32.xlu0 %v3237, 56
        %v3425 = vpop.permute.xlu0 %3424
        %3426 = vrot.lane.b32.xlu0 %v2918, 56
        %v3427 = vpop.permute.xlu0 %3426
        %3430 = vst.msk [vmem:[#allocation2 + $0x60] sm:$0xfc] %vm2498, %v3425
        %3431 = vst.msk [vmem:[#allocation2 + $0x70] sm:$0xf] %vm2500, %v3427
        %v3432 = vsel %vm2254, %v3246, %v3120
        %3433 = vrot.lane.b32.xlu0 %v3247, 64
        %v3434 = vpop.permute.xlu0 %3433
        %3435 = vrot.lane.b32.xlu0 %v3432, 64
        %v3436 = vpop.permute.xlu0 %3435
        %3439 = vst.msk [vmem:[#allocation2 + $0x60] sm:$0xfc] %vm2509, %v3434
        %3440 = vst.msk [vmem:[#allocation2 + $0x70] sm:$0xf] %vm2511, %v3436
        %v3441 = vsel %vm2173, %v3064, %v3131
        %3442 = vrot.lane.b32.xlu0 %v3064, 72
        %v3443 = vpop.permute.xlu0 %3442
        %3444 = vrot.lane.b32.xlu0 %v3441, 72
        %v3445 = vpop.permute.xlu0 %3444
        %3448 = vst.msk [vmem:[#allocation2 + $0x60] sm:$0xfc] %vm2520, %v3443
        %3449 = vst.msk [vmem:[#allocation2 + $0x70] sm:$0xf] %vm2522, %v3445
        %3450 = vrot.lane.b32.xlu0 %v2097, 80
        %v3451 = vpop.permute.xlu0 %3450
        %3452 = vrot.lane.b32.xlu0 %v2098, 80
        %v3453 = vpop.permute.xlu0 %3452
        %3456 = vst.msk [vmem:[#allocation2 + $0x60] sm:$0xfc] %vm2530, %v3451
        %3457 = vst.msk [vmem:[#allocation2 + $0x70] sm:$0xf] %vm2532, %v3453
        %v3458 = vrot.slane %v2098, 1
        %v3459 = vsel %vm2116, %v3089, %v3458
        %3460 = vrot.lane.b32.xlu0 %v3459, 88
        %v3461 = vpop.permute.xlu0 %3460
        %3462 = vrot.lane.b32.xlu0 %v3458, 88
        %v3463 = vpop.permute.xlu0 %3462
        %3466 = vst.msk [vmem:[#allocation2 + $0x60] sm:$0xfc] %vm2543, %v3461
        %3467 = vst.msk [vmem:[#allocation2 + $0x70] sm:$0xf] %vm2545, %v3463
        %3468 = vrot.lane.b32.xlu0 %v3282, 96
        %v3469 = vpop.permute.xlu0 %3468
        %3470 = vrot.lane.b32.xlu0 %v3281, 96
        %v3471 = vpop.permute.xlu0 %3470
        %3474 = vst.msk [vmem:[#allocation2 + $0x60] sm:$0xfc] %vm2553, %v3469
        %3475 = vst.msk [vmem:[#allocation2 + $0x70] sm:$0xf] %vm2555, %v3471
        %3476 = vrot.lane.b32.xlu0 %v3292, 104
        %v3477 = vpop.permute.xlu0 %3476
        %3478 = vrot.lane.b32.xlu0 %v3291, 104
        %v3479 = vpop.permute.xlu0 %3478
        %3482 = vst.msk [vmem:[#allocation2 + $0x60] sm:$0xfc] %vm2563, %v3477
        %3483 = vst.msk [vmem:[#allocation2 + $0x70] sm:$0xf] %vm2565, %v3479
        %3484 = vrot.lane.b32.xlu0 %v3111, 112
        %v3485 = vpop.permute.xlu0 %3484
        %3486 = vrot.lane.b32.xlu0 %v3110, 112
        %v3487 = vpop.permute.xlu0 %3486
        %3490 = vst.msk [vmem:[#allocation2 + $0x60] sm:$0xfc] %vm2573, %v3485
        %3491 = vst.msk [vmem:[#allocation2 + $0x70] sm:$0xf] %vm2575, %v3487
        %v3492 = vrot.slane %v2099, 6
        %v3493 = vrot.slane %v2100, 6
        %v3494 = vsel %vm2173, %v3492, %v3493
        %3495 = vrot.lane.b32.xlu0 %v3492, 120
        %v3496 = vpop.permute.xlu0 %3495
        %3497 = vrot.lane.b32.xlu0 %v3494, 120
        %v3498 = vpop.permute.xlu0 %3497
        %3501 = vst.msk [vmem:[#allocation2 + $0x60] sm:$0xfc] %vm2586, %v3496
        %3502 = vst.msk [vmem:[#allocation2 + $0x70] sm:$0xf] %vm2588, %v3498
        %v3503 = vrot.slane %v2099, 7
        %v3504 = vrot.slane %v2100, 7
        %v3505 = vsel %vm2188, %v3503, %v3504
        %3508 = vst.msk [vmem:[#allocation2 + $0x68] sm:$0xfc] %vm2418, %v3503
        %3509 = vst.msk [vmem:[#allocation2 + $0x78] sm:$0xf] %vm2420, %v3505
        %3510 = vrot.lane.b32.xlu0 %v2099, 8
        %v3511 = vpop.permute.xlu0 %3510
        %3512 = vrot.lane.b32.xlu0 %v2100, 8
        %v3513 = vpop.permute.xlu0 %3512
        %3516 = vst.msk [vmem:[#allocation2 + $0x68] sm:$0xfc] %vm2432, %v3511
        %3517 = vst.msk [vmem:[#allocation2 + $0x78] sm:$0xf] %vm2434, %v3513
        %3518 = vrot.lane.b32.xlu0 %v3333, 16
        %v3519 = vpop.permute.xlu0 %3518
        %3520 = vrot.lane.b32.xlu0 %v3332, 16
        %v3521 = vpop.permute.xlu0 %3520
        %3524 = vst.msk [vmem:[#allocation2 + $0x68] sm:$0xfc] %vm2443, %v3519
        %3525 = vst.msk [vmem:[#allocation2 + $0x78] sm:$0xf] %vm2445, %v3521
        %3526 = vrot.lane.b32.xlu0 %v3344, 24
        %v3527 = vpop.permute.xlu0 %3526
        %3528 = vrot.lane.b32.xlu0 %v3343, 24
        %v3529 = vpop.permute.xlu0 %3528
        %3532 = vst.msk [vmem:[#allocation2 + $0x68] sm:$0xfc] %vm2453, %v3527
        %3533 = vst.msk [vmem:[#allocation2 + $0x78] sm:$0xf] %vm2455, %v3529
        %v3535 = vrot.slane %v2101, 4
        %v3536 = vsel %vm2158, %v3365, %v3535
        %3537 = vrot.lane.b32.xlu0 %v3536, 32
        %v3538 = vpop.permute.xlu0 %3537
        %3539 = vrot.lane.b32.xlu0 %v3535, 32
        %v3540 = vpop.permute.xlu0 %3539
        %3543 = vst.msk [vmem:[#allocation2 + $0x68] sm:$0xfc] %vm2463, %v3538
        %3544 = vst.msk [vmem:[#allocation2 + $0x78] sm:$0xf] %vm2465, %v3540
        %v3546 = vrot.slane %v2100, 5
        %v3547 = vrot.slane %v2101, 5
        %v3548 = vsel %vm2254, %v3546, %v3547
        %v3549 = vrot.slane %v2102, 5
        %v3550 = vsel %vm2254, %v3547, %v3549
        %3551 = vrot.lane.b32.xlu0 %v3548, 40
        %v3552 = vpop.permute.xlu0 %3551
        %3553 = vrot.lane.b32.xlu0 %v3550, 40
        %v3554 = vpop.permute.xlu0 %3553
        %3557 = vst.msk [vmem:[#allocation2 + $0x68] sm:$0xfc] %vm2475, %v3552
        %3558 = vst.msk [vmem:[#allocation2 + $0x78] sm:$0xf] %vm2477, %v3554
        %v3559 = vrot.slane %v2101, 6
        %v3560 = vrot.slane %v2102, 6
        %v3561 = vsel %vm2173, %v3559, %v3560
        %3562 = vrot.lane.b32.xlu0 %v3559, 48
        %v3563 = vpop.permute.xlu0 %3562
        %3564 = vrot.lane.b32.xlu0 %v3561, 48
        %v3565 = vpop.permute.xlu0 %3564
        %3568 = vst.msk [vmem:[#allocation2 + $0x68] sm:$0xfc] %vm2488, %v3563
        %3569 = vst.msk [vmem:[#allocation2 + $0x78] sm:$0xf] %vm2490, %v3565
        %v3570 = vrot.slane %v2101, 7
        %v3571 = vrot.slane %v2102, 7
        %v3572 = vsel %vm2188, %v3570, %v3571
        %3573 = vrot.lane.b32.xlu0 %v3570, 56
        %v3574 = vpop.permute.xlu0 %3573
        %3575 = vrot.lane.b32.xlu0 %v3572, 56
        %v3576 = vpop.permute.xlu0 %3575
        %3579 = vst.msk [vmem:[#allocation2 + $0x68] sm:$0xfc] %vm2498, %v3574
        %3580 = vst.msk [vmem:[#allocation2 + $0x78] sm:$0xf] %vm2500, %v3576
        %3581 = vrot.lane.b32.xlu0 %v2101, 64
        %v3582 = vpop.permute.xlu0 %3581
        %3583 = vrot.lane.b32.xlu0 %v2102, 64
        %v3584 = vpop.permute.xlu0 %3583
        %3587 = vst.msk [vmem:[#allocation2 + $0x68] sm:$0xfc] %vm2509, %v3582
        %3588 = vst.msk [vmem:[#allocation2 + $0x78] sm:$0xf] %vm2511, %v3584
        %3589 = vst.msk [vmem:[#allocation2 + $0x70] sm:$0xf0] %vm2676, %v2095
        %3590 = vst.msk [vmem:[#allocation2 + $0x80] sm:$0x3f] %vm2678, %v2096
        %3591 = vrot.lane.b32.xlu0 %v2885, 8
        %v3592 = vpop.permute.xlu0 %3591
        %3593 = vrot.lane.b32.xlu0 %v2884, 8
        %v3594 = vpop.permute.xlu0 %3593
        %3597 = vst.msk [vmem:[#allocation2 + $0x70] sm:$0xf0] %vm2688, %v3592
        %3598 = vst.msk [vmem:[#allocation2 + $0x80] sm:$0x3f] %vm2690, %v3594
        %3599 = vrot.lane.b32.xlu0 %v2896, 16
        %v3600 = vpop.permute.xlu0 %3599
        %3601 = vrot.lane.b32.xlu0 %v2895, 16
        %v3602 = vpop.permute.xlu0 %3601
        %3605 = vst.msk [vmem:[#allocation2 + $0x70] sm:$0xf0] %vm2698, %v3600
        %3606 = vst.msk [vmem:[#allocation2 + $0x80] sm:$0x3f] %vm2700, %v3602
        %3607 = vrot.lane.b32.xlu0 %v2907, 24
        %v3608 = vpop.permute.xlu0 %3607
        %3609 = vrot.lane.b32.xlu0 %v2909, 24
        %v3610 = vpop.permute.xlu0 %3609
        %3613 = vst.msk [vmem:[#allocation2 + $0x70] sm:$0xf0] %vm2709, %v3608
        %3614 = vst.msk [vmem:[#allocation2 + $0x80] sm:$0x3f] %vm2711, %v3610
        %3615 = vrot.lane.b32.xlu0 %v2918, 32
        %v3616 = vpop.permute.xlu0 %3615
        %3617 = vrot.lane.b32.xlu0 %v2920, 32
        %v3618 = vpop.permute.xlu0 %3617
        %3621 = vst.msk [vmem:[#allocation2 + $0x70] sm:$0xf0] %vm2720, %v3616
        %3622 = vst.msk [vmem:[#allocation2 + $0x80] sm:$0x3f] %vm2722, %v3618
        %3623 = vrot.lane.b32.xlu0 %v3131, 40
        %v3624 = vpop.permute.xlu0 %3623
        %3625 = vrot.lane.b32.xlu0 %v3133, 40
        %v3626 = vpop.permute.xlu0 %3625
        %3629 = vst.msk [vmem:[#allocation2 + $0x70] sm:$0xf0] %vm2730, %v3624
        %3630 = vst.msk [vmem:[#allocation2 + $0x80] sm:$0x3f] %vm2732, %v3626
        %3631 = vrot.lane.b32.xlu0 %v3142, 48
        %v3632 = vpop.permute.xlu0 %3631
        %3633 = vrot.lane.b32.xlu0 %v3144, 48
        %v3634 = vpop.permute.xlu0 %3633
        %3637 = vst.msk [vmem:[#allocation2 + $0x70] sm:$0xf0] %vm2742, %v3632
        %3638 = vst.msk [vmem:[#allocation2 + $0x80] sm:$0x3f] %vm2744, %v3634
        %3639 = vrot.lane.b32.xlu0 %v2097, 56
        %v3640 = vpop.permute.xlu0 %3639
        %3641 = vrot.lane.b32.xlu0 %v2098, 56
        %v3642 = vpop.permute.xlu0 %3641
        %3645 = vst.msk [vmem:[#allocation2 + $0x70] sm:$0xf0] %vm2752, %v3640
        %3646 = vst.msk [vmem:[#allocation2 + $0x80] sm:$0x3f] %vm2754, %v3642
        %3647 = vrot.lane.b32.xlu0 %v3459, 64
        %v3648 = vpop.permute.xlu0 %3647
        %3649 = vrot.lane.b32.xlu0 %v3458, 64
        %v3650 = vpop.permute.xlu0 %3649
        %3653 = vst.msk [vmem:[#allocation2 + $0x70] sm:$0xf0] %vm2762, %v3648
        %3654 = vst.msk [vmem:[#allocation2 + $0x80] sm:$0x3f] %vm2764, %v3650
        %3655 = vrot.lane.b32.xlu0 %v3282, 72
        %v3656 = vpop.permute.xlu0 %3655
        %3657 = vrot.lane.b32.xlu0 %v3281, 72
        %v3658 = vpop.permute.xlu0 %3657
        %3661 = vst.msk [vmem:[#allocation2 + $0x70] sm:$0xf0] %vm2772, %v3656
        %3662 = vst.msk [vmem:[#allocation2 + $0x80] sm:$0x3f] %vm2774, %v3658
        %3663 = vrot.lane.b32.xlu0 %v3364, 80
        %v3664 = vpop.permute.xlu0 %3663
        %3665 = vrot.lane.b32.xlu0 %v3366, 80
        %v3666 = vpop.permute.xlu0 %3665
        %3669 = vst.msk [vmem:[#allocation2 + $0x70] sm:$0xf0] %vm2782, %v3664
        %3670 = vst.msk [vmem:[#allocation2 + $0x80] sm:$0x3f] %vm2784, %v3666
        %v3671 = vrot.slane %v2099, 5
        %v3672 = vsel %vm2254, %v3671, %v3546
        %3673 = vrot.lane.b32.xlu0 %v3671, 88
        %v3674 = vpop.permute.xlu0 %3673
        %3675 = vrot.lane.b32.xlu0 %v3672, 88
        %v3676 = vpop.permute.xlu0 %3675
        %3679 = vst.msk [vmem:[#allocation2 + $0x70] sm:$0xf0] %vm2794, %v3674
        %3680 = vst.msk [vmem:[#allocation2 + $0x80] sm:$0x3f] %vm2796, %v3676
        %3681 = vrot.lane.b32.xlu0 %v3492, 96
        %v3682 = vpop.permute.xlu0 %3681
        %3683 = vrot.lane.b32.xlu0 %v3494, 96
        %v3684 = vpop.permute.xlu0 %3683
        %3687 = vst.msk [vmem:[#allocation2 + $0x70] sm:$0xf0] %vm2804, %v3682
        %3688 = vst.msk [vmem:[#allocation2 + $0x80] sm:$0x3f] %vm2806, %v3684
        %3689 = vrot.lane.b32.xlu0 %v3503, 104
        %v3690 = vpop.permute.xlu0 %3689
        %3691 = vrot.lane.b32.xlu0 %v3505, 104
        %v3692 = vpop.permute.xlu0 %3691
        %3695 = vst.msk [vmem:[#allocation2 + $0x70] sm:$0xf0] %vm2814, %v3690
        %3696 = vst.msk [vmem:[#allocation2 + $0x80] sm:$0x3f] %vm2816, %v3692
        %3697 = vrot.lane.b32.xlu0 %v2099, 112
        %v3698 = vpop.permute.xlu0 %3697
        %3699 = vrot.lane.b32.xlu0 %v2100, 112
        %v3700 = vpop.permute.xlu0 %3699
        %3703 = vst.msk [vmem:[#allocation2 + $0x70] sm:$0xf0] %vm2824, %v3698
        %3704 = vst.msk [vmem:[#allocation2 + $0x80] sm:$0x3f] %vm2826, %v3700
        %v3705 = vrot.slane %v2101, 2
        %v3706 = vsel %vm2130, %v3343, %v3705
        %3707 = vrot.lane.b32.xlu0 %v3706, 120
        %v3708 = vpop.permute.xlu0 %3707
        %3709 = vrot.lane.b32.xlu0 %v3705, 120
        %v3710 = vpop.permute.xlu0 %3709
        %3713 = vst.msk [vmem:[#allocation2 + $0x70] sm:$0xf0] %vm2836, %v3708
        %3714 = vst.msk [vmem:[#allocation2 + $0x80] sm:$0x3f] %vm2838, %v3710
        %v3715 = vrot.slane %v2101, 3
        %v3716 = vsel %vm2144, %v3354, %v3715
        %v3717 = vrot.slane %v2102, 3
        %v3718 = vsel %vm2144, %v3715, %v3717
        %3721 = vst.msk [vmem:[#allocation2 + $0x78] sm:$0xf0] %vm2676, %v3716
        %3722 = vst.msk [vmem:[#allocation2 + $0x88] sm:$0x3f] %vm2678, %v3718
        %v3723 = vrot.slane %v2102, 4
        %v3724 = vsel %vm2158, %v3535, %v3723
        %3725 = vrot.lane.b32.xlu0 %v3535, 8
        %v3726 = vpop.permute.xlu0 %3725
        %3727 = vrot.lane.b32.xlu0 %v3724, 8
        %v3728 = vpop.permute.xlu0 %3727
        %3731 = vst.msk [vmem:[#allocation2 + $0x78] sm:$0xf0] %vm2688, %v3726
        %3732 = vst.msk [vmem:[#allocation2 + $0x88] sm:$0x3f] %vm2690, %v3728
        %3733 = vrot.lane.b32.xlu0 %v3547, 16
        %v3734 = vpop.permute.xlu0 %3733
        %3735 = vrot.lane.b32.xlu0 %v3550, 16
        %v3736 = vpop.permute.xlu0 %3735
        %3739 = vst.msk [vmem:[#allocation2 + $0x78] sm:$0xf0] %vm2698, %v3734
        %3740 = vst.msk [vmem:[#allocation2 + $0x88] sm:$0x3f] %vm2700, %v3736
        %3741 = vrot.lane.b32.xlu0 %v3559, 24
        %v3742 = vpop.permute.xlu0 %3741
        %3743 = vrot.lane.b32.xlu0 %v3561, 24
        %v3744 = vpop.permute.xlu0 %3743
        %3747 = vst.msk [vmem:[#allocation2 + $0x78] sm:$0xf0] %vm2709, %v3742
        %3748 = vst.msk [vmem:[#allocation2 + $0x88] sm:$0x3f] %vm2711, %v3744
        %3750 = vrot.lane.b32.xlu0 %v2102, 32
        %v3751 = vpop.permute.xlu0 %3750
        %3752 = vrot.lane.b32.xlu0 %v2103, 32
        %v3753 = vpop.permute.xlu0 %3752
        %3756 = vst.msk [vmem:[#allocation2 + $0x78] sm:$0xf0] %vm2720, %v3751
        %3757 = vst.msk [vmem:[#allocation2 + $0x88] sm:$0x3f] %vm2722, %v3753
        %v3758 = vrot.slane %v2102, 1
        %v3759 = vrot.slane %v2103, 1
        %v3760 = vsel %vm2116, %v3758, %v3759
        %3761 = vrot.lane.b32.xlu0 %v3760, 40
        %v3762 = vpop.permute.xlu0 %3761
        %3763 = vrot.lane.b32.xlu0 %v3759, 40
        %v3764 = vpop.permute.xlu0 %3763
        %3767 = vst.msk [vmem:[#allocation2 + $0x78] sm:$0xf0] %vm2730, %v3762
        %3768 = vst.msk [vmem:[#allocation2 + $0x88] sm:$0x3f] %vm2732, %v3764
        %v3769 = vrot.slane %v2102, 2
        %v3770 = vrot.slane %v2103, 2
        %v3771 = vsel %vm2130, %v3769, %v3770
        %3772 = vrot.lane.b32.xlu0 %v3771, 48
        %v3773 = vpop.permute.xlu0 %3772
        %3774 = vrot.lane.b32.xlu0 %v3770, 48
        %v3775 = vpop.permute.xlu0 %3774
        %3778 = vst.msk [vmem:[#allocation2 + $0x78] sm:$0xf0] %vm2742, %v3773
        %3779 = vst.msk [vmem:[#allocation2 + $0x88] sm:$0x3f] %vm2744, %v3775
        %v3781 = vrot.slane %v2103, 3
        %v3782 = vsel %vm2144, %v3717, %v3781
        %v3783 = vrot.slane %v2104, 3
        %v3784 = vsel %vm2144, %v3781, %v3783
        %3785 = vrot.lane.b32.xlu0 %v3782, 56
        %v3786 = vpop.permute.xlu0 %3785
        %3787 = vrot.lane.b32.xlu0 %v3784, 56
        %v3788 = vpop.permute.xlu0 %3787
        %3791 = vst.msk [vmem:[#allocation2 + $0x78] sm:$0xf0] %vm2752, %v3786
        %3792 = vst.msk [vmem:[#allocation2 + $0x88] sm:$0x3f] %vm2754, %v3788
        %v3793 = vrot.slane %v2103, 4
        %v3794 = vrot.slane %v2104, 4
        %v3795 = vsel %vm2158, %v3793, %v3794
        %3796 = vrot.lane.b32.xlu0 %v3793, 64
        %v3797 = vpop.permute.xlu0 %3796
        %3798 = vrot.lane.b32.xlu0 %v3795, 64
        %v3799 = vpop.permute.xlu0 %3798
        %3802 = vst.msk [vmem:[#allocation2 + $0x78] sm:$0xf0] %vm2762, %v3797
        %3803 = vst.msk [vmem:[#allocation2 + $0x88] sm:$0x3f] %vm2764, %v3799
        %3806 = vst.msk [vmem:[#allocation2 + $0x80] sm:$0xc0] %vm2931, %v2919
        %3807 = vst.msk [vmem:[#allocation2 + $0x90] sm:$0xff] %vm2110, %v3111
        %3808 = vrot.lane.b32.xlu0 %v3120, 8
        %v3809 = vpop.permute.xlu0 %3808
        %3810 = vrot.lane.b32.xlu0 %v3122, 8
        %v3811 = vpop.permute.xlu0 %3810
        %3814 = vst.msk [vmem:[#allocation2 + $0x80] sm:$0xc0] %vm2940, %v3809
        %3815 = vst.msk [vmem:[#allocation2 + $0x90] sm:$0xff] %vm2126, %v3811
        %3816 = vrot.lane.b32.xlu0 %v3131, 16
        %v3817 = vpop.permute.xlu0 %3816
        %3818 = vrot.lane.b32.xlu0 %v3133, 16
        %v3819 = vpop.permute.xlu0 %3818
        %3822 = vst.msk [vmem:[#allocation2 + $0x80] sm:$0xc0] %vm2949, %v3817
        %3823 = vst.msk [vmem:[#allocation2 + $0x90] sm:$0xff] %vm2140, %v3819
        %3824 = vrot.lane.b32.xlu0 %v3142, 24
        %v3825 = vpop.permute.xlu0 %3824
        %3826 = vrot.lane.b32.xlu0 %v3144, 24
        %v3827 = vpop.permute.xlu0 %3826
        %3830 = vst.msk [vmem:[#allocation2 + $0x80] sm:$0xc0] %vm2958, %v3825
        %3831 = vst.msk [vmem:[#allocation2 + $0x90] sm:$0xff] %vm2154, %v3827
        %3832 = vrot.lane.b32.xlu0 %v2097, 32
        %v3833 = vpop.permute.xlu0 %3832
        %3834 = vrot.lane.b32.xlu0 %v2098, 32
        %v3835 = vpop.permute.xlu0 %3834
        %3838 = vst.msk [vmem:[#allocation2 + $0x80] sm:$0xc0] %vm2967, %v3833
        %3839 = vst.msk [vmem:[#allocation2 + $0x90] sm:$0xff] %vm2168, %v3835
        %3840 = vrot.lane.b32.xlu0 %v3342, 40
        %v3841 = vpop.permute.xlu0 %3840
        %3842 = vrot.lane.b32.xlu0 %v3344, 40
        %v3843 = vpop.permute.xlu0 %3842
        %3846 = vst.msk [vmem:[#allocation2 + $0x80] sm:$0xc0] %vm2976, %v3841
        %3847 = vst.msk [vmem:[#allocation2 + $0x90] sm:$0xff] %vm2183, %v3843
        %3848 = vrot.lane.b32.xlu0 %v3353, 48
        %v3849 = vpop.permute.xlu0 %3848
        %3850 = vrot.lane.b32.xlu0 %v3355, 48
        %v3851 = vpop.permute.xlu0 %3850
        %3854 = vst.msk [vmem:[#allocation2 + $0x80] sm:$0xc0] %vm2985, %v3849
        %3855 = vst.msk [vmem:[#allocation2 + $0x90] sm:$0xff] %vm2200, %v3851
        %3856 = vrot.lane.b32.xlu0 %v3364, 56
        %v3857 = vpop.permute.xlu0 %3856
        %3858 = vrot.lane.b32.xlu0 %v3366, 56
        %v3859 = vpop.permute.xlu0 %3858
        %3862 = vst.msk [vmem:[#allocation2 + $0x80] sm:$0xc0] %vm2994, %v3857
        %3863 = vst.msk [vmem:[#allocation2 + $0x90] sm:$0xff] %vm2210, %v3859
        %3864 = vrot.lane.b32.xlu0 %v3671, 64
        %v3865 = vpop.permute.xlu0 %3864
        %3866 = vrot.lane.b32.xlu0 %v3672, 64
        %v3867 = vpop.permute.xlu0 %3866
        %3870 = vst.msk [vmem:[#allocation2 + $0x80] sm:$0xc0] %vm3003, %v3865
        %3871 = vst.msk [vmem:[#allocation2 + $0x90] sm:$0xff] %vm2223, %v3867
        %3872 = vrot.lane.b32.xlu0 %v3492, 72
        %v3873 = vpop.permute.xlu0 %3872
        %3874 = vrot.lane.b32.xlu0 %v3494, 72
        %v3875 = vpop.permute.xlu0 %3874
        %3878 = vst.msk [vmem:[#allocation2 + $0x80] sm:$0xc0] %vm3012, %v3873
        %3879 = vst.msk [vmem:[#allocation2 + $0x90] sm:$0xff] %vm2236, %v3875
        %3880 = vrot.lane.b32.xlu0 %v2100, 80
        %v3881 = vpop.permute.xlu0 %3880
        %3882 = vrot.lane.b32.xlu0 %v2101, 80
        %v3883 = vpop.permute.xlu0 %3882
        %3886 = vst.msk [vmem:[#allocation2 + $0x80] sm:$0xc0] %vm3021, %v3881
        %3887 = vst.msk [vmem:[#allocation2 + $0x90] sm:$0xff] %vm2250, %v3883
        %v3888 = vrot.slane %v2101, 1
        %v3889 = vsel %vm2116, %v3332, %v3888
        %v3890 = vsel %vm2116, %v3888, %v3758
        %3891 = vrot.lane.b32.xlu0 %v3889, 88
        %v3892 = vpop.permute.xlu0 %3891
        %3893 = vrot.lane.b32.xlu0 %v3890, 88
        %v3894 = vpop.permute.xlu0 %3893
        %3897 = vst.msk [vmem:[#allocation2 + $0x80] sm:$0xc0] %vm3033, %v3892
        %3898 = vst.msk [vmem:[#allocation2 + $0x90] sm:$0xff] %vm2264, %v3894
        %v3899 = vsel %vm2130, %v3705, %v3769
        %3900 = vrot.lane.b32.xlu0 %v3705, 96
        %v3901 = vpop.permute.xlu0 %3900
        %3902 = vrot.lane.b32.xlu0 %v3899, 96
        %v3903 = vpop.permute.xlu0 %3902
        %3906 = vst.msk [vmem:[#allocation2 + $0x80] sm:$0xc0] %vm3043, %v3901
        %3907 = vst.msk [vmem:[#allocation2 + $0x90] sm:$0xff] %vm2277, %v3903
        %3908 = vrot.lane.b32.xlu0 %v3715, 104
        %v3909 = vpop.permute.xlu0 %3908
        %3910 = vrot.lane.b32.xlu0 %v3718, 104
        %v3911 = vpop.permute.xlu0 %3910
        %3914 = vst.msk [vmem:[#allocation2 + $0x80] sm:$0xc0] %vm3052, %v3909
        %3915 = vst.msk [vmem:[#allocation2 + $0x90] sm:$0xff] %vm2292, %v3911
        %3916 = vrot.lane.b32.xlu0 %v3535, 112
        %v3917 = vpop.permute.xlu0 %3916
        %3918 = vrot.lane.b32.xlu0 %v3724, 112
        %v3919 = vpop.permute.xlu0 %3918
        %3922 = vst.msk [vmem:[#allocation2 + $0x80] sm:$0xc0] %vm3061, %v3917
        %3923 = vst.msk [vmem:[#allocation2 + $0x90] sm:$0xff] %vm2302, %v3919
        %v3924 = vrot.slane %v2103, 6
        %v3925 = vsel %vm2173, %v3560, %v3924
        %3926 = vrot.lane.b32.xlu0 %v3560, 120
        %v3927 = vpop.permute.xlu0 %3926
        %3928 = vrot.lane.b32.xlu0 %v3925, 120
        %v3929 = vpop.permute.xlu0 %3928
        %3932 = vst.msk [vmem:[#allocation2 + $0x80] sm:$0xc0] %vm3072, %v3927
        %3933 = vst.msk [vmem:[#allocation2 + $0x90] sm:$0xff] %vm2316, %v3929
        %v3934 = vrot.slane %v2103, 7
        %v3935 = vsel %vm2188, %v3571, %v3934
        %3938 = vst.msk [vmem:[#allocation2 + $0x88] sm:$0xc0] %vm2931, %v3571
        %3939 = vst.msk [vmem:[#allocation2 + $0x98] sm:$0xff] %vm2110, %v3935
        %3940 = vrot.lane.b32.xlu0 %v2102, 8
        %v3941 = vpop.permute.xlu0 %3940
        %3942 = vrot.lane.b32.xlu0 %v2103, 8
        %v3943 = vpop.permute.xlu0 %3942
        %3946 = vst.msk [vmem:[#allocation2 + $0x88] sm:$0xc0] %vm2940, %v3941
        %3947 = vst.msk [vmem:[#allocation2 + $0x98] sm:$0xff] %vm2126, %v3943
        %v3948 = vrot.slane %v2104, 1
        %v3949 = vsel %vm2116, %v3759, %v3948
        %3950 = vrot.lane.b32.xlu0 %v3760, 16
        %v3951 = vpop.permute.xlu0 %3950
        %3952 = vrot.lane.b32.xlu0 %v3949, 16
        %v3953 = vpop.permute.xlu0 %3952
        %3956 = vst.msk [vmem:[#allocation2 + $0x88] sm:$0xc0] %vm2949, %v3951
        %3957 = vst.msk [vmem:[#allocation2 + $0x98] sm:$0xff] %vm2140, %v3953
        %v3958 = vrot.slane %v2104, 2
        %v3959 = vsel %vm2130, %v3770, %v3958
        %3960 = vrot.lane.b32.xlu0 %v3770, 24
        %v3961 = vpop.permute.xlu0 %3960
        %3962 = vrot.lane.b32.xlu0 %v3959, 24
        %v3963 = vpop.permute.xlu0 %3962
        %3966 = vst.msk [vmem:[#allocation2 + $0x88] sm:$0xc0] %vm2958, %v3961
        %3967 = vst.msk [vmem:[#allocation2 + $0x98] sm:$0xff] %vm2154, %v3963
        %v3969 = vrot.slane %v2105, 4
        %v3970 = vsel %vm2158, %v3794, %v3969
        %3971 = vrot.lane.b32.xlu0 %v3794, 32
        %v3972 = vpop.permute.xlu0 %3971
        %3973 = vrot.lane.b32.xlu0 %v3970, 32
        %v3974 = vpop.permute.xlu0 %3973
        %3977 = vst.msk [vmem:[#allocation2 + $0x88] sm:$0xc0] %vm2967, %v3972
        %3978 = vst.msk [vmem:[#allocation2 + $0x98] sm:$0xff] %vm2168, %v3974
        %v3979 = vrot.slane %v2104, 5
        %v3980 = vrot.slane %v2105, 5
        %v3981 = vsel %vm2254, %v3979, %v3980
        %3982 = vrot.lane.b32.xlu0 %v3979, 40
        %v3983 = vpop.permute.xlu0 %3982
        %3984 = vrot.lane.b32.xlu0 %v3981, 40
        %v3985 = vpop.permute.xlu0 %3984
        %3988 = vst.msk [vmem:[#allocation2 + $0x88] sm:$0xc0] %vm2976, %v3983
        %3989 = vst.msk [vmem:[#allocation2 + $0x98] sm:$0xff] %vm2183, %v3985
        %v3990 = vrot.slane %v2104, 6
        %v3991 = vrot.slane %v2105, 6
        %v3992 = vsel %vm2173, %v3990, %v3991
        %3993 = vrot.lane.b32.xlu0 %v3990, 48
        %v3994 = vpop.permute.xlu0 %3993
        %3995 = vrot.lane.b32.xlu0 %v3992, 48
        %v3996 = vpop.permute.xlu0 %3995
        %3999 = vst.msk [vmem:[#allocation2 + $0x88] sm:$0xc0] %vm2985, %v3994
        %4000 = vst.msk [vmem:[#allocation2 + $0x98] sm:$0xff] %vm2200, %v3996
        %v4001 = vrot.slane %v2104, 7
        %v4002 = vrot.slane %v2105, 7
        %v4003 = vsel %vm2188, %v4001, %v4002
        %4004 = vrot.lane.b32.xlu0 %v4001, 56
        %v4005 = vpop.permute.xlu0 %4004
        %4006 = vrot.lane.b32.xlu0 %v4003, 56
        %v4007 = vpop.permute.xlu0 %4006
        %4010 = vst.msk [vmem:[#allocation2 + $0x88] sm:$0xc0] %vm2994, %v4005
        %4011 = vst.msk [vmem:[#allocation2 + $0x98] sm:$0xff] %vm2210, %v4007
        %4012 = vrot.lane.b32.xlu0 %v2104, 64
        %v4013 = vpop.permute.xlu0 %4012
        %4014 = vrot.lane.b32.xlu0 %v2105, 64
        %v4015 = vpop.permute.xlu0 %4014
        %4018 = vst.msk [vmem:[#allocation2 + $0x88] sm:$0xc0] %vm3003, %v4013
        %4019 = vst.msk [vmem:[#allocation2 + $0x98] sm:$0xff] %vm2223, %v4015
        %4020 = vst.msk [vmem:[#allocation2 + $0xa0] sm:$0xff] %vm2110, %v2099
        %4021 = vst.msk [vmem:[#allocation2 + $0xb0] sm:$0x3] %vm2112, %v2100
        %4022 = vrot.lane.b32.xlu0 %v3333, 8
        %v4023 = vpop.permute.xlu0 %4022
        %4024 = vrot.lane.b32.xlu0 %v3332, 8
        %v4025 = vpop.permute.xlu0 %4024
        %4028 = vst.msk [vmem:[#allocation2 + $0xa0] sm:$0xff] %vm2126, %v4023
        %4029 = vst.msk [vmem:[#allocation2 + $0xb0] sm:$0x3] %vm2128, %v4025
        %4030 = vrot.lane.b32.xlu0 %v3344, 16
        %v4031 = vpop.permute.xlu0 %4030
        %4032 = vrot.lane.b32.xlu0 %v3343, 16
        %v4033 = vpop.permute.xlu0 %4032
        %4036 = vst.msk [vmem:[#allocation2 + $0xa0] sm:$0xff] %vm2140, %v4031
        %4037 = vst.msk [vmem:[#allocation2 + $0xb0] sm:$0x3] %vm2142, %v4033
        %4038 = vrot.lane.b32.xlu0 %v3355, 24
        %v4039 = vpop.permute.xlu0 %4038
        %4040 = vrot.lane.b32.xlu0 %v3354, 24
        %v4041 = vpop.permute.xlu0 %4040
        %4044 = vst.msk [vmem:[#allocation2 + $0xa0] sm:$0xff] %vm2154, %v4039
        %4045 = vst.msk [vmem:[#allocation2 + $0xb0] sm:$0x3] %vm2156, %v4041
        %4046 = vrot.lane.b32.xlu0 %v3366, 32
        %v4047 = vpop.permute.xlu0 %4046
        %4048 = vrot.lane.b32.xlu0 %v3365, 32
        %v4049 = vpop.permute.xlu0 %4048
        %4052 = vst.msk [vmem:[#allocation2 + $0xa0] sm:$0xff] %vm2168, %v4047
        %4053 = vst.msk [vmem:[#allocation2 + $0xb0] sm:$0x3] %vm2170, %v4049
        %v4054 = vsel %vm2173, %v3493, %v3559
        %4055 = vrot.lane.b32.xlu0 %v4054, 40
        %v4056 = vpop.permute.xlu0 %4055
        %4057 = vrot.lane.b32.xlu0 %v3559, 40
        %v4058 = vpop.permute.xlu0 %4057
        %4061 = vst.msk [vmem:[#allocation2 + $0xa0] sm:$0xff] %vm2183, %v4056
        %4062 = vst.msk [vmem:[#allocation2 + $0xb0] sm:$0x3] %vm2185, %v4058
        %v4063 = vsel %vm2188, %v3504, %v3570
        %4064 = vrot.lane.b32.xlu0 %v4063, 48
        %v4065 = vpop.permute.xlu0 %4064
        %4066 = vrot.lane.b32.xlu0 %v3572, 48
        %v4067 = vpop.permute.xlu0 %4066
        %4070 = vst.msk [vmem:[#allocation2 + $0xa0] sm:$0xff] %vm2200, %v4065
        %4071 = vst.msk [vmem:[#allocation2 + $0xb0] sm:$0x3] %vm2202, %v4067
        %4072 = vrot.lane.b32.xlu0 %v2101, 56
        %v4073 = vpop.permute.xlu0 %4072
        %4074 = vrot.lane.b32.xlu0 %v2102, 56
        %v4075 = vpop.permute.xlu0 %4074
        %4078 = vst.msk [vmem:[#allocation2 + $0xa0] sm:$0xff] %vm2210, %v4073
        %4079 = vst.msk [vmem:[#allocation2 + $0xb0] sm:$0x3] %vm2212, %v4075
        %4080 = vrot.lane.b32.xlu0 %v3890, 64
        %v4081 = vpop.permute.xlu0 %4080
        %4082 = vrot.lane.b32.xlu0 %v3758, 64
        %v4083 = vpop.permute.xlu0 %4082
        %4086 = vst.msk [vmem:[#allocation2 + $0xa0] sm:$0xff] %vm2223, %v4081
        %4087 = vst.msk [vmem:[#allocation2 + $0xb0] sm:$0x3] %vm2225, %v4083
        %4088 = vrot.lane.b32.xlu0 %v3899, 72
        %v4089 = vpop.permute.xlu0 %4088
        %4090 = vrot.lane.b32.xlu0 %v3769, 72
        %v4091 = vpop.permute.xlu0 %4090
        %4094 = vst.msk [vmem:[#allocation2 + $0xa0] sm:$0xff] %vm2236, %v4089
        %4095 = vst.msk [vmem:[#allocation2 + $0xb0] sm:$0x3] %vm2238, %v4091
        %v4096 = vsel %vm2158, %v3723, %v3793
        %4097 = vrot.lane.b32.xlu0 %v4096, 80
        %v4098 = vpop.permute.xlu0 %4097
        %4099 = vrot.lane.b32.xlu0 %v3793, 80
        %v4100 = vpop.permute.xlu0 %4099
        %4103 = vst.msk [vmem:[#allocation2 + $0xa0] sm:$0xff] %vm2250, %v4098
        %4104 = vst.msk [vmem:[#allocation2 + $0xb0] sm:$0x3] %vm2252, %v4100
        %v4105 = vrot.slane %v2103, 5
        %v4106 = vsel %vm2254, %v3549, %v4105
        %4107 = vrot.lane.b32.xlu0 %v4106, 88
        %v4108 = vpop.permute.xlu0 %4107
        %4109 = vrot.lane.b32.xlu0 %v4105, 88
        %v4110 = vpop.permute.xlu0 %4109
        %4113 = vst.msk [vmem:[#allocation2 + $0xa0] sm:$0xff] %vm2264, %v4108
        %4114 = vst.msk [vmem:[#allocation2 + $0xb0] sm:$0x3] %vm2266, %v4110
        %4115 = vrot.lane.b32.xlu0 %v3925, 96
        %v4116 = vpop.permute.xlu0 %4115
        %4117 = vrot.lane.b32.xlu0 %v3924, 96
        %v4118 = vpop.permute.xlu0 %4117
        %4121 = vst.msk [vmem:[#allocation2 + $0xa0] sm:$0xff] %vm2277, %v4116
        %4122 = vst.msk [vmem:[#allocation2 + $0xb0] sm:$0x3] %vm2279, %v4118
        %v4123 = vsel %vm2188, %v3934, %v4001
        %4124 = vrot.lane.b32.xlu0 %v3935, 104
        %v4125 = vpop.permute.xlu0 %4124
        %4126 = vrot.lane.b32.xlu0 %v4123, 104
        %v4127 = vpop.permute.xlu0 %4126
        %4130 = vst.msk [vmem:[#allocation2 + $0xa0] sm:$0xff] %vm2292, %v4125
        %4131 = vst.msk [vmem:[#allocation2 + $0xb0] sm:$0x3] %vm2294, %v4127
        %4132 = vrot.lane.b32.xlu0 %v2103, 112
        %v4133 = vpop.permute.xlu0 %4132
        %4134 = vrot.lane.b32.xlu0 %v2104, 112
        %v4135 = vpop.permute.xlu0 %4134
        %4138 = vst.msk [vmem:[#allocation2 + $0xa0] sm:$0xff] %vm2302, %v4133
        %4139 = vst.msk [vmem:[#allocation2 + $0xb0] sm:$0x3] %vm2304, %v4135
        %v4140 = vrot.slane %v2105, 2
        %v4141 = vsel %vm2130, %v3958, %v4140
        %4142 = vrot.lane.b32.xlu0 %v4141, 120
        %v4143 = vpop.permute.xlu0 %4142
        %4144 = vrot.lane.b32.xlu0 %v4140, 120
        %v4145 = vpop.permute.xlu0 %4144
        %4148 = vst.msk [vmem:[#allocation2 + $0xa0] sm:$0xff] %vm2316, %v4143
        %4149 = vst.msk [vmem:[#allocation2 + $0xb0] sm:$0x3] %vm2318, %v4145
        %v4150 = vrot.slane %v2105, 3
        %v4151 = vsel %vm2144, %v3783, %v4150
        %4154 = vst.msk [vmem:[#allocation2 + $0xa8] sm:$0xff] %vm2110, %v4151
        %4155 = vst.msk [vmem:[#allocation2 + $0xb8] sm:$0x3] %vm2112, %v4150
        %4156 = vrot.lane.b32.xlu0 %v3970, 8
        %v4157 = vpop.permute.xlu0 %4156
        %4158 = vrot.lane.b32.xlu0 %v3969, 8
        %v4159 = vpop.permute.xlu0 %4158
        %4162 = vst.msk [vmem:[#allocation2 + $0xa8] sm:$0xff] %vm2126, %v4157
        %4163 = vst.msk [vmem:[#allocation2 + $0xb8] sm:$0x3] %vm2128, %v4159
        %4164 = vrot.lane.b32.xlu0 %v3981, 16
        %v4165 = vpop.permute.xlu0 %4164
        %4166 = vrot.lane.b32.xlu0 %v3980, 16
        %v4167 = vpop.permute.xlu0 %4166
        %4170 = vst.msk [vmem:[#allocation2 + $0xa8] sm:$0xff] %vm2140, %v4165
        %4171 = vst.msk [vmem:[#allocation2 + $0xb8] sm:$0x3] %vm2142, %v4167
        %4172 = vrot.lane.b32.xlu0 %v3992, 24
        %v4173 = vpop.permute.xlu0 %4172
        %4174 = vrot.lane.b32.xlu0 %v3991, 24
        %v4175 = vpop.permute.xlu0 %4174
        %4178 = vst.msk [vmem:[#allocation2 + $0xa8] sm:$0xff] %vm2154, %v4173
        %4179 = vst.msk [vmem:[#allocation2 + $0xb8] sm:$0x3] %vm2156, %v4175
        %4182 = vrot.lane.b32.xlu0 %v2106, 32
        %v4183 = vpop.permute.xlu0 %4182
        %4184 = vrot.lane.b32.xlu0 %v2107, 32
        %v4185 = vpop.permute.xlu0 %4184
        %4188 = vst.msk [vmem:[#allocation2 + $0xa8] sm:$0xff] %vm2168, %v4183
        %4189 = vst.msk [vmem:[#allocation2 + $0xb8] sm:$0x3] %vm2170, %v4185
        %v4190 = vrot.slane %v2106, 1
        %v4191 = vrot.slane %v2107, 1
        %v4192 = vsel %vm2116, %v4190, %v4191
        %4193 = vrot.lane.b32.xlu0 %v4192, 40
        %v4194 = vpop.permute.xlu0 %4193
        %4195 = vrot.lane.b32.xlu0 %v4191, 40
        %v4196 = vpop.permute.xlu0 %4195
        %4199 = vst.msk [vmem:[#allocation2 + $0xa8] sm:$0xff] %vm2183, %v4194
        %4200 = vst.msk [vmem:[#allocation2 + $0xb8] sm:$0x3] %vm2185, %v4196
        %v4201 = vrot.slane %v2106, 2
        %v4202 = vrot.slane %v2107, 2
        %v4203 = vsel %vm2130, %v4201, %v4202
        %4204 = vrot.lane.b32.xlu0 %v4203, 48
        %v4205 = vpop.permute.xlu0 %4204
        %4206 = vrot.lane.b32.xlu0 %v4202, 48
        %v4207 = vpop.permute.xlu0 %4206
        %4210 = vst.msk [vmem:[#allocation2 + $0xa8] sm:$0xff] %vm2200, %v4205
        %4211 = vst.msk [vmem:[#allocation2 + $0xb8] sm:$0x3] %vm2202, %v4207
        %v4212 = vrot.slane %v2106, 3
        %v4213 = vrot.slane %v2107, 3
        %v4214 = vsel %vm2144, %v4212, %v4213
        %4215 = vrot.lane.b32.xlu0 %v4214, 56
        %v4216 = vpop.permute.xlu0 %4215
        %4217 = vrot.lane.b32.xlu0 %v4213, 56
        %v4218 = vpop.permute.xlu0 %4217
        %4221 = vst.msk [vmem:[#allocation2 + $0xa8] sm:$0xff] %vm2210, %v4216
        %4222 = vst.msk [vmem:[#allocation2 + $0xb8] sm:$0x3] %vm2212, %v4218
        %v4223 = vrot.slane %v2106, 4
        %v4224 = vrot.slane %v2107, 4
        %v4225 = vsel %vm2158, %v4223, %v4224
        %4226 = vrot.lane.b32.xlu0 %v4225, 64
        %v4227 = vpop.permute.xlu0 %4226
        %4228 = vrot.lane.b32.xlu0 %v4224, 64
        %v4229 = vpop.permute.xlu0 %4228
        %4232 = vst.msk [vmem:[#allocation2 + $0xa8] sm:$0xff] %vm2223, %v4227
        %4233 = vst.msk [vmem:[#allocation2 + $0xb8] sm:$0x3] %vm2225, %v4229
        %4236 = vst.msk [vmem:[#allocation2 + $0xb0] sm:$0xfc] %vm2418, %v3536
        %4237 = vst.msk [vmem:[#allocation2 + $0xc0] sm:$0xf] %vm2420, %v3535
        %4238 = vrot.lane.b32.xlu0 %v3548, 8
        %v4239 = vpop.permute.xlu0 %4238
        %4240 = vrot.lane.b32.xlu0 %v3550, 8
        %v4241 = vpop.permute.xlu0 %4240
        %4244 = vst.msk [vmem:[#allocation2 + $0xb0] sm:$0xfc] %vm2432, %v4239
        %4245 = vst.msk [vmem:[#allocation2 + $0xc0] sm:$0xf] %vm2434, %v4241
        %4246 = vrot.lane.b32.xlu0 %v3559, 16
        %v4247 = vpop.permute.xlu0 %4246
        %4248 = vrot.lane.b32.xlu0 %v3561, 16
        %v4249 = vpop.permute.xlu0 %4248
        %4252 = vst.msk [vmem:[#allocation2 + $0xb0] sm:$0xfc] %vm2443, %v4247
        %4253 = vst.msk [vmem:[#allocation2 + $0xc0] sm:$0xf] %vm2445, %v4249
        %4254 = vrot.lane.b32.xlu0 %v3570, 24
        %v4255 = vpop.permute.xlu0 %4254
        %4256 = vrot.lane.b32.xlu0 %v3572, 24
        %v4257 = vpop.permute.xlu0 %4256
        %4260 = vst.msk [vmem:[#allocation2 + $0xb0] sm:$0xfc] %vm2453, %v4255
        %4261 = vst.msk [vmem:[#allocation2 + $0xc0] sm:$0xf] %vm2455, %v4257
        %4262 = vrot.lane.b32.xlu0 %v2101, 32
        %v4263 = vpop.permute.xlu0 %4262
        %4265 = vst.msk [vmem:[#allocation2 + $0xb0] sm:$0xfc] %vm2463, %v4263
        %4266 = vst.msk [vmem:[#allocation2 + $0xc0] sm:$0xf] %vm2465, %v3751
        %4267 = vrot.lane.b32.xlu0 %v3771, 40
        %v4268 = vpop.permute.xlu0 %4267
        %4269 = vrot.lane.b32.xlu0 %v3770, 40
        %v4270 = vpop.permute.xlu0 %4269
        %4273 = vst.msk [vmem:[#allocation2 + $0xb0] sm:$0xfc] %vm2475, %v4268
        %4274 = vst.msk [vmem:[#allocation2 + $0xc0] sm:$0xf] %vm2477, %v4270
        %4275 = vrot.lane.b32.xlu0 %v3782, 48
        %v4276 = vpop.permute.xlu0 %4275
        %4277 = vrot.lane.b32.xlu0 %v3781, 48
        %v4278 = vpop.permute.xlu0 %4277
        %4281 = vst.msk [vmem:[#allocation2 + $0xb0] sm:$0xfc] %vm2488, %v4276
        %4282 = vst.msk [vmem:[#allocation2 + $0xc0] sm:$0xf] %vm2490, %v4278
        %4283 = vrot.lane.b32.xlu0 %v4096, 56
        %v4284 = vpop.permute.xlu0 %4283
        %4285 = vrot.lane.b32.xlu0 %v3793, 56
        %v4286 = vpop.permute.xlu0 %4285
        %4289 = vst.msk [vmem:[#allocation2 + $0xb0] sm:$0xfc] %vm2498, %v4284
        %4290 = vst.msk [vmem:[#allocation2 + $0xc0] sm:$0xf] %vm2500, %v4286
        %v4291 = vsel %vm2254, %v4105, %v3979
        %4292 = vrot.lane.b32.xlu0 %v4106, 64
        %v4293 = vpop.permute.xlu0 %4292
        %4294 = vrot.lane.b32.xlu0 %v4291, 64
        %v4295 = vpop.permute.xlu0 %4294
        %4298 = vst.msk [vmem:[#allocation2 + $0xb0] sm:$0xfc] %vm2509, %v4293
        %4299 = vst.msk [vmem:[#allocation2 + $0xc0] sm:$0xf] %vm2511, %v4295
        %v4300 = vsel %vm2173, %v3924, %v3990
        %4301 = vrot.lane.b32.xlu0 %v3924, 72
        %v4302 = vpop.permute.xlu0 %4301
        %4303 = vrot.lane.b32.xlu0 %v4300, 72
        %v4304 = vpop.permute.xlu0 %4303
        %4307 = vst.msk [vmem:[#allocation2 + $0xb0] sm:$0xfc] %vm2520, %v4302
        %4308 = vst.msk [vmem:[#allocation2 + $0xc0] sm:$0xf] %vm2522, %v4304
        %4309 = vrot.lane.b32.xlu0 %v2104, 80
        %v4310 = vpop.permute.xlu0 %4309
        %4311 = vrot.lane.b32.xlu0 %v2105, 80
        %v4312 = vpop.permute.xlu0 %4311
        %4315 = vst.msk [vmem:[#allocation2 + $0xb0] sm:$0xfc] %vm2530, %v4310
        %4316 = vst.msk [vmem:[#allocation2 + $0xc0] sm:$0xf] %vm2532, %v4312
        %v4317 = vrot.slane %v2105, 1
        %v4318 = vsel %vm2116, %v3948, %v4317
        %4319 = vrot.lane.b32.xlu0 %v4318, 88
        %v4320 = vpop.permute.xlu0 %4319
        %4321 = vrot.lane.b32.xlu0 %v4317, 88
        %v4322 = vpop.permute.xlu0 %4321
        %4325 = vst.msk [vmem:[#allocation2 + $0xb0] sm:$0xfc] %vm2543, %v4320
        %4326 = vst.msk [vmem:[#allocation2 + $0xc0] sm:$0xf] %vm2545, %v4322
        %4327 = vrot.lane.b32.xlu0 %v4141, 96
        %v4328 = vpop.permute.xlu0 %4327
        %4329 = vrot.lane.b32.xlu0 %v4140, 96
        %v4330 = vpop.permute.xlu0 %4329
        %4333 = vst.msk [vmem:[#allocation2 + $0xb0] sm:$0xfc] %vm2553, %v4328
        %4334 = vst.msk [vmem:[#allocation2 + $0xc0] sm:$0xf] %vm2555, %v4330
        %4335 = vrot.lane.b32.xlu0 %v4151, 104
        %v4336 = vpop.permute.xlu0 %4335
        %4337 = vrot.lane.b32.xlu0 %v4150, 104
        %v4338 = vpop.permute.xlu0 %4337
        %4341 = vst.msk [vmem:[#allocation2 + $0xb0] sm:$0xfc] %vm2563, %v4336
        %4342 = vst.msk [vmem:[#allocation2 + $0xc0] sm:$0xf] %vm2565, %v4338
        %4343 = vrot.lane.b32.xlu0 %v3970, 112
        %v4344 = vpop.permute.xlu0 %4343
        %4345 = vrot.lane.b32.xlu0 %v3969, 112
        %v4346 = vpop.permute.xlu0 %4345
        %4349 = vst.msk [vmem:[#allocation2 + $0xb0] sm:$0xfc] %vm2573, %v4344
        %4350 = vst.msk [vmem:[#allocation2 + $0xc0] sm:$0xf] %vm2575, %v4346
        %v4351 = vrot.slane %v2106, 6
        %v4352 = vrot.slane %v2107, 6
        %v4353 = vsel %vm2173, %v4351, %v4352
        %4354 = vrot.lane.b32.xlu0 %v4351, 120
        %v4355 = vpop.permute.xlu0 %4354
        %4356 = vrot.lane.b32.xlu0 %v4353, 120
        %v4357 = vpop.permute.xlu0 %4356
        %4360 = vst.msk [vmem:[#allocation2 + $0xb0] sm:$0xfc] %vm2586, %v4355
        %4361 = vst.msk [vmem:[#allocation2 + $0xc0] sm:$0xf] %vm2588, %v4357
        %v4362 = vrot.slane %v2106, 7
        %v4363 = vrot.slane %v2107, 7
        %v4364 = vsel %vm2188, %v4362, %v4363
        %4367 = vst.msk [vmem:[#allocation2 + $0xb8] sm:$0xfc] %vm2418, %v4362
        %4368 = vst.msk [vmem:[#allocation2 + $0xc8] sm:$0xf] %vm2420, %v4364
        %4369 = vrot.lane.b32.xlu0 %v2106, 8
        %v4370 = vpop.permute.xlu0 %4369
        %4371 = vrot.lane.b32.xlu0 %v2107, 8
        %v4372 = vpop.permute.xlu0 %4371
        %4375 = vst.msk [vmem:[#allocation2 + $0xb8] sm:$0xfc] %vm2432, %v4370
        %4376 = vst.msk [vmem:[#allocation2 + $0xc8] sm:$0xf] %vm2434, %v4372
        %4377 = vrot.lane.b32.xlu0 %v4192, 16
        %v4378 = vpop.permute.xlu0 %4377
        %4379 = vrot.lane.b32.xlu0 %v4191, 16
        %v4380 = vpop.permute.xlu0 %4379
        %4383 = vst.msk [vmem:[#allocation2 + $0xb8] sm:$0xfc] %vm2443, %v4378
        %4384 = vst.msk [vmem:[#allocation2 + $0xc8] sm:$0xf] %vm2445, %v4380
        %4385 = vrot.lane.b32.xlu0 %v4203, 24
        %v4386 = vpop.permute.xlu0 %4385
        %4387 = vrot.lane.b32.xlu0 %v4202, 24
        %v4388 = vpop.permute.xlu0 %4387
        %4391 = vst.msk [vmem:[#allocation2 + $0xb8] sm:$0xfc] %vm2453, %v4386
        %4392 = vst.msk [vmem:[#allocation2 + $0xc8] sm:$0xf] %vm2455, %v4388
        %v4394 = vrot.slane %v2108, 4
        %v4395 = vsel %vm2158, %v4224, %v4394
        %4396 = vrot.lane.b32.xlu0 %v4395, 32
        %v4397 = vpop.permute.xlu0 %4396
        %4398 = vrot.lane.b32.xlu0 %v4394, 32
        %v4399 = vpop.permute.xlu0 %4398
        %4402 = vst.msk [vmem:[#allocation2 + $0xb8] sm:$0xfc] %vm2463, %v4397
        %4403 = vst.msk [vmem:[#allocation2 + $0xc8] sm:$0xf] %vm2465, %v4399
        %v4405 = vrot.slane %v2107, 5
        %v4406 = vrot.slane %v2108, 5
        %v4407 = vsel %vm2254, %v4405, %v4406
        %v4408 = vrot.slane %v2109, 5
        %v4409 = vsel %vm2254, %v4406, %v4408
        %4410 = vrot.lane.b32.xlu0 %v4407, 40
        %v4411 = vpop.permute.xlu0 %4410
        %4412 = vrot.lane.b32.xlu0 %v4409, 40
        %v4413 = vpop.permute.xlu0 %4412
        %4416 = vst.msk [vmem:[#allocation2 + $0xb8] sm:$0xfc] %vm2475, %v4411
        %4417 = vst.msk [vmem:[#allocation2 + $0xc8] sm:$0xf] %vm2477, %v4413
        %v4418 = vrot.slane %v2108, 6
        %v4419 = vrot.slane %v2109, 6
        %v4420 = vsel %vm2173, %v4418, %v4419
        %4421 = vrot.lane.b32.xlu0 %v4418, 48
        %v4422 = vpop.permute.xlu0 %4421
        %4423 = vrot.lane.b32.xlu0 %v4420, 48
        %v4424 = vpop.permute.xlu0 %4423
        %4427 = vst.msk [vmem:[#allocation2 + $0xb8] sm:$0xfc] %vm2488, %v4422
        %4428 = vst.msk [vmem:[#allocation2 + $0xc8] sm:$0xf] %vm2490, %v4424
        %v4429 = vrot.slane %v2108, 7
        %v4430 = vrot.slane %v2109, 7
        %v4431 = vsel %vm2188, %v4429, %v4430
        %4432 = vrot.lane.b32.xlu0 %v4429, 56
        %v4433 = vpop.permute.xlu0 %4432
        %4434 = vrot.lane.b32.xlu0 %v4431, 56
        %v4435 = vpop.permute.xlu0 %4434
        %4438 = vst.msk [vmem:[#allocation2 + $0xb8] sm:$0xfc] %vm2498, %v4433
        %4439 = vst.msk [vmem:[#allocation2 + $0xc8] sm:$0xf] %vm2500, %v4435
        %4440 = vrot.lane.b32.xlu0 %v2108, 64
        %v4441 = vpop.permute.xlu0 %4440
        %4442 = vrot.lane.b32.xlu0 %v2109, 64
        %v4443 = vpop.permute.xlu0 %4442
        %4446 = vst.msk [vmem:[#allocation2 + $0xb8] sm:$0xfc] %vm2509, %v4441
        %4447 = vst.msk [vmem:[#allocation2 + $0xc8] sm:$0xf] %vm2511, %v4443
        %v4448 = vld [vmem:[#allocation2] sm:$0xff]
        %v4449 = vld [vmem:[#allocation2 + $0x8] sm:$0xff]
        %v4450 = vld [vmem:[#allocation2 + $0x10] sm:$0xff]
        %v4451 = vld [vmem:[#allocation2 + $0x18] sm:$0xff]
        %v4452 = vld [vmem:[#allocation2 + $0x20] sm:$0xff]
        %v4453 = vld [vmem:[#allocation2 + $0x28] sm:$0xff]
        %v4454 = vld [vmem:[#allocation2 + $0x30] sm:$0xff]
        %v4455 = vld [vmem:[#allocation2 + $0x38] sm:$0xff]
        %v4456 = vld [vmem:[#allocation2 + $0x40] sm:$0xff]
        %v4457 = vld [vmem:[#allocation2 + $0x48] sm:$0xff]
        %v4458 = vld [vmem:[#allocation2 + $0x50] sm:$0xff]
        %v4459 = vld [vmem:[#allocation2 + $0x58] sm:$0xff]
        %v4460 = vld [vmem:[#allocation2 + $0x60] sm:$0xff]
        %v4461 = vld [vmem:[#allocation2 + $0x68] sm:$0xff]
        %v4462 = vld [vmem:[#allocation2 + $0x70] sm:$0xff]
        %v4463 = vld [vmem:[#allocation2 + $0x78] sm:$0xff]
        %v4464 = vld [vmem:[#allocation2 + $0x80] sm:$0xff]
        %v4465 = vld [vmem:[#allocation2 + $0x88] sm:$0xff]
        %v4466 = vld [vmem:[#allocation2 + $0x90] sm:$0xff]
        %v4467 = vld [vmem:[#allocation2 + $0x98] sm:$0xff]
        %v4468 = vld [vmem:[#allocation2 + $0xa0] sm:$0xff]
        %v4469 = vld [vmem:[#allocation2 + $0xa8] sm:$0xff]
        %v4470 = vld [vmem:[#allocation2 + $0xb0] sm:$0xff]
        %v4471 = vld [vmem:[#allocation2 + $0xb8] sm:$0xff]
        %v4472 = vld [vmem:[#allocation2 + $0xc0] sm:$0xf]
        %v4473 = vld [vmem:[#allocation2 + $0xc8] sm:$0xf]
        %v4474 = vld [vmem:[%s3] sm:$0xff]
        %v4475 = vld [vmem:[%s3 + $0x8] sm:$0xff]
        %v4476 = vld [vmem:[%s3 + $0x10] sm:$0xff]
        %v4477 = vld [vmem:[%s3 + $0x18] sm:$0xff]
        %v4478 = vld [vmem:[%s3 + $0x20] sm:$0xff]
        %v4479 = vld [vmem:[%s3 + $0x28] sm:$0xff]
        %v4480 = vld [vmem:[%s3 + $0x30] sm:$0xff]
        %v4481 = vld [vmem:[%s3 + $0x38] sm:$0xff]
        %v4482 = vld [vmem:[%s3 + $0x40] sm:$0xff]
        %v4483 = vld [vmem:[%s3 + $0x48] sm:$0xff]
        %v4484 = vld [vmem:[%s3 + $0x50] sm:$0xff]
        %v4485 = vld [vmem:[%s3 + $0x58] sm:$0xff]
        %v4486 = vld [vmem:[%s3 + $0x60] sm:$0xff]
        %v4487 = vld [vmem:[%s3 + $0x68] sm:$0xff]
        %v4488 = vld [vmem:[%s3 + $0x70] sm:$0xff]
        %v4489 = vld [vmem:[%s3 + $0x78] sm:$0xff]
        %v4490 = vld [vmem:[%s3 + $0x80] sm:$0xff]
        %v4491 = vld [vmem:[%s3 + $0x88] sm:$0xff]
        %v4492 = vld [vmem:[%s3 + $0x90] sm:$0xff]
        %v4493 = vld [vmem:[%s3 + $0x98] sm:$0xff]
        %v4494 = vld [vmem:[%s3 + $0xa0] sm:$0xff]
        %v4495 = vld [vmem:[%s3 + $0xa8] sm:$0xff]
        %v4496 = vld [vmem:[%s3 + $0xb0] sm:$0xff]
        %v4497 = vld [vmem:[%s3 + $0xb8] sm:$0xff]
        %v4498 = vld [vmem:[%s3 + $0xc0] sm:$0xff]
        %vm4499 = vcmask 588800
        %v4501 = vsel %vm4499, %v4449, 0
        %v4504 = vsel %vm4499, %v4451, 0
        %v4507 = vsel %vm4499, %v4453, 0
        %v4510 = vsel %vm4499, %v4455, 0
        %v4513 = vsel %vm4499, %v4457, 0
        %v4516 = vsel %vm4499, %v4459, 0
        %v4519 = vsel %vm4499, %v4461, 0
        %v4522 = vsel %vm4499, %v4463, 0
        %v4525 = vsel %vm4499, %v4465, 0
        %v4528 = vsel %vm4499, %v4467, 0
        %v4531 = vsel %vm4499, %v4469, 0
        %v4534 = vsel %vm4499, %v4471, 0
        %v4537 = vsel %vm4499, %v4473, 0
        %4539 = vmatpush.msra.mxu0 %v4489
        %4540 = vmatpush.msra.mxu0 %v4488
        %4541 = vmatpush.msra.mxu0 %v4487
        %4542 = vmatpush.msra.mxu0 %v4486
        %4543 = vmatpush.msra.mxu0 %v4485
        %4544 = vmatpush.msra.mxu0 %v4484
        %4545 = vmatpush.msra.mxu0 %v4483
        %4546 = vmatpush.msra.mxu0 %v4482
        %4547 = vmatpush.msra.mxu0 %v4481
        %4548 = vmatpush.msra.mxu0 %v4480
        %4549 = vmatpush.msra.mxu0 %v4479
        %4550 = vmatpush.msra.mxu0 %v4478
        %4551 = vmatpush.msra.mxu0 %v4477
        %4552 = vmatpush.msra.mxu0 %v4476
        %4553 = vmatpush.msra.mxu0 %v4475
        %4554 = vmatpush.msra.mxu0 %v4474
        %4555 = vmatmul.f32.gmra.mxu0 %v4448
        %v4556 = vpop.f32.mrf.mxu0
        %v4557 = vadd.f32 0.0, %v4556
        %4558 = vmatmul.f32.gmra.mxu0 %v4450
        %v4559 = vpop.f32.mrf.mxu0
        %v4560 = vadd.f32 0.0, %v4559
        %4561 = vmatmul.f32.gmra.mxu0 %v4452
        %v4562 = vpop.f32.mrf.mxu0
        %v4563 = vadd.f32 0.0, %v4562
        %4564 = vmatmul.f32.gmra.mxu0 %v4454
        %v4565 = vpop.f32.mrf.mxu0
        %v4566 = vadd.f32 0.0, %v4565
        %4567 = vmatmul.f32.gmra.mxu0 %v4456
        %v4568 = vpop.f32.mrf.mxu0
        %v4569 = vadd.f32 0.0, %v4568
        %4570 = vmatmul.f32.gmra.mxu0 %v4458
        %v4571 = vpop.f32.mrf.mxu0
        %v4572 = vadd.f32 0.0, %v4571
        %4573 = vmatmul.f32.gmra.mxu0 %v4460
        %v4574 = vpop.f32.mrf.mxu0
        %v4575 = vadd.f32 0.0, %v4574
        %4576 = vmatmul.f32.gmra.mxu0 %v4462
        %v4577 = vpop.f32.mrf.mxu0
        %v4578 = vadd.f32 0.0, %v4577
        %4579 = vmatmul.f32.gmra.mxu0 %v4464
        %v4580 = vpop.f32.mrf.mxu0
        %v4581 = vadd.f32 0.0, %v4580
        %4582 = vmatmul.f32.gmra.mxu0 %v4466
        %v4583 = vpop.f32.mrf.mxu0
        %v4584 = vadd.f32 0.0, %v4583
        %4585 = vmatmul.f32.gmra.mxu0 %v4468
        %v4586 = vpop.f32.mrf.mxu0
        %v4587 = vadd.f32 0.0, %v4586
        %4588 = vmatmul.f32.gmra.mxu0 %v4470
        %v4589 = vpop.f32.mrf.mxu0
        %v4590 = vadd.f32 0.0, %v4589
        %4591 = vmatmul.f32.gmra.mxu0 %v4472
        %v4592 = vpop.f32.mrf.mxu0
        %v4593 = vadd.f32 0.0, %v4592
        %4594 = vdwg.mxu0
        %4595 = vmatpush.msra.mxu0 0.0
        %4596 = vmatpush.msra.mxu0 0.0
        %4597 = vmatpush.msra.mxu0 0.0
        %4598 = vmatpush.msra.mxu0 0.0
        %4599 = vmatpush.msra.mxu0 0.0
        %4600 = vmatpush.msra.mxu0 0.0
        %4601 = vmatpush.msra.mxu0 0.0
        %4602 = vmatpush.msra.mxu0 %v4498
        %4603 = vmatpush.msra.mxu0 %v4497
        %4604 = vmatpush.msra.mxu0 %v4496
        %4605 = vmatpush.msra.mxu0 %v4495
        %4606 = vmatpush.msra.mxu0 %v4494
        %4607 = vmatpush.msra.mxu0 %v4493
        %4608 = vmatpush.msra.mxu0 %v4492
        %4609 = vmatpush.msra.mxu0 %v4491
        %4610 = vmatpush.msra.mxu0 %v4490
        %4611 = vmatmul.f32.gmra.mxu0 %v4501
        %v4612 = vpop.f32.mrf.mxu0
        %v4613 = vadd.f32 %v4557, %v4612
        %4614 = vmatmul.f32.gmra.mxu0 %v4504
        %v4615 = vpop.f32.mrf.mxu0
        %v4616 = vadd.f32 %v4560, %v4615
        %4617 = vmatmul.f32.gmra.mxu0 %v4507
        %v4618 = vpop.f32.mrf.mxu0
        %v4619 = vadd.f32 %v4563, %v4618
        %4620 = vmatmul.f32.gmra.mxu0 %v4510
        %v4621 = vpop.f32.mrf.mxu0
        %v4622 = vadd.f32 %v4566, %v4621
        %4623 = vmatmul.f32.gmra.mxu0 %v4513
        %v4624 = vpop.f32.mrf.mxu0
        %v4625 = vadd.f32 %v4569, %v4624
        %4626 = vmatmul.f32.gmra.mxu0 %v4516
        %v4627 = vpop.f32.mrf.mxu0
        %v4628 = vadd.f32 %v4572, %v4627
        %4629 = vmatmul.f32.gmra.mxu0 %v4519
        %v4630 = vpop.f32.mrf.mxu0
        %v4631 = vadd.f32 %v4575, %v4630
        %4632 = vmatmul.f32.gmra.mxu0 %v4522
        %v4633 = vpop.f32.mrf.mxu0
        %v4634 = vadd.f32 %v4578, %v4633
        %4635 = vmatmul.f32.gmra.mxu0 %v4525
        %v4636 = vpop.f32.mrf.mxu0
        %v4637 = vadd.f32 %v4581, %v4636
        %4638 = vmatmul.f32.gmra.mxu0 %v4528
        %v4639 = vpop.f32.mrf.mxu0
        %v4640 = vadd.f32 %v4584, %v4639
        %4641 = vmatmul.f32.gmra.mxu0 %v4531
        %v4642 = vpop.f32.mrf.mxu0
        %v4643 = vadd.f32 %v4587, %v4642
        %4644 = vmatmul.f32.gmra.mxu0 %v4534
        %v4645 = vpop.f32.mrf.mxu0
        %v4646 = vadd.f32 %v4590, %v4645
        %4647 = vmatmul.f32.gmra.mxu0 %v4537
        %v4648 = vpop.f32.mrf.mxu0
        %v4649 = vadd.f32 %v4593, %v4648
        %4650 = vdwg.mxu0
        %v4651 = vmax.f32 %v4613, 0.0
        %v4652 = vmax.f32 %v4616, 0.0
        %v4653 = vmax.f32 %v4619, 0.0
        %v4654 = vmax.f32 %v4622, 0.0
        %v4655 = vmax.f32 %v4625, 0.0
        %v4656 = vmax.f32 %v4628, 0.0
        %v4657 = vmax.f32 %v4631, 0.0
        %v4658 = vmax.f32 %v4634, 0.0
        %v4659 = vmax.f32 %v4637, 0.0
        %v4660 = vmax.f32 %v4640, 0.0
        %v4661 = vmax.f32 %v4643, 0.0
        %v4662 = vmax.f32 %v4646, 0.0
        %v4663 = vmax.f32 %v4649, 0.0
        %v4664 = vld [vmem:[%s4] sm:$0xff]
        %v4665 = vld [vmem:[%s4 + $0x8] sm:$0xff]
        %v4666 = vld [vmem:[%s4 + $0x10] sm:$0xff]
        %v4667 = vld [vmem:[%s4 + $0x18] sm:$0x1]
        %vm4668 = vcmask 818176
        %v4670 = vsel %vm4668, %v4664, 0
        %v4673 = vsel %vm4668, %v4665, 0
        %v4676 = vsel %vm4668, %v4666, 0
        %v4679 = vsel %vm4668, %v4667, 0
        %v4682 = vsel %vm2158, %v4663, 0
        %4684 = vmatpush.msra.mxu0 0.0
        %4685 = vmatpush.msra.mxu0 0.0
        %4686 = vmatpush.msra.mxu0 0.0
        %4687 = vmatpush.msra.mxu0 %v4682
        %4688 = vmatpush.msra.mxu0 %v4662
        %4689 = vmatpush.msra.mxu0 %v4661
        %4690 = vmatpush.msra.mxu0 %v4660
        %4691 = vmatpush.msra.mxu0 %v4659
        %4692 = vmatpush.msra.mxu0 %v4658
        %4693 = vmatpush.msra.mxu0 %v4657
        %4694 = vmatpush.msra.mxu0 %v4656
        %4695 = vmatpush.msra.mxu0 %v4655
        %4696 = vmatpush.msra.mxu0 %v4654
        %4697 = vmatpush.msra.mxu0 %v4653
        %4698 = vmatpush.msra.mxu0 %v4652
        %4699 = vmatpush.msra.mxu0 %v4651
        %4700 = vmatmul.f32.gmra.mxu0 %v4670
        %v4701 = vpop.f32.mrf.mxu0
        %v4702 = vadd.f32 0.0, %v4701
        %4703 = vmatmul.f32.gmra.mxu0 %v4673
        %v4704 = vpop.f32.mrf.mxu0
        %v4705 = vadd.f32 0.0, %v4704
        %4706 = vmatmul.f32.gmra.mxu0 %v4676
        %v4707 = vpop.f32.mrf.mxu0
        %v4708 = vadd.f32 0.0, %v4707
        %4709 = vmatmul.f32.gmra.mxu0 %v4679
        %v4710 = vpop.f32.mrf.mxu0
        %v4711 = vadd.f32 0.0, %v4710
        %4712 = vdwg.mxu0
        %v4713 = vmul.f32 %v4702, 0.25
        %v4714 = vmul.f32 %v4705, 0.25
        %v4715 = vmul.f32 %v4708, 0.25
        %v4716 = vmul.f32 %v4711, 0.25
        %v4717 = vlaneseq
        %vm4718 = vcmp.ge.s32.totalorder %v4717, 0
        %vm4719 = vcmp.lt.s32.totalorder %v4717, 16
        %vm4720 = vmand %vm4718, %vm4719
        %4721 = vst.msk [vmem:[#allocation3] sm:$0x1] %vm4720, %v4713
        %4723 = vst [vmem:[#allocation1] sm:$0xff] %v4713
        %s4724 = scalar_lea.vmem [#allocation1], 1
        %v4725 = vld [vmem:[%s4724] ss:$9 sm:$0xff]
        %4726 = vrot.lane.b32.xlu0 %v4725, 16
        %v4727 = vpop.permute.xlu0 %4726
        %vm4729 = vcmp.ge.s32.totalorder %v4717, 16
        %vm4730 = vcmp.lt.s32.totalorder %v4717, 32
        %vm4731 = vmand %vm4729, %vm4730
        %4732 = vst.msk [vmem:[#allocation3] sm:$0x1] %vm4731, %v4727
        %4733 = vst [vmem:[#allocation1] sm:$0xff] %v4713
        %s4734 = scalar_lea.vmem [#allocation1], 2
        %v4735 = vld [vmem:[%s4734] ss:$9 sm:$0xff]
        %4736 = vrot.lane.b32.xlu0 %v4735, 32
        %v4737 = vpop.permute.xlu0 %4736
        %vm4739 = vcmp.ge.s32.totalorder %v4717, 32
        %vm4740 = vcmp.lt.s32.totalorder %v4717, 48
        %vm4741 = vmand %vm4739, %vm4740
        %4742 = vst.msk [vmem:[#allocation3] sm:$0x1] %vm4741, %v4737
        %4743 = vst [vmem:[#allocation1] sm:$0xff] %v4713
        %s4744 = scalar_lea.vmem [#allocation1], 3
        %v4745 = vld [vmem:[%s4744] ss:$9 sm:$0xff]
        %4746 = vrot.lane.b32.xlu0 %v4745, 48
        %v4747 = vpop.permute.xlu0 %4746
        %vm4749 = vcmp.ge.s32.totalorder %v4717, 48
        %vm4750 = vcmp.lt.s32.totalorder %v4717, 64
        %vm4751 = vmand %vm4749, %vm4750
        %4752 = vst.msk [vmem:[#allocation3] sm:$0x1] %vm4751, %v4747
        %4753 = vst [vmem:[#allocation1] sm:$0xff] %v4713
        %s4754 = scalar_lea.vmem [#allocation1], 4
        %v4755 = vld [vmem:[%s4754] ss:$9 sm:$0xff]
        %4756 = vrot.lane.b32.xlu0 %v4755, 64
        %v4757 = vpop.permute.xlu0 %4756
        %vm4759 = vcmp.ge.s32.totalorder %v4717, 64
        %vm4760 = vcmp.lt.s32.totalorder %v4717, 80
        %vm4761 = vmand %vm4759, %vm4760
        %4762 = vst.msk [vmem:[#allocation3] sm:$0x1] %vm4761, %v4757
        %4763 = vst [vmem:[#allocation1] sm:$0xff] %v4713
        %s4764 = scalar_lea.vmem [#allocation1], 5
        %v4765 = vld [vmem:[%s4764] ss:$9 sm:$0xff]
        %4766 = vrot.lane.b32.xlu0 %v4765, 80
        %v4767 = vpop.permute.xlu0 %4766
        %vm4769 = vcmp.ge.s32.totalorder %v4717, 80
        %vm4770 = vcmp.lt.s32.totalorder %v4717, 96
        %vm4771 = vmand %vm4769, %vm4770
        %4772 = vst.msk [vmem:[#allocation3] sm:$0x1] %vm4771, %v4767
        %4773 = vst [vmem:[#allocation1] sm:$0xff] %v4713
        %s4774 = scalar_lea.vmem [#allocation1], 6
        %v4775 = vld [vmem:[%s4774] ss:$9 sm:$0xff]
        %4776 = vrot.lane.b32.xlu0 %v4775, 96
        %v4777 = vpop.permute.xlu0 %4776
        %vm4779 = vcmp.ge.s32.totalorder %v4717, 96
        %vm4780 = vcmp.lt.s32.totalorder %v4717, 112
        %vm4781 = vmand %vm4779, %vm4780
        %4782 = vst.msk [vmem:[#allocation3] sm:$0x1] %vm4781, %v4777
        %4783 = vst [vmem:[#allocation1] sm:$0xff] %v4713
        %s4784 = scalar_lea.vmem [#allocation1], 7
        %v4785 = vld [vmem:[%s4784] ss:$9 sm:$0xff]
        %4786 = vrot.lane.b32.xlu0 %v4785, 112
        %v4787 = vpop.permute.xlu0 %4786
        %vm4789 = vcmp.ge.s32.totalorder %v4717, 112
        %vm4790 = vcmp.lt.s32.totalorder %v4717, 128
        %vm4791 = vmand %vm4789, %vm4790
        %4792 = vst.msk [vmem:[#allocation3] sm:$0x1] %vm4791, %v4787
        %4793 = vst.msk [vmem:[#allocation3 + $0x1] sm:$0x1] %vm4720, %v4714
        %4795 = vst [vmem:[#allocation1] sm:$0xff] %v4714
        %s4796 = scalar_lea.vmem [#allocation1], 1
        %v4797 = vld [vmem:[%s4796] ss:$9 sm:$0xff]
        %4798 = vrot.lane.b32.xlu0 %v4797, 16
        %v4799 = vpop.permute.xlu0 %4798
        %4801 = vst.msk [vmem:[#allocation3 + $0x1] sm:$0x1] %vm4731, %v4799
        %4802 = vst [vmem:[#allocation1] sm:$0xff] %v4714
        %s4803 = scalar_lea.vmem [#allocation1], 2
        %v4804 = vld [vmem:[%s4803] ss:$9 sm:$0xff]
        %4805 = vrot.lane.b32.xlu0 %v4804, 32
        %v4806 = vpop.permute.xlu0 %4805
        %4808 = vst.msk [vmem:[#allocation3 + $0x1] sm:$0x1] %vm4741, %v4806
        %4809 = vst [vmem:[#allocation1] sm:$0xff] %v4714
        %s4810 = scalar_lea.vmem [#allocation1], 3
        %v4811 = vld [vmem:[%s4810] ss:$9 sm:$0xff]
        %4812 = vrot.lane.b32.xlu0 %v4811, 48
        %v4813 = vpop.permute.xlu0 %4812
        %4815 = vst.msk [vmem:[#allocation3 + $0x1] sm:$0x1] %vm4751, %v4813
        %4816 = vst [vmem:[#allocation1] sm:$0xff] %v4714
        %s4817 = scalar_lea.vmem [#allocation1], 4
        %v4818 = vld [vmem:[%s4817] ss:$9 sm:$0xff]
        %4819 = vrot.lane.b32.xlu0 %v4818, 64
        %v4820 = vpop.permute.xlu0 %4819
        %4822 = vst.msk [vmem:[#allocation3 + $0x1] sm:$0x1] %vm4761, %v4820
        %4823 = vst [vmem:[#allocation1] sm:$0xff] %v4714
        %s4824 = scalar_lea.vmem [#allocation1], 5
        %v4825 = vld [vmem:[%s4824] ss:$9 sm:$0xff]
        %4826 = vrot.lane.b32.xlu0 %v4825, 80
        %v4827 = vpop.permute.xlu0 %4826
        %4829 = vst.msk [vmem:[#allocation3 + $0x1] sm:$0x1] %vm4771, %v4827
        %4830 = vst [vmem:[#allocation1] sm:$0xff] %v4714
        %s4831 = scalar_lea.vmem [#allocation1], 6
        %v4832 = vld [vmem:[%s4831] ss:$9 sm:$0xff]
        %4833 = vrot.lane.b32.xlu0 %v4832, 96
        %v4834 = vpop.permute.xlu0 %4833
        %4836 = vst.msk [vmem:[#allocation3 + $0x1] sm:$0x1] %vm4781, %v4834
        %4837 = vst [vmem:[#allocation1] sm:$0xff] %v4714
        %s4838 = scalar_lea.vmem [#allocation1], 7
        %v4839 = vld [vmem:[%s4838] ss:$9 sm:$0xff]
        %4840 = vrot.lane.b32.xlu0 %v4839, 112
        %v4841 = vpop.permute.xlu0 %4840
        %4843 = vst.msk [vmem:[#allocation3 + $0x1] sm:$0x1] %vm4791, %v4841
        %4844 = vst.msk [vmem:[#allocation3 + $0x2] sm:$0x1] %vm4720, %v4715
        %4846 = vst [vmem:[#allocation1] sm:$0xff] %v4715
        %s4847 = scalar_lea.vmem [#allocation1], 1
        %v4848 = vld [vmem:[%s4847] ss:$9 sm:$0xff]
        %4849 = vrot.lane.b32.xlu0 %v4848, 16
        %v4850 = vpop.permute.xlu0 %4849
        %4852 = vst.msk [vmem:[#allocation3 + $0x2] sm:$0x1] %vm4731, %v4850
        %4853 = vst [vmem:[#allocation1] sm:$0xff] %v4715
        %s4854 = scalar_lea.vmem [#allocation1], 2
        %v4855 = vld [vmem:[%s4854] ss:$9 sm:$0xff]
        %4856 = vrot.lane.b32.xlu0 %v4855, 32
        %v4857 = vpop.permute.xlu0 %4856
        %4859 = vst.msk [vmem:[#allocation3 + $0x2] sm:$0x1] %vm4741, %v4857
        %4860 = vst [vmem:[#allocation1] sm:$0xff] %v4715
        %s4861 = scalar_lea.vmem [#allocation1], 3
        %v4862 = vld [vmem:[%s4861] ss:$9 sm:$0xff]
        %4863 = vrot.lane.b32.xlu0 %v4862, 48
        %v4864 = vpop.permute.xlu0 %4863
        %4866 = vst.msk [vmem:[#allocation3 + $0x2] sm:$0x1] %vm4751, %v4864
        %4867 = vst [vmem:[#allocation1] sm:$0xff] %v4715
        %s4868 = scalar_lea.vmem [#allocation1], 4
        %v4869 = vld [vmem:[%s4868] ss:$9 sm:$0xff]
        %4870 = vrot.lane.b32.xlu0 %v4869, 64
        %v4871 = vpop.permute.xlu0 %4870
        %4873 = vst.msk [vmem:[#allocation3 + $0x2] sm:$0x1] %vm4761, %v4871
        %4874 = vst [vmem:[#allocation1] sm:$0xff] %v4715
        %s4875 = scalar_lea.vmem [#allocation1], 5
        %v4876 = vld [vmem:[%s4875] ss:$9 sm:$0xff]
        %4877 = vrot.lane.b32.xlu0 %v4876, 80
        %v4878 = vpop.permute.xlu0 %4877
        %4880 = vst.msk [vmem:[#allocation3 + $0x2] sm:$0x1] %vm4771, %v4878
        %4881 = vst [vmem:[#allocation1] sm:$0xff] %v4715
        %s4882 = scalar_lea.vmem [#allocation1], 6
        %v4883 = vld [vmem:[%s4882] ss:$9 sm:$0xff]
        %4884 = vrot.lane.b32.xlu0 %v4883, 96
        %v4885 = vpop.permute.xlu0 %4884
        %4887 = vst.msk [vmem:[#allocation3 + $0x2] sm:$0x1] %vm4781, %v4885
        %4888 = vst [vmem:[#allocation1] sm:$0xff] %v4715
        %s4889 = scalar_lea.vmem [#allocation1], 7
        %v4890 = vld [vmem:[%s4889] ss:$9 sm:$0xff]
        %4891 = vrot.lane.b32.xlu0 %v4890, 112
        %v4892 = vpop.permute.xlu0 %4891
        %4894 = vst.msk [vmem:[#allocation3 + $0x2] sm:$0x1] %vm4791, %v4892
        %4895 = vst.msk [vmem:[#allocation3 + $0x3] sm:$0x1] %vm4720, %v4716
        %v4896 = vld [vmem:[#allocation3] sm:$0xf]
        %v4897 = vld [vmem:[%s5] sm:$0xff]
        %v4898 = vld [vmem:[%s5 + $0x8] sm:$0xff]
        %v4899 = vld [vmem:[%s5 + $0x10] sm:$0xff]
        %v4900 = vld [vmem:[%s5 + $0x18] sm:$0xff]
        %v4901 = vld [vmem:[%s5 + $0x20] sm:$0xff]
        %v4902 = vld [vmem:[%s5 + $0x28] sm:$0xff]
        %v4903 = vld [vmem:[%s5 + $0x30] sm:$0xff]
        %v4904 = vld [vmem:[%s5 + $0x38] sm:$0xff]
        %v4905 = vld [vmem:[%s5 + $0x40] sm:$0xff]
        %v4906 = vld [vmem:[%s5 + $0x48] sm:$0xff]
        %v4907 = vld [vmem:[%s5 + $0x50] sm:$0xff]
        %v4908 = vld [vmem:[%s5 + $0x58] sm:$0xff]
        %v4909 = vld [vmem:[%s5 + $0x60] sm:$0xff]
        %v4910 = vld [vmem:[%s5 + $0x68] sm:$0xff]
        %v4911 = vld [vmem:[%s5 + $0x70] sm:$0xff]
        %v4912 = vld [vmem:[%s5 + $0x78] sm:$0xff]
        %v4913 = vld [vmem:[%s5 + $0x80] sm:$0xff]
        %v4914 = vld [vmem:[%s5 + $0x88] sm:$0xff]
        %v4915 = vld [vmem:[%s5 + $0x90] sm:$0xff]
        %v4916 = vld [vmem:[%s5 + $0x98] sm:$0xff]
        %v4917 = vld [vmem:[%s5 + $0xa0] sm:$0xff]
        %v4918 = vld [vmem:[%s5 + $0xa8] sm:$0xff]
        %v4919 = vld [vmem:[%s5 + $0xb0] sm:$0xff]
        %v4920 = vld [vmem:[%s5 + $0xb8] sm:$0xff]
        %v4921 = vld [vmem:[%s5 + $0xc0] sm:$0xff]
        %v4922 = vld [vmem:[%s5 + $0xc8] sm:$0xff]
        %v4923 = vld [vmem:[%s5 + $0xd0] sm:$0xff]
        %v4924 = vld [vmem:[%s5 + $0xd8] sm:$0xff]
        %v4925 = vld [vmem:[%s5 + $0xe0] sm:$0xff]
        %v4926 = vld [vmem:[%s5 + $0xe8] sm:$0xff]
        %v4927 = vld [vmem:[%s5 + $0xf0] sm:$0xff]
        %v4928 = vld [vmem:[%s5 + $0xf8] sm:$0xff]
        %v4929 = vld [vmem:[%s5 + $0x100] sm:$0xff]
        %v4930 = vld [vmem:[%s5 + $0x108] sm:$0xff]
        %v4931 = vld [vmem:[%s5 + $0x110] sm:$0xff]
        %v4932 = vld [vmem:[%s5 + $0x118] sm:$0xff]
        %v4933 = vld [vmem:[%s5 + $0x120] sm:$0xff]
        %v4934 = vld [vmem:[%s5 + $0x128] sm:$0xff]
        %v4935 = vld [vmem:[%s5 + $0x130] sm:$0xff]
        %v4936 = vld [vmem:[%s5 + $0x138] sm:$0xff]
        %v4937 = vld [vmem:[%s5 + $0x140] sm:$0xff]
        %v4938 = vld [vmem:[%s5 + $0x148] sm:$0xff]
        %v4939 = vld [vmem:[%s5 + $0x150] sm:$0xff]
        %v4940 = vld [vmem:[%s5 + $0x158] sm:$0xff]
        %v4941 = vld [vmem:[%s5 + $0x160] sm:$0xff]
        %v4942 = vld [vmem:[%s5 + $0x168] sm:$0xff]
        %v4943 = vld [vmem:[%s5 + $0x170] sm:$0xff]
        %v4944 = vld [vmem:[%s5 + $0x178] sm:$0xff]
        %v4945 = vld [vmem:[%s5 + $0x180] sm:$0xff]
        %v4946 = vld [vmem:[%s5 + $0x188] sm:$0xff]
        %v4947 = vld [vmem:[%s6] sm:$0x1]
        %v4949 = vperm.slane %v4896, 0
        %v4950 = vperm.slane %v4896, 1
        %v4951 = vperm.slane %v4896, 2
        %v4952 = vperm.slane %v4896, 3
        %v4956 = vsel %vm1365, %v4952, 0
        %4958 = vmatpush.msra.mxu0 %v4912
        %4959 = vmatpush.msra.mxu0 %v4911
        %4960 = vmatpush.msra.mxu0 %v4910
        %4961 = vmatpush.msra.mxu0 %v4909
        %4962 = vmatpush.msra.mxu0 %v4908
        %4963 = vmatpush.msra.mxu0 %v4907
        %4964 = vmatpush.msra.mxu0 %v4906
        %4965 = vmatpush.msra.mxu0 %v4905
        %4966 = vmatpush.msra.mxu0 %v4904
        %4967 = vmatpush.msra.mxu0 %v4903
        %4968 = vmatpush.msra.mxu0 %v4902
        %4969 = vmatpush.msra.mxu0 %v4901
        %4970 = vmatpush.msra.mxu0 %v4900
        %4971 = vmatpush.msra.mxu0 %v4899
        %4972 = vmatpush.msra.mxu0 %v4898
        %4973 = vmatpush.msra.mxu0 %v4897
        %4974 = vmatmul.f32.gmra.mxu0 %v4949
        %v4975 = vpop.f32.mrf.mxu0
        %v4976 = vadd.f32 %v4947, %v4975
        %4977 = vdwg.mxu0
        %4978 = vmatpush.msra.mxu0 %v4928
        %4979 = vmatpush.msra.mxu0 %v4927
        %4980 = vmatpush.msra.mxu0 %v4926
        %4981 = vmatpush.msra.mxu0 %v4925
        %4982 = vmatpush.msra.mxu0 %v4924
        %4983 = vmatpush.msra.mxu0 %v4923
        %4984 = vmatpush.msra.mxu0 %v4922
        %4985 = vmatpush.msra.mxu0 %v4921
        %4986 = vmatpush.msra.mxu0 %v4920
        %4987 = vmatpush.msra.mxu0 %v4919
        %4988 = vmatpush.msra.mxu0 %v4918
        %4989 = vmatpush.msra.mxu0 %v4917
        %4990 = vmatpush.msra.mxu0 %v4916
        %4991 = vmatpush.msra.mxu0 %v4915
        %4992 = vmatpush.msra.mxu0 %v4914
        %4993 = vmatpush.msra.mxu0 %v4913
        %4994 = vmatmul.f32.gmra.mxu0 %v4950
        %v4995 = vpop.f32.mrf.mxu0
        %v4996 = vadd.f32 %v4976, %v4995
        %4997 = vdwg.mxu0
        %4998 = vmatpush.msra.mxu0 %v4944
        %4999 = vmatpush.msra.mxu0 %v4943
        %5000 = vmatpush.msra.mxu0 %v4942
        %5001 = vmatpush.msra.mxu0 %v4941
        %5002 = vmatpush.msra.mxu0 %v4940
        %5003 = vmatpush.msra.mxu0 %v4939
        %5004 = vmatpush.msra.mxu0 %v4938
        %5005 = vmatpush.msra.mxu0 %v4937
        %5006 = vmatpush.msra.mxu0 %v4936
        %5007 = vmatpush.msra.mxu0 %v4935
        %5008 = vmatpush.msra.mxu0 %v4934
        %5009 = vmatpush.msra.mxu0 %v4933
        %5010 = vmatpush.msra.mxu0 %v4932
        %5011 = vmatpush.msra.mxu0 %v4931
        %5012 = vmatpush.msra.mxu0 %v4930
        %5013 = vmatpush.msra.mxu0 %v4929
        %5014 = vmatmul.f32.gmra.mxu0 %v4951
        %v5015 = vpop.f32.mrf.mxu0
        %v5016 = vadd.f32 %v4996, %v5015
        %5017 = vdwg.mxu0
        %5018 = vmatpush.msra.mxu0 0.0
        %5019 = vmatpush.msra.mxu0 0.0
        %5020 = vmatpush.msra.mxu0 0.0
        %5021 = vmatpush.msra.mxu0 0.0
        %5022 = vmatpush.msra.mxu0 0.0
        %5023 = vmatpush.msra.mxu0 0.0
        %5024 = vmatpush.msra.mxu0 0.0
        %5025 = vmatpush.msra.mxu0 0.0
        %5026 = vmatpush.msra.mxu0 0.0
        %5027 = vmatpush.msra.mxu0 0.0
        %5028 = vmatpush.msra.mxu0 0.0
        %5029 = vmatpush.msra.mxu0 0.0
        %5030 = vmatpush.msra.mxu0 0.0
        %5031 = vmatpush.msra.mxu0 0.0
        %5032 = vmatpush.msra.mxu0 %v4946
        %5033 = vmatpush.msra.mxu0 %v4945
        %5034 = vmatmul.f32.gmra.mxu0 %v4956
        %v5035 = vpop.f32.mrf.mxu0
        %v5036 = vadd.f32 %v5016, %v5035
        %5037 = vdwg.mxu0
        %v5038 = vld [vmem:[%s7] sm:$0xff]
        %v5039 = vld [vmem:[%s7 + $0x8] sm:$0xff]
        %v5040 = vld [vmem:[%s7 + $0x10] sm:$0xff]
        %v5041 = vld [vmem:[%s7 + $0x18] sm:$0xff]
        %v5042 = vld [vmem:[%s7 + $0x20] sm:$0xff]
        %v5043 = vld [vmem:[%s7 + $0x28] sm:$0xff]
        %v5044 = vld [vmem:[%s7 + $0x30] sm:$0xff]
        %v5045 = vld [vmem:[%s7 + $0x38] sm:$0xff]
        %v5046 = vld [vmem:[%s7 + $0x40] sm:$0xff]
        %v5047 = vld [vmem:[%s7 + $0x48] sm:$0xff]
        %v5048 = vld [vmem:[%s7 + $0x50] sm:$0xff]
        %v5049 = vld [vmem:[%s7 + $0x58] sm:$0xff]
        %v5050 = vld [vmem:[%s7 + $0x60] sm:$0xff]
        %v5051 = vld [vmem:[%s7 + $0x68] sm:$0xff]
        %v5052 = vld [vmem:[%s7 + $0x70] sm:$0xff]
        %v5053 = vld [vmem:[%s7 + $0x78] sm:$0xff]
        %v5054 = vld [vmem:[%s8] sm:$0x1]
        %5055 = vmatpush.msra.mxu0 %v5053
        %5056 = vmatpush.msra.mxu0 %v5052
        %5057 = vmatpush.msra.mxu0 %v5051
        %5058 = vmatpush.msra.mxu0 %v5050
        %5059 = vmatpush.msra.mxu0 %v5049
        %5060 = vmatpush.msra.mxu0 %v5048
        %5061 = vmatpush.msra.mxu0 %v5047
        %5062 = vmatpush.msra.mxu0 %v5046
        %5063 = vmatpush.msra.mxu0 %v5045
        %5064 = vmatpush.msra.mxu0 %v5044
        %5065 = vmatpush.msra.mxu0 %v5043
        %5066 = vmatpush.msra.mxu0 %v5042
        %5067 = vmatpush.msra.mxu0 %v5041
        %5068 = vmatpush.msra.mxu0 %v5040
        %5069 = vmatpush.msra.mxu0 %v5039
        %5070 = vmatpush.msra.mxu0 %v5038
        %5071 = vmatmul.f32.gmra.mxu0 %v5036
        %v5072 = vpop.f32.mrf.mxu0
        %v5073 = vadd.f32 %v5054, %v5072
        %5074 = vdwg.mxu0
        %v5075 = vld [vmem:[%s9] sm:$0xff]
        %v5076 = vld [vmem:[%s9 + $0x8] sm:$0xff]
        %v5077 = vld [vmem:[%s9 + $0x10] sm:$0xff]
        %v5078 = vld [vmem:[%s9 + $0x18] sm:$0xff]
        %v5079 = vld [vmem:[%s9 + $0x20] sm:$0xff]
        %v5080 = vld [vmem:[%s9 + $0x28] sm:$0xff]
        %v5081 = vld [vmem:[%s9 + $0x30] sm:$0xff]
        %v5082 = vld [vmem:[%s9 + $0x38] sm:$0xff]
        %v5083 = vld [vmem:[%s9 + $0x40] sm:$0xff]
        %v5084 = vld [vmem:[%s9 + $0x48] sm:$0xff]
        %v5085 = vld [vmem:[%s9 + $0x50] sm:$0xff]
        %v5086 = vld [vmem:[%s9 + $0x58] sm:$0xff]
        %v5087 = vld [vmem:[%s9 + $0x60] sm:$0xff]
        %v5088 = vld [vmem:[%s9 + $0x68] sm:$0xff]
        %v5089 = vld [vmem:[%s9 + $0x70] sm:$0xff]
        %v5090 = vld [vmem:[%s9 + $0x78] sm:$0xff]
        %v5091 = vld [vmem:[%s10] sm:$0x1]
        %5092 = vmatpush.msra.mxu0 %v5090
        %5093 = vmatpush.msra.mxu0 %v5089
        %5094 = vmatpush.msra.mxu0 %v5088
        %5095 = vmatpush.msra.mxu0 %v5087
        %5096 = vmatpush.msra.mxu0 %v5086
        %5097 = vmatpush.msra.mxu0 %v5085
        %5098 = vmatpush.msra.mxu0 %v5084
        %5099 = vmatpush.msra.mxu0 %v5083
        %5100 = vmatpush.msra.mxu0 %v5082
        %5101 = vmatpush.msra.mxu0 %v5081
        %5102 = vmatpush.msra.mxu0 %v5080
        %5103 = vmatpush.msra.mxu0 %v5079
        %5104 = vmatpush.msra.mxu0 %v5078
        %5105 = vmatpush.msra.mxu0 %v5077
        %5106 = vmatpush.msra.mxu0 %v5076
        %5107 = vmatpush.msra.mxu0 %v5075
        %5108 = vmatmul.f32.gmra.mxu0 %v5073
        %v5109 = vpop.f32.mrf.mxu0
        %v5110 = vadd.f32 %v5091, %v5109
        %5111 = vdwg.mxu0
        %5112 = vst [vmem:[%s378] sm:$0x1] %v5110
        %s5113 = sand.u32 %s269, 1
        %s5114 = scalar_lea.sflag [#allocation5], %s5113
        %s5115 = sand.u32 %s269, 1
        %s5116 = scalar_lea.vmem [#allocation4], %s5115
        // Predicated region
        $region65: #{lenet_forward.1} parent=63 // pred_check
          %p5117 = pneg %p279
        $region66: #{lenet_forward.1} parent=63 // pred_check_branch
          %5119 = sbr.rel (%p5117) target = $region68
        $region67: #{lenet_forward.1} parent=63 // pred_region
          %5121 = vsyncadd %s5114, 0
          %s5122 = scalar_lea.hbm %s11, %s25
          %s5124 = sshll.u32 %s5116, 4
          %s5125 = int_to_ptr.vmem [resolvable:$true] %s5124
          %s5126 = sshll.u32 %s5122, 4
          %s5127 = int_to_ptr.hbm [resolvable:$true] %s5126
          %5129 = dma.vmem_to_hbm [thread:$0]  %s5125, 16, %s5127, %s5114
        $region68: #{lenet_forward.1} parent=63 // pred_fallthru
          _
      $region64: #{lenet_forward.1} parent=5 // pred_fallthru
        _
      %p5130 = scmp.le.s32.totalorder 2, %s20
      // Predicated region
      $region69: #{lenet_forward.1} parent=5 // pred_check
        %p5131 = pneg %p5130
      $region70: #{lenet_forward.1} parent=5 // pred_check_branch
        %5133 = sbr.rel (%p5131) target = $region72
      $region71: #{lenet_forward.1} parent=5 // pred_region
        %s5134 = ssub.s32 %s20, 2
        // Predicated region
        $region73: #{lenet_forward.1} parent=71 // pred_check
          %p5135 = pneg %p285
        $region74: #{lenet_forward.1} parent=71 // pred_check_branch
          %5137 = sbr.rel (%p5135) target = $region76
        $region75: #{lenet_forward.1} parent=71 // pred_region
          %s5138 = sand.u32 %s270, 1
          %s5139 = scalar_lea.sflag [#allocation5], %s5138
          %s5140 = sand.u32 %s270, 1
          %s5141 = scalar_lea.vmem [#allocation4], %s5140
          %5143 = dma.done %s5139, 16
        $region76: #{lenet_forward.1} parent=71 // pred_fallthru
          _
      $region72: #{lenet_forward.1} parent=5 // pred_fallthru
        _
    $region6: #{lenet_forward.1} parent=1 // loop_footer
      %s24 = sadd.s32 1, %s20
    $region7: #{lenet_forward.1} parent=1 // loop_footer_branch
      %19 = sbr.rel target = $region3
    $region8: #{lenet_forward.1} parent=1 // loop_exit
      _
    %5144 = vsyncpa [#allocation5], 1
    %s5145 = scalar_lea.sflag [#allocation5], 1
    %5146 = vsyncpa %s5145, 1

</llo_original>
